<compile_context>
chip_gen: v6e
topology: v6e:2x2x1
jax: 0.10.0
libtpu: 0.0.40
codegen_flags: <defaults>
</compile_context>

<pallas_src>
import functools

import jax
import jax.numpy as jnp
from jax.experimental import pallas as pl
from jax.experimental.pallas import tpu as pltpu


# ----------------------------------------------------------------------------
# Fused layer kernel: im2col + matmul + bias + activation (+ BatchNorm)
# ----------------------------------------------------------------------------

def _fused_layer_kernel(xp_ref, w_ref, aff_ref, o_ref, patches_ref, *,
                        N, OH, OW, Cin, K, act, do_bn, eps):
    """One full ConvTranspose2d layer on a zero-dilated, padded NHWC input.

    xp_ref      : (N, Hp, Wp, Cin)      dilated + padded input, whole block in VMEM
    w_ref       : (K*K*Cin, Cout)       flipped transposed-conv weights as a matmul
    aff_ref     : (3, Cout)             rows = [bias, gamma, beta]
    o_ref       : (M, Cout)             M = N*OH*OW, channels-last flat output
    patches_ref : (M, K*K*Cin) scratch  lane-dense im2col slab (K*K*Cin == 128 here)
    """
    M = N * OH * OW

    # ---- in-kernel im2col: K*K shifted windows -> lane-dense patch slab -----
    # (OW is a multiple of 8 for these configs, so the collapse (N,OH,OW,Cin) ->
    #  (M,Cin) is tile-aligned and cheap.)
    for kh in range(K):
        for kw in range(K):
            idx = kh * K + kw
            win = xp_ref[:, kh:kh + OH, kw:kw + OW, :]          # (N, OH, OW, Cin)
            patches_ref[:, idx * Cin:(idx + 1) * Cin] = win.reshape(M, Cin)

    # ---- single MXU matmul + fused epilogue ---------------------------------
    y = jnp.dot(patches_ref[...], w_ref[...], preferred_element_type=jnp.float32)
    y = y + aff_ref[0:1, :]                                     # bias

    if act == "relu":
        y = jnp.maximum(y, 0.0)
    elif act == "tanh":
        y = jnp.tanh(y)

    if do_bn:
        # Training-mode BatchNorm2d over the (M, Cout) slab:
        # per-channel (column) batch mean and *biased* variance, eps=1e-5, affine.
        mean = jnp.sum(y, axis=0, keepdims=True) * (1.0 / M)
        yc = y - mean
        var = jnp.sum(yc * yc, axis=0, keepdims=True) * (1.0 / M)
        y = yc * jax.lax.rsqrt(var + eps) * aff_ref[1:2, :] + aff_ref[2:3, :]

    o_ref[...] = y


def fused_deconv_layer(x_nhwc, w, b, gamma, beta, stride, pad, act, do_bn, eps=1e-5):
    """ConvTranspose2d(Cin, Cout, K, stride, pad) + act (+ BatchNorm) in one pallas_call.

    x_nhwc : (N, H, W, Cin) float32
    w      : PyTorch layout (Cin, Cout, K, K); b/gamma/beta: (Cout,)
    Returns (flat (N*OH*OW, Cout) output, (N, OH, OW, Cout)).
    """
    N, H, W, Cin = x_nhwc.shape
    _, Cout, K, _ = w.shape
    OH = (H - 1) * stride - 2 * pad + K
    OW = (W - 1) * stride - 2 * pad + K
    M = N * OH * OW
    pe = K - 1 - pad

    # Single XLA glue op: stride zero-dilation + edge padding in one lax.pad.
    xp = jax.lax.pad(
        x_nhwc, jnp.zeros((), x_nhwc.dtype),
        [(0, 0, 0), (pe, pe, stride - 1), (pe, pe, stride - 1), (0, 0, 0)])
    Hp, Wp = xp.shape[1], xp.shape[2]

    # Transposed-conv weight -> equivalent cross-correlation weight (flipped kernel),
    # laid out to match the (kh, kw, ci) patch-column ordering.  Constant-folded by XLA.
    wf = w[:, :, ::-1, ::-1]                                          # (Cin, Cout, K, K)
    wm = jnp.transpose(wf, (2, 3, 0, 1)).reshape(K * K * Cin, Cout)   # (K*K*Cin, Cout)
    aff = jnp.stack([b, gamma, beta], axis=0)                         # (3, Cout)

    kernel = functools.partial(
        _fused_layer_kernel,
        N=N, OH=OH, OW=OW, Cin=Cin, K=K, act=act, do_bn=do_bn, eps=eps)

    y = pl.pallas_call(
        kernel,
        out_shape=jax.ShapeDtypeStruct((M, Cout), jnp.float32),
        grid_spec=pltpu.PrefetchScalarGridSpec(
            num_scalar_prefetch=0,
            grid=(1,),                                   # single step: whole slab fits VMEM
            in_specs=[
                pl.BlockSpec((N, Hp, Wp, Cin), lambda i: (0, 0, 0, 0)),
                pl.BlockSpec((K * K * Cin, Cout), lambda i: (0, 0)),
                pl.BlockSpec((3, Cout), lambda i: (0, 0)),
            ],
            out_specs=pl.BlockSpec((M, Cout), lambda i: (0, 0)),
            scratch_shapes=[pltpu.VMEM((M, K * K * Cin), jnp.float32)],
        ),
        compiler_params=pltpu.CompilerParams(dimension_semantics=("arbitrary",)),
    )(xp, wm, aff)
    return y, (N, OH, OW, Cout)


# ----------------------------------------------------------------------------
# Generator (Pallas) and pure-JAX reference
# ----------------------------------------------------------------------------

CONFIG = {
    "CycleGAN": {
        "Generator": {
            # each entry: (in_channels, out_channels, kernel, stride, padding)
            "layers": [(8, 8, 4, 2, 1), (8, 4, 4, 2, 1)],
            "initial_size": (8, 4, 4),     # (C0, H0, W0)
            "intermediate_activations": "relu",
            "final_activation": "tanh",
        }
    }
}


def init_params(key, config):
    layers = config["CycleGAN"]["Generator"]["layers"]
    params = []
    for (cin, cout, k, _s, _p) in layers:
        key, kw_, kb_, kg_, kbeta_ = jax.random.split(key, 5)
        params.append({
            "w": 0.1 * jax.random.normal(kw_, (cin, cout, k, k), jnp.float32),
            "b": 0.05 * jax.random.normal(kb_, (cout,), jnp.float32),
            "gamma": 1.0 + 0.1 * jax.random.normal(kg_, (cout,), jnp.float32),
            "beta": 0.1 * jax.random.normal(kbeta_, (cout,), jnp.float32),
        })
    return params


def generator_forward(z, params, config):
    gcfg = config["CycleGAN"]["Generator"]
    layers = gcfg["layers"]
    C0, H0, W0 = gcfg["initial_size"]
    N = z.shape[0]
    # z.view(N, *initial_size) is channel-first; convert to NHWC once at the start.
    x = jnp.transpose(z.reshape(N, C0, H0, W0), (0, 2, 3, 1))
    for i, (cfg, p) in enumerate(zip(layers, params)):
        _cin, cout, _k, s, pad = cfg
        last = i == len(layers) - 1
        act = gcfg["final_activation"] if last else gcfg["intermediate_activations"]
        y_flat, (n, oh, ow, _) = fused_deconv_layer(
            x, p["w"], p["b"], p["gamma"], p["beta"], s, pad, act, do_bn=not last)
        x = y_flat.reshape(n, oh, ow, cout)            # stay channels-last between layers
    return jnp.transpose(x, (0, 3, 1, 2))              # NHWC -> NCHW once at the end


def generator_ref(z, params, config):
    """Pure-JAX reference (lax conv with lhs_dilation) for validation."""
    gcfg = config["CycleGAN"]["Generator"]
    layers = gcfg["layers"]
    C0, H0, W0 = gcfg["initial_size"]
    x = z.reshape(z.shape[0], C0, H0, W0)
    for i, (cfg, p) in enumerate(zip(layers, params)):
        _cin, cout, k, s, pad = cfg
        wf = p["w"][:, :, ::-1, ::-1]                 # flip spatial
        wc = jnp.transpose(wf, (1, 0, 2, 3))          # (Cout, Cin, K, K) OIHW
        y = jax.lax.conv_general_dilated(
            x, wc, window_strides=(1, 1),
            padding=[(k - 1 - pad, k - 1 - pad)] * 2,
            lhs_dilation=(s, s),
            dimension_numbers=("NCHW", "OIHW", "NCHW"))
        y = y + p["b"].reshape(1, cout, 1, 1)
        if i != len(layers) - 1:
            y = jnp.maximum(y, 0.0)
            mean = y.mean(axis=(0, 2, 3), keepdims=True)
            var = ((y - mean) ** 2).mean(axis=(0, 2, 3), keepdims=True)
            y = (y - mean) * jax.lax.rsqrt(var + 1e-5)
            y = y * p["gamma"].reshape(1, cout, 1, 1) + p["beta"].reshape(1, cout, 1, 1)
        else:
            y = jnp.tanh(y)
        x = y
    return x


if __name__ == "__main__":
    key = jax.random.PRNGKey(0)
    kz, kp = jax.random.split(key)

    gcfg = CONFIG["CycleGAN"]["Generator"]
    C0, H0, W0 = gcfg["initial_size"]
    N = 2
    z = jax.random.normal(kz, (N, C0 * H0 * W0), jnp.float32)   # (2, 128)
    params = init_params(kp, CONFIG)

    out = jax.jit(lambda zz: generator_forward(zz, params, CONFIG))(z)
    out = jax.block_until_ready(out)

    ref = jax.block_until_ready(generator_ref(z, params, CONFIG))
    assert out.shape == (N, gcfg["layers"][-1][1], 16, 16), out.shape
    assert bool(jnp.all(jnp.isfinite(out)))
    assert bool(jnp.allclose(out, ref, atol=2e-2, rtol=2e-2)), \
        float(jnp.max(jnp.abs(out - ref)))

    print("KERNEL_OK")
</pallas_src>

<mosaic_0001>
module attributes {stable_mosaic.version = 11 : i64} {
  func.func @_fused_layer_kernel(%arg0: i32, %arg1: memref<2x11x11x8xf32, #tpu.memory_space<vmem>>, %arg2: memref<128x8xf32, #tpu.memory_space<vmem>>, %arg3: memref<3x8xf32, #tpu.memory_space<vmem>>, %arg4: memref<128x8xf32, #tpu.memory_space<vmem>>, %arg5: memref<128x128xf32, #tpu.memory_space<vmem>>) attributes {dimension_semantics = [#tpu.dimension_semantics<arbitrary>], iteration_bounds = array<i64: 1>, scalar_prefetch = 0 : i64, scratch_operands = 1 : i64, tpu.core_type = #tpu.core_type<tc>, window_params = [{pipeline_mode = #tpu.pipeline_mode<synchronous>, transform_indices = @transform_0, window_bounds = array<i64: 2, 11, 11, 8>}, {pipeline_mode = #tpu.pipeline_mode<synchronous>, transform_indices = @transform_1, window_bounds = array<i64: 128, 8>}, {pipeline_mode = #tpu.pipeline_mode<synchronous>, transform_indices = @transform_2, window_bounds = array<i64: 3, 8>}, {pipeline_mode = #tpu.pipeline_mode<synchronous>, transform_indices = @transform_3, window_bounds = array<i64: 128, 8>}]} {
    %c0 = arith.constant 0 : index
    %c0_0 = arith.constant 0 : index
    %c0_1 = arith.constant 0 : index
    %c0_2 = arith.constant 0 : index
    %0 = vector.load %arg1[%c0, %c0_0, %c0_1, %c0_2] : memref<2x11x11x8xf32, #tpu.memory_space<vmem>>, vector<2x8x8x8xf32>
    %1 = vector.shape_cast %0 : vector<2x8x8x8xf32> to vector<128x8xf32>
    %c0_3 = arith.constant 0 : index
    %c0_4 = arith.constant 0 : index
    %2 = vector.load %arg5[%c0_3, %c0_4] : memref<128x128xf32, #tpu.memory_space<vmem>>, vector<128x8xf32>
    tpu.vector_store %arg5[%c0_3, %c0_4], %1 {strides = array<i32>} : memref<128x128xf32, #tpu.memory_space<vmem>>, vector<128x8xf32>,
    %c0_5 = arith.constant 0 : index
    %c0_6 = arith.constant 0 : index
    %c1 = arith.constant 1 : index
    %c0_7 = arith.constant 0 : index
    %3 = vector.load %arg1[%c0_5, %c0_6, %c1, %c0_7] : memref<2x11x11x8xf32, #tpu.memory_space<vmem>>, vector<2x8x8x8xf32>
    %4 = vector.shape_cast %3 : vector<2x8x8x8xf32> to vector<128x8xf32>
    %c0_8 = arith.constant 0 : index
    %c8 = arith.constant 8 : index
    %5 = vector.load %arg5[%c0_8, %c8] : memref<128x128xf32, #tpu.memory_space<vmem>>, vector<128x8xf32>
    tpu.vector_store %arg5[%c0_8, %c8], %4 {strides = array<i32>} : memref<128x128xf32, #tpu.memory_space<vmem>>, vector<128x8xf32>,
    %c0_9 = arith.constant 0 : index
    %c0_10 = arith.constant 0 : index
    %c2 = arith.constant 2 : index
    %c0_11 = arith.constant 0 : index
    %6 = vector.load %arg1[%c0_9, %c0_10, %c2, %c0_11] : memref<2x11x11x8xf32, #tpu.memory_space<vmem>>, vector<2x8x8x8xf32>
    %7 = vector.shape_cast %6 : vector<2x8x8x8xf32> to vector<128x8xf32>
    %c0_12 = arith.constant 0 : index
    %c16 = arith.constant 16 : index
    %8 = vector.load %arg5[%c0_12, %c16] : memref<128x128xf32, #tpu.memory_space<vmem>>, vector<128x8xf32>
    tpu.vector_store %arg5[%c0_12, %c16], %7 {strides = array<i32>} : memref<128x128xf32, #tpu.memory_space<vmem>>, vector<128x8xf32>,
    %c0_13 = arith.constant 0 : index
    %c0_14 = arith.constant 0 : index
    %c3 = arith.constant 3 : index
    %c0_15 = arith.constant 0 : index
    %9 = vector.load %arg1[%c0_13, %c0_14, %c3, %c0_15] : memref<2x11x11x8xf32, #tpu.memory_space<vmem>>, vector<2x8x8x8xf32>
    %10 = vector.shape_cast %9 : vector<2x8x8x8xf32> to vector<128x8xf32>
    %c0_16 = arith.constant 0 : index
    %c24 = arith.constant 24 : index
    %11 = vector.load %arg5[%c0_16, %c24] : memref<128x128xf32, #tpu.memory_space<vmem>>, vector<128x8xf32>
    tpu.vector_store %arg5[%c0_16, %c24], %10 {strides = array<i32>} : memref<128x128xf32, #tpu.memory_space<vmem>>, vector<128x8xf32>,
    %c0_17 = arith.constant 0 : index
    %c1_18 = arith.constant 1 : index
    %c0_19 = arith.constant 0 : index
    %c0_20 = arith.constant 0 : index
    %12 = vector.load %arg1[%c0_17, %c1_18, %c0_19, %c0_20] : memref<2x11x11x8xf32, #tpu.memory_space<vmem>>, vector<2x8x8x8xf32>
    %13 = vector.shape_cast %12 : vector<2x8x8x8xf32> to vector<128x8xf32>
    %c0_21 = arith.constant 0 : index
    %c32 = arith.constant 32 : index
    %14 = vector.load %arg5[%c0_21, %c32] : memref<128x128xf32, #tpu.memory_space<vmem>>, vector<128x8xf32>
    tpu.vector_store %arg5[%c0_21, %c32], %13 {strides = array<i32>} : memref<128x128xf32, #tpu.memory_space<vmem>>, vector<128x8xf32>,
    %c0_22 = arith.constant 0 : index
    %c1_23 = arith.constant 1 : index
    %c1_24 = arith.constant 1 : index
    %c0_25 = arith.constant 0 : index
    %15 = vector.load %arg1[%c0_22, %c1_23, %c1_24, %c0_25] : memref<2x11x11x8xf32, #tpu.memory_space<vmem>>, vector<2x8x8x8xf32>
    %16 = vector.shape_cast %15 : vector<2x8x8x8xf32> to vector<128x8xf32>
    %c0_26 = arith.constant 0 : index
    %c40 = arith.constant 40 : index
    %17 = vector.load %arg5[%c0_26, %c40] : memref<128x128xf32, #tpu.memory_space<vmem>>, vector<128x8xf32>
    tpu.vector_store %arg5[%c0_26, %c40], %16 {strides = array<i32>} : memref<128x128xf32, #tpu.memory_space<vmem>>, vector<128x8xf32>,
    %c0_27 = arith.constant 0 : index
    %c1_28 = arith.constant 1 : index
    %c2_29 = arith.constant 2 : index
    %c0_30 = arith.constant 0 : index
    %18 = vector.load %arg1[%c0_27, %c1_28, %c2_29, %c0_30] : memref<2x11x11x8xf32, #tpu.memory_space<vmem>>, vector<2x8x8x8xf32>
    %19 = vector.shape_cast %18 : vector<2x8x8x8xf32> to vector<128x8xf32>
    %c0_31 = arith.constant 0 : index
    %c48 = arith.constant 48 : index
    %20 = vector.load %arg5[%c0_31, %c48] : memref<128x128xf32, #tpu.memory_space<vmem>>, vector<128x8xf32>
    tpu.vector_store %arg5[%c0_31, %c48], %19 {strides = array<i32>} : memref<128x128xf32, #tpu.memory_space<vmem>>, vector<128x8xf32>,
    %c0_32 = arith.constant 0 : index
    %c1_33 = arith.constant 1 : index
    %c3_34 = arith.constant 3 : index
    %c0_35 = arith.constant 0 : index
    %21 = vector.load %arg1[%c0_32, %c1_33, %c3_34, %c0_35] : memref<2x11x11x8xf32, #tpu.memory_space<vmem>>, vector<2x8x8x8xf32>
    %22 = vector.shape_cast %21 : vector<2x8x8x8xf32> to vector<128x8xf32>
    %c0_36 = arith.constant 0 : index
    %c56 = arith.constant 56 : index
    %23 = vector.load %arg5[%c0_36, %c56] : memref<128x128xf32, #tpu.memory_space<vmem>>, vector<128x8xf32>
    tpu.vector_store %arg5[%c0_36, %c56], %22 {strides = array<i32>} : memref<128x128xf32, #tpu.memory_space<vmem>>, vector<128x8xf32>,
    %c0_37 = arith.constant 0 : index
    %c2_38 = arith.constant 2 : index
    %c0_39 = arith.constant 0 : index
    %c0_40 = arith.constant 0 : index
    %24 = vector.load %arg1[%c0_37, %c2_38, %c0_39, %c0_40] : memref<2x11x11x8xf32, #tpu.memory_space<vmem>>, vector<2x8x8x8xf32>
    %25 = vector.shape_cast %24 : vector<2x8x8x8xf32> to vector<128x8xf32>
    %c0_41 = arith.constant 0 : index
    %c64 = arith.constant 64 : index
    %26 = vector.load %arg5[%c0_41, %c64] : memref<128x128xf32, #tpu.memory_space<vmem>>, vector<128x8xf32>
    tpu.vector_store %arg5[%c0_41, %c64], %25 {strides = array<i32>} : memref<128x128xf32, #tpu.memory_space<vmem>>, vector<128x8xf32>,
    %c0_42 = arith.constant 0 : index
    %c2_43 = arith.constant 2 : index
    %c1_44 = arith.constant 1 : index
    %c0_45 = arith.constant 0 : index
    %27 = vector.load %arg1[%c0_42, %c2_43, %c1_44, %c0_45] : memref<2x11x11x8xf32, #tpu.memory_space<vmem>>, vector<2x8x8x8xf32>
    %28 = vector.shape_cast %27 : vector<2x8x8x8xf32> to vector<128x8xf32>
    %c0_46 = arith.constant 0 : index
    %c72 = arith.constant 72 : index
    %29 = vector.load %arg5[%c0_46, %c72] : memref<128x128xf32, #tpu.memory_space<vmem>>, vector<128x8xf32>
    tpu.vector_store %arg5[%c0_46, %c72], %28 {strides = array<i32>} : memref<128x128xf32, #tpu.memory_space<vmem>>, vector<128x8xf32>,
    %c0_47 = arith.constant 0 : index
    %c2_48 = arith.constant 2 : index
    %c2_49 = arith.constant 2 : index
    %c0_50 = arith.constant 0 : index
    %30 = vector.load %arg1[%c0_47, %c2_48, %c2_49, %c0_50] : memref<2x11x11x8xf32, #tpu.memory_space<vmem>>, vector<2x8x8x8xf32>
    %31 = vector.shape_cast %30 : vector<2x8x8x8xf32> to vector<128x8xf32>
    %c0_51 = arith.constant 0 : index
    %c80 = arith.constant 80 : index
    %32 = vector.load %arg5[%c0_51, %c80] : memref<128x128xf32, #tpu.memory_space<vmem>>, vector<128x8xf32>
    tpu.vector_store %arg5[%c0_51, %c80], %31 {strides = array<i32>} : memref<128x128xf32, #tpu.memory_space<vmem>>, vector<128x8xf32>,
    %c0_52 = arith.constant 0 : index
    %c2_53 = arith.constant 2 : index
    %c3_54 = arith.constant 3 : index
    %c0_55 = arith.constant 0 : index
    %33 = vector.load %arg1[%c0_52, %c2_53, %c3_54, %c0_55] : memref<2x11x11x8xf32, #tpu.memory_space<vmem>>, vector<2x8x8x8xf32>
    %34 = vector.shape_cast %33 : vector<2x8x8x8xf32> to vector<128x8xf32>
    %c0_56 = arith.constant 0 : index
    %c88 = arith.constant 88 : index
    %35 = vector.load %arg5[%c0_56, %c88] : memref<128x128xf32, #tpu.memory_space<vmem>>, vector<128x8xf32>
    tpu.vector_store %arg5[%c0_56, %c88], %34 {strides = array<i32>} : memref<128x128xf32, #tpu.memory_space<vmem>>, vector<128x8xf32>,
    %c0_57 = arith.constant 0 : index
    %c3_58 = arith.constant 3 : index
    %c0_59 = arith.constant 0 : index
    %c0_60 = arith.constant 0 : index
    %36 = vector.load %arg1[%c0_57, %c3_58, %c0_59, %c0_60] : memref<2x11x11x8xf32, #tpu.memory_space<vmem>>, vector<2x8x8x8xf32>
    %37 = vector.shape_cast %36 : vector<2x8x8x8xf32> to vector<128x8xf32>
    %c0_61 = arith.constant 0 : index
    %c96 = arith.constant 96 : index
    %38 = vector.load %arg5[%c0_61, %c96] : memref<128x128xf32, #tpu.memory_space<vmem>>, vector<128x8xf32>
    tpu.vector_store %arg5[%c0_61, %c96], %37 {strides = array<i32>} : memref<128x128xf32, #tpu.memory_space<vmem>>, vector<128x8xf32>,
    %c0_62 = arith.constant 0 : index
    %c3_63 = arith.constant 3 : index
    %c1_64 = arith.constant 1 : index
    %c0_65 = arith.constant 0 : index
    %39 = vector.load %arg1[%c0_62, %c3_63, %c1_64, %c0_65] : memref<2x11x11x8xf32, #tpu.memory_space<vmem>>, vector<2x8x8x8xf32>
    %40 = vector.shape_cast %39 : vector<2x8x8x8xf32> to vector<128x8xf32>
    %c0_66 = arith.constant 0 : index
    %c104 = arith.constant 104 : index
    %41 = vector.load %arg5[%c0_66, %c104] : memref<128x128xf32, #tpu.memory_space<vmem>>, vector<128x8xf32>
    tpu.vector_store %arg5[%c0_66, %c104], %40 {strides = array<i32>} : memref<128x128xf32, #tpu.memory_space<vmem>>, vector<128x8xf32>,
    %c0_67 = arith.constant 0 : index
    %c3_68 = arith.constant 3 : index
    %c2_69 = arith.constant 2 : index
    %c0_70 = arith.constant 0 : index
    %42 = vector.load %arg1[%c0_67, %c3_68, %c2_69, %c0_70] : memref<2x11x11x8xf32, #tpu.memory_space<vmem>>, vector<2x8x8x8xf32>
    %43 = vector.shape_cast %42 : vector<2x8x8x8xf32> to vector<128x8xf32>
    %c0_71 = arith.constant 0 : index
    %c112 = arith.constant 112 : index
    %44 = vector.load %arg5[%c0_71, %c112] : memref<128x128xf32, #tpu.memory_space<vmem>>, vector<128x8xf32>
    tpu.vector_store %arg5[%c0_71, %c112], %43 {strides = array<i32>} : memref<128x128xf32, #tpu.memory_space<vmem>>, vector<128x8xf32>,
    %c0_72 = arith.constant 0 : index
    %c3_73 = arith.constant 3 : index
    %c3_74 = arith.constant 3 : index
    %c0_75 = arith.constant 0 : index
    %45 = vector.load %arg1[%c0_72, %c3_73, %c3_74, %c0_75] : memref<2x11x11x8xf32, #tpu.memory_space<vmem>>, vector<2x8x8x8xf32>
    %46 = vector.shape_cast %45 : vector<2x8x8x8xf32> to vector<128x8xf32>
    %c0_76 = arith.constant 0 : index
    %c120 = arith.constant 120 : index
    %47 = vector.load %arg5[%c0_76, %c120] : memref<128x128xf32, #tpu.memory_space<vmem>>, vector<128x8xf32>
    tpu.vector_store %arg5[%c0_76, %c120], %46 {strides = array<i32>} : memref<128x128xf32, #tpu.memory_space<vmem>>, vector<128x8xf32>,
    %c0_77 = arith.constant 0 : index
    %c0_78 = arith.constant 0 : index
    %48 = vector.load %arg5[%c0_77, %c0_78] : memref<128x128xf32, #tpu.memory_space<vmem>>, vector<128x128xf32>
    %c0_79 = arith.constant 0 : index
    %c0_80 = arith.constant 0 : index
    %49 = vector.load %arg2[%c0_79, %c0_80] : memref<128x8xf32, #tpu.memory_space<vmem>>, vector<128x8xf32>
    %cst = arith.constant dense<0.000000e+00> : vector<128x8xf32>
    %50 = tpu.matmul %48, %49, %cst {dimension_numbers = #tpu.dot_dimension_numbers<[1], [0], [0], [1], [0, 0, 1, 1], [], []>} : vector<128x128xf32>, vector<128x8xf32>, vector<128x8xf32> -> vector<128x8xf32>
    %c0_81 = arith.constant 0 : index
    %c0_82 = arith.constant 0 : index
    %51 = vector.load %arg3[%c0_81, %c0_82] : memref<3x8xf32, #tpu.memory_space<vmem>>, vector<1x8xf32>
    %52 = vector.broadcast %51 : vector<1x8xf32> to vector<128x8xf32>
    %53 = arith.addf %50, %52 : vector<128x8xf32>
    %cst_83 = arith.constant 0.000000e+00 : f32
    %54 = vector.broadcast %cst_83 : f32 to vector<128x8xf32>
    %55 = arith.maximumf %53, %54 : vector<128x8xf32>
    %cst_84 = arith.constant dense<0.000000e+00> : vector<8xf32>
    %56 = vector.multi_reduction <add>, %55, %cst_84 [0] : vector<128x8xf32> to vector<8xf32>
    %57 = vector.shape_cast %56 : vector<8xf32> to vector<1x8xf32>
    %cst_85 = arith.constant 7.812500e-03 : f32
    %58 = vector.broadcast %cst_85 : f32 to vector<1x8xf32>
    %59 = arith.mulf %57, %58 : vector<1x8xf32>
    %60 = vector.broadcast %59 : vector<1x8xf32> to vector<128x8xf32>
    %61 = arith.subf %55, %60 : vector<128x8xf32>
    %62 = arith.mulf %61, %61 : vector<128x8xf32>
    %cst_86 = arith.constant dense<0.000000e+00> : vector<8xf32>
    %63 = vector.multi_reduction <add>, %62, %cst_86 [0] : vector<128x8xf32> to vector<8xf32>
    %64 = vector.shape_cast %63 : vector<8xf32> to vector<1x8xf32>
    %cst_87 = arith.constant 7.812500e-03 : f32
    %65 = vector.broadcast %cst_87 : f32 to vector<1x8xf32>
    %66 = arith.mulf %64, %65 : vector<1x8xf32>
    %cst_88 = arith.constant 9.99999974E-6 : f32
    %67 = vector.broadcast %cst_88 : f32 to vector<1x8xf32>
    %68 = arith.addf %66, %67 : vector<1x8xf32>
    %69 = math.rsqrt %68 : vector<1x8xf32>
    %70 = vector.broadcast %69 : vector<1x8xf32> to vector<128x8xf32>
    %71 = arith.mulf %61, %70 : vector<128x8xf32>
    %c1_89 = arith.constant 1 : index
    %c0_90 = arith.constant 0 : index
    %72 = vector.load %arg3[%c1_89, %c0_90] : memref<3x8xf32, #tpu.memory_space<vmem>>, vector<1x8xf32>
    %73 = vector.broadcast %72 : vector<1x8xf32> to vector<128x8xf32>
    %74 = arith.mulf %71, %73 : vector<128x8xf32>
    %c2_91 = arith.constant 2 : index
    %c0_92 = arith.constant 0 : index
    %75 = vector.load %arg3[%c2_91, %c0_92] : memref<3x8xf32, #tpu.memory_space<vmem>>, vector<1x8xf32>
    %76 = vector.broadcast %75 : vector<1x8xf32> to vector<128x8xf32>
    %77 = arith.addf %74, %76 : vector<128x8xf32>
    %c0_93 = arith.constant 0 : index
    %c0_94 = arith.constant 0 : index
    %78 = vector.load %arg4[%c0_93, %c0_94] : memref<128x8xf32, #tpu.memory_space<vmem>>, vector<128x8xf32>
    tpu.vector_store %arg4[%c0_93, %c0_94], %77 {strides = array<i32>} : memref<128x8xf32, #tpu.memory_space<vmem>>, vector<128x8xf32>,
    return
  }
  func.func @transform_0(%arg0: i32) -> (i32, i32, i32, i32) {
    %c0_i32 = arith.constant 0 : i32
    %c0_i32_0 = arith.constant 0 : i32
    %c0_i32_1 = arith.constant 0 : i32
    %c0_i32_2 = arith.constant 0 : i32
    %c0_i32_3 = arith.constant 0 : i32
    return %c0_i32, %c0_i32_0, %c0_i32_1, %c0_i32_2 : i32, i32, i32, i32
  }
  func.func @transform_1(%arg0: i32) -> (i32, i32) {
    %c0_i32 = arith.constant 0 : i32
    %c0_i32_0 = arith.constant 0 : i32
    %c0_i32_1 = arith.constant 0 : i32
    return %c0_i32, %c0_i32_0 : i32, i32
  }
  func.func @transform_2(%arg0: i32) -> (i32, i32) {
    %c0_i32 = arith.constant 0 : i32
    %c0_i32_0 = arith.constant 0 : i32
    %c0_i32_1 = arith.constant 0 : i32
    return %c0_i32, %c0_i32_0 : i32, i32
  }
  func.func @transform_3(%arg0: i32) -> (i32, i32) {
    %c0_i32 = arith.constant 0 : i32
    %c0_i32_0 = arith.constant 0 : i32
    %c0_i32_1 = arith.constant 0 : i32
    return %c0_i32, %c0_i32_0 : i32, i32
  }
}

module attributes {stable_mosaic.version = 11 : i64} {
  func.func @_fused_layer_kernel(%arg0: i32, %arg1: memref<2x19x19x8xf32, #tpu.memory_space<vmem>>, %arg2: memref<128x4xf32, #tpu.memory_space<vmem>>, %arg3: memref<3x4xf32, #tpu.memory_space<vmem>>, %arg4: memref<512x4xf32, #tpu.memory_space<vmem>>, %arg5: memref<512x128xf32, #tpu.memory_space<vmem>>) attributes {dimension_semantics = [#tpu.dimension_semantics<arbitrary>], iteration_bounds = array<i64: 1>, scalar_prefetch = 0 : i64, scratch_operands = 1 : i64, tpu.core_type = #tpu.core_type<tc>, window_params = [{pipeline_mode = #tpu.pipeline_mode<synchronous>, transform_indices = @transform_0, window_bounds = array<i64: 2, 19, 19, 8>}, {pipeline_mode = #tpu.pipeline_mode<synchronous>, transform_indices = @transform_1, window_bounds = array<i64: 128, 4>}, {pipeline_mode = #tpu.pipeline_mode<synchronous>, transform_indices = @transform_2, window_bounds = array<i64: 3, 4>}, {pipeline_mode = #tpu.pipeline_mode<synchronous>, transform_indices = @transform_3, window_bounds = array<i64: 512, 4>}]} {
    %c0 = arith.constant 0 : index
    %c0_0 = arith.constant 0 : index
    %c0_1 = arith.constant 0 : index
    %c0_2 = arith.constant 0 : index
    %0 = vector.load %arg1[%c0, %c0_0, %c0_1, %c0_2] : memref<2x19x19x8xf32, #tpu.memory_space<vmem>>, vector<2x16x16x8xf32>
    %1 = vector.shape_cast %0 : vector<2x16x16x8xf32> to vector<512x8xf32>
    %c0_3 = arith.constant 0 : index
    %c0_4 = arith.constant 0 : index
    %2 = vector.load %arg5[%c0_3, %c0_4] : memref<512x128xf32, #tpu.memory_space<vmem>>, vector<512x8xf32>
    tpu.vector_store %arg5[%c0_3, %c0_4], %1 {strides = array<i32>} : memref<512x128xf32, #tpu.memory_space<vmem>>, vector<512x8xf32>,
    %c0_5 = arith.constant 0 : index
    %c0_6 = arith.constant 0 : index
    %c1 = arith.constant 1 : index
    %c0_7 = arith.constant 0 : index
    %3 = vector.load %arg1[%c0_5, %c0_6, %c1, %c0_7] : memref<2x19x19x8xf32, #tpu.memory_space<vmem>>, vector<2x16x16x8xf32>
    %4 = vector.shape_cast %3 : vector<2x16x16x8xf32> to vector<512x8xf32>
    %c0_8 = arith.constant 0 : index
    %c8 = arith.constant 8 : index
    %5 = vector.load %arg5[%c0_8, %c8] : memref<512x128xf32, #tpu.memory_space<vmem>>, vector<512x8xf32>
    tpu.vector_store %arg5[%c0_8, %c8], %4 {strides = array<i32>} : memref<512x128xf32, #tpu.memory_space<vmem>>, vector<512x8xf32>,
    %c0_9 = arith.constant 0 : index
    %c0_10 = arith.constant 0 : index
    %c2 = arith.constant 2 : index
    %c0_11 = arith.constant 0 : index
    %6 = vector.load %arg1[%c0_9, %c0_10, %c2, %c0_11] : memref<2x19x19x8xf32, #tpu.memory_space<vmem>>, vector<2x16x16x8xf32>
    %7 = vector.shape_cast %6 : vector<2x16x16x8xf32> to vector<512x8xf32>
    %c0_12 = arith.constant 0 : index
    %c16 = arith.constant 16 : index
    %8 = vector.load %arg5[%c0_12, %c16] : memref<512x128xf32, #tpu.memory_space<vmem>>, vector<512x8xf32>
    tpu.vector_store %arg5[%c0_12, %c16], %7 {strides = array<i32>} : memref<512x128xf32, #tpu.memory_space<vmem>>, vector<512x8xf32>,
    %c0_13 = arith.constant 0 : index
    %c0_14 = arith.constant 0 : index
    %c3 = arith.constant 3 : index
    %c0_15 = arith.constant 0 : index
    %9 = vector.load %arg1[%c0_13, %c0_14, %c3, %c0_15] : memref<2x19x19x8xf32, #tpu.memory_space<vmem>>, vector<2x16x16x8xf32>
    %10 = vector.shape_cast %9 : vector<2x16x16x8xf32> to vector<512x8xf32>
    %c0_16 = arith.constant 0 : index
    %c24 = arith.constant 24 : index
    %11 = vector.load %arg5[%c0_16, %c24] : memref<512x128xf32, #tpu.memory_space<vmem>>, vector<512x8xf32>
    tpu.vector_store %arg5[%c0_16, %c24], %10 {strides = array<i32>} : memref<512x128xf32, #tpu.memory_space<vmem>>, vector<512x8xf32>,
    %c0_17 = arith.constant 0 : index
    %c1_18 = arith.constant 1 : index
    %c0_19 = arith.constant 0 : index
    %c0_20 = arith.constant 0 : index
    %12 = vector.load %arg1[%c0_17, %c1_18, %c0_19, %c0_20] : memref<2x19x19x8xf32, #tpu.memory_space<vmem>>, vector<2x16x16x8xf32>
    %13 = vector.shape_cast %12 : vector<2x16x16x8xf32> to vector<512x8xf32>
    %c0_21 = arith.constant 0 : index
    %c32 = arith.constant 32 : index
    %14 = vector.load %arg5[%c0_21, %c32] : memref<512x128xf32, #tpu.memory_space<vmem>>, vector<512x8xf32>
    tpu.vector_store %arg5[%c0_21, %c32], %13 {strides = array<i32>} : memref<512x128xf32, #tpu.memory_space<vmem>>, vector<512x8xf32>,
    %c0_22 = arith.constant 0 : index
    %c1_23 = arith.constant 1 : index
    %c1_24 = arith.constant 1 : index
    %c0_25 = arith.constant 0 : index
    %15 = vector.load %arg1[%c0_22, %c1_23, %c1_24, %c0_25] : memref<2x19x19x8xf32, #tpu.memory_space<vmem>>, vector<2x16x16x8xf32>
    %16 = vector.shape_cast %15 : vector<2x16x16x8xf32> to vector<512x8xf32>
    %c0_26 = arith.constant 0 : index
    %c40 = arith.constant 40 : index
    %17 = vector.load %arg5[%c0_26, %c40] : memref<512x128xf32, #tpu.memory_space<vmem>>, vector<512x8xf32>
    tpu.vector_store %arg5[%c0_26, %c40], %16 {strides = array<i32>} : memref<512x128xf32, #tpu.memory_space<vmem>>, vector<512x8xf32>,
    %c0_27 = arith.constant 0 : index
    %c1_28 = arith.constant 1 : index
    %c2_29 = arith.constant 2 : index
    %c0_30 = arith.constant 0 : index
    %18 = vector.load %arg1[%c0_27, %c1_28, %c2_29, %c0_30] : memref<2x19x19x8xf32, #tpu.memory_space<vmem>>, vector<2x16x16x8xf32>
    %19 = vector.shape_cast %18 : vector<2x16x16x8xf32> to vector<512x8xf32>
    %c0_31 = arith.constant 0 : index
    %c48 = arith.constant 48 : index
    %20 = vector.load %arg5[%c0_31, %c48] : memref<512x128xf32, #tpu.memory_space<vmem>>, vector<512x8xf32>
    tpu.vector_store %arg5[%c0_31, %c48], %19 {strides = array<i32>} : memref<512x128xf32, #tpu.memory_space<vmem>>, vector<512x8xf32>,
    %c0_32 = arith.constant 0 : index
    %c1_33 = arith.constant 1 : index
    %c3_34 = arith.constant 3 : index
    %c0_35 = arith.constant 0 : index
    %21 = vector.load %arg1[%c0_32, %c1_33, %c3_34, %c0_35] : memref<2x19x19x8xf32, #tpu.memory_space<vmem>>, vector<2x16x16x8xf32>
    %22 = vector.shape_cast %21 : vector<2x16x16x8xf32> to vector<512x8xf32>
    %c0_36 = arith.constant 0 : index
    %c56 = arith.constant 56 : index
    %23 = vector.load %arg5[%c0_36, %c56] : memref<512x128xf32, #tpu.memory_space<vmem>>, vector<512x8xf32>
    tpu.vector_store %arg5[%c0_36, %c56], %22 {strides = array<i32>} : memref<512x128xf32, #tpu.memory_space<vmem>>, vector<512x8xf32>,
    %c0_37 = arith.constant 0 : index
    %c2_38 = arith.constant 2 : index
    %c0_39 = arith.constant 0 : index
    %c0_40 = arith.constant 0 : index
    %24 = vector.load %arg1[%c0_37, %c2_38, %c0_39, %c0_40] : memref<2x19x19x8xf32, #tpu.memory_space<vmem>>, vector<2x16x16x8xf32>
    %25 = vector.shape_cast %24 : vector<2x16x16x8xf32> to vector<512x8xf32>
    %c0_41 = arith.constant 0 : index
    %c64 = arith.constant 64 : index
    %26 = vector.load %arg5[%c0_41, %c64] : memref<512x128xf32, #tpu.memory_space<vmem>>, vector<512x8xf32>
    tpu.vector_store %arg5[%c0_41, %c64], %25 {strides = array<i32>} : memref<512x128xf32, #tpu.memory_space<vmem>>, vector<512x8xf32>,
    %c0_42 = arith.constant 0 : index
    %c2_43 = arith.constant 2 : index
    %c1_44 = arith.constant 1 : index
    %c0_45 = arith.constant 0 : index
    %27 = vector.load %arg1[%c0_42, %c2_43, %c1_44, %c0_45] : memref<2x19x19x8xf32, #tpu.memory_space<vmem>>, vector<2x16x16x8xf32>
    %28 = vector.shape_cast %27 : vector<2x16x16x8xf32> to vector<512x8xf32>
    %c0_46 = arith.constant 0 : index
    %c72 = arith.constant 72 : index
    %29 = vector.load %arg5[%c0_46, %c72] : memref<512x128xf32, #tpu.memory_space<vmem>>, vector<512x8xf32>
    tpu.vector_store %arg5[%c0_46, %c72], %28 {strides = array<i32>} : memref<512x128xf32, #tpu.memory_space<vmem>>, vector<512x8xf32>,
    %c0_47 = arith.constant 0 : index
    %c2_48 = arith.constant 2 : index
    %c2_49 = arith.constant 2 : index
    %c0_50 = arith.constant 0 : index
    %30 = vector.load %arg1[%c0_47, %c2_48, %c2_49, %c0_50] : memref<2x19x19x8xf32, #tpu.memory_space<vmem>>, vector<2x16x16x8xf32>
    %31 = vector.shape_cast %30 : vector<2x16x16x8xf32> to vector<512x8xf32>
    %c0_51 = arith.constant 0 : index
    %c80 = arith.constant 80 : index
    %32 = vector.load %arg5[%c0_51, %c80] : memref<512x128xf32, #tpu.memory_space<vmem>>, vector<512x8xf32>
    tpu.vector_store %arg5[%c0_51, %c80], %31 {strides = array<i32>} : memref<512x128xf32, #tpu.memory_space<vmem>>, vector<512x8xf32>,
    %c0_52 = arith.constant 0 : index
    %c2_53 = arith.constant 2 : index
    %c3_54 = arith.constant 3 : index
    %c0_55 = arith.constant 0 : index
    %33 = vector.load %arg1[%c0_52, %c2_53, %c3_54, %c0_55] : memref<2x19x19x8xf32, #tpu.memory_space<vmem>>, vector<2x16x16x8xf32>
    %34 = vector.shape_cast %33 : vector<2x16x16x8xf32> to vector<512x8xf32>
    %c0_56 = arith.constant 0 : index
    %c88 = arith.constant 88 : index
    %35 = vector.load %arg5[%c0_56, %c88] : memref<512x128xf32, #tpu.memory_space<vmem>>, vector<512x8xf32>
    tpu.vector_store %arg5[%c0_56, %c88], %34 {strides = array<i32>} : memref<512x128xf32, #tpu.memory_space<vmem>>, vector<512x8xf32>,
    %c0_57 = arith.constant 0 : index
    %c3_58 = arith.constant 3 : index
    %c0_59 = arith.constant 0 : index
    %c0_60 = arith.constant 0 : index
    %36 = vector.load %arg1[%c0_57, %c3_58, %c0_59, %c0_60] : memref<2x19x19x8xf32, #tpu.memory_space<vmem>>, vector<2x16x16x8xf32>
    %37 = vector.shape_cast %36 : vector<2x16x16x8xf32> to vector<512x8xf32>
    %c0_61 = arith.constant 0 : index
    %c96 = arith.constant 96 : index
    %38 = vector.load %arg5[%c0_61, %c96] : memref<512x128xf32, #tpu.memory_space<vmem>>, vector<512x8xf32>
    tpu.vector_store %arg5[%c0_61, %c96], %37 {strides = array<i32>} : memref<512x128xf32, #tpu.memory_space<vmem>>, vector<512x8xf32>,
    %c0_62 = arith.constant 0 : index
    %c3_63 = arith.constant 3 : index
    %c1_64 = arith.constant 1 : index
    %c0_65 = arith.constant 0 : index
    %39 = vector.load %arg1[%c0_62, %c3_63, %c1_64, %c0_65] : memref<2x19x19x8xf32, #tpu.memory_space<vmem>>, vector<2x16x16x8xf32>
    %40 = vector.shape_cast %39 : vector<2x16x16x8xf32> to vector<512x8xf32>
    %c0_66 = arith.constant 0 : index
    %c104 = arith.constant 104 : index
    %41 = vector.load %arg5[%c0_66, %c104] : memref<512x128xf32, #tpu.memory_space<vmem>>, vector<512x8xf32>
    tpu.vector_store %arg5[%c0_66, %c104], %40 {strides = array<i32>} : memref<512x128xf32, #tpu.memory_space<vmem>>, vector<512x8xf32>,
    %c0_67 = arith.constant 0 : index
    %c3_68 = arith.constant 3 : index
    %c2_69 = arith.constant 2 : index
    %c0_70 = arith.constant 0 : index
    %42 = vector.load %arg1[%c0_67, %c3_68, %c2_69, %c0_70] : memref<2x19x19x8xf32, #tpu.memory_space<vmem>>, vector<2x16x16x8xf32>
    %43 = vector.shape_cast %42 : vector<2x16x16x8xf32> to vector<512x8xf32>
    %c0_71 = arith.constant 0 : index
    %c112 = arith.constant 112 : index
    %44 = vector.load %arg5[%c0_71, %c112] : memref<512x128xf32, #tpu.memory_space<vmem>>, vector<512x8xf32>
    tpu.vector_store %arg5[%c0_71, %c112], %43 {strides = array<i32>} : memref<512x128xf32, #tpu.memory_space<vmem>>, vector<512x8xf32>,
    %c0_72 = arith.constant 0 : index
    %c3_73 = arith.constant 3 : index
    %c3_74 = arith.constant 3 : index
    %c0_75 = arith.constant 0 : index
    %45 = vector.load %arg1[%c0_72, %c3_73, %c3_74, %c0_75] : memref<2x19x19x8xf32, #tpu.memory_space<vmem>>, vector<2x16x16x8xf32>
    %46 = vector.shape_cast %45 : vector<2x16x16x8xf32> to vector<512x8xf32>
    %c0_76 = arith.constant 0 : index
    %c120 = arith.constant 120 : index
    %47 = vector.load %arg5[%c0_76, %c120] : memref<512x128xf32, #tpu.memory_space<vmem>>, vector<512x8xf32>
    tpu.vector_store %arg5[%c0_76, %c120], %46 {strides = array<i32>} : memref<512x128xf32, #tpu.memory_space<vmem>>, vector<512x8xf32>,
    %c0_77 = arith.constant 0 : index
    %c0_78 = arith.constant 0 : index
    %48 = vector.load %arg5[%c0_77, %c0_78] : memref<512x128xf32, #tpu.memory_space<vmem>>, vector<512x128xf32>
    %c0_79 = arith.constant 0 : index
    %c0_80 = arith.constant 0 : index
    %49 = vector.load %arg2[%c0_79, %c0_80] : memref<128x4xf32, #tpu.memory_space<vmem>>, vector<128x4xf32>
    %cst = arith.constant dense<0.000000e+00> : vector<512x4xf32>
    %50 = tpu.matmul %48, %49, %cst {dimension_numbers = #tpu.dot_dimension_numbers<[1], [0], [0], [1], [0, 0, 1, 1], [], []>} : vector<512x128xf32>, vector<128x4xf32>, vector<512x4xf32> -> vector<512x4xf32>
    %c0_81 = arith.constant 0 : index
    %c0_82 = arith.constant 0 : index
    %51 = vector.load %arg3[%c0_81, %c0_82] : memref<3x4xf32, #tpu.memory_space<vmem>>, vector<1x4xf32>
    %52 = vector.broadcast %51 : vector<1x4xf32> to vector<512x4xf32>
    %53 = arith.addf %50, %52 : vector<512x4xf32>
    %54 = math.tanh %53 : vector<512x4xf32>
    %c0_83 = arith.constant 0 : index
    %c0_84 = arith.constant 0 : index
    %55 = vector.load %arg4[%c0_83, %c0_84] : memref<512x4xf32, #tpu.memory_space<vmem>>, vector<512x4xf32>
    tpu.vector_store %arg4[%c0_83, %c0_84], %54 {strides = array<i32>} : memref<512x4xf32, #tpu.memory_space<vmem>>, vector<512x4xf32>,
    return
  }
  func.func @transform_0(%arg0: i32) -> (i32, i32, i32, i32) {
    %c0_i32 = arith.constant 0 : i32
    %c0_i32_0 = arith.constant 0 : i32
    %c0_i32_1 = arith.constant 0 : i32
    %c0_i32_2 = arith.constant 0 : i32
    %c0_i32_3 = arith.constant 0 : i32
    return %c0_i32, %c0_i32_0, %c0_i32_1, %c0_i32_2 : i32, i32, i32, i32
  }
  func.func @transform_1(%arg0: i32) -> (i32, i32) {
    %c0_i32 = arith.constant 0 : i32
    %c0_i32_0 = arith.constant 0 : i32
    %c0_i32_1 = arith.constant 0 : i32
    return %c0_i32, %c0_i32_0 : i32, i32
  }
  func.func @transform_2(%arg0: i32) -> (i32, i32) {
    %c0_i32 = arith.constant 0 : i32
    %c0_i32_0 = arith.constant 0 : i32
    %c0_i32_1 = arith.constant 0 : i32
    return %c0_i32, %c0_i32_0 : i32, i32
  }
  func.func @transform_3(%arg0: i32) -> (i32, i32) {
    %c0_i32 = arith.constant 0 : i32
    %c0_i32_0 = arith.constant 0 : i32
    %c0_i32_1 = arith.constant 0 : i32
    return %c0_i32, %c0_i32_0 : i32, i32
  }
}

</mosaic_0001>

<llo_original>
// kernel: _lambda_.2
$region0: #{_lambda_.2}
  #allocation0 [shape = 'u32[]', space=smem, size = 0x4, offset = 0x4, fixed_abs, tag = 'smem constant byte address 0x4 - core index']
  #allocation1 [shape = 'u32[144,128]{1,0:T(1,128)}', space=vmem, size = 0x12000, scoped, tag = 'internal scratch']
  #allocation2 [shape = 'f32[128,128]{1,0:T(8,128)}', space=vmem, size = 0x10000, scoped, tag = 'scratch operand']
  %s0 = inlined_call_operand.vmem [shape: f32[2,11,11,8], index: 0, kind: input, shape index: {}]
  %s1 = inlined_call_operand.vmem [shape: f32[128,8], index: 1, kind: input, shape index: {}]
  %s2 = inlined_call_operand.vmem [shape: f32[3,8], index: 2, kind: input, shape index: {}]
  %s3 = inlined_call_operand.vmem [shape: f32[128,8], index: 3, kind: output, shape index: {}]
  %s4 = sld [smem:[#allocation0]]
  $region22: #{_lambda_.2} parent=0
    _
  %s6 = ssub.s32 1, %s4
  %s7 = scalar_select 0, %s6, %s4
  // Predicated region
  $region2: #{_lambda_.2} parent=0 // pred_check
    _
  $region3: #{_lambda_.2} parent=0 // pred_check_branch
    %9 = sbr.rel (0) target = $region5
  $region4: #{_lambda_.2} parent=0 // pred_region
    _
  $region5: #{_lambda_.2} parent=0 // pred_fallthru
    _
  // Predicated region
  $region6: #{_lambda_.2} parent=0 // pred_check
    _
  $region7: #{_lambda_.2} parent=0 // pred_check_branch
    %11 = sbr.rel (0) target = $region9
  $region8: #{_lambda_.2} parent=0 // pred_region
    _
  $region9: #{_lambda_.2} parent=0 // pred_fallthru
    _
  // Predicated region
  $region10: #{_lambda_.2} parent=0 // pred_check
    _
  $region11: #{_lambda_.2} parent=0 // pred_check_branch
    %13 = sbr.rel (0) target = $region13
  $region12: #{_lambda_.2} parent=0 // pred_region
    _
  $region13: #{_lambda_.2} parent=0 // pred_fallthru
    _
  %v14 = vld [vmem:[%s0] sm:$0xff]
  %v15 = vld [vmem:[%s0 + $0x10] sm:$0xff]
  %v16 = vld [vmem:[%s0 + $0x20] sm:$0xff]
  %v17 = vld [vmem:[%s0 + $0x30] sm:$0xff]
  %v18 = vld [vmem:[%s0 + $0x40] sm:$0xff]
  %v19 = vld [vmem:[%s0 + $0x50] sm:$0xff]
  %v20 = vld [vmem:[%s0 + $0x60] sm:$0xff]
  %v21 = vld [vmem:[%s0 + $0x70] sm:$0xff]
  %v22 = vld [vmem:[%s0 + $0xb0] sm:$0xff]
  %v23 = vld [vmem:[%s0 + $0xc0] sm:$0xff]
  %v24 = vld [vmem:[%s0 + $0xd0] sm:$0xff]
  %v25 = vld [vmem:[%s0 + $0xe0] sm:$0xff]
  %v26 = vld [vmem:[%s0 + $0xf0] sm:$0xff]
  %v27 = vld [vmem:[%s0 + $0x100] sm:$0xff]
  %v28 = vld [vmem:[%s0 + $0x110] sm:$0xff]
  %v29 = vld [vmem:[%s0 + $0x120] sm:$0xff]
  %vm30 = vcmask 64512
  %31 = vst.msk [vmem:[#allocation2] sm:$0xff] %vm30, %v14
  %32 = vst.msk [vmem:[#allocation2 + $0x8] sm:$0xff] %vm30, %v15
  %33 = vst.msk [vmem:[#allocation2 + $0x10] sm:$0xff] %vm30, %v16
  %34 = vst.msk [vmem:[#allocation2 + $0x18] sm:$0xff] %vm30, %v17
  %35 = vst.msk [vmem:[#allocation2 + $0x20] sm:$0xff] %vm30, %v18
  %36 = vst.msk [vmem:[#allocation2 + $0x28] sm:$0xff] %vm30, %v19
  %37 = vst.msk [vmem:[#allocation2 + $0x30] sm:$0xff] %vm30, %v20
  %38 = vst.msk [vmem:[#allocation2 + $0x38] sm:$0xff] %vm30, %v21
  %39 = vst.msk [vmem:[#allocation2 + $0x40] sm:$0xff] %vm30, %v22
  %40 = vst.msk [vmem:[#allocation2 + $0x48] sm:$0xff] %vm30, %v23
  %41 = vst.msk [vmem:[#allocation2 + $0x50] sm:$0xff] %vm30, %v24
  %42 = vst.msk [vmem:[#allocation2 + $0x58] sm:$0xff] %vm30, %v25
  %43 = vst.msk [vmem:[#allocation2 + $0x60] sm:$0xff] %vm30, %v26
  %44 = vst.msk [vmem:[#allocation2 + $0x68] sm:$0xff] %vm30, %v27
  %45 = vst.msk [vmem:[#allocation2 + $0x70] sm:$0xff] %vm30, %v28
  %46 = vst.msk [vmem:[#allocation2 + $0x78] sm:$0xff] %vm30, %v29
  %v47 = vld [vmem:[%s0 + $0x1] sm:$0xff]
  %v48 = vld [vmem:[%s0 + $0x11] sm:$0xff]
  %v49 = vld [vmem:[%s0 + $0x21] sm:$0xff]
  %v50 = vld [vmem:[%s0 + $0x31] sm:$0xff]
  %v51 = vld [vmem:[%s0 + $0x41] sm:$0xff]
  %v52 = vld [vmem:[%s0 + $0x51] sm:$0xff]
  %v53 = vld [vmem:[%s0 + $0x61] sm:$0xff]
  %v54 = vld [vmem:[%s0 + $0x71] sm:$0xff]
  %v55 = vld [vmem:[%s0 + $0xb1] sm:$0xff]
  %v56 = vld [vmem:[%s0 + $0xc1] sm:$0xff]
  %v57 = vld [vmem:[%s0 + $0xd1] sm:$0xff]
  %v58 = vld [vmem:[%s0 + $0xe1] sm:$0xff]
  %v59 = vld [vmem:[%s0 + $0xf1] sm:$0xff]
  %v60 = vld [vmem:[%s0 + $0x101] sm:$0xff]
  %v61 = vld [vmem:[%s0 + $0x111] sm:$0xff]
  %v62 = vld [vmem:[%s0 + $0x121] sm:$0xff]
  %79 = vrot.lane.b32.xlu0 %v47, 8
  %v80 = vpop.permute.xlu0 %79
  %81 = vrot.lane.b32.xlu0 %v48, 8
  %v82 = vpop.permute.xlu0 %81
  %83 = vrot.lane.b32.xlu0 %v49, 8
  %v84 = vpop.permute.xlu0 %83
  %85 = vrot.lane.b32.xlu0 %v50, 8
  %v86 = vpop.permute.xlu0 %85
  %87 = vrot.lane.b32.xlu0 %v51, 8
  %v88 = vpop.permute.xlu0 %87
  %89 = vrot.lane.b32.xlu0 %v52, 8
  %v90 = vpop.permute.xlu0 %89
  %91 = vrot.lane.b32.xlu0 %v53, 8
  %v92 = vpop.permute.xlu0 %91
  %93 = vrot.lane.b32.xlu0 %v54, 8
  %v94 = vpop.permute.xlu0 %93
  %95 = vrot.lane.b32.xlu0 %v55, 8
  %v96 = vpop.permute.xlu0 %95
  %97 = vrot.lane.b32.xlu0 %v56, 8
  %v98 = vpop.permute.xlu0 %97
  %99 = vrot.lane.b32.xlu0 %v57, 8
  %v100 = vpop.permute.xlu0 %99
  %101 = vrot.lane.b32.xlu0 %v58, 8
  %v102 = vpop.permute.xlu0 %101
  %103 = vrot.lane.b32.xlu0 %v59, 8
  %v104 = vpop.permute.xlu0 %103
  %105 = vrot.lane.b32.xlu0 %v60, 8
  %v106 = vpop.permute.xlu0 %105
  %107 = vrot.lane.b32.xlu0 %v61, 8
  %v108 = vpop.permute.xlu0 %107
  %109 = vrot.lane.b32.xlu0 %v62, 8
  %v110 = vpop.permute.xlu0 %109
  %vm127 = vcmask 130112
  %128 = vst.msk [vmem:[#allocation2] sm:$0xff] %vm127, %v80
  %129 = vst.msk [vmem:[#allocation2 + $0x8] sm:$0xff] %vm127, %v82
  %130 = vst.msk [vmem:[#allocation2 + $0x10] sm:$0xff] %vm127, %v84
  %131 = vst.msk [vmem:[#allocation2 + $0x18] sm:$0xff] %vm127, %v86
  %132 = vst.msk [vmem:[#allocation2 + $0x20] sm:$0xff] %vm127, %v88
  %133 = vst.msk [vmem:[#allocation2 + $0x28] sm:$0xff] %vm127, %v90
  %134 = vst.msk [vmem:[#allocation2 + $0x30] sm:$0xff] %vm127, %v92
  %135 = vst.msk [vmem:[#allocation2 + $0x38] sm:$0xff] %vm127, %v94
  %136 = vst.msk [vmem:[#allocation2 + $0x40] sm:$0xff] %vm127, %v96
  %137 = vst.msk [vmem:[#allocation2 + $0x48] sm:$0xff] %vm127, %v98
  %138 = vst.msk [vmem:[#allocation2 + $0x50] sm:$0xff] %vm127, %v100
  %139 = vst.msk [vmem:[#allocation2 + $0x58] sm:$0xff] %vm127, %v102
  %140 = vst.msk [vmem:[#allocation2 + $0x60] sm:$0xff] %vm127, %v104
  %141 = vst.msk [vmem:[#allocation2 + $0x68] sm:$0xff] %vm127, %v106
  %142 = vst.msk [vmem:[#allocation2 + $0x70] sm:$0xff] %vm127, %v108
  %143 = vst.msk [vmem:[#allocation2 + $0x78] sm:$0xff] %vm127, %v110
  %v144 = vld [vmem:[%s0 + $0x2] sm:$0xff]
  %v145 = vld [vmem:[%s0 + $0x12] sm:$0xff]
  %v146 = vld [vmem:[%s0 + $0x22] sm:$0xff]
  %v147 = vld [vmem:[%s0 + $0x32] sm:$0xff]
  %v148 = vld [vmem:[%s0 + $0x42] sm:$0xff]
  %v149 = vld [vmem:[%s0 + $0x52] sm:$0xff]
  %v150 = vld [vmem:[%s0 + $0x62] sm:$0xff]
  %v151 = vld [vmem:[%s0 + $0x72] sm:$0xff]
  %v152 = vld [vmem:[%s0 + $0xb2] sm:$0xff]
  %v153 = vld [vmem:[%s0 + $0xc2] sm:$0xff]
  %v154 = vld [vmem:[%s0 + $0xd2] sm:$0xff]
  %v155 = vld [vmem:[%s0 + $0xe2] sm:$0xff]
  %v156 = vld [vmem:[%s0 + $0xf2] sm:$0xff]
  %v157 = vld [vmem:[%s0 + $0x102] sm:$0xff]
  %v158 = vld [vmem:[%s0 + $0x112] sm:$0xff]
  %v159 = vld [vmem:[%s0 + $0x122] sm:$0xff]
  %176 = vrot.lane.b32.xlu0 %v144, 16
  %v177 = vpop.permute.xlu0 %176
  %178 = vrot.lane.b32.xlu0 %v145, 16
  %v179 = vpop.permute.xlu0 %178
  %180 = vrot.lane.b32.xlu0 %v146, 16
  %v181 = vpop.permute.xlu0 %180
  %182 = vrot.lane.b32.xlu0 %v147, 16
  %v183 = vpop.permute.xlu0 %182
  %184 = vrot.lane.b32.xlu0 %v148, 16
  %v185 = vpop.permute.xlu0 %184
  %186 = vrot.lane.b32.xlu0 %v149, 16
  %v187 = vpop.permute.xlu0 %186
  %188 = vrot.lane.b32.xlu0 %v150, 16
  %v189 = vpop.permute.xlu0 %188
  %190 = vrot.lane.b32.xlu0 %v151, 16
  %v191 = vpop.permute.xlu0 %190
  %192 = vrot.lane.b32.xlu0 %v152, 16
  %v193 = vpop.permute.xlu0 %192
  %194 = vrot.lane.b32.xlu0 %v153, 16
  %v195 = vpop.permute.xlu0 %194
  %196 = vrot.lane.b32.xlu0 %v154, 16
  %v197 = vpop.permute.xlu0 %196
  %198 = vrot.lane.b32.xlu0 %v155, 16
  %v199 = vpop.permute.xlu0 %198
  %200 = vrot.lane.b32.xlu0 %v156, 16
  %v201 = vpop.permute.xlu0 %200
  %202 = vrot.lane.b32.xlu0 %v157, 16
  %v203 = vpop.permute.xlu0 %202
  %204 = vrot.lane.b32.xlu0 %v158, 16
  %v205 = vpop.permute.xlu0 %204
  %206 = vrot.lane.b32.xlu0 %v159, 16
  %v207 = vpop.permute.xlu0 %206
  %vm224 = vcmask 195712
  %225 = vst.msk [vmem:[#allocation2] sm:$0xff] %vm224, %v177
  %226 = vst.msk [vmem:[#allocation2 + $0x8] sm:$0xff] %vm224, %v179
  %227 = vst.msk [vmem:[#allocation2 + $0x10] sm:$0xff] %vm224, %v181
  %228 = vst.msk [vmem:[#allocation2 + $0x18] sm:$0xff] %vm224, %v183
  %229 = vst.msk [vmem:[#allocation2 + $0x20] sm:$0xff] %vm224, %v185
  %230 = vst.msk [vmem:[#allocation2 + $0x28] sm:$0xff] %vm224, %v187
  %231 = vst.msk [vmem:[#allocation2 + $0x30] sm:$0xff] %vm224, %v189
  %232 = vst.msk [vmem:[#allocation2 + $0x38] sm:$0xff] %vm224, %v191
  %233 = vst.msk [vmem:[#allocation2 + $0x40] sm:$0xff] %vm224, %v193
  %234 = vst.msk [vmem:[#allocation2 + $0x48] sm:$0xff] %vm224, %v195
  %235 = vst.msk [vmem:[#allocation2 + $0x50] sm:$0xff] %vm224, %v197
  %236 = vst.msk [vmem:[#allocation2 + $0x58] sm:$0xff] %vm224, %v199
  %237 = vst.msk [vmem:[#allocation2 + $0x60] sm:$0xff] %vm224, %v201
  %238 = vst.msk [vmem:[#allocation2 + $0x68] sm:$0xff] %vm224, %v203
  %239 = vst.msk [vmem:[#allocation2 + $0x70] sm:$0xff] %vm224, %v205
  %240 = vst.msk [vmem:[#allocation2 + $0x78] sm:$0xff] %vm224, %v207
  %v241 = vld [vmem:[%s0 + $0x3] sm:$0xff]
  %v242 = vld [vmem:[%s0 + $0x13] sm:$0xff]
  %v243 = vld [vmem:[%s0 + $0x23] sm:$0xff]
  %v244 = vld [vmem:[%s0 + $0x33] sm:$0xff]
  %v245 = vld [vmem:[%s0 + $0x43] sm:$0xff]
  %v246 = vld [vmem:[%s0 + $0x53] sm:$0xff]
  %v247 = vld [vmem:[%s0 + $0x63] sm:$0xff]
  %v248 = vld [vmem:[%s0 + $0x73] sm:$0xff]
  %v249 = vld [vmem:[%s0 + $0xb3] sm:$0xff]
  %v250 = vld [vmem:[%s0 + $0xc3] sm:$0xff]
  %v251 = vld [vmem:[%s0 + $0xd3] sm:$0xff]
  %v252 = vld [vmem:[%s0 + $0xe3] sm:$0xff]
  %v253 = vld [vmem:[%s0 + $0xf3] sm:$0xff]
  %v254 = vld [vmem:[%s0 + $0x103] sm:$0xff]
  %v255 = vld [vmem:[%s0 + $0x113] sm:$0xff]
  %v256 = vld [vmem:[%s0 + $0x123] sm:$0xff]
  %273 = vrot.lane.b32.xlu0 %v241, 24
  %v274 = vpop.permute.xlu0 %273
  %275 = vrot.lane.b32.xlu0 %v242, 24
  %v276 = vpop.permute.xlu0 %275
  %277 = vrot.lane.b32.xlu0 %v243, 24
  %v278 = vpop.permute.xlu0 %277
  %279 = vrot.lane.b32.xlu0 %v244, 24
  %v280 = vpop.permute.xlu0 %279
  %281 = vrot.lane.b32.xlu0 %v245, 24
  %v282 = vpop.permute.xlu0 %281
  %283 = vrot.lane.b32.xlu0 %v246, 24
  %v284 = vpop.permute.xlu0 %283
  %285 = vrot.lane.b32.xlu0 %v247, 24
  %v286 = vpop.permute.xlu0 %285
  %287 = vrot.lane.b32.xlu0 %v248, 24
  %v288 = vpop.permute.xlu0 %287
  %289 = vrot.lane.b32.xlu0 %v249, 24
  %v290 = vpop.permute.xlu0 %289
  %291 = vrot.lane.b32.xlu0 %v250, 24
  %v292 = vpop.permute.xlu0 %291
  %293 = vrot.lane.b32.xlu0 %v251, 24
  %v294 = vpop.permute.xlu0 %293
  %295 = vrot.lane.b32.xlu0 %v252, 24
  %v296 = vpop.permute.xlu0 %295
  %297 = vrot.lane.b32.xlu0 %v253, 24
  %v298 = vpop.permute.xlu0 %297
  %299 = vrot.lane.b32.xlu0 %v254, 24
  %v300 = vpop.permute.xlu0 %299
  %301 = vrot.lane.b32.xlu0 %v255, 24
  %v302 = vpop.permute.xlu0 %301
  %303 = vrot.lane.b32.xlu0 %v256, 24
  %v304 = vpop.permute.xlu0 %303
  %vm321 = vcmask 261312
  %322 = vst.msk [vmem:[#allocation2] sm:$0xff] %vm321, %v274
  %323 = vst.msk [vmem:[#allocation2 + $0x8] sm:$0xff] %vm321, %v276
  %324 = vst.msk [vmem:[#allocation2 + $0x10] sm:$0xff] %vm321, %v278
  %325 = vst.msk [vmem:[#allocation2 + $0x18] sm:$0xff] %vm321, %v280
  %326 = vst.msk [vmem:[#allocation2 + $0x20] sm:$0xff] %vm321, %v282
  %327 = vst.msk [vmem:[#allocation2 + $0x28] sm:$0xff] %vm321, %v284
  %328 = vst.msk [vmem:[#allocation2 + $0x30] sm:$0xff] %vm321, %v286
  %329 = vst.msk [vmem:[#allocation2 + $0x38] sm:$0xff] %vm321, %v288
  %330 = vst.msk [vmem:[#allocation2 + $0x40] sm:$0xff] %vm321, %v290
  %331 = vst.msk [vmem:[#allocation2 + $0x48] sm:$0xff] %vm321, %v292
  %332 = vst.msk [vmem:[#allocation2 + $0x50] sm:$0xff] %vm321, %v294
  %333 = vst.msk [vmem:[#allocation2 + $0x58] sm:$0xff] %vm321, %v296
  %334 = vst.msk [vmem:[#allocation2 + $0x60] sm:$0xff] %vm321, %v298
  %335 = vst.msk [vmem:[#allocation2 + $0x68] sm:$0xff] %vm321, %v300
  %336 = vst.msk [vmem:[#allocation2 + $0x70] sm:$0xff] %vm321, %v302
  %337 = vst.msk [vmem:[#allocation2 + $0x78] sm:$0xff] %vm321, %v304
  %s338 = scalar_lea.vmem %s0, 16
  %v339 = vld [vmem:[%s338] sm:$0xff]
  %v340 = vld [vmem:[%s338 + $0x10] sm:$0xff]
  %v341 = vld [vmem:[%s338 + $0x20] sm:$0xff]
  %v342 = vld [vmem:[%s338 + $0x30] sm:$0xff]
  %v343 = vld [vmem:[%s338 + $0x40] sm:$0xff]
  %v344 = vld [vmem:[%s338 + $0x50] sm:$0xff]
  %v345 = vld [vmem:[%s338 + $0x60] sm:$0xff]
  %v346 = vld [vmem:[%s338 + $0x70] sm:$0xff]
  %v347 = vld [vmem:[%s338 + $0xb0] sm:$0xff]
  %v348 = vld [vmem:[%s338 + $0xc0] sm:$0xff]
  %v349 = vld [vmem:[%s338 + $0xd0] sm:$0xff]
  %v350 = vld [vmem:[%s338 + $0xe0] sm:$0xff]
  %v351 = vld [vmem:[%s338 + $0xf0] sm:$0xff]
  %v352 = vld [vmem:[%s338 + $0x100] sm:$0xff]
  %v353 = vld [vmem:[%s338 + $0x110] sm:$0xff]
  %v354 = vld [vmem:[%s338 + $0x120] sm:$0xff]
  %371 = vrot.lane.b32.xlu0 %v339, 32
  %v372 = vpop.permute.xlu0 %371
  %373 = vrot.lane.b32.xlu0 %v340, 32
  %v374 = vpop.permute.xlu0 %373
  %375 = vrot.lane.b32.xlu0 %v341, 32
  %v376 = vpop.permute.xlu0 %375
  %377 = vrot.lane.b32.xlu0 %v342, 32
  %v378 = vpop.permute.xlu0 %377
  %379 = vrot.lane.b32.xlu0 %v343, 32
  %v380 = vpop.permute.xlu0 %379
  %381 = vrot.lane.b32.xlu0 %v344, 32
  %v382 = vpop.permute.xlu0 %381
  %383 = vrot.lane.b32.xlu0 %v345, 32
  %v384 = vpop.permute.xlu0 %383
  %385 = vrot.lane.b32.xlu0 %v346, 32
  %v386 = vpop.permute.xlu0 %385
  %387 = vrot.lane.b32.xlu0 %v347, 32
  %v388 = vpop.permute.xlu0 %387
  %389 = vrot.lane.b32.xlu0 %v348, 32
  %v390 = vpop.permute.xlu0 %389
  %391 = vrot.lane.b32.xlu0 %v349, 32
  %v392 = vpop.permute.xlu0 %391
  %393 = vrot.lane.b32.xlu0 %v350, 32
  %v394 = vpop.permute.xlu0 %393
  %395 = vrot.lane.b32.xlu0 %v351, 32
  %v396 = vpop.permute.xlu0 %395
  %397 = vrot.lane.b32.xlu0 %v352, 32
  %v398 = vpop.permute.xlu0 %397
  %399 = vrot.lane.b32.xlu0 %v353, 32
  %v400 = vpop.permute.xlu0 %399
  %401 = vrot.lane.b32.xlu0 %v354, 32
  %v402 = vpop.permute.xlu0 %401
  %vm419 = vcmask 326912
  %420 = vst.msk [vmem:[#allocation2] sm:$0xff] %vm419, %v372
  %421 = vst.msk [vmem:[#allocation2 + $0x8] sm:$0xff] %vm419, %v374
  %422 = vst.msk [vmem:[#allocation2 + $0x10] sm:$0xff] %vm419, %v376
  %423 = vst.msk [vmem:[#allocation2 + $0x18] sm:$0xff] %vm419, %v378
  %424 = vst.msk [vmem:[#allocation2 + $0x20] sm:$0xff] %vm419, %v380
  %425 = vst.msk [vmem:[#allocation2 + $0x28] sm:$0xff] %vm419, %v382
  %426 = vst.msk [vmem:[#allocation2 + $0x30] sm:$0xff] %vm419, %v384
  %427 = vst.msk [vmem:[#allocation2 + $0x38] sm:$0xff] %vm419, %v386
  %428 = vst.msk [vmem:[#allocation2 + $0x40] sm:$0xff] %vm419, %v388
  %429 = vst.msk [vmem:[#allocation2 + $0x48] sm:$0xff] %vm419, %v390
  %430 = vst.msk [vmem:[#allocation2 + $0x50] sm:$0xff] %vm419, %v392
  %431 = vst.msk [vmem:[#allocation2 + $0x58] sm:$0xff] %vm419, %v394
  %432 = vst.msk [vmem:[#allocation2 + $0x60] sm:$0xff] %vm419, %v396
  %433 = vst.msk [vmem:[#allocation2 + $0x68] sm:$0xff] %vm419, %v398
  %434 = vst.msk [vmem:[#allocation2 + $0x70] sm:$0xff] %vm419, %v400
  %435 = vst.msk [vmem:[#allocation2 + $0x78] sm:$0xff] %vm419, %v402
  %v436 = vld [vmem:[%s338 + $0x1] sm:$0xff]
  %v437 = vld [vmem:[%s338 + $0x11] sm:$0xff]
  %v438 = vld [vmem:[%s338 + $0x21] sm:$0xff]
  %v439 = vld [vmem:[%s338 + $0x31] sm:$0xff]
  %v440 = vld [vmem:[%s338 + $0x41] sm:$0xff]
  %v441 = vld [vmem:[%s338 + $0x51] sm:$0xff]
  %v442 = vld [vmem:[%s338 + $0x61] sm:$0xff]
  %v443 = vld [vmem:[%s338 + $0x71] sm:$0xff]
  %v444 = vld [vmem:[%s338 + $0xb1] sm:$0xff]
  %v445 = vld [vmem:[%s338 + $0xc1] sm:$0xff]
  %v446 = vld [vmem:[%s338 + $0xd1] sm:$0xff]
  %v447 = vld [vmem:[%s338 + $0xe1] sm:$0xff]
  %v448 = vld [vmem:[%s338 + $0xf1] sm:$0xff]
  %v449 = vld [vmem:[%s338 + $0x101] sm:$0xff]
  %v450 = vld [vmem:[%s338 + $0x111] sm:$0xff]
  %v451 = vld [vmem:[%s338 + $0x121] sm:$0xff]
  %468 = vrot.lane.b32.xlu0 %v436, 40
  %v469 = vpop.permute.xlu0 %468
  %470 = vrot.lane.b32.xlu0 %v437, 40
  %v471 = vpop.permute.xlu0 %470
  %472 = vrot.lane.b32.xlu0 %v438, 40
  %v473 = vpop.permute.xlu0 %472
  %474 = vrot.lane.b32.xlu0 %v439, 40
  %v475 = vpop.permute.xlu0 %474
  %476 = vrot.lane.b32.xlu0 %v440, 40
  %v477 = vpop.permute.xlu0 %476
  %478 = vrot.lane.b32.xlu0 %v441, 40
  %v479 = vpop.permute.xlu0 %478
  %480 = vrot.lane.b32.xlu0 %v442, 40
  %v481 = vpop.permute.xlu0 %480
  %482 = vrot.lane.b32.xlu0 %v443, 40
  %v483 = vpop.permute.xlu0 %482
  %484 = vrot.lane.b32.xlu0 %v444, 40
  %v485 = vpop.permute.xlu0 %484
  %486 = vrot.lane.b32.xlu0 %v445, 40
  %v487 = vpop.permute.xlu0 %486
  %488 = vrot.lane.b32.xlu0 %v446, 40
  %v489 = vpop.permute.xlu0 %488
  %490 = vrot.lane.b32.xlu0 %v447, 40
  %v491 = vpop.permute.xlu0 %490
  %492 = vrot.lane.b32.xlu0 %v448, 40
  %v493 = vpop.permute.xlu0 %492
  %494 = vrot.lane.b32.xlu0 %v449, 40
  %v495 = vpop.permute.xlu0 %494
  %496 = vrot.lane.b32.xlu0 %v450, 40
  %v497 = vpop.permute.xlu0 %496
  %498 = vrot.lane.b32.xlu0 %v451, 40
  %v499 = vpop.permute.xlu0 %498
  %vm516 = vcmask 392512
  %517 = vst.msk [vmem:[#allocation2] sm:$0xff] %vm516, %v469
  %518 = vst.msk [vmem:[#allocation2 + $0x8] sm:$0xff] %vm516, %v471
  %519 = vst.msk [vmem:[#allocation2 + $0x10] sm:$0xff] %vm516, %v473
  %520 = vst.msk [vmem:[#allocation2 + $0x18] sm:$0xff] %vm516, %v475
  %521 = vst.msk [vmem:[#allocation2 + $0x20] sm:$0xff] %vm516, %v477
  %522 = vst.msk [vmem:[#allocation2 + $0x28] sm:$0xff] %vm516, %v479
  %523 = vst.msk [vmem:[#allocation2 + $0x30] sm:$0xff] %vm516, %v481
  %524 = vst.msk [vmem:[#allocation2 + $0x38] sm:$0xff] %vm516, %v483
  %525 = vst.msk [vmem:[#allocation2 + $0x40] sm:$0xff] %vm516, %v485
  %526 = vst.msk [vmem:[#allocation2 + $0x48] sm:$0xff] %vm516, %v487
  %527 = vst.msk [vmem:[#allocation2 + $0x50] sm:$0xff] %vm516, %v489
  %528 = vst.msk [vmem:[#allocation2 + $0x58] sm:$0xff] %vm516, %v491
  %529 = vst.msk [vmem:[#allocation2 + $0x60] sm:$0xff] %vm516, %v493
  %530 = vst.msk [vmem:[#allocation2 + $0x68] sm:$0xff] %vm516, %v495
  %531 = vst.msk [vmem:[#allocation2 + $0x70] sm:$0xff] %vm516, %v497
  %532 = vst.msk [vmem:[#allocation2 + $0x78] sm:$0xff] %vm516, %v499
  %v533 = vld [vmem:[%s338 + $0x2] sm:$0xff]
  %v534 = vld [vmem:[%s338 + $0x12] sm:$0xff]
  %v535 = vld [vmem:[%s338 + $0x22] sm:$0xff]
  %v536 = vld [vmem:[%s338 + $0x32] sm:$0xff]
  %v537 = vld [vmem:[%s338 + $0x42] sm:$0xff]
  %v538 = vld [vmem:[%s338 + $0x52] sm:$0xff]
  %v539 = vld [vmem:[%s338 + $0x62] sm:$0xff]
  %v540 = vld [vmem:[%s338 + $0x72] sm:$0xff]
  %v541 = vld [vmem:[%s338 + $0xb2] sm:$0xff]
  %v542 = vld [vmem:[%s338 + $0xc2] sm:$0xff]
  %v543 = vld [vmem:[%s338 + $0xd2] sm:$0xff]
  %v544 = vld [vmem:[%s338 + $0xe2] sm:$0xff]
  %v545 = vld [vmem:[%s338 + $0xf2] sm:$0xff]
  %v546 = vld [vmem:[%s338 + $0x102] sm:$0xff]
  %v547 = vld [vmem:[%s338 + $0x112] sm:$0xff]
  %v548 = vld [vmem:[%s338 + $0x122] sm:$0xff]
  %565 = vrot.lane.b32.xlu0 %v533, 48
  %v566 = vpop.permute.xlu0 %565
  %567 = vrot.lane.b32.xlu0 %v534, 48
  %v568 = vpop.permute.xlu0 %567
  %569 = vrot.lane.b32.xlu0 %v535, 48
  %v570 = vpop.permute.xlu0 %569
  %571 = vrot.lane.b32.xlu0 %v536, 48
  %v572 = vpop.permute.xlu0 %571
  %573 = vrot.lane.b32.xlu0 %v537, 48
  %v574 = vpop.permute.xlu0 %573
  %575 = vrot.lane.b32.xlu0 %v538, 48
  %v576 = vpop.permute.xlu0 %575
  %577 = vrot.lane.b32.xlu0 %v539, 48
  %v578 = vpop.permute.xlu0 %577
  %579 = vrot.lane.b32.xlu0 %v540, 48
  %v580 = vpop.permute.xlu0 %579
  %581 = vrot.lane.b32.xlu0 %v541, 48
  %v582 = vpop.permute.xlu0 %581
  %583 = vrot.lane.b32.xlu0 %v542, 48
  %v584 = vpop.permute.xlu0 %583
  %585 = vrot.lane.b32.xlu0 %v543, 48
  %v586 = vpop.permute.xlu0 %585
  %587 = vrot.lane.b32.xlu0 %v544, 48
  %v588 = vpop.permute.xlu0 %587
  %589 = vrot.lane.b32.xlu0 %v545, 48
  %v590 = vpop.permute.xlu0 %589
  %591 = vrot.lane.b32.xlu0 %v546, 48
  %v592 = vpop.permute.xlu0 %591
  %593 = vrot.lane.b32.xlu0 %v547, 48
  %v594 = vpop.permute.xlu0 %593
  %595 = vrot.lane.b32.xlu0 %v548, 48
  %v596 = vpop.permute.xlu0 %595
  %vm613 = vcmask 458112
  %614 = vst.msk [vmem:[#allocation2] sm:$0xff] %vm613, %v566
  %615 = vst.msk [vmem:[#allocation2 + $0x8] sm:$0xff] %vm613, %v568
  %616 = vst.msk [vmem:[#allocation2 + $0x10] sm:$0xff] %vm613, %v570
  %617 = vst.msk [vmem:[#allocation2 + $0x18] sm:$0xff] %vm613, %v572
  %618 = vst.msk [vmem:[#allocation2 + $0x20] sm:$0xff] %vm613, %v574
  %619 = vst.msk [vmem:[#allocation2 + $0x28] sm:$0xff] %vm613, %v576
  %620 = vst.msk [vmem:[#allocation2 + $0x30] sm:$0xff] %vm613, %v578
  %621 = vst.msk [vmem:[#allocation2 + $0x38] sm:$0xff] %vm613, %v580
  %622 = vst.msk [vmem:[#allocation2 + $0x40] sm:$0xff] %vm613, %v582
  %623 = vst.msk [vmem:[#allocation2 + $0x48] sm:$0xff] %vm613, %v584
  %624 = vst.msk [vmem:[#allocation2 + $0x50] sm:$0xff] %vm613, %v586
  %625 = vst.msk [vmem:[#allocation2 + $0x58] sm:$0xff] %vm613, %v588
  %626 = vst.msk [vmem:[#allocation2 + $0x60] sm:$0xff] %vm613, %v590
  %627 = vst.msk [vmem:[#allocation2 + $0x68] sm:$0xff] %vm613, %v592
  %628 = vst.msk [vmem:[#allocation2 + $0x70] sm:$0xff] %vm613, %v594
  %629 = vst.msk [vmem:[#allocation2 + $0x78] sm:$0xff] %vm613, %v596
  %v630 = vld [vmem:[%s338 + $0x3] sm:$0xff]
  %v631 = vld [vmem:[%s338 + $0x13] sm:$0xff]
  %v632 = vld [vmem:[%s338 + $0x23] sm:$0xff]
  %v633 = vld [vmem:[%s338 + $0x33] sm:$0xff]
  %v634 = vld [vmem:[%s338 + $0x43] sm:$0xff]
  %v635 = vld [vmem:[%s338 + $0x53] sm:$0xff]
  %v636 = vld [vmem:[%s338 + $0x63] sm:$0xff]
  %v637 = vld [vmem:[%s338 + $0x73] sm:$0xff]
  %v638 = vld [vmem:[%s338 + $0xb3] sm:$0xff]
  %v639 = vld [vmem:[%s338 + $0xc3] sm:$0xff]
  %v640 = vld [vmem:[%s338 + $0xd3] sm:$0xff]
  %v641 = vld [vmem:[%s338 + $0xe3] sm:$0xff]
  %v642 = vld [vmem:[%s338 + $0xf3] sm:$0xff]
  %v643 = vld [vmem:[%s338 + $0x103] sm:$0xff]
  %v644 = vld [vmem:[%s338 + $0x113] sm:$0xff]
  %v645 = vld [vmem:[%s338 + $0x123] sm:$0xff]
  %662 = vrot.lane.b32.xlu0 %v630, 56
  %v663 = vpop.permute.xlu0 %662
  %664 = vrot.lane.b32.xlu0 %v631, 56
  %v665 = vpop.permute.xlu0 %664
  %666 = vrot.lane.b32.xlu0 %v632, 56
  %v667 = vpop.permute.xlu0 %666
  %668 = vrot.lane.b32.xlu0 %v633, 56
  %v669 = vpop.permute.xlu0 %668
  %670 = vrot.lane.b32.xlu0 %v634, 56
  %v671 = vpop.permute.xlu0 %670
  %672 = vrot.lane.b32.xlu0 %v635, 56
  %v673 = vpop.permute.xlu0 %672
  %674 = vrot.lane.b32.xlu0 %v636, 56
  %v675 = vpop.permute.xlu0 %674
  %676 = vrot.lane.b32.xlu0 %v637, 56
  %v677 = vpop.permute.xlu0 %676
  %678 = vrot.lane.b32.xlu0 %v638, 56
  %v679 = vpop.permute.xlu0 %678
  %680 = vrot.lane.b32.xlu0 %v639, 56
  %v681 = vpop.permute.xlu0 %680
  %682 = vrot.lane.b32.xlu0 %v640, 56
  %v683 = vpop.permute.xlu0 %682
  %684 = vrot.lane.b32.xlu0 %v641, 56
  %v685 = vpop.permute.xlu0 %684
  %686 = vrot.lane.b32.xlu0 %v642, 56
  %v687 = vpop.permute.xlu0 %686
  %688 = vrot.lane.b32.xlu0 %v643, 56
  %v689 = vpop.permute.xlu0 %688
  %690 = vrot.lane.b32.xlu0 %v644, 56
  %v691 = vpop.permute.xlu0 %690
  %692 = vrot.lane.b32.xlu0 %v645, 56
  %v693 = vpop.permute.xlu0 %692
  %vm710 = vcmask 523712
  %711 = vst.msk [vmem:[#allocation2] sm:$0xff] %vm710, %v663
  %712 = vst.msk [vmem:[#allocation2 + $0x8] sm:$0xff] %vm710, %v665
  %713 = vst.msk [vmem:[#allocation2 + $0x10] sm:$0xff] %vm710, %v667
  %714 = vst.msk [vmem:[#allocation2 + $0x18] sm:$0xff] %vm710, %v669
  %715 = vst.msk [vmem:[#allocation2 + $0x20] sm:$0xff] %vm710, %v671
  %716 = vst.msk [vmem:[#allocation2 + $0x28] sm:$0xff] %vm710, %v673
  %717 = vst.msk [vmem:[#allocation2 + $0x30] sm:$0xff] %vm710, %v675
  %718 = vst.msk [vmem:[#allocation2 + $0x38] sm:$0xff] %vm710, %v677
  %719 = vst.msk [vmem:[#allocation2 + $0x40] sm:$0xff] %vm710, %v679
  %720 = vst.msk [vmem:[#allocation2 + $0x48] sm:$0xff] %vm710, %v681
  %721 = vst.msk [vmem:[#allocation2 + $0x50] sm:$0xff] %vm710, %v683
  %722 = vst.msk [vmem:[#allocation2 + $0x58] sm:$0xff] %vm710, %v685
  %723 = vst.msk [vmem:[#allocation2 + $0x60] sm:$0xff] %vm710, %v687
  %724 = vst.msk [vmem:[#allocation2 + $0x68] sm:$0xff] %vm710, %v689
  %725 = vst.msk [vmem:[#allocation2 + $0x70] sm:$0xff] %vm710, %v691
  %726 = vst.msk [vmem:[#allocation2 + $0x78] sm:$0xff] %vm710, %v693
  %s727 = scalar_lea.vmem %s0, 32
  %v728 = vld [vmem:[%s727] sm:$0xff]
  %v729 = vld [vmem:[%s727 + $0x10] sm:$0xff]
  %v730 = vld [vmem:[%s727 + $0x20] sm:$0xff]
  %v731 = vld [vmem:[%s727 + $0x30] sm:$0xff]
  %v732 = vld [vmem:[%s727 + $0x40] sm:$0xff]
  %v733 = vld [vmem:[%s727 + $0x50] sm:$0xff]
  %v734 = vld [vmem:[%s727 + $0x60] sm:$0xff]
  %v735 = vld [vmem:[%s727 + $0x70] sm:$0xff]
  %v736 = vld [vmem:[%s727 + $0xb0] sm:$0xff]
  %v737 = vld [vmem:[%s727 + $0xc0] sm:$0xff]
  %v738 = vld [vmem:[%s727 + $0xd0] sm:$0xff]
  %v739 = vld [vmem:[%s727 + $0xe0] sm:$0xff]
  %v740 = vld [vmem:[%s727 + $0xf0] sm:$0xff]
  %v741 = vld [vmem:[%s727 + $0x100] sm:$0xff]
  %v742 = vld [vmem:[%s727 + $0x110] sm:$0xff]
  %v743 = vld [vmem:[%s727 + $0x120] sm:$0xff]
  %760 = vrot.lane.b32.xlu0 %v728, 64
  %v761 = vpop.permute.xlu0 %760
  %762 = vrot.lane.b32.xlu0 %v729, 64
  %v763 = vpop.permute.xlu0 %762
  %764 = vrot.lane.b32.xlu0 %v730, 64
  %v765 = vpop.permute.xlu0 %764
  %766 = vrot.lane.b32.xlu0 %v731, 64
  %v767 = vpop.permute.xlu0 %766
  %768 = vrot.lane.b32.xlu0 %v732, 64
  %v769 = vpop.permute.xlu0 %768
  %770 = vrot.lane.b32.xlu0 %v733, 64
  %v771 = vpop.permute.xlu0 %770
  %772 = vrot.lane.b32.xlu0 %v734, 64
  %v773 = vpop.permute.xlu0 %772
  %774 = vrot.lane.b32.xlu0 %v735, 64
  %v775 = vpop.permute.xlu0 %774
  %776 = vrot.lane.b32.xlu0 %v736, 64
  %v777 = vpop.permute.xlu0 %776
  %778 = vrot.lane.b32.xlu0 %v737, 64
  %v779 = vpop.permute.xlu0 %778
  %780 = vrot.lane.b32.xlu0 %v738, 64
  %v781 = vpop.permute.xlu0 %780
  %782 = vrot.lane.b32.xlu0 %v739, 64
  %v783 = vpop.permute.xlu0 %782
  %784 = vrot.lane.b32.xlu0 %v740, 64
  %v785 = vpop.permute.xlu0 %784
  %786 = vrot.lane.b32.xlu0 %v741, 64
  %v787 = vpop.permute.xlu0 %786
  %788 = vrot.lane.b32.xlu0 %v742, 64
  %v789 = vpop.permute.xlu0 %788
  %790 = vrot.lane.b32.xlu0 %v743, 64
  %v791 = vpop.permute.xlu0 %790
  %vm808 = vcmask 589312
  %809 = vst.msk [vmem:[#allocation2] sm:$0xff] %vm808, %v761
  %810 = vst.msk [vmem:[#allocation2 + $0x8] sm:$0xff] %vm808, %v763
  %811 = vst.msk [vmem:[#allocation2 + $0x10] sm:$0xff] %vm808, %v765
  %812 = vst.msk [vmem:[#allocation2 + $0x18] sm:$0xff] %vm808, %v767
  %813 = vst.msk [vmem:[#allocation2 + $0x20] sm:$0xff] %vm808, %v769
  %814 = vst.msk [vmem:[#allocation2 + $0x28] sm:$0xff] %vm808, %v771
  %815 = vst.msk [vmem:[#allocation2 + $0x30] sm:$0xff] %vm808, %v773
  %816 = vst.msk [vmem:[#allocation2 + $0x38] sm:$0xff] %vm808, %v775
  %817 = vst.msk [vmem:[#allocation2 + $0x40] sm:$0xff] %vm808, %v777
  %818 = vst.msk [vmem:[#allocation2 + $0x48] sm:$0xff] %vm808, %v779
  %819 = vst.msk [vmem:[#allocation2 + $0x50] sm:$0xff] %vm808, %v781
  %820 = vst.msk [vmem:[#allocation2 + $0x58] sm:$0xff] %vm808, %v783
  %821 = vst.msk [vmem:[#allocation2 + $0x60] sm:$0xff] %vm808, %v785
  %822 = vst.msk [vmem:[#allocation2 + $0x68] sm:$0xff] %vm808, %v787
  %823 = vst.msk [vmem:[#allocation2 + $0x70] sm:$0xff] %vm808, %v789
  %824 = vst.msk [vmem:[#allocation2 + $0x78] sm:$0xff] %vm808, %v791
  %v825 = vld [vmem:[%s727 + $0x1] sm:$0xff]
  %v826 = vld [vmem:[%s727 + $0x11] sm:$0xff]
  %v827 = vld [vmem:[%s727 + $0x21] sm:$0xff]
  %v828 = vld [vmem:[%s727 + $0x31] sm:$0xff]
  %v829 = vld [vmem:[%s727 + $0x41] sm:$0xff]
  %v830 = vld [vmem:[%s727 + $0x51] sm:$0xff]
  %v831 = vld [vmem:[%s727 + $0x61] sm:$0xff]
  %v832 = vld [vmem:[%s727 + $0x71] sm:$0xff]
  %v833 = vld [vmem:[%s727 + $0xb1] sm:$0xff]
  %v834 = vld [vmem:[%s727 + $0xc1] sm:$0xff]
  %v835 = vld [vmem:[%s727 + $0xd1] sm:$0xff]
  %v836 = vld [vmem:[%s727 + $0xe1] sm:$0xff]
  %v837 = vld [vmem:[%s727 + $0xf1] sm:$0xff]
  %v838 = vld [vmem:[%s727 + $0x101] sm:$0xff]
  %v839 = vld [vmem:[%s727 + $0x111] sm:$0xff]
  %v840 = vld [vmem:[%s727 + $0x121] sm:$0xff]
  %857 = vrot.lane.b32.xlu0 %v825, 72
  %v858 = vpop.permute.xlu0 %857
  %859 = vrot.lane.b32.xlu0 %v826, 72
  %v860 = vpop.permute.xlu0 %859
  %861 = vrot.lane.b32.xlu0 %v827, 72
  %v862 = vpop.permute.xlu0 %861
  %863 = vrot.lane.b32.xlu0 %v828, 72
  %v864 = vpop.permute.xlu0 %863
  %865 = vrot.lane.b32.xlu0 %v829, 72
  %v866 = vpop.permute.xlu0 %865
  %867 = vrot.lane.b32.xlu0 %v830, 72
  %v868 = vpop.permute.xlu0 %867
  %869 = vrot.lane.b32.xlu0 %v831, 72
  %v870 = vpop.permute.xlu0 %869
  %871 = vrot.lane.b32.xlu0 %v832, 72
  %v872 = vpop.permute.xlu0 %871
  %873 = vrot.lane.b32.xlu0 %v833, 72
  %v874 = vpop.permute.xlu0 %873
  %875 = vrot.lane.b32.xlu0 %v834, 72
  %v876 = vpop.permute.xlu0 %875
  %877 = vrot.lane.b32.xlu0 %v835, 72
  %v878 = vpop.permute.xlu0 %877
  %879 = vrot.lane.b32.xlu0 %v836, 72
  %v880 = vpop.permute.xlu0 %879
  %881 = vrot.lane.b32.xlu0 %v837, 72
  %v882 = vpop.permute.xlu0 %881
  %883 = vrot.lane.b32.xlu0 %v838, 72
  %v884 = vpop.permute.xlu0 %883
  %885 = vrot.lane.b32.xlu0 %v839, 72
  %v886 = vpop.permute.xlu0 %885
  %887 = vrot.lane.b32.xlu0 %v840, 72
  %v888 = vpop.permute.xlu0 %887
  %vm905 = vcmask 654912
  %906 = vst.msk [vmem:[#allocation2] sm:$0xff] %vm905, %v858
  %907 = vst.msk [vmem:[#allocation2 + $0x8] sm:$0xff] %vm905, %v860
  %908 = vst.msk [vmem:[#allocation2 + $0x10] sm:$0xff] %vm905, %v862
  %909 = vst.msk [vmem:[#allocation2 + $0x18] sm:$0xff] %vm905, %v864
  %910 = vst.msk [vmem:[#allocation2 + $0x20] sm:$0xff] %vm905, %v866
  %911 = vst.msk [vmem:[#allocation2 + $0x28] sm:$0xff] %vm905, %v868
  %912 = vst.msk [vmem:[#allocation2 + $0x30] sm:$0xff] %vm905, %v870
  %913 = vst.msk [vmem:[#allocation2 + $0x38] sm:$0xff] %vm905, %v872
  %914 = vst.msk [vmem:[#allocation2 + $0x40] sm:$0xff] %vm905, %v874
  %915 = vst.msk [vmem:[#allocation2 + $0x48] sm:$0xff] %vm905, %v876
  %916 = vst.msk [vmem:[#allocation2 + $0x50] sm:$0xff] %vm905, %v878
  %917 = vst.msk [vmem:[#allocation2 + $0x58] sm:$0xff] %vm905, %v880
  %918 = vst.msk [vmem:[#allocation2 + $0x60] sm:$0xff] %vm905, %v882
  %919 = vst.msk [vmem:[#allocation2 + $0x68] sm:$0xff] %vm905, %v884
  %920 = vst.msk [vmem:[#allocation2 + $0x70] sm:$0xff] %vm905, %v886
  %921 = vst.msk [vmem:[#allocation2 + $0x78] sm:$0xff] %vm905, %v888
  %v922 = vld [vmem:[%s727 + $0x2] sm:$0xff]
  %v923 = vld [vmem:[%s727 + $0x12] sm:$0xff]
  %v924 = vld [vmem:[%s727 + $0x22] sm:$0xff]
  %v925 = vld [vmem:[%s727 + $0x32] sm:$0xff]
  %v926 = vld [vmem:[%s727 + $0x42] sm:$0xff]
  %v927 = vld [vmem:[%s727 + $0x52] sm:$0xff]
  %v928 = vld [vmem:[%s727 + $0x62] sm:$0xff]
  %v929 = vld [vmem:[%s727 + $0x72] sm:$0xff]
  %v930 = vld [vmem:[%s727 + $0xb2] sm:$0xff]
  %v931 = vld [vmem:[%s727 + $0xc2] sm:$0xff]
  %v932 = vld [vmem:[%s727 + $0xd2] sm:$0xff]
  %v933 = vld [vmem:[%s727 + $0xe2] sm:$0xff]
  %v934 = vld [vmem:[%s727 + $0xf2] sm:$0xff]
  %v935 = vld [vmem:[%s727 + $0x102] sm:$0xff]
  %v936 = vld [vmem:[%s727 + $0x112] sm:$0xff]
  %v937 = vld [vmem:[%s727 + $0x122] sm:$0xff]
  %954 = vrot.lane.b32.xlu0 %v922, 80
  %v955 = vpop.permute.xlu0 %954
  %956 = vrot.lane.b32.xlu0 %v923, 80
  %v957 = vpop.permute.xlu0 %956
  %958 = vrot.lane.b32.xlu0 %v924, 80
  %v959 = vpop.permute.xlu0 %958
  %960 = vrot.lane.b32.xlu0 %v925, 80
  %v961 = vpop.permute.xlu0 %960
  %962 = vrot.lane.b32.xlu0 %v926, 80
  %v963 = vpop.permute.xlu0 %962
  %964 = vrot.lane.b32.xlu0 %v927, 80
  %v965 = vpop.permute.xlu0 %964
  %966 = vrot.lane.b32.xlu0 %v928, 80
  %v967 = vpop.permute.xlu0 %966
  %968 = vrot.lane.b32.xlu0 %v929, 80
  %v969 = vpop.permute.xlu0 %968
  %970 = vrot.lane.b32.xlu0 %v930, 80
  %v971 = vpop.permute.xlu0 %970
  %972 = vrot.lane.b32.xlu0 %v931, 80
  %v973 = vpop.permute.xlu0 %972
  %974 = vrot.lane.b32.xlu0 %v932, 80
  %v975 = vpop.permute.xlu0 %974
  %976 = vrot.lane.b32.xlu0 %v933, 80
  %v977 = vpop.permute.xlu0 %976
  %978 = vrot.lane.b32.xlu0 %v934, 80
  %v979 = vpop.permute.xlu0 %978
  %980 = vrot.lane.b32.xlu0 %v935, 80
  %v981 = vpop.permute.xlu0 %980
  %982 = vrot.lane.b32.xlu0 %v936, 80
  %v983 = vpop.permute.xlu0 %982
  %984 = vrot.lane.b32.xlu0 %v937, 80
  %v985 = vpop.permute.xlu0 %984
  %vm1002 = vcmask 720512
  %1003 = vst.msk [vmem:[#allocation2] sm:$0xff] %vm1002, %v955
  %1004 = vst.msk [vmem:[#allocation2 + $0x8] sm:$0xff] %vm1002, %v957
  %1005 = vst.msk [vmem:[#allocation2 + $0x10] sm:$0xff] %vm1002, %v959
  %1006 = vst.msk [vmem:[#allocation2 + $0x18] sm:$0xff] %vm1002, %v961
  %1007 = vst.msk [vmem:[#allocation2 + $0x20] sm:$0xff] %vm1002, %v963
  %1008 = vst.msk [vmem:[#allocation2 + $0x28] sm:$0xff] %vm1002, %v965
  %1009 = vst.msk [vmem:[#allocation2 + $0x30] sm:$0xff] %vm1002, %v967
  %1010 = vst.msk [vmem:[#allocation2 + $0x38] sm:$0xff] %vm1002, %v969
  %1011 = vst.msk [vmem:[#allocation2 + $0x40] sm:$0xff] %vm1002, %v971
  %1012 = vst.msk [vmem:[#allocation2 + $0x48] sm:$0xff] %vm1002, %v973
  %1013 = vst.msk [vmem:[#allocation2 + $0x50] sm:$0xff] %vm1002, %v975
  %1014 = vst.msk [vmem:[#allocation2 + $0x58] sm:$0xff] %vm1002, %v977
  %1015 = vst.msk [vmem:[#allocation2 + $0x60] sm:$0xff] %vm1002, %v979
  %1016 = vst.msk [vmem:[#allocation2 + $0x68] sm:$0xff] %vm1002, %v981
  %1017 = vst.msk [vmem:[#allocation2 + $0x70] sm:$0xff] %vm1002, %v983
  %1018 = vst.msk [vmem:[#allocation2 + $0x78] sm:$0xff] %vm1002, %v985
  %v1019 = vld [vmem:[%s727 + $0x3] sm:$0xff]
  %v1020 = vld [vmem:[%s727 + $0x13] sm:$0xff]
  %v1021 = vld [vmem:[%s727 + $0x23] sm:$0xff]
  %v1022 = vld [vmem:[%s727 + $0x33] sm:$0xff]
  %v1023 = vld [vmem:[%s727 + $0x43] sm:$0xff]
  %v1024 = vld [vmem:[%s727 + $0x53] sm:$0xff]
  %v1025 = vld [vmem:[%s727 + $0x63] sm:$0xff]
  %v1026 = vld [vmem:[%s727 + $0x73] sm:$0xff]
  %v1027 = vld [vmem:[%s727 + $0xb3] sm:$0xff]
  %v1028 = vld [vmem:[%s727 + $0xc3] sm:$0xff]
  %v1029 = vld [vmem:[%s727 + $0xd3] sm:$0xff]
  %v1030 = vld [vmem:[%s727 + $0xe3] sm:$0xff]
  %v1031 = vld [vmem:[%s727 + $0xf3] sm:$0xff]
  %v1032 = vld [vmem:[%s727 + $0x103] sm:$0xff]
  %v1033 = vld [vmem:[%s727 + $0x113] sm:$0xff]
  %v1034 = vld [vmem:[%s727 + $0x123] sm:$0xff]
  %1051 = vrot.lane.b32.xlu0 %v1019, 88
  %v1052 = vpop.permute.xlu0 %1051
  %1053 = vrot.lane.b32.xlu0 %v1020, 88
  %v1054 = vpop.permute.xlu0 %1053
  %1055 = vrot.lane.b32.xlu0 %v1021, 88
  %v1056 = vpop.permute.xlu0 %1055
  %1057 = vrot.lane.b32.xlu0 %v1022, 88
  %v1058 = vpop.permute.xlu0 %1057
  %1059 = vrot.lane.b32.xlu0 %v1023, 88
  %v1060 = vpop.permute.xlu0 %1059
  %1061 = vrot.lane.b32.xlu0 %v1024, 88
  %v1062 = vpop.permute.xlu0 %1061
  %1063 = vrot.lane.b32.xlu0 %v1025, 88
  %v1064 = vpop.permute.xlu0 %1063
  %1065 = vrot.lane.b32.xlu0 %v1026, 88
  %v1066 = vpop.permute.xlu0 %1065
  %1067 = vrot.lane.b32.xlu0 %v1027, 88
  %v1068 = vpop.permute.xlu0 %1067
  %1069 = vrot.lane.b32.xlu0 %v1028, 88
  %v1070 = vpop.permute.xlu0 %1069
  %1071 = vrot.lane.b32.xlu0 %v1029, 88
  %v1072 = vpop.permute.xlu0 %1071
  %1073 = vrot.lane.b32.xlu0 %v1030, 88
  %v1074 = vpop.permute.xlu0 %1073
  %1075 = vrot.lane.b32.xlu0 %v1031, 88
  %v1076 = vpop.permute.xlu0 %1075
  %1077 = vrot.lane.b32.xlu0 %v1032, 88
  %v1078 = vpop.permute.xlu0 %1077
  %1079 = vrot.lane.b32.xlu0 %v1033, 88
  %v1080 = vpop.permute.xlu0 %1079
  %1081 = vrot.lane.b32.xlu0 %v1034, 88
  %v1082 = vpop.permute.xlu0 %1081
  %vm1099 = vcmask 786112
  %1100 = vst.msk [vmem:[#allocation2] sm:$0xff] %vm1099, %v1052
  %1101 = vst.msk [vmem:[#allocation2 + $0x8] sm:$0xff] %vm1099, %v1054
  %1102 = vst.msk [vmem:[#allocation2 + $0x10] sm:$0xff] %vm1099, %v1056
  %1103 = vst.msk [vmem:[#allocation2 + $0x18] sm:$0xff] %vm1099, %v1058
  %1104 = vst.msk [vmem:[#allocation2 + $0x20] sm:$0xff] %vm1099, %v1060
  %1105 = vst.msk [vmem:[#allocation2 + $0x28] sm:$0xff] %vm1099, %v1062
  %1106 = vst.msk [vmem:[#allocation2 + $0x30] sm:$0xff] %vm1099, %v1064
  %1107 = vst.msk [vmem:[#allocation2 + $0x38] sm:$0xff] %vm1099, %v1066
  %1108 = vst.msk [vmem:[#allocation2 + $0x40] sm:$0xff] %vm1099, %v1068
  %1109 = vst.msk [vmem:[#allocation2 + $0x48] sm:$0xff] %vm1099, %v1070
  %1110 = vst.msk [vmem:[#allocation2 + $0x50] sm:$0xff] %vm1099, %v1072
  %1111 = vst.msk [vmem:[#allocation2 + $0x58] sm:$0xff] %vm1099, %v1074
  %1112 = vst.msk [vmem:[#allocation2 + $0x60] sm:$0xff] %vm1099, %v1076
  %1113 = vst.msk [vmem:[#allocation2 + $0x68] sm:$0xff] %vm1099, %v1078
  %1114 = vst.msk [vmem:[#allocation2 + $0x70] sm:$0xff] %vm1099, %v1080
  %1115 = vst.msk [vmem:[#allocation2 + $0x78] sm:$0xff] %vm1099, %v1082
  %s1116 = scalar_lea.vmem %s0, 48
  %v1117 = vld [vmem:[%s1116] sm:$0xff]
  %v1118 = vld [vmem:[%s1116 + $0x10] sm:$0xff]
  %v1119 = vld [vmem:[%s1116 + $0x20] sm:$0xff]
  %v1120 = vld [vmem:[%s1116 + $0x30] sm:$0xff]
  %v1121 = vld [vmem:[%s1116 + $0x40] sm:$0xff]
  %v1122 = vld [vmem:[%s1116 + $0x50] sm:$0xff]
  %v1123 = vld [vmem:[%s1116 + $0x60] sm:$0xff]
  %v1124 = vld [vmem:[%s1116 + $0x70] sm:$0xff]
  %v1125 = vld [vmem:[%s1116 + $0xb0] sm:$0xff]
  %v1126 = vld [vmem:[%s1116 + $0xc0] sm:$0xff]
  %v1127 = vld [vmem:[%s1116 + $0xd0] sm:$0xff]
  %v1128 = vld [vmem:[%s1116 + $0xe0] sm:$0xff]
  %v1129 = vld [vmem:[%s1116 + $0xf0] sm:$0xff]
  %v1130 = vld [vmem:[%s1116 + $0x100] sm:$0xff]
  %v1131 = vld [vmem:[%s1116 + $0x110] sm:$0xff]
  %v1132 = vld [vmem:[%s1116 + $0x120] sm:$0xff]
  %1149 = vrot.lane.b32.xlu0 %v1117, 96
  %v1150 = vpop.permute.xlu0 %1149
  %1151 = vrot.lane.b32.xlu0 %v1118, 96
  %v1152 = vpop.permute.xlu0 %1151
  %1153 = vrot.lane.b32.xlu0 %v1119, 96
  %v1154 = vpop.permute.xlu0 %1153
  %1155 = vrot.lane.b32.xlu0 %v1120, 96
  %v1156 = vpop.permute.xlu0 %1155
  %1157 = vrot.lane.b32.xlu0 %v1121, 96
  %v1158 = vpop.permute.xlu0 %1157
  %1159 = vrot.lane.b32.xlu0 %v1122, 96
  %v1160 = vpop.permute.xlu0 %1159
  %1161 = vrot.lane.b32.xlu0 %v1123, 96
  %v1162 = vpop.permute.xlu0 %1161
  %1163 = vrot.lane.b32.xlu0 %v1124, 96
  %v1164 = vpop.permute.xlu0 %1163
  %1165 = vrot.lane.b32.xlu0 %v1125, 96
  %v1166 = vpop.permute.xlu0 %1165
  %1167 = vrot.lane.b32.xlu0 %v1126, 96
  %v1168 = vpop.permute.xlu0 %1167
  %1169 = vrot.lane.b32.xlu0 %v1127, 96
  %v1170 = vpop.permute.xlu0 %1169
  %1171 = vrot.lane.b32.xlu0 %v1128, 96
  %v1172 = vpop.permute.xlu0 %1171
  %1173 = vrot.lane.b32.xlu0 %v1129, 96
  %v1174 = vpop.permute.xlu0 %1173
  %1175 = vrot.lane.b32.xlu0 %v1130, 96
  %v1176 = vpop.permute.xlu0 %1175
  %1177 = vrot.lane.b32.xlu0 %v1131, 96
  %v1178 = vpop.permute.xlu0 %1177
  %1179 = vrot.lane.b32.xlu0 %v1132, 96
  %v1180 = vpop.permute.xlu0 %1179
  %vm1197 = vcmask 851712
  %1198 = vst.msk [vmem:[#allocation2] sm:$0xff] %vm1197, %v1150
  %1199 = vst.msk [vmem:[#allocation2 + $0x8] sm:$0xff] %vm1197, %v1152
  %1200 = vst.msk [vmem:[#allocation2 + $0x10] sm:$0xff] %vm1197, %v1154
  %1201 = vst.msk [vmem:[#allocation2 + $0x18] sm:$0xff] %vm1197, %v1156
  %1202 = vst.msk [vmem:[#allocation2 + $0x20] sm:$0xff] %vm1197, %v1158
  %1203 = vst.msk [vmem:[#allocation2 + $0x28] sm:$0xff] %vm1197, %v1160
  %1204 = vst.msk [vmem:[#allocation2 + $0x30] sm:$0xff] %vm1197, %v1162
  %1205 = vst.msk [vmem:[#allocation2 + $0x38] sm:$0xff] %vm1197, %v1164
  %1206 = vst.msk [vmem:[#allocation2 + $0x40] sm:$0xff] %vm1197, %v1166
  %1207 = vst.msk [vmem:[#allocation2 + $0x48] sm:$0xff] %vm1197, %v1168
  %1208 = vst.msk [vmem:[#allocation2 + $0x50] sm:$0xff] %vm1197, %v1170
  %1209 = vst.msk [vmem:[#allocation2 + $0x58] sm:$0xff] %vm1197, %v1172
  %1210 = vst.msk [vmem:[#allocation2 + $0x60] sm:$0xff] %vm1197, %v1174
  %1211 = vst.msk [vmem:[#allocation2 + $0x68] sm:$0xff] %vm1197, %v1176
  %1212 = vst.msk [vmem:[#allocation2 + $0x70] sm:$0xff] %vm1197, %v1178
  %1213 = vst.msk [vmem:[#allocation2 + $0x78] sm:$0xff] %vm1197, %v1180
  %v1214 = vld [vmem:[%s1116 + $0x1] sm:$0xff]
  %v1215 = vld [vmem:[%s1116 + $0x11] sm:$0xff]
  %v1216 = vld [vmem:[%s1116 + $0x21] sm:$0xff]
  %v1217 = vld [vmem:[%s1116 + $0x31] sm:$0xff]
  %v1218 = vld [vmem:[%s1116 + $0x41] sm:$0xff]
  %v1219 = vld [vmem:[%s1116 + $0x51] sm:$0xff]
  %v1220 = vld [vmem:[%s1116 + $0x61] sm:$0xff]
  %v1221 = vld [vmem:[%s1116 + $0x71] sm:$0xff]
  %v1222 = vld [vmem:[%s1116 + $0xb1] sm:$0xff]
  %v1223 = vld [vmem:[%s1116 + $0xc1] sm:$0xff]
  %v1224 = vld [vmem:[%s1116 + $0xd1] sm:$0xff]
  %v1225 = vld [vmem:[%s1116 + $0xe1] sm:$0xff]
  %v1226 = vld [vmem:[%s1116 + $0xf1] sm:$0xff]
  %v1227 = vld [vmem:[%s1116 + $0x101] sm:$0xff]
  %v1228 = vld [vmem:[%s1116 + $0x111] sm:$0xff]
  %v1229 = vld [vmem:[%s1116 + $0x121] sm:$0xff]
  %1246 = vrot.lane.b32.xlu0 %v1214, 104
  %v1247 = vpop.permute.xlu0 %1246
  %1248 = vrot.lane.b32.xlu0 %v1215, 104
  %v1249 = vpop.permute.xlu0 %1248
  %1250 = vrot.lane.b32.xlu0 %v1216, 104
  %v1251 = vpop.permute.xlu0 %1250
  %1252 = vrot.lane.b32.xlu0 %v1217, 104
  %v1253 = vpop.permute.xlu0 %1252
  %1254 = vrot.lane.b32.xlu0 %v1218, 104
  %v1255 = vpop.permute.xlu0 %1254
  %1256 = vrot.lane.b32.xlu0 %v1219, 104
  %v1257 = vpop.permute.xlu0 %1256
  %1258 = vrot.lane.b32.xlu0 %v1220, 104
  %v1259 = vpop.permute.xlu0 %1258
  %1260 = vrot.lane.b32.xlu0 %v1221, 104
  %v1261 = vpop.permute.xlu0 %1260
  %1262 = vrot.lane.b32.xlu0 %v1222, 104
  %v1263 = vpop.permute.xlu0 %1262
  %1264 = vrot.lane.b32.xlu0 %v1223, 104
  %v1265 = vpop.permute.xlu0 %1264
  %1266 = vrot.lane.b32.xlu0 %v1224, 104
  %v1267 = vpop.permute.xlu0 %1266
  %1268 = vrot.lane.b32.xlu0 %v1225, 104
  %v1269 = vpop.permute.xlu0 %1268
  %1270 = vrot.lane.b32.xlu0 %v1226, 104
  %v1271 = vpop.permute.xlu0 %1270
  %1272 = vrot.lane.b32.xlu0 %v1227, 104
  %v1273 = vpop.permute.xlu0 %1272
  %1274 = vrot.lane.b32.xlu0 %v1228, 104
  %v1275 = vpop.permute.xlu0 %1274
  %1276 = vrot.lane.b32.xlu0 %v1229, 104
  %v1277 = vpop.permute.xlu0 %1276
  %vm1294 = vcmask 917312
  %1295 = vst.msk [vmem:[#allocation2] sm:$0xff] %vm1294, %v1247
  %1296 = vst.msk [vmem:[#allocation2 + $0x8] sm:$0xff] %vm1294, %v1249
  %1297 = vst.msk [vmem:[#allocation2 + $0x10] sm:$0xff] %vm1294, %v1251
  %1298 = vst.msk [vmem:[#allocation2 + $0x18] sm:$0xff] %vm1294, %v1253
  %1299 = vst.msk [vmem:[#allocation2 + $0x20] sm:$0xff] %vm1294, %v1255
  %1300 = vst.msk [vmem:[#allocation2 + $0x28] sm:$0xff] %vm1294, %v1257
  %1301 = vst.msk [vmem:[#allocation2 + $0x30] sm:$0xff] %vm1294, %v1259
  %1302 = vst.msk [vmem:[#allocation2 + $0x38] sm:$0xff] %vm1294, %v1261
  %1303 = vst.msk [vmem:[#allocation2 + $0x40] sm:$0xff] %vm1294, %v1263
  %1304 = vst.msk [vmem:[#allocation2 + $0x48] sm:$0xff] %vm1294, %v1265
  %1305 = vst.msk [vmem:[#allocation2 + $0x50] sm:$0xff] %vm1294, %v1267
  %1306 = vst.msk [vmem:[#allocation2 + $0x58] sm:$0xff] %vm1294, %v1269
  %1307 = vst.msk [vmem:[#allocation2 + $0x60] sm:$0xff] %vm1294, %v1271
  %1308 = vst.msk [vmem:[#allocation2 + $0x68] sm:$0xff] %vm1294, %v1273
  %1309 = vst.msk [vmem:[#allocation2 + $0x70] sm:$0xff] %vm1294, %v1275
  %1310 = vst.msk [vmem:[#allocation2 + $0x78] sm:$0xff] %vm1294, %v1277
  %v1311 = vld [vmem:[%s1116 + $0x2] sm:$0xff]
  %v1312 = vld [vmem:[%s1116 + $0x12] sm:$0xff]
  %v1313 = vld [vmem:[%s1116 + $0x22] sm:$0xff]
  %v1314 = vld [vmem:[%s1116 + $0x32] sm:$0xff]
  %v1315 = vld [vmem:[%s1116 + $0x42] sm:$0xff]
  %v1316 = vld [vmem:[%s1116 + $0x52] sm:$0xff]
  %v1317 = vld [vmem:[%s1116 + $0x62] sm:$0xff]
  %v1318 = vld [vmem:[%s1116 + $0x72] sm:$0xff]
  %v1319 = vld [vmem:[%s1116 + $0xb2] sm:$0xff]
  %v1320 = vld [vmem:[%s1116 + $0xc2] sm:$0xff]
  %v1321 = vld [vmem:[%s1116 + $0xd2] sm:$0xff]
  %v1322 = vld [vmem:[%s1116 + $0xe2] sm:$0xff]
  %v1323 = vld [vmem:[%s1116 + $0xf2] sm:$0xff]
  %v1324 = vld [vmem:[%s1116 + $0x102] sm:$0xff]
  %v1325 = vld [vmem:[%s1116 + $0x112] sm:$0xff]
  %v1326 = vld [vmem:[%s1116 + $0x122] sm:$0xff]
  %1343 = vrot.lane.b32.xlu0 %v1311, 112
  %v1344 = vpop.permute.xlu0 %1343
  %1345 = vrot.lane.b32.xlu0 %v1312, 112
  %v1346 = vpop.permute.xlu0 %1345
  %1347 = vrot.lane.b32.xlu0 %v1313, 112
  %v1348 = vpop.permute.xlu0 %1347
  %1349 = vrot.lane.b32.xlu0 %v1314, 112
  %v1350 = vpop.permute.xlu0 %1349
  %1351 = vrot.lane.b32.xlu0 %v1315, 112
  %v1352 = vpop.permute.xlu0 %1351
  %1353 = vrot.lane.b32.xlu0 %v1316, 112
  %v1354 = vpop.permute.xlu0 %1353
  %1355 = vrot.lane.b32.xlu0 %v1317, 112
  %v1356 = vpop.permute.xlu0 %1355
  %1357 = vrot.lane.b32.xlu0 %v1318, 112
  %v1358 = vpop.permute.xlu0 %1357
  %1359 = vrot.lane.b32.xlu0 %v1319, 112
  %v1360 = vpop.permute.xlu0 %1359
  %1361 = vrot.lane.b32.xlu0 %v1320, 112
  %v1362 = vpop.permute.xlu0 %1361
  %1363 = vrot.lane.b32.xlu0 %v1321, 112
  %v1364 = vpop.permute.xlu0 %1363
  %1365 = vrot.lane.b32.xlu0 %v1322, 112
  %v1366 = vpop.permute.xlu0 %1365
  %1367 = vrot.lane.b32.xlu0 %v1323, 112
  %v1368 = vpop.permute.xlu0 %1367
  %1369 = vrot.lane.b32.xlu0 %v1324, 112
  %v1370 = vpop.permute.xlu0 %1369
  %1371 = vrot.lane.b32.xlu0 %v1325, 112
  %v1372 = vpop.permute.xlu0 %1371
  %1373 = vrot.lane.b32.xlu0 %v1326, 112
  %v1374 = vpop.permute.xlu0 %1373
  %vm1391 = vcmask 982912
  %1392 = vst.msk [vmem:[#allocation2] sm:$0xff] %vm1391, %v1344
  %1393 = vst.msk [vmem:[#allocation2 + $0x8] sm:$0xff] %vm1391, %v1346
  %1394 = vst.msk [vmem:[#allocation2 + $0x10] sm:$0xff] %vm1391, %v1348
  %1395 = vst.msk [vmem:[#allocation2 + $0x18] sm:$0xff] %vm1391, %v1350
  %1396 = vst.msk [vmem:[#allocation2 + $0x20] sm:$0xff] %vm1391, %v1352
  %1397 = vst.msk [vmem:[#allocation2 + $0x28] sm:$0xff] %vm1391, %v1354
  %1398 = vst.msk [vmem:[#allocation2 + $0x30] sm:$0xff] %vm1391, %v1356
  %1399 = vst.msk [vmem:[#allocation2 + $0x38] sm:$0xff] %vm1391, %v1358
  %1400 = vst.msk [vmem:[#allocation2 + $0x40] sm:$0xff] %vm1391, %v1360
  %1401 = vst.msk [vmem:[#allocation2 + $0x48] sm:$0xff] %vm1391, %v1362
  %1402 = vst.msk [vmem:[#allocation2 + $0x50] sm:$0xff] %vm1391, %v1364
  %1403 = vst.msk [vmem:[#allocation2 + $0x58] sm:$0xff] %vm1391, %v1366
  %1404 = vst.msk [vmem:[#allocation2 + $0x60] sm:$0xff] %vm1391, %v1368
  %1405 = vst.msk [vmem:[#allocation2 + $0x68] sm:$0xff] %vm1391, %v1370
  %1406 = vst.msk [vmem:[#allocation2 + $0x70] sm:$0xff] %vm1391, %v1372
  %1407 = vst.msk [vmem:[#allocation2 + $0x78] sm:$0xff] %vm1391, %v1374
  %v1408 = vld [vmem:[%s1116 + $0x3] sm:$0xff]
  %v1409 = vld [vmem:[%s1116 + $0x13] sm:$0xff]
  %v1410 = vld [vmem:[%s1116 + $0x23] sm:$0xff]
  %v1411 = vld [vmem:[%s1116 + $0x33] sm:$0xff]
  %v1412 = vld [vmem:[%s1116 + $0x43] sm:$0xff]
  %v1413 = vld [vmem:[%s1116 + $0x53] sm:$0xff]
  %v1414 = vld [vmem:[%s1116 + $0x63] sm:$0xff]
  %v1415 = vld [vmem:[%s1116 + $0x73] sm:$0xff]
  %v1416 = vld [vmem:[%s1116 + $0xb3] sm:$0xff]
  %v1417 = vld [vmem:[%s1116 + $0xc3] sm:$0xff]
  %v1418 = vld [vmem:[%s1116 + $0xd3] sm:$0xff]
  %v1419 = vld [vmem:[%s1116 + $0xe3] sm:$0xff]
  %v1420 = vld [vmem:[%s1116 + $0xf3] sm:$0xff]
  %v1421 = vld [vmem:[%s1116 + $0x103] sm:$0xff]
  %v1422 = vld [vmem:[%s1116 + $0x113] sm:$0xff]
  %v1423 = vld [vmem:[%s1116 + $0x123] sm:$0xff]
  %1440 = vrot.lane.b32.xlu0 %v1408, 120
  %v1441 = vpop.permute.xlu0 %1440
  %1442 = vrot.lane.b32.xlu0 %v1409, 120
  %v1443 = vpop.permute.xlu0 %1442
  %1444 = vrot.lane.b32.xlu0 %v1410, 120
  %v1445 = vpop.permute.xlu0 %1444
  %1446 = vrot.lane.b32.xlu0 %v1411, 120
  %v1447 = vpop.permute.xlu0 %1446
  %1448 = vrot.lane.b32.xlu0 %v1412, 120
  %v1449 = vpop.permute.xlu0 %1448
  %1450 = vrot.lane.b32.xlu0 %v1413, 120
  %v1451 = vpop.permute.xlu0 %1450
  %1452 = vrot.lane.b32.xlu0 %v1414, 120
  %v1453 = vpop.permute.xlu0 %1452
  %1454 = vrot.lane.b32.xlu0 %v1415, 120
  %v1455 = vpop.permute.xlu0 %1454
  %1456 = vrot.lane.b32.xlu0 %v1416, 120
  %v1457 = vpop.permute.xlu0 %1456
  %1458 = vrot.lane.b32.xlu0 %v1417, 120
  %v1459 = vpop.permute.xlu0 %1458
  %1460 = vrot.lane.b32.xlu0 %v1418, 120
  %v1461 = vpop.permute.xlu0 %1460
  %1462 = vrot.lane.b32.xlu0 %v1419, 120
  %v1463 = vpop.permute.xlu0 %1462
  %1464 = vrot.lane.b32.xlu0 %v1420, 120
  %v1465 = vpop.permute.xlu0 %1464
  %1466 = vrot.lane.b32.xlu0 %v1421, 120
  %v1467 = vpop.permute.xlu0 %1466
  %1468 = vrot.lane.b32.xlu0 %v1422, 120
  %v1469 = vpop.permute.xlu0 %1468
  %1470 = vrot.lane.b32.xlu0 %v1423, 120
  %v1471 = vpop.permute.xlu0 %1470
  %vm1488 = vcmask 1048512
  %1489 = vst.msk [vmem:[#allocation2] sm:$0xff] %vm1488, %v1441
  %1490 = vst.msk [vmem:[#allocation2 + $0x8] sm:$0xff] %vm1488, %v1443
  %1491 = vst.msk [vmem:[#allocation2 + $0x10] sm:$0xff] %vm1488, %v1445
  %1492 = vst.msk [vmem:[#allocation2 + $0x18] sm:$0xff] %vm1488, %v1447
  %1493 = vst.msk [vmem:[#allocation2 + $0x20] sm:$0xff] %vm1488, %v1449
  %1494 = vst.msk [vmem:[#allocation2 + $0x28] sm:$0xff] %vm1488, %v1451
  %1495 = vst.msk [vmem:[#allocation2 + $0x30] sm:$0xff] %vm1488, %v1453
  %1496 = vst.msk [vmem:[#allocation2 + $0x38] sm:$0xff] %vm1488, %v1455
  %1497 = vst.msk [vmem:[#allocation2 + $0x40] sm:$0xff] %vm1488, %v1457
  %1498 = vst.msk [vmem:[#allocation2 + $0x48] sm:$0xff] %vm1488, %v1459
  %1499 = vst.msk [vmem:[#allocation2 + $0x50] sm:$0xff] %vm1488, %v1461
  %1500 = vst.msk [vmem:[#allocation2 + $0x58] sm:$0xff] %vm1488, %v1463
  %1501 = vst.msk [vmem:[#allocation2 + $0x60] sm:$0xff] %vm1488, %v1465
  %1502 = vst.msk [vmem:[#allocation2 + $0x68] sm:$0xff] %vm1488, %v1467
  %1503 = vst.msk [vmem:[#allocation2 + $0x70] sm:$0xff] %vm1488, %v1469
  %1504 = vst.msk [vmem:[#allocation2 + $0x78] sm:$0xff] %vm1488, %v1471
  %v1505 = vld [vmem:[#allocation2] sm:$0xff]
  %v1506 = vld [vmem:[#allocation2 + $0x8] sm:$0xff]
  %v1507 = vld [vmem:[#allocation2 + $0x10] sm:$0xff]
  %v1508 = vld [vmem:[#allocation2 + $0x18] sm:$0xff]
  %v1509 = vld [vmem:[#allocation2 + $0x20] sm:$0xff]
  %v1510 = vld [vmem:[#allocation2 + $0x28] sm:$0xff]
  %v1511 = vld [vmem:[#allocation2 + $0x30] sm:$0xff]
  %v1512 = vld [vmem:[#allocation2 + $0x38] sm:$0xff]
  %v1513 = vld [vmem:[#allocation2 + $0x40] sm:$0xff]
  %v1514 = vld [vmem:[#allocation2 + $0x48] sm:$0xff]
  %v1515 = vld [vmem:[#allocation2 + $0x50] sm:$0xff]
  %v1516 = vld [vmem:[#allocation2 + $0x58] sm:$0xff]
  %v1517 = vld [vmem:[#allocation2 + $0x60] sm:$0xff]
  %v1518 = vld [vmem:[#allocation2 + $0x68] sm:$0xff]
  %v1519 = vld [vmem:[#allocation2 + $0x70] sm:$0xff]
  %v1520 = vld [vmem:[#allocation2 + $0x78] sm:$0xff]
  %v1521 = vld [vmem:[%s1] sm:$0xff]
  %v1522 = vld [vmem:[%s1 + $0x8] sm:$0xff]
  %v1523 = vld [vmem:[%s1 + $0x10] sm:$0xff]
  %v1524 = vld [vmem:[%s1 + $0x18] sm:$0xff]
  %v1525 = vld [vmem:[%s1 + $0x20] sm:$0xff]
  %v1526 = vld [vmem:[%s1 + $0x28] sm:$0xff]
  %v1527 = vld [vmem:[%s1 + $0x30] sm:$0xff]
  %v1528 = vld [vmem:[%s1 + $0x38] sm:$0xff]
  %v1529 = vld [vmem:[%s1 + $0x40] sm:$0xff]
  %v1530 = vld [vmem:[%s1 + $0x48] sm:$0xff]
  %v1531 = vld [vmem:[%s1 + $0x50] sm:$0xff]
  %v1532 = vld [vmem:[%s1 + $0x58] sm:$0xff]
  %v1533 = vld [vmem:[%s1 + $0x60] sm:$0xff]
  %v1534 = vld [vmem:[%s1 + $0x68] sm:$0xff]
  %v1535 = vld [vmem:[%s1 + $0x70] sm:$0xff]
  %v1536 = vld [vmem:[%s1 + $0x78] sm:$0xff]
  %v1537 = vld [vmem:[%s2] sm:$0x1]
  %v1538 = vlaneseq
  %v1539 = vshrl.u32 %v1538, 7
  %v1540 = vsub.s32 0, %v1539
  %v1541 = vrot.slane %v1537, %v1540
  %1542 = vmatprep.subr.mxu0 0.0
  %1543 = vmatpush1.msra.mxu0 %v1536
  %1544 = vmatprep.subr.mxu0 0.0
  %1545 = vmatpush1.msra.mxu0 %v1535
  %1546 = vmatprep.subr.mxu0 0.0
  %1547 = vmatpush1.msra.mxu0 %v1534
  %1548 = vmatprep.subr.mxu0 0.0
  %1549 = vmatpush1.msra.mxu0 %v1533
  %1550 = vmatprep.subr.mxu0 0.0
  %1551 = vmatpush1.msra.mxu0 %v1532
  %1552 = vmatprep.subr.mxu0 0.0
  %1553 = vmatpush1.msra.mxu0 %v1531
  %1554 = vmatprep.subr.mxu0 0.0
  %1555 = vmatpush1.msra.mxu0 %v1530
  %1556 = vmatprep.subr.mxu0 0.0
  %1557 = vmatpush1.msra.mxu0 %v1529
  %1558 = vmatprep.subr.mxu0 0.0
  %1559 = vmatpush1.msra.mxu0 %v1528
  %1560 = vmatprep.subr.mxu0 0.0
  %1561 = vmatpush1.msra.mxu0 %v1527
  %1562 = vmatprep.subr.mxu0 0.0
  %1563 = vmatpush1.msra.mxu0 %v1526
  %1564 = vmatprep.subr.mxu0 0.0
  %1565 = vmatpush1.msra.mxu0 %v1525
  %1566 = vmatprep.subr.mxu0 0.0
  %1567 = vmatpush1.msra.mxu0 %v1524
  %1568 = vmatprep.subr.mxu0 0.0
  %1569 = vmatpush1.msra.mxu0 %v1523
  %1570 = vmatprep.subr.mxu0 0.0
  %1571 = vmatpush1.msra.mxu0 %v1522
  %1572 = vmatprep.subr.mxu0 0.0
  %1573 = vmatpush1.msra.mxu0 %v1521
  %1574 = vmatprep.subr.mxu0 0.0
  %1575 = vmatpush2.msra.mxu0 0.0
  %1576 = vmatprep.subr.mxu0 0.0
  %1577 = vmatpush2.msra.mxu0 0.0
  %1578 = vmatprep.subr.mxu0 0.0
  %1579 = vmatpush2.msra.mxu0 0.0
  %1580 = vmatprep.subr.mxu0 0.0
  %1581 = vmatpush2.msra.mxu0 0.0
  %1582 = vmatprep.subr.mxu0 0.0
  %1583 = vmatpush2.msra.mxu0 0.0
  %1584 = vmatprep.subr.mxu0 0.0
  %1585 = vmatpush2.msra.mxu0 0.0
  %1586 = vmatprep.subr.mxu0 0.0
  %1587 = vmatpush2.msra.mxu0 0.0
  %1588 = vmatprep.subr.mxu0 0.0
  %1589 = vmatpush2.msra.mxu0 0.0
  %1590 = vmatprep.subr.mxu0 0.0
  %1591 = vmatpush2.msra.mxu0 0.0
  %1592 = vmatprep.subr.mxu0 0.0
  %1593 = vmatpush2.msra.mxu0 0.0
  %1594 = vmatprep.subr.mxu0 0.0
  %1595 = vmatpush2.msra.mxu0 0.0
  %1596 = vmatprep.subr.mxu0 0.0
  %1597 = vmatpush2.msra.mxu0 0.0
  %1598 = vmatprep.subr.mxu0 0.0
  %1599 = vmatpush2.msra.mxu0 0.0
  %1600 = vmatprep.subr.mxu0 0.0
  %1601 = vmatpush2.msra.mxu0 0.0
  %1602 = vmatprep.subr.mxu0 0.0
  %1603 = vmatpush2.msra.mxu0 0.0
  %1604 = vmatprep.subr.mxu0 0.0
  %1605 = vmatpush2.msra.mxu0 0.0
  %1606 = vmatprep.mubr.f32.mxu0 0.0
  %1607 = vmatmul.mubr.f32.gmra.mxu0 %v1505
  %v1608 = vpop.f32.mrf.mxu0
  %v1609 = vadd.f32 %v1541, %v1608
  %v1610 = vpop.f32.mrf.mxu0
  %1611 = vmatprep.mubr.f32.mxu0 0.0
  %1612 = vmatmul.mubr.f32.gmra.mxu0 %v1506
  %v1613 = vpop.f32.mrf.mxu0
  %v1614 = vadd.f32 %v1541, %v1613
  %v1615 = vpop.f32.mrf.mxu0
  %1616 = vmatprep.mubr.f32.mxu0 0.0
  %1617 = vmatmul.mubr.f32.gmra.mxu0 %v1507
  %v1618 = vpop.f32.mrf.mxu0
  %v1619 = vadd.f32 %v1541, %v1618
  %v1620 = vpop.f32.mrf.mxu0
  %1621 = vmatprep.mubr.f32.mxu0 0.0
  %1622 = vmatmul.mubr.f32.gmra.mxu0 %v1508
  %v1623 = vpop.f32.mrf.mxu0
  %v1624 = vadd.f32 %v1541, %v1623
  %v1625 = vpop.f32.mrf.mxu0
  %1626 = vmatprep.mubr.f32.mxu0 0.0
  %1627 = vmatmul.mubr.f32.gmra.mxu0 %v1509
  %v1628 = vpop.f32.mrf.mxu0
  %v1629 = vadd.f32 %v1541, %v1628
  %v1630 = vpop.f32.mrf.mxu0
  %1631 = vmatprep.mubr.f32.mxu0 0.0
  %1632 = vmatmul.mubr.f32.gmra.mxu0 %v1510
  %v1633 = vpop.f32.mrf.mxu0
  %v1634 = vadd.f32 %v1541, %v1633
  %v1635 = vpop.f32.mrf.mxu0
  %1636 = vmatprep.mubr.f32.mxu0 0.0
  %1637 = vmatmul.mubr.f32.gmra.mxu0 %v1511
  %v1638 = vpop.f32.mrf.mxu0
  %v1639 = vadd.f32 %v1541, %v1638
  %v1640 = vpop.f32.mrf.mxu0
  %1641 = vmatprep.mubr.f32.mxu0 0.0
  %1642 = vmatmul.mubr.f32.gmra.mxu0 %v1512
  %v1643 = vpop.f32.mrf.mxu0
  %v1644 = vadd.f32 %v1541, %v1643
  %v1645 = vpop.f32.mrf.mxu0
  %1646 = vmatprep.mubr.f32.mxu0 0.0
  %1647 = vmatmul.mubr.f32.gmra.mxu0 %v1513
  %v1648 = vpop.f32.mrf.mxu0
  %v1649 = vadd.f32 %v1541, %v1648
  %v1650 = vpop.f32.mrf.mxu0
  %1651 = vmatprep.mubr.f32.mxu0 0.0
  %1652 = vmatmul.mubr.f32.gmra.mxu0 %v1514
  %v1653 = vpop.f32.mrf.mxu0
  %v1654 = vadd.f32 %v1541, %v1653
  %v1655 = vpop.f32.mrf.mxu0
  %1656 = vmatprep.mubr.f32.mxu0 0.0
  %1657 = vmatmul.mubr.f32.gmra.mxu0 %v1515
  %v1658 = vpop.f32.mrf.mxu0
  %v1659 = vadd.f32 %v1541, %v1658
  %v1660 = vpop.f32.mrf.mxu0
  %1661 = vmatprep.mubr.f32.mxu0 0.0
  %1662 = vmatmul.mubr.f32.gmra.mxu0 %v1516
  %v1663 = vpop.f32.mrf.mxu0
  %v1664 = vadd.f32 %v1541, %v1663
  %v1665 = vpop.f32.mrf.mxu0
  %1666 = vmatprep.mubr.f32.mxu0 0.0
  %1667 = vmatmul.mubr.f32.gmra.mxu0 %v1517
  %v1668 = vpop.f32.mrf.mxu0
  %v1669 = vadd.f32 %v1541, %v1668
  %v1670 = vpop.f32.mrf.mxu0
  %1671 = vmatprep.mubr.f32.mxu0 0.0
  %1672 = vmatmul.mubr.f32.gmra.mxu0 %v1518
  %v1673 = vpop.f32.mrf.mxu0
  %v1674 = vadd.f32 %v1541, %v1673
  %v1675 = vpop.f32.mrf.mxu0
  %1676 = vmatprep.mubr.f32.mxu0 0.0
  %1677 = vmatmul.mubr.f32.gmra.mxu0 %v1519
  %v1678 = vpop.f32.mrf.mxu0
  %v1679 = vadd.f32 %v1541, %v1678
  %v1680 = vpop.f32.mrf.mxu0
  %1681 = vmatprep.mubr.f32.mxu0 0.0
  %1682 = vmatmul.mubr.f32.gmra.mxu0 %v1520
  %v1683 = vpop.f32.mrf.mxu0
  %v1684 = vadd.f32 %v1541, %v1683
  %v1685 = vpop.f32.mrf.mxu0
  %1686 = vdwg.mxu0
  %v1687 = vmax.f32 %v1609, 0.0
  %v1688 = vmax.f32 %v1614, 0.0
  %v1689 = vmax.f32 %v1619, 0.0
  %v1690 = vmax.f32 %v1624, 0.0
  %v1691 = vmax.f32 %v1629, 0.0
  %v1692 = vmax.f32 %v1634, 0.0
  %v1693 = vmax.f32 %v1639, 0.0
  %v1694 = vmax.f32 %v1644, 0.0
  %v1695 = vmax.f32 %v1649, 0.0
  %v1696 = vmax.f32 %v1654, 0.0
  %v1697 = vmax.f32 %v1659, 0.0
  %v1698 = vmax.f32 %v1664, 0.0
  %v1699 = vmax.f32 %v1669, 0.0
  %v1700 = vmax.f32 %v1674, 0.0
  %v1701 = vmax.f32 %v1679, 0.0
  %v1702 = vmax.f32 %v1684, 0.0
  %v1703 = vsel %vm30, %v1687, 0.0
  %v1704 = vsel %vm30, %v1688, 0.0
  %v1705 = vadd.f32 %v1703, %v1704
  %v1706 = vsel %vm30, %v1689, 0.0
  %v1707 = vadd.f32 %v1705, %v1706
  %v1708 = vsel %vm30, %v1690, 0.0
  %v1709 = vadd.f32 %v1707, %v1708
  %v1710 = vsel %vm30, %v1691, 0.0
  %v1711 = vadd.f32 %v1709, %v1710
  %v1712 = vsel %vm30, %v1692, 0.0
  %v1713 = vadd.f32 %v1711, %v1712
  %v1714 = vsel %vm30, %v1693, 0.0
  %v1715 = vadd.f32 %v1713, %v1714
  %v1716 = vsel %vm30, %v1694, 0.0
  %v1717 = vadd.f32 %v1715, %v1716
  %v1718 = vsel %vm30, %v1695, 0.0
  %v1719 = vadd.f32 %v1717, %v1718
  %v1720 = vsel %vm30, %v1696, 0.0
  %v1721 = vadd.f32 %v1719, %v1720
  %v1722 = vsel %vm30, %v1697, 0.0
  %v1723 = vadd.f32 %v1721, %v1722
  %v1724 = vsel %vm30, %v1698, 0.0
  %v1725 = vadd.f32 %v1723, %v1724
  %v1726 = vsel %vm30, %v1699, 0.0
  %v1727 = vadd.f32 %v1725, %v1726
  %v1728 = vsel %vm30, %v1700, 0.0
  %v1729 = vadd.f32 %v1727, %v1728
  %v1730 = vsel %vm30, %v1701, 0.0
  %v1731 = vadd.f32 %v1729, %v1730
  %v1732 = vsel %vm30, %v1702, 0.0
  %v1733 = vadd.f32 %v1731, %v1732
  %v1734 = vrot.slane %v1733, 4
  %v1735 = vadd.f32 %v1733, %v1734
  %v1736 = vrot.slane %v1735, 2
  %v1737 = vadd.f32 %v1735, %v1736
  %v1738 = vrot.slane %v1737, 1
  %v1739 = vadd.f32 %v1737, %v1738
  %v1740 = vmul.f32 %v1739, 0.0078125
  %v1741 = vsub.f32 %v1687, %v1740
  %v1742 = vsub.f32 %v1688, %v1740
  %v1743 = vsub.f32 %v1689, %v1740
  %v1744 = vsub.f32 %v1690, %v1740
  %v1745 = vsub.f32 %v1691, %v1740
  %v1746 = vsub.f32 %v1692, %v1740
  %v1747 = vsub.f32 %v1693, %v1740
  %v1748 = vsub.f32 %v1694, %v1740
  %v1749 = vsub.f32 %v1695, %v1740
  %v1750 = vsub.f32 %v1696, %v1740
  %v1751 = vsub.f32 %v1697, %v1740
  %v1752 = vsub.f32 %v1698, %v1740
  %v1753 = vsub.f32 %v1699, %v1740
  %v1754 = vsub.f32 %v1700, %v1740
  %v1755 = vsub.f32 %v1701, %v1740
  %v1756 = vsub.f32 %v1702, %v1740
  %v1757 = vmul.f32 %v1741, %v1741
  %v1758 = vmul.f32 %v1742, %v1742
  %v1759 = vmul.f32 %v1743, %v1743
  %v1760 = vmul.f32 %v1744, %v1744
  %v1761 = vmul.f32 %v1745, %v1745
  %v1762 = vmul.f32 %v1746, %v1746
  %v1763 = vmul.f32 %v1747, %v1747
  %v1764 = vmul.f32 %v1748, %v1748
  %v1765 = vmul.f32 %v1749, %v1749
  %v1766 = vmul.f32 %v1750, %v1750
  %v1767 = vmul.f32 %v1751, %v1751
  %v1768 = vmul.f32 %v1752, %v1752
  %v1769 = vmul.f32 %v1753, %v1753
  %v1770 = vmul.f32 %v1754, %v1754
  %v1771 = vmul.f32 %v1755, %v1755
  %v1772 = vmul.f32 %v1756, %v1756
  %v1773 = vsel %vm30, %v1757, 0.0
  %v1774 = vsel %vm30, %v1758, 0.0
  %v1775 = vadd.f32 %v1773, %v1774
  %v1776 = vsel %vm30, %v1759, 0.0
  %v1777 = vadd.f32 %v1775, %v1776
  %v1778 = vsel %vm30, %v1760, 0.0
  %v1779 = vadd.f32 %v1777, %v1778
  %v1780 = vsel %vm30, %v1761, 0.0
  %v1781 = vadd.f32 %v1779, %v1780
  %v1782 = vsel %vm30, %v1762, 0.0
  %v1783 = vadd.f32 %v1781, %v1782
  %v1784 = vsel %vm30, %v1763, 0.0
  %v1785 = vadd.f32 %v1783, %v1784
  %v1786 = vsel %vm30, %v1764, 0.0
  %v1787 = vadd.f32 %v1785, %v1786
  %v1788 = vsel %vm30, %v1765, 0.0
  %v1789 = vadd.f32 %v1787, %v1788
  %v1790 = vsel %vm30, %v1766, 0.0
  %v1791 = vadd.f32 %v1789, %v1790
  %v1792 = vsel %vm30, %v1767, 0.0
  %v1793 = vadd.f32 %v1791, %v1792
  %v1794 = vsel %vm30, %v1768, 0.0
  %v1795 = vadd.f32 %v1793, %v1794
  %v1796 = vsel %vm30, %v1769, 0.0
  %v1797 = vadd.f32 %v1795, %v1796
  %v1798 = vsel %vm30, %v1770, 0.0
  %v1799 = vadd.f32 %v1797, %v1798
  %v1800 = vsel %vm30, %v1771, 0.0
  %v1801 = vadd.f32 %v1799, %v1800
  %v1802 = vsel %vm30, %v1772, 0.0
  %v1803 = vadd.f32 %v1801, %v1802
  %v1804 = vrot.slane %v1803, 4
  %v1805 = vadd.f32 %v1803, %v1804
  %v1806 = vrot.slane %v1805, 2
  %v1807 = vadd.f32 %v1805, %v1806
  %v1808 = vrot.slane %v1807, 1
  %v1809 = vadd.f32 %v1807, %v1808
  %v1810 = vmul.f32 %v1809, 0.0078125
  %v1811 = vadd.f32 %v1810, 1e-05
  %v1812 = vrsqrt.pop %v1811
  %v1813 = vmul.f32 %v1741, %v1812
  %v1814 = vmul.f32 %v1742, %v1812
  %v1815 = vmul.f32 %v1743, %v1812
  %v1816 = vmul.f32 %v1744, %v1812
  %v1817 = vmul.f32 %v1745, %v1812
  %v1818 = vmul.f32 %v1746, %v1812
  %v1819 = vmul.f32 %v1747, %v1812
  %v1820 = vmul.f32 %v1748, %v1812
  %v1821 = vmul.f32 %v1749, %v1812
  %v1822 = vmul.f32 %v1750, %v1812
  %v1823 = vmul.f32 %v1751, %v1812
  %v1824 = vmul.f32 %v1752, %v1812
  %v1825 = vmul.f32 %v1753, %v1812
  %v1826 = vmul.f32 %v1754, %v1812
  %v1827 = vmul.f32 %v1755, %v1812
  %v1828 = vmul.f32 %v1756, %v1812
  %v1829 = vld [vmem:[%s2 + $0x1] sm:$0x1]
  %v1830 = vlaneseq
  %v1831 = vshrl.u32 %v1830, 7
  %v1832 = vsub.s32 0, %v1831
  %v1833 = vrot.slane %v1829, %v1832
  %v1834 = vmul.f32 %v1813, %v1833
  %v1835 = vmul.f32 %v1814, %v1833
  %v1836 = vmul.f32 %v1815, %v1833
  %v1837 = vmul.f32 %v1816, %v1833
  %v1838 = vmul.f32 %v1817, %v1833
  %v1839 = vmul.f32 %v1818, %v1833
  %v1840 = vmul.f32 %v1819, %v1833
  %v1841 = vmul.f32 %v1820, %v1833
  %v1842 = vmul.f32 %v1821, %v1833
  %v1843 = vmul.f32 %v1822, %v1833
  %v1844 = vmul.f32 %v1823, %v1833
  %v1845 = vmul.f32 %v1824, %v1833
  %v1846 = vmul.f32 %v1825, %v1833
  %v1847 = vmul.f32 %v1826, %v1833
  %v1848 = vmul.f32 %v1827, %v1833
  %v1849 = vmul.f32 %v1828, %v1833
  %v1850 = vld [vmem:[%s2 + $0x2] sm:$0x1]
  %v1851 = vlaneseq
  %v1852 = vshrl.u32 %v1851, 7
  %v1853 = vsub.s32 0, %v1852
  %v1854 = vrot.slane %v1850, %v1853
  %v1855 = vadd.f32 %v1834, %v1854
  %v1856 = vadd.f32 %v1835, %v1854
  %v1857 = vadd.f32 %v1836, %v1854
  %v1858 = vadd.f32 %v1837, %v1854
  %v1859 = vadd.f32 %v1838, %v1854
  %v1860 = vadd.f32 %v1839, %v1854
  %v1861 = vadd.f32 %v1840, %v1854
  %v1862 = vadd.f32 %v1841, %v1854
  %v1863 = vadd.f32 %v1842, %v1854
  %v1864 = vadd.f32 %v1843, %v1854
  %v1865 = vadd.f32 %v1844, %v1854
  %v1866 = vadd.f32 %v1845, %v1854
  %v1867 = vadd.f32 %v1846, %v1854
  %v1868 = vadd.f32 %v1847, %v1854
  %v1869 = vadd.f32 %v1848, %v1854
  %v1870 = vadd.f32 %v1849, %v1854
  %1871 = vst.msk [vmem:[%s3] sm:$0xff] %vm30, %v1855
  %1872 = vst.msk [vmem:[%s3 + $0x8] sm:$0xff] %vm30, %v1856
  %1873 = vst.msk [vmem:[%s3 + $0x10] sm:$0xff] %vm30, %v1857
  %1874 = vst.msk [vmem:[%s3 + $0x18] sm:$0xff] %vm30, %v1858
  %1875 = vst.msk [vmem:[%s3 + $0x20] sm:$0xff] %vm30, %v1859
  %1876 = vst.msk [vmem:[%s3 + $0x28] sm:$0xff] %vm30, %v1860
  %1877 = vst.msk [vmem:[%s3 + $0x30] sm:$0xff] %vm30, %v1861
  %1878 = vst.msk [vmem:[%s3 + $0x38] sm:$0xff] %vm30, %v1862
  %1879 = vst.msk [vmem:[%s3 + $0x40] sm:$0xff] %vm30, %v1863
  %1880 = vst.msk [vmem:[%s3 + $0x48] sm:$0xff] %vm30, %v1864
  %1881 = vst.msk [vmem:[%s3 + $0x50] sm:$0xff] %vm30, %v1865
  %1882 = vst.msk [vmem:[%s3 + $0x58] sm:$0xff] %vm30, %v1866
  %1883 = vst.msk [vmem:[%s3 + $0x60] sm:$0xff] %vm30, %v1867
  %1884 = vst.msk [vmem:[%s3 + $0x68] sm:$0xff] %vm30, %v1868
  %1885 = vst.msk [vmem:[%s3 + $0x70] sm:$0xff] %vm30, %v1869
  %1886 = vst.msk [vmem:[%s3 + $0x78] sm:$0xff] %vm30, %v1870
  // Predicated region
  $region14: #{_lambda_.2} parent=0 // pred_check
    _
  $region15: #{_lambda_.2} parent=0 // pred_check_branch
    %1888 = sbr.rel (0) target = $region17
  $region16: #{_lambda_.2} parent=0 // pred_region
    _
  $region17: #{_lambda_.2} parent=0 // pred_fallthru
    _
  // Predicated region
  $region18: #{_lambda_.2} parent=0 // pred_check
    _
  $region19: #{_lambda_.2} parent=0 // pred_check_branch
    %1890 = sbr.rel (0) target = $region21
  $region20: #{_lambda_.2} parent=0 // pred_region
    _
  $region21: #{_lambda_.2} parent=0 // pred_fallthru
    _

// kernel: _lambda_.3
$region0: #{_lambda_.3}
  #allocation0 [shape = 'u32[]', space=smem, size = 0x4, offset = 0x4, fixed_abs, tag = 'smem constant byte address 0x4 - core index']
  #allocation1 [shape = 'u32[144,128]{1,0:T(1,128)}', space=vmem, size = 0x12000, scoped, tag = 'internal scratch']
  #allocation2 [shape = 'f32[512,128]{1,0:T(8,128)}', space=vmem, size = 0x40000, scoped, tag = 'scratch operand']
  %s0 = inlined_call_operand.vmem [shape: f32[2,19,19,8], index: 0, kind: input, shape index: {}]
  %s1 = inlined_call_operand.vmem [shape: f32[128,4], index: 1, kind: input, shape index: {}]
  %s2 = inlined_call_operand.vmem [shape: f32[3,4], index: 2, kind: input, shape index: {}]
  %s3 = inlined_call_operand.vmem [shape: f32[512,4], index: 3, kind: output, shape index: {}]
  %s4 = sld [smem:[#allocation0]]
  $region22: #{_lambda_.3} parent=0
    _
  %s6 = ssub.s32 1, %s4
  %s7 = scalar_select 0, %s6, %s4
  // Predicated region
  $region2: #{_lambda_.3} parent=0 // pred_check
    _
  $region3: #{_lambda_.3} parent=0 // pred_check_branch
    %9 = sbr.rel (0) target = $region5
  $region4: #{_lambda_.3} parent=0 // pred_region
    _
  $region5: #{_lambda_.3} parent=0 // pred_fallthru
    _
  // Predicated region
  $region6: #{_lambda_.3} parent=0 // pred_check
    _
  $region7: #{_lambda_.3} parent=0 // pred_check_branch
    %11 = sbr.rel (0) target = $region9
  $region8: #{_lambda_.3} parent=0 // pred_region
    _
  $region9: #{_lambda_.3} parent=0 // pred_fallthru
    _
  // Predicated region
  $region10: #{_lambda_.3} parent=0 // pred_check
    _
  $region11: #{_lambda_.3} parent=0 // pred_check_branch
    %13 = sbr.rel (0) target = $region13
  $region12: #{_lambda_.3} parent=0 // pred_region
    _
  $region13: #{_lambda_.3} parent=0 // pred_fallthru
    _
  %v14 = vld [vmem:[%s0] sm:$0xff]
  %v15 = vld [vmem:[%s0 + $0x8] sm:$0xff]
  %v16 = vld [vmem:[%s0 + $0x18] sm:$0xff]
  %v17 = vld [vmem:[%s0 + $0x20] sm:$0xff]
  %v18 = vld [vmem:[%s0 + $0x30] sm:$0xff]
  %v19 = vld [vmem:[%s0 + $0x38] sm:$0xff]
  %v20 = vld [vmem:[%s0 + $0x48] sm:$0xff]
  %v21 = vld [vmem:[%s0 + $0x50] sm:$0xff]
  %v22 = vld [vmem:[%s0 + $0x60] sm:$0xff]
  %v23 = vld [vmem:[%s0 + $0x68] sm:$0xff]
  %v24 = vld [vmem:[%s0 + $0x78] sm:$0xff]
  %v25 = vld [vmem:[%s0 + $0x80] sm:$0xff]
  %v26 = vld [vmem:[%s0 + $0x90] sm:$0xff]
  %v27 = vld [vmem:[%s0 + $0x98] sm:$0xff]
  %v28 = vld [vmem:[%s0 + $0xa8] sm:$0xff]
  %v29 = vld [vmem:[%s0 + $0xb0] sm:$0xff]
  %v30 = vld [vmem:[%s0 + $0xc0] sm:$0xff]
  %v31 = vld [vmem:[%s0 + $0xc8] sm:$0xff]
  %v32 = vld [vmem:[%s0 + $0xd8] sm:$0xff]
  %v33 = vld [vmem:[%s0 + $0xe0] sm:$0xff]
  %v34 = vld [vmem:[%s0 + $0xf0] sm:$0xff]
  %v35 = vld [vmem:[%s0 + $0xf8] sm:$0xff]
  %v36 = vld [vmem:[%s0 + $0x108] sm:$0xff]
  %v37 = vld [vmem:[%s0 + $0x110] sm:$0xff]
  %v38 = vld [vmem:[%s0 + $0x120] sm:$0xff]
  %v39 = vld [vmem:[%s0 + $0x128] sm:$0xff]
  %v40 = vld [vmem:[%s0 + $0x138] sm:$0xff]
  %v41 = vld [vmem:[%s0 + $0x140] sm:$0xff]
  %v42 = vld [vmem:[%s0 + $0x150] sm:$0xff]
  %v43 = vld [vmem:[%s0 + $0x158] sm:$0xff]
  %v44 = vld [vmem:[%s0 + $0x168] sm:$0xff]
  %v45 = vld [vmem:[%s0 + $0x170] sm:$0xff]
  %v46 = vld [vmem:[%s0 + $0x1c8] sm:$0xff]
  %v47 = vld [vmem:[%s0 + $0x1d0] sm:$0xff]
  %v48 = vld [vmem:[%s0 + $0x1e0] sm:$0xff]
  %v49 = vld [vmem:[%s0 + $0x1e8] sm:$0xff]
  %v50 = vld [vmem:[%s0 + $0x1f8] sm:$0xff]
  %v51 = vld [vmem:[%s0 + $0x200] sm:$0xff]
  %v52 = vld [vmem:[%s0 + $0x210] sm:$0xff]
  %v53 = vld [vmem:[%s0 + $0x218] sm:$0xff]
  %v54 = vld [vmem:[%s0 + $0x228] sm:$0xff]
  %v55 = vld [vmem:[%s0 + $0x230] sm:$0xff]
  %v56 = vld [vmem:[%s0 + $0x240] sm:$0xff]
  %v57 = vld [vmem:[%s0 + $0x248] sm:$0xff]
  %v58 = vld [vmem:[%s0 + $0x258] sm:$0xff]
  %v59 = vld [vmem:[%s0 + $0x260] sm:$0xff]
  %v60 = vld [vmem:[%s0 + $0x270] sm:$0xff]
  %v61 = vld [vmem:[%s0 + $0x278] sm:$0xff]
  %v62 = vld [vmem:[%s0 + $0x288] sm:$0xff]
  %v63 = vld [vmem:[%s0 + $0x290] sm:$0xff]
  %v64 = vld [vmem:[%s0 + $0x2a0] sm:$0xff]
  %v65 = vld [vmem:[%s0 + $0x2a8] sm:$0xff]
  %v66 = vld [vmem:[%s0 + $0x2b8] sm:$0xff]
  %v67 = vld [vmem:[%s0 + $0x2c0] sm:$0xff]
  %v68 = vld [vmem:[%s0 + $0x2d0] sm:$0xff]
  %v69 = vld [vmem:[%s0 + $0x2d8] sm:$0xff]
  %v70 = vld [vmem:[%s0 + $0x2e8] sm:$0xff]
  %v71 = vld [vmem:[%s0 + $0x2f0] sm:$0xff]
  %v72 = vld [vmem:[%s0 + $0x300] sm:$0xff]
  %v73 = vld [vmem:[%s0 + $0x308] sm:$0xff]
  %v74 = vld [vmem:[%s0 + $0x318] sm:$0xff]
  %v75 = vld [vmem:[%s0 + $0x320] sm:$0xff]
  %v76 = vld [vmem:[%s0 + $0x330] sm:$0xff]
  %v77 = vld [vmem:[%s0 + $0x338] sm:$0xff]
  %vm78 = vcmask 64512
  %79 = vst.msk [vmem:[#allocation2] sm:$0xff] %vm78, %v14
  %80 = vst.msk [vmem:[#allocation2 + $0x8] sm:$0xff] %vm78, %v15
  %81 = vst.msk [vmem:[#allocation2 + $0x10] sm:$0xff] %vm78, %v16
  %82 = vst.msk [vmem:[#allocation2 + $0x18] sm:$0xff] %vm78, %v17
  %83 = vst.msk [vmem:[#allocation2 + $0x20] sm:$0xff] %vm78, %v18
  %84 = vst.msk [vmem:[#allocation2 + $0x28] sm:$0xff] %vm78, %v19
  %85 = vst.msk [vmem:[#allocation2 + $0x30] sm:$0xff] %vm78, %v20
  %86 = vst.msk [vmem:[#allocation2 + $0x38] sm:$0xff] %vm78, %v21
  %87 = vst.msk [vmem:[#allocation2 + $0x40] sm:$0xff] %vm78, %v22
  %88 = vst.msk [vmem:[#allocation2 + $0x48] sm:$0xff] %vm78, %v23
  %89 = vst.msk [vmem:[#allocation2 + $0x50] sm:$0xff] %vm78, %v24
  %90 = vst.msk [vmem:[#allocation2 + $0x58] sm:$0xff] %vm78, %v25
  %91 = vst.msk [vmem:[#allocation2 + $0x60] sm:$0xff] %vm78, %v26
  %92 = vst.msk [vmem:[#allocation2 + $0x68] sm:$0xff] %vm78, %v27
  %93 = vst.msk [vmem:[#allocation2 + $0x70] sm:$0xff] %vm78, %v28
  %94 = vst.msk [vmem:[#allocation2 + $0x78] sm:$0xff] %vm78, %v29
  %95 = vst.msk [vmem:[#allocation2 + $0x80] sm:$0xff] %vm78, %v30
  %96 = vst.msk [vmem:[#allocation2 + $0x88] sm:$0xff] %vm78, %v31
  %97 = vst.msk [vmem:[#allocation2 + $0x90] sm:$0xff] %vm78, %v32
  %98 = vst.msk [vmem:[#allocation2 + $0x98] sm:$0xff] %vm78, %v33
  %99 = vst.msk [vmem:[#allocation2 + $0xa0] sm:$0xff] %vm78, %v34
  %100 = vst.msk [vmem:[#allocation2 + $0xa8] sm:$0xff] %vm78, %v35
  %101 = vst.msk [vmem:[#allocation2 + $0xb0] sm:$0xff] %vm78, %v36
  %102 = vst.msk [vmem:[#allocation2 + $0xb8] sm:$0xff] %vm78, %v37
  %103 = vst.msk [vmem:[#allocation2 + $0xc0] sm:$0xff] %vm78, %v38
  %104 = vst.msk [vmem:[#allocation2 + $0xc8] sm:$0xff] %vm78, %v39
  %105 = vst.msk [vmem:[#allocation2 + $0xd0] sm:$0xff] %vm78, %v40
  %106 = vst.msk [vmem:[#allocation2 + $0xd8] sm:$0xff] %vm78, %v41
  %107 = vst.msk [vmem:[#allocation2 + $0xe0] sm:$0xff] %vm78, %v42
  %108 = vst.msk [vmem:[#allocation2 + $0xe8] sm:$0xff] %vm78, %v43
  %109 = vst.msk [vmem:[#allocation2 + $0xf0] sm:$0xff] %vm78, %v44
  %110 = vst.msk [vmem:[#allocation2 + $0xf8] sm:$0xff] %vm78, %v45
  %111 = vst.msk [vmem:[#allocation2 + $0x100] sm:$0xff] %vm78, %v46
  %112 = vst.msk [vmem:[#allocation2 + $0x108] sm:$0xff] %vm78, %v47
  %113 = vst.msk [vmem:[#allocation2 + $0x110] sm:$0xff] %vm78, %v48
  %114 = vst.msk [vmem:[#allocation2 + $0x118] sm:$0xff] %vm78, %v49
  %115 = vst.msk [vmem:[#allocation2 + $0x120] sm:$0xff] %vm78, %v50
  %116 = vst.msk [vmem:[#allocation2 + $0x128] sm:$0xff] %vm78, %v51
  %117 = vst.msk [vmem:[#allocation2 + $0x130] sm:$0xff] %vm78, %v52
  %118 = vst.msk [vmem:[#allocation2 + $0x138] sm:$0xff] %vm78, %v53
  %119 = vst.msk [vmem:[#allocation2 + $0x140] sm:$0xff] %vm78, %v54
  %120 = vst.msk [vmem:[#allocation2 + $0x148] sm:$0xff] %vm78, %v55
  %121 = vst.msk [vmem:[#allocation2 + $0x150] sm:$0xff] %vm78, %v56
  %122 = vst.msk [vmem:[#allocation2 + $0x158] sm:$0xff] %vm78, %v57
  %123 = vst.msk [vmem:[#allocation2 + $0x160] sm:$0xff] %vm78, %v58
  %124 = vst.msk [vmem:[#allocation2 + $0x168] sm:$0xff] %vm78, %v59
  %125 = vst.msk [vmem:[#allocation2 + $0x170] sm:$0xff] %vm78, %v60
  %126 = vst.msk [vmem:[#allocation2 + $0x178] sm:$0xff] %vm78, %v61
  %127 = vst.msk [vmem:[#allocation2 + $0x180] sm:$0xff] %vm78, %v62
  %128 = vst.msk [vmem:[#allocation2 + $0x188] sm:$0xff] %vm78, %v63
  %129 = vst.msk [vmem:[#allocation2 + $0x190] sm:$0xff] %vm78, %v64
  %130 = vst.msk [vmem:[#allocation2 + $0x198] sm:$0xff] %vm78, %v65
  %131 = vst.msk [vmem:[#allocation2 + $0x1a0] sm:$0xff] %vm78, %v66
  %132 = vst.msk [vmem:[#allocation2 + $0x1a8] sm:$0xff] %vm78, %v67
  %133 = vst.msk [vmem:[#allocation2 + $0x1b0] sm:$0xff] %vm78, %v68
  %134 = vst.msk [vmem:[#allocation2 + $0x1b8] sm:$0xff] %vm78, %v69
  %135 = vst.msk [vmem:[#allocation2 + $0x1c0] sm:$0xff] %vm78, %v70
  %136 = vst.msk [vmem:[#allocation2 + $0x1c8] sm:$0xff] %vm78, %v71
  %137 = vst.msk [vmem:[#allocation2 + $0x1d0] sm:$0xff] %vm78, %v72
  %138 = vst.msk [vmem:[#allocation2 + $0x1d8] sm:$0xff] %vm78, %v73
  %139 = vst.msk [vmem:[#allocation2 + $0x1e0] sm:$0xff] %vm78, %v74
  %140 = vst.msk [vmem:[#allocation2 + $0x1e8] sm:$0xff] %vm78, %v75
  %141 = vst.msk [vmem:[#allocation2 + $0x1f0] sm:$0xff] %vm78, %v76
  %142 = vst.msk [vmem:[#allocation2 + $0x1f8] sm:$0xff] %vm78, %v77
  %v143 = vld [vmem:[%s0 + $0x1] sm:$0xff]
  %v144 = vld [vmem:[%s0 + $0x9] sm:$0xff]
  %v145 = vld [vmem:[%s0 + $0x19] sm:$0xff]
  %v146 = vld [vmem:[%s0 + $0x21] sm:$0xff]
  %v147 = vld [vmem:[%s0 + $0x31] sm:$0xff]
  %v148 = vld [vmem:[%s0 + $0x39] sm:$0xff]
  %v149 = vld [vmem:[%s0 + $0x49] sm:$0xff]
  %v150 = vld [vmem:[%s0 + $0x51] sm:$0xff]
  %v151 = vld [vmem:[%s0 + $0x61] sm:$0xff]
  %v152 = vld [vmem:[%s0 + $0x69] sm:$0xff]
  %v153 = vld [vmem:[%s0 + $0x79] sm:$0xff]
  %v154 = vld [vmem:[%s0 + $0x81] sm:$0xff]
  %v155 = vld [vmem:[%s0 + $0x91] sm:$0xff]
  %v156 = vld [vmem:[%s0 + $0x99] sm:$0xff]
  %v157 = vld [vmem:[%s0 + $0xa9] sm:$0xff]
  %v158 = vld [vmem:[%s0 + $0xb1] sm:$0xff]
  %v159 = vld [vmem:[%s0 + $0xc1] sm:$0xff]
  %v160 = vld [vmem:[%s0 + $0xc9] sm:$0xff]
  %v161 = vld [vmem:[%s0 + $0xd9] sm:$0xff]
  %v162 = vld [vmem:[%s0 + $0xe1] sm:$0xff]
  %v163 = vld [vmem:[%s0 + $0xf1] sm:$0xff]
  %v164 = vld [vmem:[%s0 + $0xf9] sm:$0xff]
  %v165 = vld [vmem:[%s0 + $0x109] sm:$0xff]
  %v166 = vld [vmem:[%s0 + $0x111] sm:$0xff]
  %v167 = vld [vmem:[%s0 + $0x121] sm:$0xff]
  %v168 = vld [vmem:[%s0 + $0x129] sm:$0xff]
  %v169 = vld [vmem:[%s0 + $0x139] sm:$0xff]
  %v170 = vld [vmem:[%s0 + $0x141] sm:$0xff]
  %v171 = vld [vmem:[%s0 + $0x151] sm:$0xff]
  %v172 = vld [vmem:[%s0 + $0x159] sm:$0xff]
  %v173 = vld [vmem:[%s0 + $0x169] sm:$0xff]
  %v174 = vld [vmem:[%s0 + $0x171] sm:$0xff]
  %v175 = vld [vmem:[%s0 + $0x1c9] sm:$0xff]
  %v176 = vld [vmem:[%s0 + $0x1d1] sm:$0xff]
  %v177 = vld [vmem:[%s0 + $0x1e1] sm:$0xff]
  %v178 = vld [vmem:[%s0 + $0x1e9] sm:$0xff]
  %v179 = vld [vmem:[%s0 + $0x1f9] sm:$0xff]
  %v180 = vld [vmem:[%s0 + $0x201] sm:$0xff]
  %v181 = vld [vmem:[%s0 + $0x211] sm:$0xff]
  %v182 = vld [vmem:[%s0 + $0x219] sm:$0xff]
  %v183 = vld [vmem:[%s0 + $0x229] sm:$0xff]
  %v184 = vld [vmem:[%s0 + $0x231] sm:$0xff]
  %v185 = vld [vmem:[%s0 + $0x241] sm:$0xff]
  %v186 = vld [vmem:[%s0 + $0x249] sm:$0xff]
  %v187 = vld [vmem:[%s0 + $0x259] sm:$0xff]
  %v188 = vld [vmem:[%s0 + $0x261] sm:$0xff]
  %v189 = vld [vmem:[%s0 + $0x271] sm:$0xff]
  %v190 = vld [vmem:[%s0 + $0x279] sm:$0xff]
  %v191 = vld [vmem:[%s0 + $0x289] sm:$0xff]
  %v192 = vld [vmem:[%s0 + $0x291] sm:$0xff]
  %v193 = vld [vmem:[%s0 + $0x2a1] sm:$0xff]
  %v194 = vld [vmem:[%s0 + $0x2a9] sm:$0xff]
  %v195 = vld [vmem:[%s0 + $0x2b9] sm:$0xff]
  %v196 = vld [vmem:[%s0 + $0x2c1] sm:$0xff]
  %v197 = vld [vmem:[%s0 + $0x2d1] sm:$0xff]
  %v198 = vld [vmem:[%s0 + $0x2d9] sm:$0xff]
  %v199 = vld [vmem:[%s0 + $0x2e9] sm:$0xff]
  %v200 = vld [vmem:[%s0 + $0x2f1] sm:$0xff]
  %v201 = vld [vmem:[%s0 + $0x301] sm:$0xff]
  %v202 = vld [vmem:[%s0 + $0x309] sm:$0xff]
  %v203 = vld [vmem:[%s0 + $0x319] sm:$0xff]
  %v204 = vld [vmem:[%s0 + $0x321] sm:$0xff]
  %v205 = vld [vmem:[%s0 + $0x331] sm:$0xff]
  %v206 = vld [vmem:[%s0 + $0x339] sm:$0xff]
  %271 = vrot.lane.b32.xlu0 %v143, 8
  %v272 = vpop.permute.xlu0 %271
  %273 = vrot.lane.b32.xlu0 %v144, 8
  %v274 = vpop.permute.xlu0 %273
  %275 = vrot.lane.b32.xlu0 %v145, 8
  %v276 = vpop.permute.xlu0 %275
  %277 = vrot.lane.b32.xlu0 %v146, 8
  %v278 = vpop.permute.xlu0 %277
  %279 = vrot.lane.b32.xlu0 %v147, 8
  %v280 = vpop.permute.xlu0 %279
  %281 = vrot.lane.b32.xlu0 %v148, 8
  %v282 = vpop.permute.xlu0 %281
  %283 = vrot.lane.b32.xlu0 %v149, 8
  %v284 = vpop.permute.xlu0 %283
  %285 = vrot.lane.b32.xlu0 %v150, 8
  %v286 = vpop.permute.xlu0 %285
  %287 = vrot.lane.b32.xlu0 %v151, 8
  %v288 = vpop.permute.xlu0 %287
  %289 = vrot.lane.b32.xlu0 %v152, 8
  %v290 = vpop.permute.xlu0 %289
  %291 = vrot.lane.b32.xlu0 %v153, 8
  %v292 = vpop.permute.xlu0 %291
  %293 = vrot.lane.b32.xlu0 %v154, 8
  %v294 = vpop.permute.xlu0 %293
  %295 = vrot.lane.b32.xlu0 %v155, 8
  %v296 = vpop.permute.xlu0 %295
  %297 = vrot.lane.b32.xlu0 %v156, 8
  %v298 = vpop.permute.xlu0 %297
  %299 = vrot.lane.b32.xlu0 %v157, 8
  %v300 = vpop.permute.xlu0 %299
  %301 = vrot.lane.b32.xlu0 %v158, 8
  %v302 = vpop.permute.xlu0 %301
  %303 = vrot.lane.b32.xlu0 %v159, 8
  %v304 = vpop.permute.xlu0 %303
  %305 = vrot.lane.b32.xlu0 %v160, 8
  %v306 = vpop.permute.xlu0 %305
  %307 = vrot.lane.b32.xlu0 %v161, 8
  %v308 = vpop.permute.xlu0 %307
  %309 = vrot.lane.b32.xlu0 %v162, 8
  %v310 = vpop.permute.xlu0 %309
  %311 = vrot.lane.b32.xlu0 %v163, 8
  %v312 = vpop.permute.xlu0 %311
  %313 = vrot.lane.b32.xlu0 %v164, 8
  %v314 = vpop.permute.xlu0 %313
  %315 = vrot.lane.b32.xlu0 %v165, 8
  %v316 = vpop.permute.xlu0 %315
  %317 = vrot.lane.b32.xlu0 %v166, 8
  %v318 = vpop.permute.xlu0 %317
  %319 = vrot.lane.b32.xlu0 %v167, 8
  %v320 = vpop.permute.xlu0 %319
  %321 = vrot.lane.b32.xlu0 %v168, 8
  %v322 = vpop.permute.xlu0 %321
  %323 = vrot.lane.b32.xlu0 %v169, 8
  %v324 = vpop.permute.xlu0 %323
  %325 = vrot.lane.b32.xlu0 %v170, 8
  %v326 = vpop.permute.xlu0 %325
  %327 = vrot.lane.b32.xlu0 %v171, 8
  %v328 = vpop.permute.xlu0 %327
  %329 = vrot.lane.b32.xlu0 %v172, 8
  %v330 = vpop.permute.xlu0 %329
  %331 = vrot.lane.b32.xlu0 %v173, 8
  %v332 = vpop.permute.xlu0 %331
  %333 = vrot.lane.b32.xlu0 %v174, 8
  %v334 = vpop.permute.xlu0 %333
  %335 = vrot.lane.b32.xlu0 %v175, 8
  %v336 = vpop.permute.xlu0 %335
  %337 = vrot.lane.b32.xlu0 %v176, 8
  %v338 = vpop.permute.xlu0 %337
  %339 = vrot.lane.b32.xlu0 %v177, 8
  %v340 = vpop.permute.xlu0 %339
  %341 = vrot.lane.b32.xlu0 %v178, 8
  %v342 = vpop.permute.xlu0 %341
  %343 = vrot.lane.b32.xlu0 %v179, 8
  %v344 = vpop.permute.xlu0 %343
  %345 = vrot.lane.b32.xlu0 %v180, 8
  %v346 = vpop.permute.xlu0 %345
  %347 = vrot.lane.b32.xlu0 %v181, 8
  %v348 = vpop.permute.xlu0 %347
  %349 = vrot.lane.b32.xlu0 %v182, 8
  %v350 = vpop.permute.xlu0 %349
  %351 = vrot.lane.b32.xlu0 %v183, 8
  %v352 = vpop.permute.xlu0 %351
  %353 = vrot.lane.b32.xlu0 %v184, 8
  %v354 = vpop.permute.xlu0 %353
  %355 = vrot.lane.b32.xlu0 %v185, 8
  %v356 = vpop.permute.xlu0 %355
  %357 = vrot.lane.b32.xlu0 %v186, 8
  %v358 = vpop.permute.xlu0 %357
  %359 = vrot.lane.b32.xlu0 %v187, 8
  %v360 = vpop.permute.xlu0 %359
  %361 = vrot.lane.b32.xlu0 %v188, 8
  %v362 = vpop.permute.xlu0 %361
  %363 = vrot.lane.b32.xlu0 %v189, 8
  %v364 = vpop.permute.xlu0 %363
  %365 = vrot.lane.b32.xlu0 %v190, 8
  %v366 = vpop.permute.xlu0 %365
  %367 = vrot.lane.b32.xlu0 %v191, 8
  %v368 = vpop.permute.xlu0 %367
  %369 = vrot.lane.b32.xlu0 %v192, 8
  %v370 = vpop.permute.xlu0 %369
  %371 = vrot.lane.b32.xlu0 %v193, 8
  %v372 = vpop.permute.xlu0 %371
  %373 = vrot.lane.b32.xlu0 %v194, 8
  %v374 = vpop.permute.xlu0 %373
  %375 = vrot.lane.b32.xlu0 %v195, 8
  %v376 = vpop.permute.xlu0 %375
  %377 = vrot.lane.b32.xlu0 %v196, 8
  %v378 = vpop.permute.xlu0 %377
  %379 = vrot.lane.b32.xlu0 %v197, 8
  %v380 = vpop.permute.xlu0 %379
  %381 = vrot.lane.b32.xlu0 %v198, 8
  %v382 = vpop.permute.xlu0 %381
  %383 = vrot.lane.b32.xlu0 %v199, 8
  %v384 = vpop.permute.xlu0 %383
  %385 = vrot.lane.b32.xlu0 %v200, 8
  %v386 = vpop.permute.xlu0 %385
  %387 = vrot.lane.b32.xlu0 %v201, 8
  %v388 = vpop.permute.xlu0 %387
  %389 = vrot.lane.b32.xlu0 %v202, 8
  %v390 = vpop.permute.xlu0 %389
  %391 = vrot.lane.b32.xlu0 %v203, 8
  %v392 = vpop.permute.xlu0 %391
  %393 = vrot.lane.b32.xlu0 %v204, 8
  %v394 = vpop.permute.xlu0 %393
  %395 = vrot.lane.b32.xlu0 %v205, 8
  %v396 = vpop.permute.xlu0 %395
  %397 = vrot.lane.b32.xlu0 %v206, 8
  %v398 = vpop.permute.xlu0 %397
  %vm463 = vcmask 130112
  %464 = vst.msk [vmem:[#allocation2] sm:$0xff] %vm463, %v272
  %465 = vst.msk [vmem:[#allocation2 + $0x8] sm:$0xff] %vm463, %v274
  %466 = vst.msk [vmem:[#allocation2 + $0x10] sm:$0xff] %vm463, %v276
  %467 = vst.msk [vmem:[#allocation2 + $0x18] sm:$0xff] %vm463, %v278
  %468 = vst.msk [vmem:[#allocation2 + $0x20] sm:$0xff] %vm463, %v280
  %469 = vst.msk [vmem:[#allocation2 + $0x28] sm:$0xff] %vm463, %v282
  %470 = vst.msk [vmem:[#allocation2 + $0x30] sm:$0xff] %vm463, %v284
  %471 = vst.msk [vmem:[#allocation2 + $0x38] sm:$0xff] %vm463, %v286
  %472 = vst.msk [vmem:[#allocation2 + $0x40] sm:$0xff] %vm463, %v288
  %473 = vst.msk [vmem:[#allocation2 + $0x48] sm:$0xff] %vm463, %v290
  %474 = vst.msk [vmem:[#allocation2 + $0x50] sm:$0xff] %vm463, %v292
  %475 = vst.msk [vmem:[#allocation2 + $0x58] sm:$0xff] %vm463, %v294
  %476 = vst.msk [vmem:[#allocation2 + $0x60] sm:$0xff] %vm463, %v296
  %477 = vst.msk [vmem:[#allocation2 + $0x68] sm:$0xff] %vm463, %v298
  %478 = vst.msk [vmem:[#allocation2 + $0x70] sm:$0xff] %vm463, %v300
  %479 = vst.msk [vmem:[#allocation2 + $0x78] sm:$0xff] %vm463, %v302
  %480 = vst.msk [vmem:[#allocation2 + $0x80] sm:$0xff] %vm463, %v304
  %481 = vst.msk [vmem:[#allocation2 + $0x88] sm:$0xff] %vm463, %v306
  %482 = vst.msk [vmem:[#allocation2 + $0x90] sm:$0xff] %vm463, %v308
  %483 = vst.msk [vmem:[#allocation2 + $0x98] sm:$0xff] %vm463, %v310
  %484 = vst.msk [vmem:[#allocation2 + $0xa0] sm:$0xff] %vm463, %v312
  %485 = vst.msk [vmem:[#allocation2 + $0xa8] sm:$0xff] %vm463, %v314
  %486 = vst.msk [vmem:[#allocation2 + $0xb0] sm:$0xff] %vm463, %v316
  %487 = vst.msk [vmem:[#allocation2 + $0xb8] sm:$0xff] %vm463, %v318
  %488 = vst.msk [vmem:[#allocation2 + $0xc0] sm:$0xff] %vm463, %v320
  %489 = vst.msk [vmem:[#allocation2 + $0xc8] sm:$0xff] %vm463, %v322
  %490 = vst.msk [vmem:[#allocation2 + $0xd0] sm:$0xff] %vm463, %v324
  %491 = vst.msk [vmem:[#allocation2 + $0xd8] sm:$0xff] %vm463, %v326
  %492 = vst.msk [vmem:[#allocation2 + $0xe0] sm:$0xff] %vm463, %v328
  %493 = vst.msk [vmem:[#allocation2 + $0xe8] sm:$0xff] %vm463, %v330
  %494 = vst.msk [vmem:[#allocation2 + $0xf0] sm:$0xff] %vm463, %v332
  %495 = vst.msk [vmem:[#allocation2 + $0xf8] sm:$0xff] %vm463, %v334
  %496 = vst.msk [vmem:[#allocation2 + $0x100] sm:$0xff] %vm463, %v336
  %497 = vst.msk [vmem:[#allocation2 + $0x108] sm:$0xff] %vm463, %v338
  %498 = vst.msk [vmem:[#allocation2 + $0x110] sm:$0xff] %vm463, %v340
  %499 = vst.msk [vmem:[#allocation2 + $0x118] sm:$0xff] %vm463, %v342
  %500 = vst.msk [vmem:[#allocation2 + $0x120] sm:$0xff] %vm463, %v344
  %501 = vst.msk [vmem:[#allocation2 + $0x128] sm:$0xff] %vm463, %v346
  %502 = vst.msk [vmem:[#allocation2 + $0x130] sm:$0xff] %vm463, %v348
  %503 = vst.msk [vmem:[#allocation2 + $0x138] sm:$0xff] %vm463, %v350
  %504 = vst.msk [vmem:[#allocation2 + $0x140] sm:$0xff] %vm463, %v352
  %505 = vst.msk [vmem:[#allocation2 + $0x148] sm:$0xff] %vm463, %v354
  %506 = vst.msk [vmem:[#allocation2 + $0x150] sm:$0xff] %vm463, %v356
  %507 = vst.msk [vmem:[#allocation2 + $0x158] sm:$0xff] %vm463, %v358
  %508 = vst.msk [vmem:[#allocation2 + $0x160] sm:$0xff] %vm463, %v360
  %509 = vst.msk [vmem:[#allocation2 + $0x168] sm:$0xff] %vm463, %v362
  %510 = vst.msk [vmem:[#allocation2 + $0x170] sm:$0xff] %vm463, %v364
  %511 = vst.msk [vmem:[#allocation2 + $0x178] sm:$0xff] %vm463, %v366
  %512 = vst.msk [vmem:[#allocation2 + $0x180] sm:$0xff] %vm463, %v368
  %513 = vst.msk [vmem:[#allocation2 + $0x188] sm:$0xff] %vm463, %v370
  %514 = vst.msk [vmem:[#allocation2 + $0x190] sm:$0xff] %vm463, %v372
  %515 = vst.msk [vmem:[#allocation2 + $0x198] sm:$0xff] %vm463, %v374
  %516 = vst.msk [vmem:[#allocation2 + $0x1a0] sm:$0xff] %vm463, %v376
  %517 = vst.msk [vmem:[#allocation2 + $0x1a8] sm:$0xff] %vm463, %v378
  %518 = vst.msk [vmem:[#allocation2 + $0x1b0] sm:$0xff] %vm463, %v380
  %519 = vst.msk [vmem:[#allocation2 + $0x1b8] sm:$0xff] %vm463, %v382
  %520 = vst.msk [vmem:[#allocation2 + $0x1c0] sm:$0xff] %vm463, %v384
  %521 = vst.msk [vmem:[#allocation2 + $0x1c8] sm:$0xff] %vm463, %v386
  %522 = vst.msk [vmem:[#allocation2 + $0x1d0] sm:$0xff] %vm463, %v388
  %523 = vst.msk [vmem:[#allocation2 + $0x1d8] sm:$0xff] %vm463, %v390
  %524 = vst.msk [vmem:[#allocation2 + $0x1e0] sm:$0xff] %vm463, %v392
  %525 = vst.msk [vmem:[#allocation2 + $0x1e8] sm:$0xff] %vm463, %v394
  %526 = vst.msk [vmem:[#allocation2 + $0x1f0] sm:$0xff] %vm463, %v396
  %527 = vst.msk [vmem:[#allocation2 + $0x1f8] sm:$0xff] %vm463, %v398
  %v528 = vld [vmem:[%s0 + $0x2] sm:$0xff]
  %v529 = vld [vmem:[%s0 + $0xa] sm:$0xff]
  %v530 = vld [vmem:[%s0 + $0x1a] sm:$0xff]
  %v531 = vld [vmem:[%s0 + $0x22] sm:$0xff]
  %v532 = vld [vmem:[%s0 + $0x32] sm:$0xff]
  %v533 = vld [vmem:[%s0 + $0x3a] sm:$0xff]
  %v534 = vld [vmem:[%s0 + $0x4a] sm:$0xff]
  %v535 = vld [vmem:[%s0 + $0x52] sm:$0xff]
  %v536 = vld [vmem:[%s0 + $0x62] sm:$0xff]
  %v537 = vld [vmem:[%s0 + $0x6a] sm:$0xff]
  %v538 = vld [vmem:[%s0 + $0x7a] sm:$0xff]
  %v539 = vld [vmem:[%s0 + $0x82] sm:$0xff]
  %v540 = vld [vmem:[%s0 + $0x92] sm:$0xff]
  %v541 = vld [vmem:[%s0 + $0x9a] sm:$0xff]
  %v542 = vld [vmem:[%s0 + $0xaa] sm:$0xff]
  %v543 = vld [vmem:[%s0 + $0xb2] sm:$0xff]
  %v544 = vld [vmem:[%s0 + $0xc2] sm:$0xff]
  %v545 = vld [vmem:[%s0 + $0xca] sm:$0xff]
  %v546 = vld [vmem:[%s0 + $0xda] sm:$0xff]
  %v547 = vld [vmem:[%s0 + $0xe2] sm:$0xff]
  %v548 = vld [vmem:[%s0 + $0xf2] sm:$0xff]
  %v549 = vld [vmem:[%s0 + $0xfa] sm:$0xff]
  %v550 = vld [vmem:[%s0 + $0x10a] sm:$0xff]
  %v551 = vld [vmem:[%s0 + $0x112] sm:$0xff]
  %v552 = vld [vmem:[%s0 + $0x122] sm:$0xff]
  %v553 = vld [vmem:[%s0 + $0x12a] sm:$0xff]
  %v554 = vld [vmem:[%s0 + $0x13a] sm:$0xff]
  %v555 = vld [vmem:[%s0 + $0x142] sm:$0xff]
  %v556 = vld [vmem:[%s0 + $0x152] sm:$0xff]
  %v557 = vld [vmem:[%s0 + $0x15a] sm:$0xff]
  %v558 = vld [vmem:[%s0 + $0x16a] sm:$0xff]
  %v559 = vld [vmem:[%s0 + $0x172] sm:$0xff]
  %v560 = vld [vmem:[%s0 + $0x1ca] sm:$0xff]
  %v561 = vld [vmem:[%s0 + $0x1d2] sm:$0xff]
  %v562 = vld [vmem:[%s0 + $0x1e2] sm:$0xff]
  %v563 = vld [vmem:[%s0 + $0x1ea] sm:$0xff]
  %v564 = vld [vmem:[%s0 + $0x1fa] sm:$0xff]
  %v565 = vld [vmem:[%s0 + $0x202] sm:$0xff]
  %v566 = vld [vmem:[%s0 + $0x212] sm:$0xff]
  %v567 = vld [vmem:[%s0 + $0x21a] sm:$0xff]
  %v568 = vld [vmem:[%s0 + $0x22a] sm:$0xff]
  %v569 = vld [vmem:[%s0 + $0x232] sm:$0xff]
  %v570 = vld [vmem:[%s0 + $0x242] sm:$0xff]
  %v571 = vld [vmem:[%s0 + $0x24a] sm:$0xff]
  %v572 = vld [vmem:[%s0 + $0x25a] sm:$0xff]
  %v573 = vld [vmem:[%s0 + $0x262] sm:$0xff]
  %v574 = vld [vmem:[%s0 + $0x272] sm:$0xff]
  %v575 = vld [vmem:[%s0 + $0x27a] sm:$0xff]
  %v576 = vld [vmem:[%s0 + $0x28a] sm:$0xff]
  %v577 = vld [vmem:[%s0 + $0x292] sm:$0xff]
  %v578 = vld [vmem:[%s0 + $0x2a2] sm:$0xff]
  %v579 = vld [vmem:[%s0 + $0x2aa] sm:$0xff]
  %v580 = vld [vmem:[%s0 + $0x2ba] sm:$0xff]
  %v581 = vld [vmem:[%s0 + $0x2c2] sm:$0xff]
  %v582 = vld [vmem:[%s0 + $0x2d2] sm:$0xff]
  %v583 = vld [vmem:[%s0 + $0x2da] sm:$0xff]
  %v584 = vld [vmem:[%s0 + $0x2ea] sm:$0xff]
  %v585 = vld [vmem:[%s0 + $0x2f2] sm:$0xff]
  %v586 = vld [vmem:[%s0 + $0x302] sm:$0xff]
  %v587 = vld [vmem:[%s0 + $0x30a] sm:$0xff]
  %v588 = vld [vmem:[%s0 + $0x31a] sm:$0xff]
  %v589 = vld [vmem:[%s0 + $0x322] sm:$0xff]
  %v590 = vld [vmem:[%s0 + $0x332] sm:$0xff]
  %v591 = vld [vmem:[%s0 + $0x33a] sm:$0xff]
  %656 = vrot.lane.b32.xlu0 %v528, 16
  %v657 = vpop.permute.xlu0 %656
  %658 = vrot.lane.b32.xlu0 %v529, 16
  %v659 = vpop.permute.xlu0 %658
  %660 = vrot.lane.b32.xlu0 %v530, 16
  %v661 = vpop.permute.xlu0 %660
  %662 = vrot.lane.b32.xlu0 %v531, 16
  %v663 = vpop.permute.xlu0 %662
  %664 = vrot.lane.b32.xlu0 %v532, 16
  %v665 = vpop.permute.xlu0 %664
  %666 = vrot.lane.b32.xlu0 %v533, 16
  %v667 = vpop.permute.xlu0 %666
  %668 = vrot.lane.b32.xlu0 %v534, 16
  %v669 = vpop.permute.xlu0 %668
  %670 = vrot.lane.b32.xlu0 %v535, 16
  %v671 = vpop.permute.xlu0 %670
  %672 = vrot.lane.b32.xlu0 %v536, 16
  %v673 = vpop.permute.xlu0 %672
  %674 = vrot.lane.b32.xlu0 %v537, 16
  %v675 = vpop.permute.xlu0 %674
  %676 = vrot.lane.b32.xlu0 %v538, 16
  %v677 = vpop.permute.xlu0 %676
  %678 = vrot.lane.b32.xlu0 %v539, 16
  %v679 = vpop.permute.xlu0 %678
  %680 = vrot.lane.b32.xlu0 %v540, 16
  %v681 = vpop.permute.xlu0 %680
  %682 = vrot.lane.b32.xlu0 %v541, 16
  %v683 = vpop.permute.xlu0 %682
  %684 = vrot.lane.b32.xlu0 %v542, 16
  %v685 = vpop.permute.xlu0 %684
  %686 = vrot.lane.b32.xlu0 %v543, 16
  %v687 = vpop.permute.xlu0 %686
  %688 = vrot.lane.b32.xlu0 %v544, 16
  %v689 = vpop.permute.xlu0 %688
  %690 = vrot.lane.b32.xlu0 %v545, 16
  %v691 = vpop.permute.xlu0 %690
  %692 = vrot.lane.b32.xlu0 %v546, 16
  %v693 = vpop.permute.xlu0 %692
  %694 = vrot.lane.b32.xlu0 %v547, 16
  %v695 = vpop.permute.xlu0 %694
  %696 = vrot.lane.b32.xlu0 %v548, 16
  %v697 = vpop.permute.xlu0 %696
  %698 = vrot.lane.b32.xlu0 %v549, 16
  %v699 = vpop.permute.xlu0 %698
  %700 = vrot.lane.b32.xlu0 %v550, 16
  %v701 = vpop.permute.xlu0 %700
  %702 = vrot.lane.b32.xlu0 %v551, 16
  %v703 = vpop.permute.xlu0 %702
  %704 = vrot.lane.b32.xlu0 %v552, 16
  %v705 = vpop.permute.xlu0 %704
  %706 = vrot.lane.b32.xlu0 %v553, 16
  %v707 = vpop.permute.xlu0 %706
  %708 = vrot.lane.b32.xlu0 %v554, 16
  %v709 = vpop.permute.xlu0 %708
  %710 = vrot.lane.b32.xlu0 %v555, 16
  %v711 = vpop.permute.xlu0 %710
  %712 = vrot.lane.b32.xlu0 %v556, 16
  %v713 = vpop.permute.xlu0 %712
  %714 = vrot.lane.b32.xlu0 %v557, 16
  %v715 = vpop.permute.xlu0 %714
  %716 = vrot.lane.b32.xlu0 %v558, 16
  %v717 = vpop.permute.xlu0 %716
  %718 = vrot.lane.b32.xlu0 %v559, 16
  %v719 = vpop.permute.xlu0 %718
  %720 = vrot.lane.b32.xlu0 %v560, 16
  %v721 = vpop.permute.xlu0 %720
  %722 = vrot.lane.b32.xlu0 %v561, 16
  %v723 = vpop.permute.xlu0 %722
  %724 = vrot.lane.b32.xlu0 %v562, 16
  %v725 = vpop.permute.xlu0 %724
  %726 = vrot.lane.b32.xlu0 %v563, 16
  %v727 = vpop.permute.xlu0 %726
  %728 = vrot.lane.b32.xlu0 %v564, 16
  %v729 = vpop.permute.xlu0 %728
  %730 = vrot.lane.b32.xlu0 %v565, 16
  %v731 = vpop.permute.xlu0 %730
  %732 = vrot.lane.b32.xlu0 %v566, 16
  %v733 = vpop.permute.xlu0 %732
  %734 = vrot.lane.b32.xlu0 %v567, 16
  %v735 = vpop.permute.xlu0 %734
  %736 = vrot.lane.b32.xlu0 %v568, 16
  %v737 = vpop.permute.xlu0 %736
  %738 = vrot.lane.b32.xlu0 %v569, 16
  %v739 = vpop.permute.xlu0 %738
  %740 = vrot.lane.b32.xlu0 %v570, 16
  %v741 = vpop.permute.xlu0 %740
  %742 = vrot.lane.b32.xlu0 %v571, 16
  %v743 = vpop.permute.xlu0 %742
  %744 = vrot.lane.b32.xlu0 %v572, 16
  %v745 = vpop.permute.xlu0 %744
  %746 = vrot.lane.b32.xlu0 %v573, 16
  %v747 = vpop.permute.xlu0 %746
  %748 = vrot.lane.b32.xlu0 %v574, 16
  %v749 = vpop.permute.xlu0 %748
  %750 = vrot.lane.b32.xlu0 %v575, 16
  %v751 = vpop.permute.xlu0 %750
  %752 = vrot.lane.b32.xlu0 %v576, 16
  %v753 = vpop.permute.xlu0 %752
  %754 = vrot.lane.b32.xlu0 %v577, 16
  %v755 = vpop.permute.xlu0 %754
  %756 = vrot.lane.b32.xlu0 %v578, 16
  %v757 = vpop.permute.xlu0 %756
  %758 = vrot.lane.b32.xlu0 %v579, 16
  %v759 = vpop.permute.xlu0 %758
  %760 = vrot.lane.b32.xlu0 %v580, 16
  %v761 = vpop.permute.xlu0 %760
  %762 = vrot.lane.b32.xlu0 %v581, 16
  %v763 = vpop.permute.xlu0 %762
  %764 = vrot.lane.b32.xlu0 %v582, 16
  %v765 = vpop.permute.xlu0 %764
  %766 = vrot.lane.b32.xlu0 %v583, 16
  %v767 = vpop.permute.xlu0 %766
  %768 = vrot.lane.b32.xlu0 %v584, 16
  %v769 = vpop.permute.xlu0 %768
  %770 = vrot.lane.b32.xlu0 %v585, 16
  %v771 = vpop.permute.xlu0 %770
  %772 = vrot.lane.b32.xlu0 %v586, 16
  %v773 = vpop.permute.xlu0 %772
  %774 = vrot.lane.b32.xlu0 %v587, 16
  %v775 = vpop.permute.xlu0 %774
  %776 = vrot.lane.b32.xlu0 %v588, 16
  %v777 = vpop.permute.xlu0 %776
  %778 = vrot.lane.b32.xlu0 %v589, 16
  %v779 = vpop.permute.xlu0 %778
  %780 = vrot.lane.b32.xlu0 %v590, 16
  %v781 = vpop.permute.xlu0 %780
  %782 = vrot.lane.b32.xlu0 %v591, 16
  %v783 = vpop.permute.xlu0 %782
  %vm848 = vcmask 195712
  %849 = vst.msk [vmem:[#allocation2] sm:$0xff] %vm848, %v657
  %850 = vst.msk [vmem:[#allocation2 + $0x8] sm:$0xff] %vm848, %v659
  %851 = vst.msk [vmem:[#allocation2 + $0x10] sm:$0xff] %vm848, %v661
  %852 = vst.msk [vmem:[#allocation2 + $0x18] sm:$0xff] %vm848, %v663
  %853 = vst.msk [vmem:[#allocation2 + $0x20] sm:$0xff] %vm848, %v665
  %854 = vst.msk [vmem:[#allocation2 + $0x28] sm:$0xff] %vm848, %v667
  %855 = vst.msk [vmem:[#allocation2 + $0x30] sm:$0xff] %vm848, %v669
  %856 = vst.msk [vmem:[#allocation2 + $0x38] sm:$0xff] %vm848, %v671
  %857 = vst.msk [vmem:[#allocation2 + $0x40] sm:$0xff] %vm848, %v673
  %858 = vst.msk [vmem:[#allocation2 + $0x48] sm:$0xff] %vm848, %v675
  %859 = vst.msk [vmem:[#allocation2 + $0x50] sm:$0xff] %vm848, %v677
  %860 = vst.msk [vmem:[#allocation2 + $0x58] sm:$0xff] %vm848, %v679
  %861 = vst.msk [vmem:[#allocation2 + $0x60] sm:$0xff] %vm848, %v681
  %862 = vst.msk [vmem:[#allocation2 + $0x68] sm:$0xff] %vm848, %v683
  %863 = vst.msk [vmem:[#allocation2 + $0x70] sm:$0xff] %vm848, %v685
  %864 = vst.msk [vmem:[#allocation2 + $0x78] sm:$0xff] %vm848, %v687
  %865 = vst.msk [vmem:[#allocation2 + $0x80] sm:$0xff] %vm848, %v689
  %866 = vst.msk [vmem:[#allocation2 + $0x88] sm:$0xff] %vm848, %v691
  %867 = vst.msk [vmem:[#allocation2 + $0x90] sm:$0xff] %vm848, %v693
  %868 = vst.msk [vmem:[#allocation2 + $0x98] sm:$0xff] %vm848, %v695
  %869 = vst.msk [vmem:[#allocation2 + $0xa0] sm:$0xff] %vm848, %v697
  %870 = vst.msk [vmem:[#allocation2 + $0xa8] sm:$0xff] %vm848, %v699
  %871 = vst.msk [vmem:[#allocation2 + $0xb0] sm:$0xff] %vm848, %v701
  %872 = vst.msk [vmem:[#allocation2 + $0xb8] sm:$0xff] %vm848, %v703
  %873 = vst.msk [vmem:[#allocation2 + $0xc0] sm:$0xff] %vm848, %v705
  %874 = vst.msk [vmem:[#allocation2 + $0xc8] sm:$0xff] %vm848, %v707
  %875 = vst.msk [vmem:[#allocation2 + $0xd0] sm:$0xff] %vm848, %v709
  %876 = vst.msk [vmem:[#allocation2 + $0xd8] sm:$0xff] %vm848, %v711
  %877 = vst.msk [vmem:[#allocation2 + $0xe0] sm:$0xff] %vm848, %v713
  %878 = vst.msk [vmem:[#allocation2 + $0xe8] sm:$0xff] %vm848, %v715
  %879 = vst.msk [vmem:[#allocation2 + $0xf0] sm:$0xff] %vm848, %v717
  %880 = vst.msk [vmem:[#allocation2 + $0xf8] sm:$0xff] %vm848, %v719
  %881 = vst.msk [vmem:[#allocation2 + $0x100] sm:$0xff] %vm848, %v721
  %882 = vst.msk [vmem:[#allocation2 + $0x108] sm:$0xff] %vm848, %v723
  %883 = vst.msk [vmem:[#allocation2 + $0x110] sm:$0xff] %vm848, %v725
  %884 = vst.msk [vmem:[#allocation2 + $0x118] sm:$0xff] %vm848, %v727
  %885 = vst.msk [vmem:[#allocation2 + $0x120] sm:$0xff] %vm848, %v729
  %886 = vst.msk [vmem:[#allocation2 + $0x128] sm:$0xff] %vm848, %v731
  %887 = vst.msk [vmem:[#allocation2 + $0x130] sm:$0xff] %vm848, %v733
  %888 = vst.msk [vmem:[#allocation2 + $0x138] sm:$0xff] %vm848, %v735
  %889 = vst.msk [vmem:[#allocation2 + $0x140] sm:$0xff] %vm848, %v737
  %890 = vst.msk [vmem:[#allocation2 + $0x148] sm:$0xff] %vm848, %v739
  %891 = vst.msk [vmem:[#allocation2 + $0x150] sm:$0xff] %vm848, %v741
  %892 = vst.msk [vmem:[#allocation2 + $0x158] sm:$0xff] %vm848, %v743
  %893 = vst.msk [vmem:[#allocation2 + $0x160] sm:$0xff] %vm848, %v745
  %894 = vst.msk [vmem:[#allocation2 + $0x168] sm:$0xff] %vm848, %v747
  %895 = vst.msk [vmem:[#allocation2 + $0x170] sm:$0xff] %vm848, %v749
  %896 = vst.msk [vmem:[#allocation2 + $0x178] sm:$0xff] %vm848, %v751
  %897 = vst.msk [vmem:[#allocation2 + $0x180] sm:$0xff] %vm848, %v753
  %898 = vst.msk [vmem:[#allocation2 + $0x188] sm:$0xff] %vm848, %v755
  %899 = vst.msk [vmem:[#allocation2 + $0x190] sm:$0xff] %vm848, %v757
  %900 = vst.msk [vmem:[#allocation2 + $0x198] sm:$0xff] %vm848, %v759
  %901 = vst.msk [vmem:[#allocation2 + $0x1a0] sm:$0xff] %vm848, %v761
  %902 = vst.msk [vmem:[#allocation2 + $0x1a8] sm:$0xff] %vm848, %v763
  %903 = vst.msk [vmem:[#allocation2 + $0x1b0] sm:$0xff] %vm848, %v765
  %904 = vst.msk [vmem:[#allocation2 + $0x1b8] sm:$0xff] %vm848, %v767
  %905 = vst.msk [vmem:[#allocation2 + $0x1c0] sm:$0xff] %vm848, %v769
  %906 = vst.msk [vmem:[#allocation2 + $0x1c8] sm:$0xff] %vm848, %v771
  %907 = vst.msk [vmem:[#allocation2 + $0x1d0] sm:$0xff] %vm848, %v773
  %908 = vst.msk [vmem:[#allocation2 + $0x1d8] sm:$0xff] %vm848, %v775
  %909 = vst.msk [vmem:[#allocation2 + $0x1e0] sm:$0xff] %vm848, %v777
  %910 = vst.msk [vmem:[#allocation2 + $0x1e8] sm:$0xff] %vm848, %v779
  %911 = vst.msk [vmem:[#allocation2 + $0x1f0] sm:$0xff] %vm848, %v781
  %912 = vst.msk [vmem:[#allocation2 + $0x1f8] sm:$0xff] %vm848, %v783
  %v913 = vld [vmem:[%s0 + $0x3] sm:$0xff]
  %v914 = vld [vmem:[%s0 + $0xb] sm:$0xff]
  %v915 = vld [vmem:[%s0 + $0x1b] sm:$0xff]
  %v916 = vld [vmem:[%s0 + $0x23] sm:$0xff]
  %v917 = vld [vmem:[%s0 + $0x33] sm:$0xff]
  %v918 = vld [vmem:[%s0 + $0x3b] sm:$0xff]
  %v919 = vld [vmem:[%s0 + $0x4b] sm:$0xff]
  %v920 = vld [vmem:[%s0 + $0x53] sm:$0xff]
  %v921 = vld [vmem:[%s0 + $0x63] sm:$0xff]
  %v922 = vld [vmem:[%s0 + $0x6b] sm:$0xff]
  %v923 = vld [vmem:[%s0 + $0x7b] sm:$0xff]
  %v924 = vld [vmem:[%s0 + $0x83] sm:$0xff]
  %v925 = vld [vmem:[%s0 + $0x93] sm:$0xff]
  %v926 = vld [vmem:[%s0 + $0x9b] sm:$0xff]
  %v927 = vld [vmem:[%s0 + $0xab] sm:$0xff]
  %v928 = vld [vmem:[%s0 + $0xb3] sm:$0xff]
  %v929 = vld [vmem:[%s0 + $0xc3] sm:$0xff]
  %v930 = vld [vmem:[%s0 + $0xcb] sm:$0xff]
  %v931 = vld [vmem:[%s0 + $0xdb] sm:$0xff]
  %v932 = vld [vmem:[%s0 + $0xe3] sm:$0xff]
  %v933 = vld [vmem:[%s0 + $0xf3] sm:$0xff]
  %v934 = vld [vmem:[%s0 + $0xfb] sm:$0xff]
  %v935 = vld [vmem:[%s0 + $0x10b] sm:$0xff]
  %v936 = vld [vmem:[%s0 + $0x113] sm:$0xff]
  %v937 = vld [vmem:[%s0 + $0x123] sm:$0xff]
  %v938 = vld [vmem:[%s0 + $0x12b] sm:$0xff]
  %v939 = vld [vmem:[%s0 + $0x13b] sm:$0xff]
  %v940 = vld [vmem:[%s0 + $0x143] sm:$0xff]
  %v941 = vld [vmem:[%s0 + $0x153] sm:$0xff]
  %v942 = vld [vmem:[%s0 + $0x15b] sm:$0xff]
  %v943 = vld [vmem:[%s0 + $0x16b] sm:$0xff]
  %v944 = vld [vmem:[%s0 + $0x173] sm:$0xff]
  %v945 = vld [vmem:[%s0 + $0x1cb] sm:$0xff]
  %v946 = vld [vmem:[%s0 + $0x1d3] sm:$0xff]
  %v947 = vld [vmem:[%s0 + $0x1e3] sm:$0xff]
  %v948 = vld [vmem:[%s0 + $0x1eb] sm:$0xff]
  %v949 = vld [vmem:[%s0 + $0x1fb] sm:$0xff]
  %v950 = vld [vmem:[%s0 + $0x203] sm:$0xff]
  %v951 = vld [vmem:[%s0 + $0x213] sm:$0xff]
  %v952 = vld [vmem:[%s0 + $0x21b] sm:$0xff]
  %v953 = vld [vmem:[%s0 + $0x22b] sm:$0xff]
  %v954 = vld [vmem:[%s0 + $0x233] sm:$0xff]
  %v955 = vld [vmem:[%s0 + $0x243] sm:$0xff]
  %v956 = vld [vmem:[%s0 + $0x24b] sm:$0xff]
  %v957 = vld [vmem:[%s0 + $0x25b] sm:$0xff]
  %v958 = vld [vmem:[%s0 + $0x263] sm:$0xff]
  %v959 = vld [vmem:[%s0 + $0x273] sm:$0xff]
  %v960 = vld [vmem:[%s0 + $0x27b] sm:$0xff]
  %v961 = vld [vmem:[%s0 + $0x28b] sm:$0xff]
  %v962 = vld [vmem:[%s0 + $0x293] sm:$0xff]
  %v963 = vld [vmem:[%s0 + $0x2a3] sm:$0xff]
  %v964 = vld [vmem:[%s0 + $0x2ab] sm:$0xff]
  %v965 = vld [vmem:[%s0 + $0x2bb] sm:$0xff]
  %v966 = vld [vmem:[%s0 + $0x2c3] sm:$0xff]
  %v967 = vld [vmem:[%s0 + $0x2d3] sm:$0xff]
  %v968 = vld [vmem:[%s0 + $0x2db] sm:$0xff]
  %v969 = vld [vmem:[%s0 + $0x2eb] sm:$0xff]
  %v970 = vld [vmem:[%s0 + $0x2f3] sm:$0xff]
  %v971 = vld [vmem:[%s0 + $0x303] sm:$0xff]
  %v972 = vld [vmem:[%s0 + $0x30b] sm:$0xff]
  %v973 = vld [vmem:[%s0 + $0x31b] sm:$0xff]
  %v974 = vld [vmem:[%s0 + $0x323] sm:$0xff]
  %v975 = vld [vmem:[%s0 + $0x333] sm:$0xff]
  %v976 = vld [vmem:[%s0 + $0x33b] sm:$0xff]
  %1041 = vrot.lane.b32.xlu0 %v913, 24
  %v1042 = vpop.permute.xlu0 %1041
  %1043 = vrot.lane.b32.xlu0 %v914, 24
  %v1044 = vpop.permute.xlu0 %1043
  %1045 = vrot.lane.b32.xlu0 %v915, 24
  %v1046 = vpop.permute.xlu0 %1045
  %1047 = vrot.lane.b32.xlu0 %v916, 24
  %v1048 = vpop.permute.xlu0 %1047
  %1049 = vrot.lane.b32.xlu0 %v917, 24
  %v1050 = vpop.permute.xlu0 %1049
  %1051 = vrot.lane.b32.xlu0 %v918, 24
  %v1052 = vpop.permute.xlu0 %1051
  %1053 = vrot.lane.b32.xlu0 %v919, 24
  %v1054 = vpop.permute.xlu0 %1053
  %1055 = vrot.lane.b32.xlu0 %v920, 24
  %v1056 = vpop.permute.xlu0 %1055
  %1057 = vrot.lane.b32.xlu0 %v921, 24
  %v1058 = vpop.permute.xlu0 %1057
  %1059 = vrot.lane.b32.xlu0 %v922, 24
  %v1060 = vpop.permute.xlu0 %1059
  %1061 = vrot.lane.b32.xlu0 %v923, 24
  %v1062 = vpop.permute.xlu0 %1061
  %1063 = vrot.lane.b32.xlu0 %v924, 24
  %v1064 = vpop.permute.xlu0 %1063
  %1065 = vrot.lane.b32.xlu0 %v925, 24
  %v1066 = vpop.permute.xlu0 %1065
  %1067 = vrot.lane.b32.xlu0 %v926, 24
  %v1068 = vpop.permute.xlu0 %1067
  %1069 = vrot.lane.b32.xlu0 %v927, 24
  %v1070 = vpop.permute.xlu0 %1069
  %1071 = vrot.lane.b32.xlu0 %v928, 24
  %v1072 = vpop.permute.xlu0 %1071
  %1073 = vrot.lane.b32.xlu0 %v929, 24
  %v1074 = vpop.permute.xlu0 %1073
  %1075 = vrot.lane.b32.xlu0 %v930, 24
  %v1076 = vpop.permute.xlu0 %1075
  %1077 = vrot.lane.b32.xlu0 %v931, 24
  %v1078 = vpop.permute.xlu0 %1077
  %1079 = vrot.lane.b32.xlu0 %v932, 24
  %v1080 = vpop.permute.xlu0 %1079
  %1081 = vrot.lane.b32.xlu0 %v933, 24
  %v1082 = vpop.permute.xlu0 %1081
  %1083 = vrot.lane.b32.xlu0 %v934, 24
  %v1084 = vpop.permute.xlu0 %1083
  %1085 = vrot.lane.b32.xlu0 %v935, 24
  %v1086 = vpop.permute.xlu0 %1085
  %1087 = vrot.lane.b32.xlu0 %v936, 24
  %v1088 = vpop.permute.xlu0 %1087
  %1089 = vrot.lane.b32.xlu0 %v937, 24
  %v1090 = vpop.permute.xlu0 %1089
  %1091 = vrot.lane.b32.xlu0 %v938, 24
  %v1092 = vpop.permute.xlu0 %1091
  %1093 = vrot.lane.b32.xlu0 %v939, 24
  %v1094 = vpop.permute.xlu0 %1093
  %1095 = vrot.lane.b32.xlu0 %v940, 24
  %v1096 = vpop.permute.xlu0 %1095
  %1097 = vrot.lane.b32.xlu0 %v941, 24
  %v1098 = vpop.permute.xlu0 %1097
  %1099 = vrot.lane.b32.xlu0 %v942, 24
  %v1100 = vpop.permute.xlu0 %1099
  %1101 = vrot.lane.b32.xlu0 %v943, 24
  %v1102 = vpop.permute.xlu0 %1101
  %1103 = vrot.lane.b32.xlu0 %v944, 24
  %v1104 = vpop.permute.xlu0 %1103
  %1105 = vrot.lane.b32.xlu0 %v945, 24
  %v1106 = vpop.permute.xlu0 %1105
  %1107 = vrot.lane.b32.xlu0 %v946, 24
  %v1108 = vpop.permute.xlu0 %1107
  %1109 = vrot.lane.b32.xlu0 %v947, 24
  %v1110 = vpop.permute.xlu0 %1109
  %1111 = vrot.lane.b32.xlu0 %v948, 24
  %v1112 = vpop.permute.xlu0 %1111
  %1113 = vrot.lane.b32.xlu0 %v949, 24
  %v1114 = vpop.permute.xlu0 %1113
  %1115 = vrot.lane.b32.xlu0 %v950, 24
  %v1116 = vpop.permute.xlu0 %1115
  %1117 = vrot.lane.b32.xlu0 %v951, 24
  %v1118 = vpop.permute.xlu0 %1117
  %1119 = vrot.lane.b32.xlu0 %v952, 24
  %v1120 = vpop.permute.xlu0 %1119
  %1121 = vrot.lane.b32.xlu0 %v953, 24
  %v1122 = vpop.permute.xlu0 %1121
  %1123 = vrot.lane.b32.xlu0 %v954, 24
  %v1124 = vpop.permute.xlu0 %1123
  %1125 = vrot.lane.b32.xlu0 %v955, 24
  %v1126 = vpop.permute.xlu0 %1125
  %1127 = vrot.lane.b32.xlu0 %v956, 24
  %v1128 = vpop.permute.xlu0 %1127
  %1129 = vrot.lane.b32.xlu0 %v957, 24
  %v1130 = vpop.permute.xlu0 %1129
  %1131 = vrot.lane.b32.xlu0 %v958, 24
  %v1132 = vpop.permute.xlu0 %1131
  %1133 = vrot.lane.b32.xlu0 %v959, 24
  %v1134 = vpop.permute.xlu0 %1133
  %1135 = vrot.lane.b32.xlu0 %v960, 24
  %v1136 = vpop.permute.xlu0 %1135
  %1137 = vrot.lane.b32.xlu0 %v961, 24
  %v1138 = vpop.permute.xlu0 %1137
  %1139 = vrot.lane.b32.xlu0 %v962, 24
  %v1140 = vpop.permute.xlu0 %1139
  %1141 = vrot.lane.b32.xlu0 %v963, 24
  %v1142 = vpop.permute.xlu0 %1141
  %1143 = vrot.lane.b32.xlu0 %v964, 24
  %v1144 = vpop.permute.xlu0 %1143
  %1145 = vrot.lane.b32.xlu0 %v965, 24
  %v1146 = vpop.permute.xlu0 %1145
  %1147 = vrot.lane.b32.xlu0 %v966, 24
  %v1148 = vpop.permute.xlu0 %1147
  %1149 = vrot.lane.b32.xlu0 %v967, 24
  %v1150 = vpop.permute.xlu0 %1149
  %1151 = vrot.lane.b32.xlu0 %v968, 24
  %v1152 = vpop.permute.xlu0 %1151
  %1153 = vrot.lane.b32.xlu0 %v969, 24
  %v1154 = vpop.permute.xlu0 %1153
  %1155 = vrot.lane.b32.xlu0 %v970, 24
  %v1156 = vpop.permute.xlu0 %1155
  %1157 = vrot.lane.b32.xlu0 %v971, 24
  %v1158 = vpop.permute.xlu0 %1157
  %1159 = vrot.lane.b32.xlu0 %v972, 24
  %v1160 = vpop.permute.xlu0 %1159
  %1161 = vrot.lane.b32.xlu0 %v973, 24
  %v1162 = vpop.permute.xlu0 %1161
  %1163 = vrot.lane.b32.xlu0 %v974, 24
  %v1164 = vpop.permute.xlu0 %1163
  %1165 = vrot.lane.b32.xlu0 %v975, 24
  %v1166 = vpop.permute.xlu0 %1165
  %1167 = vrot.lane.b32.xlu0 %v976, 24
  %v1168 = vpop.permute.xlu0 %1167
  %vm1233 = vcmask 261312
  %1234 = vst.msk [vmem:[#allocation2] sm:$0xff] %vm1233, %v1042
  %1235 = vst.msk [vmem:[#allocation2 + $0x8] sm:$0xff] %vm1233, %v1044
  %1236 = vst.msk [vmem:[#allocation2 + $0x10] sm:$0xff] %vm1233, %v1046
  %1237 = vst.msk [vmem:[#allocation2 + $0x18] sm:$0xff] %vm1233, %v1048
  %1238 = vst.msk [vmem:[#allocation2 + $0x20] sm:$0xff] %vm1233, %v1050
  %1239 = vst.msk [vmem:[#allocation2 + $0x28] sm:$0xff] %vm1233, %v1052
  %1240 = vst.msk [vmem:[#allocation2 + $0x30] sm:$0xff] %vm1233, %v1054
  %1241 = vst.msk [vmem:[#allocation2 + $0x38] sm:$0xff] %vm1233, %v1056
  %1242 = vst.msk [vmem:[#allocation2 + $0x40] sm:$0xff] %vm1233, %v1058
  %1243 = vst.msk [vmem:[#allocation2 + $0x48] sm:$0xff] %vm1233, %v1060
  %1244 = vst.msk [vmem:[#allocation2 + $0x50] sm:$0xff] %vm1233, %v1062
  %1245 = vst.msk [vmem:[#allocation2 + $0x58] sm:$0xff] %vm1233, %v1064
  %1246 = vst.msk [vmem:[#allocation2 + $0x60] sm:$0xff] %vm1233, %v1066
  %1247 = vst.msk [vmem:[#allocation2 + $0x68] sm:$0xff] %vm1233, %v1068
  %1248 = vst.msk [vmem:[#allocation2 + $0x70] sm:$0xff] %vm1233, %v1070
  %1249 = vst.msk [vmem:[#allocation2 + $0x78] sm:$0xff] %vm1233, %v1072
  %1250 = vst.msk [vmem:[#allocation2 + $0x80] sm:$0xff] %vm1233, %v1074
  %1251 = vst.msk [vmem:[#allocation2 + $0x88] sm:$0xff] %vm1233, %v1076
  %1252 = vst.msk [vmem:[#allocation2 + $0x90] sm:$0xff] %vm1233, %v1078
  %1253 = vst.msk [vmem:[#allocation2 + $0x98] sm:$0xff] %vm1233, %v1080
  %1254 = vst.msk [vmem:[#allocation2 + $0xa0] sm:$0xff] %vm1233, %v1082
  %1255 = vst.msk [vmem:[#allocation2 + $0xa8] sm:$0xff] %vm1233, %v1084
  %1256 = vst.msk [vmem:[#allocation2 + $0xb0] sm:$0xff] %vm1233, %v1086
  %1257 = vst.msk [vmem:[#allocation2 + $0xb8] sm:$0xff] %vm1233, %v1088
  %1258 = vst.msk [vmem:[#allocation2 + $0xc0] sm:$0xff] %vm1233, %v1090
  %1259 = vst.msk [vmem:[#allocation2 + $0xc8] sm:$0xff] %vm1233, %v1092
  %1260 = vst.msk [vmem:[#allocation2 + $0xd0] sm:$0xff] %vm1233, %v1094
  %1261 = vst.msk [vmem:[#allocation2 + $0xd8] sm:$0xff] %vm1233, %v1096
  %1262 = vst.msk [vmem:[#allocation2 + $0xe0] sm:$0xff] %vm1233, %v1098
  %1263 = vst.msk [vmem:[#allocation2 + $0xe8] sm:$0xff] %vm1233, %v1100
  %1264 = vst.msk [vmem:[#allocation2 + $0xf0] sm:$0xff] %vm1233, %v1102
  %1265 = vst.msk [vmem:[#allocation2 + $0xf8] sm:$0xff] %vm1233, %v1104
  %1266 = vst.msk [vmem:[#allocation2 + $0x100] sm:$0xff] %vm1233, %v1106
  %1267 = vst.msk [vmem:[#allocation2 + $0x108] sm:$0xff] %vm1233, %v1108
  %1268 = vst.msk [vmem:[#allocation2 + $0x110] sm:$0xff] %vm1233, %v1110
  %1269 = vst.msk [vmem:[#allocation2 + $0x118] sm:$0xff] %vm1233, %v1112
  %1270 = vst.msk [vmem:[#allocation2 + $0x120] sm:$0xff] %vm1233, %v1114
  %1271 = vst.msk [vmem:[#allocation2 + $0x128] sm:$0xff] %vm1233, %v1116
  %1272 = vst.msk [vmem:[#allocation2 + $0x130] sm:$0xff] %vm1233, %v1118
  %1273 = vst.msk [vmem:[#allocation2 + $0x138] sm:$0xff] %vm1233, %v1120
  %1274 = vst.msk [vmem:[#allocation2 + $0x140] sm:$0xff] %vm1233, %v1122
  %1275 = vst.msk [vmem:[#allocation2 + $0x148] sm:$0xff] %vm1233, %v1124
  %1276 = vst.msk [vmem:[#allocation2 + $0x150] sm:$0xff] %vm1233, %v1126
  %1277 = vst.msk [vmem:[#allocation2 + $0x158] sm:$0xff] %vm1233, %v1128
  %1278 = vst.msk [vmem:[#allocation2 + $0x160] sm:$0xff] %vm1233, %v1130
  %1279 = vst.msk [vmem:[#allocation2 + $0x168] sm:$0xff] %vm1233, %v1132
  %1280 = vst.msk [vmem:[#allocation2 + $0x170] sm:$0xff] %vm1233, %v1134
  %1281 = vst.msk [vmem:[#allocation2 + $0x178] sm:$0xff] %vm1233, %v1136
  %1282 = vst.msk [vmem:[#allocation2 + $0x180] sm:$0xff] %vm1233, %v1138
  %1283 = vst.msk [vmem:[#allocation2 + $0x188] sm:$0xff] %vm1233, %v1140
  %1284 = vst.msk [vmem:[#allocation2 + $0x190] sm:$0xff] %vm1233, %v1142
  %1285 = vst.msk [vmem:[#allocation2 + $0x198] sm:$0xff] %vm1233, %v1144
  %1286 = vst.msk [vmem:[#allocation2 + $0x1a0] sm:$0xff] %vm1233, %v1146
  %1287 = vst.msk [vmem:[#allocation2 + $0x1a8] sm:$0xff] %vm1233, %v1148
  %1288 = vst.msk [vmem:[#allocation2 + $0x1b0] sm:$0xff] %vm1233, %v1150
  %1289 = vst.msk [vmem:[#allocation2 + $0x1b8] sm:$0xff] %vm1233, %v1152
  %1290 = vst.msk [vmem:[#allocation2 + $0x1c0] sm:$0xff] %vm1233, %v1154
  %1291 = vst.msk [vmem:[#allocation2 + $0x1c8] sm:$0xff] %vm1233, %v1156
  %1292 = vst.msk [vmem:[#allocation2 + $0x1d0] sm:$0xff] %vm1233, %v1158
  %1293 = vst.msk [vmem:[#allocation2 + $0x1d8] sm:$0xff] %vm1233, %v1160
  %1294 = vst.msk [vmem:[#allocation2 + $0x1e0] sm:$0xff] %vm1233, %v1162
  %1295 = vst.msk [vmem:[#allocation2 + $0x1e8] sm:$0xff] %vm1233, %v1164
  %1296 = vst.msk [vmem:[#allocation2 + $0x1f0] sm:$0xff] %vm1233, %v1166
  %1297 = vst.msk [vmem:[#allocation2 + $0x1f8] sm:$0xff] %vm1233, %v1168
  %s1298 = scalar_lea.vmem %s0, 24
  %v1299 = vld [vmem:[%s1298] sm:$0xff]
  %v1300 = vld [vmem:[%s1298 + $0x8] sm:$0xff]
  %v1301 = vld [vmem:[%s1298 + $0x18] sm:$0xff]
  %v1302 = vld [vmem:[%s1298 + $0x20] sm:$0xff]
  %v1303 = vld [vmem:[%s1298 + $0x30] sm:$0xff]
  %v1304 = vld [vmem:[%s1298 + $0x38] sm:$0xff]
  %v1305 = vld [vmem:[%s1298 + $0x48] sm:$0xff]
  %v1306 = vld [vmem:[%s1298 + $0x50] sm:$0xff]
  %v1307 = vld [vmem:[%s1298 + $0x60] sm:$0xff]
  %v1308 = vld [vmem:[%s1298 + $0x68] sm:$0xff]
  %v1309 = vld [vmem:[%s1298 + $0x78] sm:$0xff]
  %v1310 = vld [vmem:[%s1298 + $0x80] sm:$0xff]
  %v1311 = vld [vmem:[%s1298 + $0x90] sm:$0xff]
  %v1312 = vld [vmem:[%s1298 + $0x98] sm:$0xff]
  %v1313 = vld [vmem:[%s1298 + $0xa8] sm:$0xff]
  %v1314 = vld [vmem:[%s1298 + $0xb0] sm:$0xff]
  %v1315 = vld [vmem:[%s1298 + $0xc0] sm:$0xff]
  %v1316 = vld [vmem:[%s1298 + $0xc8] sm:$0xff]
  %v1317 = vld [vmem:[%s1298 + $0xd8] sm:$0xff]
  %v1318 = vld [vmem:[%s1298 + $0xe0] sm:$0xff]
  %v1319 = vld [vmem:[%s1298 + $0xf0] sm:$0xff]
  %v1320 = vld [vmem:[%s1298 + $0xf8] sm:$0xff]
  %v1321 = vld [vmem:[%s1298 + $0x108] sm:$0xff]
  %v1322 = vld [vmem:[%s1298 + $0x110] sm:$0xff]
  %v1323 = vld [vmem:[%s1298 + $0x120] sm:$0xff]
  %v1324 = vld [vmem:[%s1298 + $0x128] sm:$0xff]
  %v1325 = vld [vmem:[%s1298 + $0x138] sm:$0xff]
  %v1326 = vld [vmem:[%s1298 + $0x140] sm:$0xff]
  %v1327 = vld [vmem:[%s1298 + $0x150] sm:$0xff]
  %v1328 = vld [vmem:[%s1298 + $0x158] sm:$0xff]
  %v1329 = vld [vmem:[%s1298 + $0x168] sm:$0xff]
  %v1330 = vld [vmem:[%s1298 + $0x170] sm:$0xff]
  %v1331 = vld [vmem:[%s1298 + $0x1c8] sm:$0xff]
  %v1332 = vld [vmem:[%s1298 + $0x1d0] sm:$0xff]
  %v1333 = vld [vmem:[%s1298 + $0x1e0] sm:$0xff]
  %v1334 = vld [vmem:[%s1298 + $0x1e8] sm:$0xff]
  %v1335 = vld [vmem:[%s1298 + $0x1f8] sm:$0xff]
  %v1336 = vld [vmem:[%s1298 + $0x200] sm:$0xff]
  %v1337 = vld [vmem:[%s1298 + $0x210] sm:$0xff]
  %v1338 = vld [vmem:[%s1298 + $0x218] sm:$0xff]
  %v1339 = vld [vmem:[%s1298 + $0x228] sm:$0xff]
  %v1340 = vld [vmem:[%s1298 + $0x230] sm:$0xff]
  %v1341 = vld [vmem:[%s1298 + $0x240] sm:$0xff]
  %v1342 = vld [vmem:[%s1298 + $0x248] sm:$0xff]
  %v1343 = vld [vmem:[%s1298 + $0x258] sm:$0xff]
  %v1344 = vld [vmem:[%s1298 + $0x260] sm:$0xff]
  %v1345 = vld [vmem:[%s1298 + $0x270] sm:$0xff]
  %v1346 = vld [vmem:[%s1298 + $0x278] sm:$0xff]
  %v1347 = vld [vmem:[%s1298 + $0x288] sm:$0xff]
  %v1348 = vld [vmem:[%s1298 + $0x290] sm:$0xff]
  %v1349 = vld [vmem:[%s1298 + $0x2a0] sm:$0xff]
  %v1350 = vld [vmem:[%s1298 + $0x2a8] sm:$0xff]
  %v1351 = vld [vmem:[%s1298 + $0x2b8] sm:$0xff]
  %v1352 = vld [vmem:[%s1298 + $0x2c0] sm:$0xff]
  %v1353 = vld [vmem:[%s1298 + $0x2d0] sm:$0xff]
  %v1354 = vld [vmem:[%s1298 + $0x2d8] sm:$0xff]
  %v1355 = vld [vmem:[%s1298 + $0x2e8] sm:$0xff]
  %v1356 = vld [vmem:[%s1298 + $0x2f0] sm:$0xff]
  %v1357 = vld [vmem:[%s1298 + $0x300] sm:$0xff]
  %v1358 = vld [vmem:[%s1298 + $0x308] sm:$0xff]
  %v1359 = vld [vmem:[%s1298 + $0x318] sm:$0xff]
  %v1360 = vld [vmem:[%s1298 + $0x320] sm:$0xff]
  %v1361 = vld [vmem:[%s1298 + $0x330] sm:$0xff]
  %v1362 = vld [vmem:[%s1298 + $0x338] sm:$0xff]
  %1427 = vrot.lane.b32.xlu0 %v1299, 32
  %v1428 = vpop.permute.xlu0 %1427
  %1429 = vrot.lane.b32.xlu0 %v1300, 32
  %v1430 = vpop.permute.xlu0 %1429
  %1431 = vrot.lane.b32.xlu0 %v1301, 32
  %v1432 = vpop.permute.xlu0 %1431
  %1433 = vrot.lane.b32.xlu0 %v1302, 32
  %v1434 = vpop.permute.xlu0 %1433
  %1435 = vrot.lane.b32.xlu0 %v1303, 32
  %v1436 = vpop.permute.xlu0 %1435
  %1437 = vrot.lane.b32.xlu0 %v1304, 32
  %v1438 = vpop.permute.xlu0 %1437
  %1439 = vrot.lane.b32.xlu0 %v1305, 32
  %v1440 = vpop.permute.xlu0 %1439
  %1441 = vrot.lane.b32.xlu0 %v1306, 32
  %v1442 = vpop.permute.xlu0 %1441
  %1443 = vrot.lane.b32.xlu0 %v1307, 32
  %v1444 = vpop.permute.xlu0 %1443
  %1445 = vrot.lane.b32.xlu0 %v1308, 32
  %v1446 = vpop.permute.xlu0 %1445
  %1447 = vrot.lane.b32.xlu0 %v1309, 32
  %v1448 = vpop.permute.xlu0 %1447
  %1449 = vrot.lane.b32.xlu0 %v1310, 32
  %v1450 = vpop.permute.xlu0 %1449
  %1451 = vrot.lane.b32.xlu0 %v1311, 32
  %v1452 = vpop.permute.xlu0 %1451
  %1453 = vrot.lane.b32.xlu0 %v1312, 32
  %v1454 = vpop.permute.xlu0 %1453
  %1455 = vrot.lane.b32.xlu0 %v1313, 32
  %v1456 = vpop.permute.xlu0 %1455
  %1457 = vrot.lane.b32.xlu0 %v1314, 32
  %v1458 = vpop.permute.xlu0 %1457
  %1459 = vrot.lane.b32.xlu0 %v1315, 32
  %v1460 = vpop.permute.xlu0 %1459
  %1461 = vrot.lane.b32.xlu0 %v1316, 32
  %v1462 = vpop.permute.xlu0 %1461
  %1463 = vrot.lane.b32.xlu0 %v1317, 32
  %v1464 = vpop.permute.xlu0 %1463
  %1465 = vrot.lane.b32.xlu0 %v1318, 32
  %v1466 = vpop.permute.xlu0 %1465
  %1467 = vrot.lane.b32.xlu0 %v1319, 32
  %v1468 = vpop.permute.xlu0 %1467
  %1469 = vrot.lane.b32.xlu0 %v1320, 32
  %v1470 = vpop.permute.xlu0 %1469
  %1471 = vrot.lane.b32.xlu0 %v1321, 32
  %v1472 = vpop.permute.xlu0 %1471
  %1473 = vrot.lane.b32.xlu0 %v1322, 32
  %v1474 = vpop.permute.xlu0 %1473
  %1475 = vrot.lane.b32.xlu0 %v1323, 32
  %v1476 = vpop.permute.xlu0 %1475
  %1477 = vrot.lane.b32.xlu0 %v1324, 32
  %v1478 = vpop.permute.xlu0 %1477
  %1479 = vrot.lane.b32.xlu0 %v1325, 32
  %v1480 = vpop.permute.xlu0 %1479
  %1481 = vrot.lane.b32.xlu0 %v1326, 32
  %v1482 = vpop.permute.xlu0 %1481
  %1483 = vrot.lane.b32.xlu0 %v1327, 32
  %v1484 = vpop.permute.xlu0 %1483
  %1485 = vrot.lane.b32.xlu0 %v1328, 32
  %v1486 = vpop.permute.xlu0 %1485
  %1487 = vrot.lane.b32.xlu0 %v1329, 32
  %v1488 = vpop.permute.xlu0 %1487
  %1489 = vrot.lane.b32.xlu0 %v1330, 32
  %v1490 = vpop.permute.xlu0 %1489
  %1491 = vrot.lane.b32.xlu0 %v1331, 32
  %v1492 = vpop.permute.xlu0 %1491
  %1493 = vrot.lane.b32.xlu0 %v1332, 32
  %v1494 = vpop.permute.xlu0 %1493
  %1495 = vrot.lane.b32.xlu0 %v1333, 32
  %v1496 = vpop.permute.xlu0 %1495
  %1497 = vrot.lane.b32.xlu0 %v1334, 32
  %v1498 = vpop.permute.xlu0 %1497
  %1499 = vrot.lane.b32.xlu0 %v1335, 32
  %v1500 = vpop.permute.xlu0 %1499
  %1501 = vrot.lane.b32.xlu0 %v1336, 32
  %v1502 = vpop.permute.xlu0 %1501
  %1503 = vrot.lane.b32.xlu0 %v1337, 32
  %v1504 = vpop.permute.xlu0 %1503
  %1505 = vrot.lane.b32.xlu0 %v1338, 32
  %v1506 = vpop.permute.xlu0 %1505
  %1507 = vrot.lane.b32.xlu0 %v1339, 32
  %v1508 = vpop.permute.xlu0 %1507
  %1509 = vrot.lane.b32.xlu0 %v1340, 32
  %v1510 = vpop.permute.xlu0 %1509
  %1511 = vrot.lane.b32.xlu0 %v1341, 32
  %v1512 = vpop.permute.xlu0 %1511
  %1513 = vrot.lane.b32.xlu0 %v1342, 32
  %v1514 = vpop.permute.xlu0 %1513
  %1515 = vrot.lane.b32.xlu0 %v1343, 32
  %v1516 = vpop.permute.xlu0 %1515
  %1517 = vrot.lane.b32.xlu0 %v1344, 32
  %v1518 = vpop.permute.xlu0 %1517
  %1519 = vrot.lane.b32.xlu0 %v1345, 32
  %v1520 = vpop.permute.xlu0 %1519
  %1521 = vrot.lane.b32.xlu0 %v1346, 32
  %v1522 = vpop.permute.xlu0 %1521
  %1523 = vrot.lane.b32.xlu0 %v1347, 32
  %v1524 = vpop.permute.xlu0 %1523
  %1525 = vrot.lane.b32.xlu0 %v1348, 32
  %v1526 = vpop.permute.xlu0 %1525
  %1527 = vrot.lane.b32.xlu0 %v1349, 32
  %v1528 = vpop.permute.xlu0 %1527
  %1529 = vrot.lane.b32.xlu0 %v1350, 32
  %v1530 = vpop.permute.xlu0 %1529
  %1531 = vrot.lane.b32.xlu0 %v1351, 32
  %v1532 = vpop.permute.xlu0 %1531
  %1533 = vrot.lane.b32.xlu0 %v1352, 32
  %v1534 = vpop.permute.xlu0 %1533
  %1535 = vrot.lane.b32.xlu0 %v1353, 32
  %v1536 = vpop.permute.xlu0 %1535
  %1537 = vrot.lane.b32.xlu0 %v1354, 32
  %v1538 = vpop.permute.xlu0 %1537
  %1539 = vrot.lane.b32.xlu0 %v1355, 32
  %v1540 = vpop.permute.xlu0 %1539
  %1541 = vrot.lane.b32.xlu0 %v1356, 32
  %v1542 = vpop.permute.xlu0 %1541
  %1543 = vrot.lane.b32.xlu0 %v1357, 32
  %v1544 = vpop.permute.xlu0 %1543
  %1545 = vrot.lane.b32.xlu0 %v1358, 32
  %v1546 = vpop.permute.xlu0 %1545
  %1547 = vrot.lane.b32.xlu0 %v1359, 32
  %v1548 = vpop.permute.xlu0 %1547
  %1549 = vrot.lane.b32.xlu0 %v1360, 32
  %v1550 = vpop.permute.xlu0 %1549
  %1551 = vrot.lane.b32.xlu0 %v1361, 32
  %v1552 = vpop.permute.xlu0 %1551
  %1553 = vrot.lane.b32.xlu0 %v1362, 32
  %v1554 = vpop.permute.xlu0 %1553
  %vm1619 = vcmask 326912
  %1620 = vst.msk [vmem:[#allocation2] sm:$0xff] %vm1619, %v1428
  %1621 = vst.msk [vmem:[#allocation2 + $0x8] sm:$0xff] %vm1619, %v1430
  %1622 = vst.msk [vmem:[#allocation2 + $0x10] sm:$0xff] %vm1619, %v1432
  %1623 = vst.msk [vmem:[#allocation2 + $0x18] sm:$0xff] %vm1619, %v1434
  %1624 = vst.msk [vmem:[#allocation2 + $0x20] sm:$0xff] %vm1619, %v1436
  %1625 = vst.msk [vmem:[#allocation2 + $0x28] sm:$0xff] %vm1619, %v1438
  %1626 = vst.msk [vmem:[#allocation2 + $0x30] sm:$0xff] %vm1619, %v1440
  %1627 = vst.msk [vmem:[#allocation2 + $0x38] sm:$0xff] %vm1619, %v1442
  %1628 = vst.msk [vmem:[#allocation2 + $0x40] sm:$0xff] %vm1619, %v1444
  %1629 = vst.msk [vmem:[#allocation2 + $0x48] sm:$0xff] %vm1619, %v1446
  %1630 = vst.msk [vmem:[#allocation2 + $0x50] sm:$0xff] %vm1619, %v1448
  %1631 = vst.msk [vmem:[#allocation2 + $0x58] sm:$0xff] %vm1619, %v1450
  %1632 = vst.msk [vmem:[#allocation2 + $0x60] sm:$0xff] %vm1619, %v1452
  %1633 = vst.msk [vmem:[#allocation2 + $0x68] sm:$0xff] %vm1619, %v1454
  %1634 = vst.msk [vmem:[#allocation2 + $0x70] sm:$0xff] %vm1619, %v1456
  %1635 = vst.msk [vmem:[#allocation2 + $0x78] sm:$0xff] %vm1619, %v1458
  %1636 = vst.msk [vmem:[#allocation2 + $0x80] sm:$0xff] %vm1619, %v1460
  %1637 = vst.msk [vmem:[#allocation2 + $0x88] sm:$0xff] %vm1619, %v1462
  %1638 = vst.msk [vmem:[#allocation2 + $0x90] sm:$0xff] %vm1619, %v1464
  %1639 = vst.msk [vmem:[#allocation2 + $0x98] sm:$0xff] %vm1619, %v1466
  %1640 = vst.msk [vmem:[#allocation2 + $0xa0] sm:$0xff] %vm1619, %v1468
  %1641 = vst.msk [vmem:[#allocation2 + $0xa8] sm:$0xff] %vm1619, %v1470
  %1642 = vst.msk [vmem:[#allocation2 + $0xb0] sm:$0xff] %vm1619, %v1472
  %1643 = vst.msk [vmem:[#allocation2 + $0xb8] sm:$0xff] %vm1619, %v1474
  %1644 = vst.msk [vmem:[#allocation2 + $0xc0] sm:$0xff] %vm1619, %v1476
  %1645 = vst.msk [vmem:[#allocation2 + $0xc8] sm:$0xff] %vm1619, %v1478
  %1646 = vst.msk [vmem:[#allocation2 + $0xd0] sm:$0xff] %vm1619, %v1480
  %1647 = vst.msk [vmem:[#allocation2 + $0xd8] sm:$0xff] %vm1619, %v1482
  %1648 = vst.msk [vmem:[#allocation2 + $0xe0] sm:$0xff] %vm1619, %v1484
  %1649 = vst.msk [vmem:[#allocation2 + $0xe8] sm:$0xff] %vm1619, %v1486
  %1650 = vst.msk [vmem:[#allocation2 + $0xf0] sm:$0xff] %vm1619, %v1488
  %1651 = vst.msk [vmem:[#allocation2 + $0xf8] sm:$0xff] %vm1619, %v1490
  %1652 = vst.msk [vmem:[#allocation2 + $0x100] sm:$0xff] %vm1619, %v1492
  %1653 = vst.msk [vmem:[#allocation2 + $0x108] sm:$0xff] %vm1619, %v1494
  %1654 = vst.msk [vmem:[#allocation2 + $0x110] sm:$0xff] %vm1619, %v1496
  %1655 = vst.msk [vmem:[#allocation2 + $0x118] sm:$0xff] %vm1619, %v1498
  %1656 = vst.msk [vmem:[#allocation2 + $0x120] sm:$0xff] %vm1619, %v1500
  %1657 = vst.msk [vmem:[#allocation2 + $0x128] sm:$0xff] %vm1619, %v1502
  %1658 = vst.msk [vmem:[#allocation2 + $0x130] sm:$0xff] %vm1619, %v1504
  %1659 = vst.msk [vmem:[#allocation2 + $0x138] sm:$0xff] %vm1619, %v1506
  %1660 = vst.msk [vmem:[#allocation2 + $0x140] sm:$0xff] %vm1619, %v1508
  %1661 = vst.msk [vmem:[#allocation2 + $0x148] sm:$0xff] %vm1619, %v1510
  %1662 = vst.msk [vmem:[#allocation2 + $0x150] sm:$0xff] %vm1619, %v1512
  %1663 = vst.msk [vmem:[#allocation2 + $0x158] sm:$0xff] %vm1619, %v1514
  %1664 = vst.msk [vmem:[#allocation2 + $0x160] sm:$0xff] %vm1619, %v1516
  %1665 = vst.msk [vmem:[#allocation2 + $0x168] sm:$0xff] %vm1619, %v1518
  %1666 = vst.msk [vmem:[#allocation2 + $0x170] sm:$0xff] %vm1619, %v1520
  %1667 = vst.msk [vmem:[#allocation2 + $0x178] sm:$0xff] %vm1619, %v1522
  %1668 = vst.msk [vmem:[#allocation2 + $0x180] sm:$0xff] %vm1619, %v1524
  %1669 = vst.msk [vmem:[#allocation2 + $0x188] sm:$0xff] %vm1619, %v1526
  %1670 = vst.msk [vmem:[#allocation2 + $0x190] sm:$0xff] %vm1619, %v1528
  %1671 = vst.msk [vmem:[#allocation2 + $0x198] sm:$0xff] %vm1619, %v1530
  %1672 = vst.msk [vmem:[#allocation2 + $0x1a0] sm:$0xff] %vm1619, %v1532
  %1673 = vst.msk [vmem:[#allocation2 + $0x1a8] sm:$0xff] %vm1619, %v1534
  %1674 = vst.msk [vmem:[#allocation2 + $0x1b0] sm:$0xff] %vm1619, %v1536
  %1675 = vst.msk [vmem:[#allocation2 + $0x1b8] sm:$0xff] %vm1619, %v1538
  %1676 = vst.msk [vmem:[#allocation2 + $0x1c0] sm:$0xff] %vm1619, %v1540
  %1677 = vst.msk [vmem:[#allocation2 + $0x1c8] sm:$0xff] %vm1619, %v1542
  %1678 = vst.msk [vmem:[#allocation2 + $0x1d0] sm:$0xff] %vm1619, %v1544
  %1679 = vst.msk [vmem:[#allocation2 + $0x1d8] sm:$0xff] %vm1619, %v1546
  %1680 = vst.msk [vmem:[#allocation2 + $0x1e0] sm:$0xff] %vm1619, %v1548
  %1681 = vst.msk [vmem:[#allocation2 + $0x1e8] sm:$0xff] %vm1619, %v1550
  %1682 = vst.msk [vmem:[#allocation2 + $0x1f0] sm:$0xff] %vm1619, %v1552
  %1683 = vst.msk [vmem:[#allocation2 + $0x1f8] sm:$0xff] %vm1619, %v1554
  %v1684 = vld [vmem:[%s1298 + $0x1] sm:$0xff]
  %v1685 = vld [vmem:[%s1298 + $0x9] sm:$0xff]
  %v1686 = vld [vmem:[%s1298 + $0x19] sm:$0xff]
  %v1687 = vld [vmem:[%s1298 + $0x21] sm:$0xff]
  %v1688 = vld [vmem:[%s1298 + $0x31] sm:$0xff]
  %v1689 = vld [vmem:[%s1298 + $0x39] sm:$0xff]
  %v1690 = vld [vmem:[%s1298 + $0x49] sm:$0xff]
  %v1691 = vld [vmem:[%s1298 + $0x51] sm:$0xff]
  %v1692 = vld [vmem:[%s1298 + $0x61] sm:$0xff]
  %v1693 = vld [vmem:[%s1298 + $0x69] sm:$0xff]
  %v1694 = vld [vmem:[%s1298 + $0x79] sm:$0xff]
  %v1695 = vld [vmem:[%s1298 + $0x81] sm:$0xff]
  %v1696 = vld [vmem:[%s1298 + $0x91] sm:$0xff]
  %v1697 = vld [vmem:[%s1298 + $0x99] sm:$0xff]
  %v1698 = vld [vmem:[%s1298 + $0xa9] sm:$0xff]
  %v1699 = vld [vmem:[%s1298 + $0xb1] sm:$0xff]
  %v1700 = vld [vmem:[%s1298 + $0xc1] sm:$0xff]
  %v1701 = vld [vmem:[%s1298 + $0xc9] sm:$0xff]
  %v1702 = vld [vmem:[%s1298 + $0xd9] sm:$0xff]
  %v1703 = vld [vmem:[%s1298 + $0xe1] sm:$0xff]
  %v1704 = vld [vmem:[%s1298 + $0xf1] sm:$0xff]
  %v1705 = vld [vmem:[%s1298 + $0xf9] sm:$0xff]
  %v1706 = vld [vmem:[%s1298 + $0x109] sm:$0xff]
  %v1707 = vld [vmem:[%s1298 + $0x111] sm:$0xff]
  %v1708 = vld [vmem:[%s1298 + $0x121] sm:$0xff]
  %v1709 = vld [vmem:[%s1298 + $0x129] sm:$0xff]
  %v1710 = vld [vmem:[%s1298 + $0x139] sm:$0xff]
  %v1711 = vld [vmem:[%s1298 + $0x141] sm:$0xff]
  %v1712 = vld [vmem:[%s1298 + $0x151] sm:$0xff]
  %v1713 = vld [vmem:[%s1298 + $0x159] sm:$0xff]
  %v1714 = vld [vmem:[%s1298 + $0x169] sm:$0xff]
  %v1715 = vld [vmem:[%s1298 + $0x171] sm:$0xff]
  %v1716 = vld [vmem:[%s1298 + $0x1c9] sm:$0xff]
  %v1717 = vld [vmem:[%s1298 + $0x1d1] sm:$0xff]
  %v1718 = vld [vmem:[%s1298 + $0x1e1] sm:$0xff]
  %v1719 = vld [vmem:[%s1298 + $0x1e9] sm:$0xff]
  %v1720 = vld [vmem:[%s1298 + $0x1f9] sm:$0xff]
  %v1721 = vld [vmem:[%s1298 + $0x201] sm:$0xff]
  %v1722 = vld [vmem:[%s1298 + $0x211] sm:$0xff]
  %v1723 = vld [vmem:[%s1298 + $0x219] sm:$0xff]
  %v1724 = vld [vmem:[%s1298 + $0x229] sm:$0xff]
  %v1725 = vld [vmem:[%s1298 + $0x231] sm:$0xff]
  %v1726 = vld [vmem:[%s1298 + $0x241] sm:$0xff]
  %v1727 = vld [vmem:[%s1298 + $0x249] sm:$0xff]
  %v1728 = vld [vmem:[%s1298 + $0x259] sm:$0xff]
  %v1729 = vld [vmem:[%s1298 + $0x261] sm:$0xff]
  %v1730 = vld [vmem:[%s1298 + $0x271] sm:$0xff]
  %v1731 = vld [vmem:[%s1298 + $0x279] sm:$0xff]
  %v1732 = vld [vmem:[%s1298 + $0x289] sm:$0xff]
  %v1733 = vld [vmem:[%s1298 + $0x291] sm:$0xff]
  %v1734 = vld [vmem:[%s1298 + $0x2a1] sm:$0xff]
  %v1735 = vld [vmem:[%s1298 + $0x2a9] sm:$0xff]
  %v1736 = vld [vmem:[%s1298 + $0x2b9] sm:$0xff]
  %v1737 = vld [vmem:[%s1298 + $0x2c1] sm:$0xff]
  %v1738 = vld [vmem:[%s1298 + $0x2d1] sm:$0xff]
  %v1739 = vld [vmem:[%s1298 + $0x2d9] sm:$0xff]
  %v1740 = vld [vmem:[%s1298 + $0x2e9] sm:$0xff]
  %v1741 = vld [vmem:[%s1298 + $0x2f1] sm:$0xff]
  %v1742 = vld [vmem:[%s1298 + $0x301] sm:$0xff]
  %v1743 = vld [vmem:[%s1298 + $0x309] sm:$0xff]
  %v1744 = vld [vmem:[%s1298 + $0x319] sm:$0xff]
  %v1745 = vld [vmem:[%s1298 + $0x321] sm:$0xff]
  %v1746 = vld [vmem:[%s1298 + $0x331] sm:$0xff]
  %v1747 = vld [vmem:[%s1298 + $0x339] sm:$0xff]
  %1812 = vrot.lane.b32.xlu0 %v1684, 40
  %v1813 = vpop.permute.xlu0 %1812
  %1814 = vrot.lane.b32.xlu0 %v1685, 40
  %v1815 = vpop.permute.xlu0 %1814
  %1816 = vrot.lane.b32.xlu0 %v1686, 40
  %v1817 = vpop.permute.xlu0 %1816
  %1818 = vrot.lane.b32.xlu0 %v1687, 40
  %v1819 = vpop.permute.xlu0 %1818
  %1820 = vrot.lane.b32.xlu0 %v1688, 40
  %v1821 = vpop.permute.xlu0 %1820
  %1822 = vrot.lane.b32.xlu0 %v1689, 40
  %v1823 = vpop.permute.xlu0 %1822
  %1824 = vrot.lane.b32.xlu0 %v1690, 40
  %v1825 = vpop.permute.xlu0 %1824
  %1826 = vrot.lane.b32.xlu0 %v1691, 40
  %v1827 = vpop.permute.xlu0 %1826
  %1828 = vrot.lane.b32.xlu0 %v1692, 40
  %v1829 = vpop.permute.xlu0 %1828
  %1830 = vrot.lane.b32.xlu0 %v1693, 40
  %v1831 = vpop.permute.xlu0 %1830
  %1832 = vrot.lane.b32.xlu0 %v1694, 40
  %v1833 = vpop.permute.xlu0 %1832
  %1834 = vrot.lane.b32.xlu0 %v1695, 40
  %v1835 = vpop.permute.xlu0 %1834
  %1836 = vrot.lane.b32.xlu0 %v1696, 40
  %v1837 = vpop.permute.xlu0 %1836
  %1838 = vrot.lane.b32.xlu0 %v1697, 40
  %v1839 = vpop.permute.xlu0 %1838
  %1840 = vrot.lane.b32.xlu0 %v1698, 40
  %v1841 = vpop.permute.xlu0 %1840
  %1842 = vrot.lane.b32.xlu0 %v1699, 40
  %v1843 = vpop.permute.xlu0 %1842
  %1844 = vrot.lane.b32.xlu0 %v1700, 40
  %v1845 = vpop.permute.xlu0 %1844
  %1846 = vrot.lane.b32.xlu0 %v1701, 40
  %v1847 = vpop.permute.xlu0 %1846
  %1848 = vrot.lane.b32.xlu0 %v1702, 40
  %v1849 = vpop.permute.xlu0 %1848
  %1850 = vrot.lane.b32.xlu0 %v1703, 40
  %v1851 = vpop.permute.xlu0 %1850
  %1852 = vrot.lane.b32.xlu0 %v1704, 40
  %v1853 = vpop.permute.xlu0 %1852
  %1854 = vrot.lane.b32.xlu0 %v1705, 40
  %v1855 = vpop.permute.xlu0 %1854
  %1856 = vrot.lane.b32.xlu0 %v1706, 40
  %v1857 = vpop.permute.xlu0 %1856
  %1858 = vrot.lane.b32.xlu0 %v1707, 40
  %v1859 = vpop.permute.xlu0 %1858
  %1860 = vrot.lane.b32.xlu0 %v1708, 40
  %v1861 = vpop.permute.xlu0 %1860
  %1862 = vrot.lane.b32.xlu0 %v1709, 40
  %v1863 = vpop.permute.xlu0 %1862
  %1864 = vrot.lane.b32.xlu0 %v1710, 40
  %v1865 = vpop.permute.xlu0 %1864
  %1866 = vrot.lane.b32.xlu0 %v1711, 40
  %v1867 = vpop.permute.xlu0 %1866
  %1868 = vrot.lane.b32.xlu0 %v1712, 40
  %v1869 = vpop.permute.xlu0 %1868
  %1870 = vrot.lane.b32.xlu0 %v1713, 40
  %v1871 = vpop.permute.xlu0 %1870
  %1872 = vrot.lane.b32.xlu0 %v1714, 40
  %v1873 = vpop.permute.xlu0 %1872
  %1874 = vrot.lane.b32.xlu0 %v1715, 40
  %v1875 = vpop.permute.xlu0 %1874
  %1876 = vrot.lane.b32.xlu0 %v1716, 40
  %v1877 = vpop.permute.xlu0 %1876
  %1878 = vrot.lane.b32.xlu0 %v1717, 40
  %v1879 = vpop.permute.xlu0 %1878
  %1880 = vrot.lane.b32.xlu0 %v1718, 40
  %v1881 = vpop.permute.xlu0 %1880
  %1882 = vrot.lane.b32.xlu0 %v1719, 40
  %v1883 = vpop.permute.xlu0 %1882
  %1884 = vrot.lane.b32.xlu0 %v1720, 40
  %v1885 = vpop.permute.xlu0 %1884
  %1886 = vrot.lane.b32.xlu0 %v1721, 40
  %v1887 = vpop.permute.xlu0 %1886
  %1888 = vrot.lane.b32.xlu0 %v1722, 40
  %v1889 = vpop.permute.xlu0 %1888
  %1890 = vrot.lane.b32.xlu0 %v1723, 40
  %v1891 = vpop.permute.xlu0 %1890
  %1892 = vrot.lane.b32.xlu0 %v1724, 40
  %v1893 = vpop.permute.xlu0 %1892
  %1894 = vrot.lane.b32.xlu0 %v1725, 40
  %v1895 = vpop.permute.xlu0 %1894
  %1896 = vrot.lane.b32.xlu0 %v1726, 40
  %v1897 = vpop.permute.xlu0 %1896
  %1898 = vrot.lane.b32.xlu0 %v1727, 40
  %v1899 = vpop.permute.xlu0 %1898
  %1900 = vrot.lane.b32.xlu0 %v1728, 40
  %v1901 = vpop.permute.xlu0 %1900
  %1902 = vrot.lane.b32.xlu0 %v1729, 40
  %v1903 = vpop.permute.xlu0 %1902
  %1904 = vrot.lane.b32.xlu0 %v1730, 40
  %v1905 = vpop.permute.xlu0 %1904
  %1906 = vrot.lane.b32.xlu0 %v1731, 40
  %v1907 = vpop.permute.xlu0 %1906
  %1908 = vrot.lane.b32.xlu0 %v1732, 40
  %v1909 = vpop.permute.xlu0 %1908
  %1910 = vrot.lane.b32.xlu0 %v1733, 40
  %v1911 = vpop.permute.xlu0 %1910
  %1912 = vrot.lane.b32.xlu0 %v1734, 40
  %v1913 = vpop.permute.xlu0 %1912
  %1914 = vrot.lane.b32.xlu0 %v1735, 40
  %v1915 = vpop.permute.xlu0 %1914
  %1916 = vrot.lane.b32.xlu0 %v1736, 40
  %v1917 = vpop.permute.xlu0 %1916
  %1918 = vrot.lane.b32.xlu0 %v1737, 40
  %v1919 = vpop.permute.xlu0 %1918
  %1920 = vrot.lane.b32.xlu0 %v1738, 40
  %v1921 = vpop.permute.xlu0 %1920
  %1922 = vrot.lane.b32.xlu0 %v1739, 40
  %v1923 = vpop.permute.xlu0 %1922
  %1924 = vrot.lane.b32.xlu0 %v1740, 40
  %v1925 = vpop.permute.xlu0 %1924
  %1926 = vrot.lane.b32.xlu0 %v1741, 40
  %v1927 = vpop.permute.xlu0 %1926
  %1928 = vrot.lane.b32.xlu0 %v1742, 40
  %v1929 = vpop.permute.xlu0 %1928
  %1930 = vrot.lane.b32.xlu0 %v1743, 40
  %v1931 = vpop.permute.xlu0 %1930
  %1932 = vrot.lane.b32.xlu0 %v1744, 40
  %v1933 = vpop.permute.xlu0 %1932
  %1934 = vrot.lane.b32.xlu0 %v1745, 40
  %v1935 = vpop.permute.xlu0 %1934
  %1936 = vrot.lane.b32.xlu0 %v1746, 40
  %v1937 = vpop.permute.xlu0 %1936
  %1938 = vrot.lane.b32.xlu0 %v1747, 40
  %v1939 = vpop.permute.xlu0 %1938
  %vm2004 = vcmask 392512
  %2005 = vst.msk [vmem:[#allocation2] sm:$0xff] %vm2004, %v1813
  %2006 = vst.msk [vmem:[#allocation2 + $0x8] sm:$0xff] %vm2004, %v1815
  %2007 = vst.msk [vmem:[#allocation2 + $0x10] sm:$0xff] %vm2004, %v1817
  %2008 = vst.msk [vmem:[#allocation2 + $0x18] sm:$0xff] %vm2004, %v1819
  %2009 = vst.msk [vmem:[#allocation2 + $0x20] sm:$0xff] %vm2004, %v1821
  %2010 = vst.msk [vmem:[#allocation2 + $0x28] sm:$0xff] %vm2004, %v1823
  %2011 = vst.msk [vmem:[#allocation2 + $0x30] sm:$0xff] %vm2004, %v1825
  %2012 = vst.msk [vmem:[#allocation2 + $0x38] sm:$0xff] %vm2004, %v1827
  %2013 = vst.msk [vmem:[#allocation2 + $0x40] sm:$0xff] %vm2004, %v1829
  %2014 = vst.msk [vmem:[#allocation2 + $0x48] sm:$0xff] %vm2004, %v1831
  %2015 = vst.msk [vmem:[#allocation2 + $0x50] sm:$0xff] %vm2004, %v1833
  %2016 = vst.msk [vmem:[#allocation2 + $0x58] sm:$0xff] %vm2004, %v1835
  %2017 = vst.msk [vmem:[#allocation2 + $0x60] sm:$0xff] %vm2004, %v1837
  %2018 = vst.msk [vmem:[#allocation2 + $0x68] sm:$0xff] %vm2004, %v1839
  %2019 = vst.msk [vmem:[#allocation2 + $0x70] sm:$0xff] %vm2004, %v1841
  %2020 = vst.msk [vmem:[#allocation2 + $0x78] sm:$0xff] %vm2004, %v1843
  %2021 = vst.msk [vmem:[#allocation2 + $0x80] sm:$0xff] %vm2004, %v1845
  %2022 = vst.msk [vmem:[#allocation2 + $0x88] sm:$0xff] %vm2004, %v1847
  %2023 = vst.msk [vmem:[#allocation2 + $0x90] sm:$0xff] %vm2004, %v1849
  %2024 = vst.msk [vmem:[#allocation2 + $0x98] sm:$0xff] %vm2004, %v1851
  %2025 = vst.msk [vmem:[#allocation2 + $0xa0] sm:$0xff] %vm2004, %v1853
  %2026 = vst.msk [vmem:[#allocation2 + $0xa8] sm:$0xff] %vm2004, %v1855
  %2027 = vst.msk [vmem:[#allocation2 + $0xb0] sm:$0xff] %vm2004, %v1857
  %2028 = vst.msk [vmem:[#allocation2 + $0xb8] sm:$0xff] %vm2004, %v1859
  %2029 = vst.msk [vmem:[#allocation2 + $0xc0] sm:$0xff] %vm2004, %v1861
  %2030 = vst.msk [vmem:[#allocation2 + $0xc8] sm:$0xff] %vm2004, %v1863
  %2031 = vst.msk [vmem:[#allocation2 + $0xd0] sm:$0xff] %vm2004, %v1865
  %2032 = vst.msk [vmem:[#allocation2 + $0xd8] sm:$0xff] %vm2004, %v1867
  %2033 = vst.msk [vmem:[#allocation2 + $0xe0] sm:$0xff] %vm2004, %v1869
  %2034 = vst.msk [vmem:[#allocation2 + $0xe8] sm:$0xff] %vm2004, %v1871
  %2035 = vst.msk [vmem:[#allocation2 + $0xf0] sm:$0xff] %vm2004, %v1873
  %2036 = vst.msk [vmem:[#allocation2 + $0xf8] sm:$0xff] %vm2004, %v1875
  %2037 = vst.msk [vmem:[#allocation2 + $0x100] sm:$0xff] %vm2004, %v1877
  %2038 = vst.msk [vmem:[#allocation2 + $0x108] sm:$0xff] %vm2004, %v1879
  %2039 = vst.msk [vmem:[#allocation2 + $0x110] sm:$0xff] %vm2004, %v1881
  %2040 = vst.msk [vmem:[#allocation2 + $0x118] sm:$0xff] %vm2004, %v1883
  %2041 = vst.msk [vmem:[#allocation2 + $0x120] sm:$0xff] %vm2004, %v1885
  %2042 = vst.msk [vmem:[#allocation2 + $0x128] sm:$0xff] %vm2004, %v1887
  %2043 = vst.msk [vmem:[#allocation2 + $0x130] sm:$0xff] %vm2004, %v1889
  %2044 = vst.msk [vmem:[#allocation2 + $0x138] sm:$0xff] %vm2004, %v1891
  %2045 = vst.msk [vmem:[#allocation2 + $0x140] sm:$0xff] %vm2004, %v1893
  %2046 = vst.msk [vmem:[#allocation2 + $0x148] sm:$0xff] %vm2004, %v1895
  %2047 = vst.msk [vmem:[#allocation2 + $0x150] sm:$0xff] %vm2004, %v1897
  %2048 = vst.msk [vmem:[#allocation2 + $0x158] sm:$0xff] %vm2004, %v1899
  %2049 = vst.msk [vmem:[#allocation2 + $0x160] sm:$0xff] %vm2004, %v1901
  %2050 = vst.msk [vmem:[#allocation2 + $0x168] sm:$0xff] %vm2004, %v1903
  %2051 = vst.msk [vmem:[#allocation2 + $0x170] sm:$0xff] %vm2004, %v1905
  %2052 = vst.msk [vmem:[#allocation2 + $0x178] sm:$0xff] %vm2004, %v1907
  %2053 = vst.msk [vmem:[#allocation2 + $0x180] sm:$0xff] %vm2004, %v1909
  %2054 = vst.msk [vmem:[#allocation2 + $0x188] sm:$0xff] %vm2004, %v1911
  %2055 = vst.msk [vmem:[#allocation2 + $0x190] sm:$0xff] %vm2004, %v1913
  %2056 = vst.msk [vmem:[#allocation2 + $0x198] sm:$0xff] %vm2004, %v1915
  %2057 = vst.msk [vmem:[#allocation2 + $0x1a0] sm:$0xff] %vm2004, %v1917
  %2058 = vst.msk [vmem:[#allocation2 + $0x1a8] sm:$0xff] %vm2004, %v1919
  %2059 = vst.msk [vmem:[#allocation2 + $0x1b0] sm:$0xff] %vm2004, %v1921
  %2060 = vst.msk [vmem:[#allocation2 + $0x1b8] sm:$0xff] %vm2004, %v1923
  %2061 = vst.msk [vmem:[#allocation2 + $0x1c0] sm:$0xff] %vm2004, %v1925
  %2062 = vst.msk [vmem:[#allocation2 + $0x1c8] sm:$0xff] %vm2004, %v1927
  %2063 = vst.msk [vmem:[#allocation2 + $0x1d0] sm:$0xff] %vm2004, %v1929
  %2064 = vst.msk [vmem:[#allocation2 + $0x1d8] sm:$0xff] %vm2004, %v1931
  %2065 = vst.msk [vmem:[#allocation2 + $0x1e0] sm:$0xff] %vm2004, %v1933
  %2066 = vst.msk [vmem:[#allocation2 + $0x1e8] sm:$0xff] %vm2004, %v1935
  %2067 = vst.msk [vmem:[#allocation2 + $0x1f0] sm:$0xff] %vm2004, %v1937
  %2068 = vst.msk [vmem:[#allocation2 + $0x1f8] sm:$0xff] %vm2004, %v1939
  %v2069 = vld [vmem:[%s1298 + $0x2] sm:$0xff]
  %v2070 = vld [vmem:[%s1298 + $0xa] sm:$0xff]
  %v2071 = vld [vmem:[%s1298 + $0x1a] sm:$0xff]
  %v2072 = vld [vmem:[%s1298 + $0x22] sm:$0xff]
  %v2073 = vld [vmem:[%s1298 + $0x32] sm:$0xff]
  %v2074 = vld [vmem:[%s1298 + $0x3a] sm:$0xff]
  %v2075 = vld [vmem:[%s1298 + $0x4a] sm:$0xff]
  %v2076 = vld [vmem:[%s1298 + $0x52] sm:$0xff]
  %v2077 = vld [vmem:[%s1298 + $0x62] sm:$0xff]
  %v2078 = vld [vmem:[%s1298 + $0x6a] sm:$0xff]
  %v2079 = vld [vmem:[%s1298 + $0x7a] sm:$0xff]
  %v2080 = vld [vmem:[%s1298 + $0x82] sm:$0xff]
  %v2081 = vld [vmem:[%s1298 + $0x92] sm:$0xff]
  %v2082 = vld [vmem:[%s1298 + $0x9a] sm:$0xff]
  %v2083 = vld [vmem:[%s1298 + $0xaa] sm:$0xff]
  %v2084 = vld [vmem:[%s1298 + $0xb2] sm:$0xff]
  %v2085 = vld [vmem:[%s1298 + $0xc2] sm:$0xff]
  %v2086 = vld [vmem:[%s1298 + $0xca] sm:$0xff]
  %v2087 = vld [vmem:[%s1298 + $0xda] sm:$0xff]
  %v2088 = vld [vmem:[%s1298 + $0xe2] sm:$0xff]
  %v2089 = vld [vmem:[%s1298 + $0xf2] sm:$0xff]
  %v2090 = vld [vmem:[%s1298 + $0xfa] sm:$0xff]
  %v2091 = vld [vmem:[%s1298 + $0x10a] sm:$0xff]
  %v2092 = vld [vmem:[%s1298 + $0x112] sm:$0xff]
  %v2093 = vld [vmem:[%s1298 + $0x122] sm:$0xff]
  %v2094 = vld [vmem:[%s1298 + $0x12a] sm:$0xff]
  %v2095 = vld [vmem:[%s1298 + $0x13a] sm:$0xff]
  %v2096 = vld [vmem:[%s1298 + $0x142] sm:$0xff]
  %v2097 = vld [vmem:[%s1298 + $0x152] sm:$0xff]
  %v2098 = vld [vmem:[%s1298 + $0x15a] sm:$0xff]
  %v2099 = vld [vmem:[%s1298 + $0x16a] sm:$0xff]
  %v2100 = vld [vmem:[%s1298 + $0x172] sm:$0xff]
  %v2101 = vld [vmem:[%s1298 + $0x1ca] sm:$0xff]
  %v2102 = vld [vmem:[%s1298 + $0x1d2] sm:$0xff]
  %v2103 = vld [vmem:[%s1298 + $0x1e2] sm:$0xff]
  %v2104 = vld [vmem:[%s1298 + $0x1ea] sm:$0xff]
  %v2105 = vld [vmem:[%s1298 + $0x1fa] sm:$0xff]
  %v2106 = vld [vmem:[%s1298 + $0x202] sm:$0xff]
  %v2107 = vld [vmem:[%s1298 + $0x212] sm:$0xff]
  %v2108 = vld [vmem:[%s1298 + $0x21a] sm:$0xff]
  %v2109 = vld [vmem:[%s1298 + $0x22a] sm:$0xff]
  %v2110 = vld [vmem:[%s1298 + $0x232] sm:$0xff]
  %v2111 = vld [vmem:[%s1298 + $0x242] sm:$0xff]
  %v2112 = vld [vmem:[%s1298 + $0x24a] sm:$0xff]
  %v2113 = vld [vmem:[%s1298 + $0x25a] sm:$0xff]
  %v2114 = vld [vmem:[%s1298 + $0x262] sm:$0xff]
  %v2115 = vld [vmem:[%s1298 + $0x272] sm:$0xff]
  %v2116 = vld [vmem:[%s1298 + $0x27a] sm:$0xff]
  %v2117 = vld [vmem:[%s1298 + $0x28a] sm:$0xff]
  %v2118 = vld [vmem:[%s1298 + $0x292] sm:$0xff]
  %v2119 = vld [vmem:[%s1298 + $0x2a2] sm:$0xff]
  %v2120 = vld [vmem:[%s1298 + $0x2aa] sm:$0xff]
  %v2121 = vld [vmem:[%s1298 + $0x2ba] sm:$0xff]
  %v2122 = vld [vmem:[%s1298 + $0x2c2] sm:$0xff]
  %v2123 = vld [vmem:[%s1298 + $0x2d2] sm:$0xff]
  %v2124 = vld [vmem:[%s1298 + $0x2da] sm:$0xff]
  %v2125 = vld [vmem:[%s1298 + $0x2ea] sm:$0xff]
  %v2126 = vld [vmem:[%s1298 + $0x2f2] sm:$0xff]
  %v2127 = vld [vmem:[%s1298 + $0x302] sm:$0xff]
  %v2128 = vld [vmem:[%s1298 + $0x30a] sm:$0xff]
  %v2129 = vld [vmem:[%s1298 + $0x31a] sm:$0xff]
  %v2130 = vld [vmem:[%s1298 + $0x322] sm:$0xff]
  %v2131 = vld [vmem:[%s1298 + $0x332] sm:$0xff]
  %v2132 = vld [vmem:[%s1298 + $0x33a] sm:$0xff]
  %2197 = vrot.lane.b32.xlu0 %v2069, 48
  %v2198 = vpop.permute.xlu0 %2197
  %2199 = vrot.lane.b32.xlu0 %v2070, 48
  %v2200 = vpop.permute.xlu0 %2199
  %2201 = vrot.lane.b32.xlu0 %v2071, 48
  %v2202 = vpop.permute.xlu0 %2201
  %2203 = vrot.lane.b32.xlu0 %v2072, 48
  %v2204 = vpop.permute.xlu0 %2203
  %2205 = vrot.lane.b32.xlu0 %v2073, 48
  %v2206 = vpop.permute.xlu0 %2205
  %2207 = vrot.lane.b32.xlu0 %v2074, 48
  %v2208 = vpop.permute.xlu0 %2207
  %2209 = vrot.lane.b32.xlu0 %v2075, 48
  %v2210 = vpop.permute.xlu0 %2209
  %2211 = vrot.lane.b32.xlu0 %v2076, 48
  %v2212 = vpop.permute.xlu0 %2211
  %2213 = vrot.lane.b32.xlu0 %v2077, 48
  %v2214 = vpop.permute.xlu0 %2213
  %2215 = vrot.lane.b32.xlu0 %v2078, 48
  %v2216 = vpop.permute.xlu0 %2215
  %2217 = vrot.lane.b32.xlu0 %v2079, 48
  %v2218 = vpop.permute.xlu0 %2217
  %2219 = vrot.lane.b32.xlu0 %v2080, 48
  %v2220 = vpop.permute.xlu0 %2219
  %2221 = vrot.lane.b32.xlu0 %v2081, 48
  %v2222 = vpop.permute.xlu0 %2221
  %2223 = vrot.lane.b32.xlu0 %v2082, 48
  %v2224 = vpop.permute.xlu0 %2223
  %2225 = vrot.lane.b32.xlu0 %v2083, 48
  %v2226 = vpop.permute.xlu0 %2225
  %2227 = vrot.lane.b32.xlu0 %v2084, 48
  %v2228 = vpop.permute.xlu0 %2227
  %2229 = vrot.lane.b32.xlu0 %v2085, 48
  %v2230 = vpop.permute.xlu0 %2229
  %2231 = vrot.lane.b32.xlu0 %v2086, 48
  %v2232 = vpop.permute.xlu0 %2231
  %2233 = vrot.lane.b32.xlu0 %v2087, 48
  %v2234 = vpop.permute.xlu0 %2233
  %2235 = vrot.lane.b32.xlu0 %v2088, 48
  %v2236 = vpop.permute.xlu0 %2235
  %2237 = vrot.lane.b32.xlu0 %v2089, 48
  %v2238 = vpop.permute.xlu0 %2237
  %2239 = vrot.lane.b32.xlu0 %v2090, 48
  %v2240 = vpop.permute.xlu0 %2239
  %2241 = vrot.lane.b32.xlu0 %v2091, 48
  %v2242 = vpop.permute.xlu0 %2241
  %2243 = vrot.lane.b32.xlu0 %v2092, 48
  %v2244 = vpop.permute.xlu0 %2243
  %2245 = vrot.lane.b32.xlu0 %v2093, 48
  %v2246 = vpop.permute.xlu0 %2245
  %2247 = vrot.lane.b32.xlu0 %v2094, 48
  %v2248 = vpop.permute.xlu0 %2247
  %2249 = vrot.lane.b32.xlu0 %v2095, 48
  %v2250 = vpop.permute.xlu0 %2249
  %2251 = vrot.lane.b32.xlu0 %v2096, 48
  %v2252 = vpop.permute.xlu0 %2251
  %2253 = vrot.lane.b32.xlu0 %v2097, 48
  %v2254 = vpop.permute.xlu0 %2253
  %2255 = vrot.lane.b32.xlu0 %v2098, 48
  %v2256 = vpop.permute.xlu0 %2255
  %2257 = vrot.lane.b32.xlu0 %v2099, 48
  %v2258 = vpop.permute.xlu0 %2257
  %2259 = vrot.lane.b32.xlu0 %v2100, 48
  %v2260 = vpop.permute.xlu0 %2259
  %2261 = vrot.lane.b32.xlu0 %v2101, 48
  %v2262 = vpop.permute.xlu0 %2261
  %2263 = vrot.lane.b32.xlu0 %v2102, 48
  %v2264 = vpop.permute.xlu0 %2263
  %2265 = vrot.lane.b32.xlu0 %v2103, 48
  %v2266 = vpop.permute.xlu0 %2265
  %2267 = vrot.lane.b32.xlu0 %v2104, 48
  %v2268 = vpop.permute.xlu0 %2267
  %2269 = vrot.lane.b32.xlu0 %v2105, 48
  %v2270 = vpop.permute.xlu0 %2269
  %2271 = vrot.lane.b32.xlu0 %v2106, 48
  %v2272 = vpop.permute.xlu0 %2271
  %2273 = vrot.lane.b32.xlu0 %v2107, 48
  %v2274 = vpop.permute.xlu0 %2273
  %2275 = vrot.lane.b32.xlu0 %v2108, 48
  %v2276 = vpop.permute.xlu0 %2275
  %2277 = vrot.lane.b32.xlu0 %v2109, 48
  %v2278 = vpop.permute.xlu0 %2277
  %2279 = vrot.lane.b32.xlu0 %v2110, 48
  %v2280 = vpop.permute.xlu0 %2279
  %2281 = vrot.lane.b32.xlu0 %v2111, 48
  %v2282 = vpop.permute.xlu0 %2281
  %2283 = vrot.lane.b32.xlu0 %v2112, 48
  %v2284 = vpop.permute.xlu0 %2283
  %2285 = vrot.lane.b32.xlu0 %v2113, 48
  %v2286 = vpop.permute.xlu0 %2285
  %2287 = vrot.lane.b32.xlu0 %v2114, 48
  %v2288 = vpop.permute.xlu0 %2287
  %2289 = vrot.lane.b32.xlu0 %v2115, 48
  %v2290 = vpop.permute.xlu0 %2289
  %2291 = vrot.lane.b32.xlu0 %v2116, 48
  %v2292 = vpop.permute.xlu0 %2291
  %2293 = vrot.lane.b32.xlu0 %v2117, 48
  %v2294 = vpop.permute.xlu0 %2293
  %2295 = vrot.lane.b32.xlu0 %v2118, 48
  %v2296 = vpop.permute.xlu0 %2295
  %2297 = vrot.lane.b32.xlu0 %v2119, 48
  %v2298 = vpop.permute.xlu0 %2297
  %2299 = vrot.lane.b32.xlu0 %v2120, 48
  %v2300 = vpop.permute.xlu0 %2299
  %2301 = vrot.lane.b32.xlu0 %v2121, 48
  %v2302 = vpop.permute.xlu0 %2301
  %2303 = vrot.lane.b32.xlu0 %v2122, 48
  %v2304 = vpop.permute.xlu0 %2303
  %2305 = vrot.lane.b32.xlu0 %v2123, 48
  %v2306 = vpop.permute.xlu0 %2305
  %2307 = vrot.lane.b32.xlu0 %v2124, 48
  %v2308 = vpop.permute.xlu0 %2307
  %2309 = vrot.lane.b32.xlu0 %v2125, 48
  %v2310 = vpop.permute.xlu0 %2309
  %2311 = vrot.lane.b32.xlu0 %v2126, 48
  %v2312 = vpop.permute.xlu0 %2311
  %2313 = vrot.lane.b32.xlu0 %v2127, 48
  %v2314 = vpop.permute.xlu0 %2313
  %2315 = vrot.lane.b32.xlu0 %v2128, 48
  %v2316 = vpop.permute.xlu0 %2315
  %2317 = vrot.lane.b32.xlu0 %v2129, 48
  %v2318 = vpop.permute.xlu0 %2317
  %2319 = vrot.lane.b32.xlu0 %v2130, 48
  %v2320 = vpop.permute.xlu0 %2319
  %2321 = vrot.lane.b32.xlu0 %v2131, 48
  %v2322 = vpop.permute.xlu0 %2321
  %2323 = vrot.lane.b32.xlu0 %v2132, 48
  %v2324 = vpop.permute.xlu0 %2323
  %vm2389 = vcmask 458112
  %2390 = vst.msk [vmem:[#allocation2] sm:$0xff] %vm2389, %v2198
  %2391 = vst.msk [vmem:[#allocation2 + $0x8] sm:$0xff] %vm2389, %v2200
  %2392 = vst.msk [vmem:[#allocation2 + $0x10] sm:$0xff] %vm2389, %v2202
  %2393 = vst.msk [vmem:[#allocation2 + $0x18] sm:$0xff] %vm2389, %v2204
  %2394 = vst.msk [vmem:[#allocation2 + $0x20] sm:$0xff] %vm2389, %v2206
  %2395 = vst.msk [vmem:[#allocation2 + $0x28] sm:$0xff] %vm2389, %v2208
  %2396 = vst.msk [vmem:[#allocation2 + $0x30] sm:$0xff] %vm2389, %v2210
  %2397 = vst.msk [vmem:[#allocation2 + $0x38] sm:$0xff] %vm2389, %v2212
  %2398 = vst.msk [vmem:[#allocation2 + $0x40] sm:$0xff] %vm2389, %v2214
  %2399 = vst.msk [vmem:[#allocation2 + $0x48] sm:$0xff] %vm2389, %v2216
  %2400 = vst.msk [vmem:[#allocation2 + $0x50] sm:$0xff] %vm2389, %v2218
  %2401 = vst.msk [vmem:[#allocation2 + $0x58] sm:$0xff] %vm2389, %v2220
  %2402 = vst.msk [vmem:[#allocation2 + $0x60] sm:$0xff] %vm2389, %v2222
  %2403 = vst.msk [vmem:[#allocation2 + $0x68] sm:$0xff] %vm2389, %v2224
  %2404 = vst.msk [vmem:[#allocation2 + $0x70] sm:$0xff] %vm2389, %v2226
  %2405 = vst.msk [vmem:[#allocation2 + $0x78] sm:$0xff] %vm2389, %v2228
  %2406 = vst.msk [vmem:[#allocation2 + $0x80] sm:$0xff] %vm2389, %v2230
  %2407 = vst.msk [vmem:[#allocation2 + $0x88] sm:$0xff] %vm2389, %v2232
  %2408 = vst.msk [vmem:[#allocation2 + $0x90] sm:$0xff] %vm2389, %v2234
  %2409 = vst.msk [vmem:[#allocation2 + $0x98] sm:$0xff] %vm2389, %v2236
  %2410 = vst.msk [vmem:[#allocation2 + $0xa0] sm:$0xff] %vm2389, %v2238
  %2411 = vst.msk [vmem:[#allocation2 + $0xa8] sm:$0xff] %vm2389, %v2240
  %2412 = vst.msk [vmem:[#allocation2 + $0xb0] sm:$0xff] %vm2389, %v2242
  %2413 = vst.msk [vmem:[#allocation2 + $0xb8] sm:$0xff] %vm2389, %v2244
  %2414 = vst.msk [vmem:[#allocation2 + $0xc0] sm:$0xff] %vm2389, %v2246
  %2415 = vst.msk [vmem:[#allocation2 + $0xc8] sm:$0xff] %vm2389, %v2248
  %2416 = vst.msk [vmem:[#allocation2 + $0xd0] sm:$0xff] %vm2389, %v2250
  %2417 = vst.msk [vmem:[#allocation2 + $0xd8] sm:$0xff] %vm2389, %v2252
  %2418 = vst.msk [vmem:[#allocation2 + $0xe0] sm:$0xff] %vm2389, %v2254
  %2419 = vst.msk [vmem:[#allocation2 + $0xe8] sm:$0xff] %vm2389, %v2256
  %2420 = vst.msk [vmem:[#allocation2 + $0xf0] sm:$0xff] %vm2389, %v2258
  %2421 = vst.msk [vmem:[#allocation2 + $0xf8] sm:$0xff] %vm2389, %v2260
  %2422 = vst.msk [vmem:[#allocation2 + $0x100] sm:$0xff] %vm2389, %v2262
  %2423 = vst.msk [vmem:[#allocation2 + $0x108] sm:$0xff] %vm2389, %v2264
  %2424 = vst.msk [vmem:[#allocation2 + $0x110] sm:$0xff] %vm2389, %v2266
  %2425 = vst.msk [vmem:[#allocation2 + $0x118] sm:$0xff] %vm2389, %v2268
  %2426 = vst.msk [vmem:[#allocation2 + $0x120] sm:$0xff] %vm2389, %v2270
  %2427 = vst.msk [vmem:[#allocation2 + $0x128] sm:$0xff] %vm2389, %v2272
  %2428 = vst.msk [vmem:[#allocation2 + $0x130] sm:$0xff] %vm2389, %v2274
  %2429 = vst.msk [vmem:[#allocation2 + $0x138] sm:$0xff] %vm2389, %v2276
  %2430 = vst.msk [vmem:[#allocation2 + $0x140] sm:$0xff] %vm2389, %v2278
  %2431 = vst.msk [vmem:[#allocation2 + $0x148] sm:$0xff] %vm2389, %v2280
  %2432 = vst.msk [vmem:[#allocation2 + $0x150] sm:$0xff] %vm2389, %v2282
  %2433 = vst.msk [vmem:[#allocation2 + $0x158] sm:$0xff] %vm2389, %v2284
  %2434 = vst.msk [vmem:[#allocation2 + $0x160] sm:$0xff] %vm2389, %v2286
  %2435 = vst.msk [vmem:[#allocation2 + $0x168] sm:$0xff] %vm2389, %v2288
  %2436 = vst.msk [vmem:[#allocation2 + $0x170] sm:$0xff] %vm2389, %v2290
  %2437 = vst.msk [vmem:[#allocation2 + $0x178] sm:$0xff] %vm2389, %v2292
  %2438 = vst.msk [vmem:[#allocation2 + $0x180] sm:$0xff] %vm2389, %v2294
  %2439 = vst.msk [vmem:[#allocation2 + $0x188] sm:$0xff] %vm2389, %v2296
  %2440 = vst.msk [vmem:[#allocation2 + $0x190] sm:$0xff] %vm2389, %v2298
  %2441 = vst.msk [vmem:[#allocation2 + $0x198] sm:$0xff] %vm2389, %v2300
  %2442 = vst.msk [vmem:[#allocation2 + $0x1a0] sm:$0xff] %vm2389, %v2302
  %2443 = vst.msk [vmem:[#allocation2 + $0x1a8] sm:$0xff] %vm2389, %v2304
  %2444 = vst.msk [vmem:[#allocation2 + $0x1b0] sm:$0xff] %vm2389, %v2306
  %2445 = vst.msk [vmem:[#allocation2 + $0x1b8] sm:$0xff] %vm2389, %v2308
  %2446 = vst.msk [vmem:[#allocation2 + $0x1c0] sm:$0xff] %vm2389, %v2310
  %2447 = vst.msk [vmem:[#allocation2 + $0x1c8] sm:$0xff] %vm2389, %v2312
  %2448 = vst.msk [vmem:[#allocation2 + $0x1d0] sm:$0xff] %vm2389, %v2314
  %2449 = vst.msk [vmem:[#allocation2 + $0x1d8] sm:$0xff] %vm2389, %v2316
  %2450 = vst.msk [vmem:[#allocation2 + $0x1e0] sm:$0xff] %vm2389, %v2318
  %2451 = vst.msk [vmem:[#allocation2 + $0x1e8] sm:$0xff] %vm2389, %v2320
  %2452 = vst.msk [vmem:[#allocation2 + $0x1f0] sm:$0xff] %vm2389, %v2322
  %2453 = vst.msk [vmem:[#allocation2 + $0x1f8] sm:$0xff] %vm2389, %v2324
  %v2454 = vld [vmem:[%s1298 + $0x3] sm:$0xff]
  %v2455 = vld [vmem:[%s1298 + $0xb] sm:$0xff]
  %v2456 = vld [vmem:[%s1298 + $0x1b] sm:$0xff]
  %v2457 = vld [vmem:[%s1298 + $0x23] sm:$0xff]
  %v2458 = vld [vmem:[%s1298 + $0x33] sm:$0xff]
  %v2459 = vld [vmem:[%s1298 + $0x3b] sm:$0xff]
  %v2460 = vld [vmem:[%s1298 + $0x4b] sm:$0xff]
  %v2461 = vld [vmem:[%s1298 + $0x53] sm:$0xff]
  %v2462 = vld [vmem:[%s1298 + $0x63] sm:$0xff]
  %v2463 = vld [vmem:[%s1298 + $0x6b] sm:$0xff]
  %v2464 = vld [vmem:[%s1298 + $0x7b] sm:$0xff]
  %v2465 = vld [vmem:[%s1298 + $0x83] sm:$0xff]
  %v2466 = vld [vmem:[%s1298 + $0x93] sm:$0xff]
  %v2467 = vld [vmem:[%s1298 + $0x9b] sm:$0xff]
  %v2468 = vld [vmem:[%s1298 + $0xab] sm:$0xff]
  %v2469 = vld [vmem:[%s1298 + $0xb3] sm:$0xff]
  %v2470 = vld [vmem:[%s1298 + $0xc3] sm:$0xff]
  %v2471 = vld [vmem:[%s1298 + $0xcb] sm:$0xff]
  %v2472 = vld [vmem:[%s1298 + $0xdb] sm:$0xff]
  %v2473 = vld [vmem:[%s1298 + $0xe3] sm:$0xff]
  %v2474 = vld [vmem:[%s1298 + $0xf3] sm:$0xff]
  %v2475 = vld [vmem:[%s1298 + $0xfb] sm:$0xff]
  %v2476 = vld [vmem:[%s1298 + $0x10b] sm:$0xff]
  %v2477 = vld [vmem:[%s1298 + $0x113] sm:$0xff]
  %v2478 = vld [vmem:[%s1298 + $0x123] sm:$0xff]
  %v2479 = vld [vmem:[%s1298 + $0x12b] sm:$0xff]
  %v2480 = vld [vmem:[%s1298 + $0x13b] sm:$0xff]
  %v2481 = vld [vmem:[%s1298 + $0x143] sm:$0xff]
  %v2482 = vld [vmem:[%s1298 + $0x153] sm:$0xff]
  %v2483 = vld [vmem:[%s1298 + $0x15b] sm:$0xff]
  %v2484 = vld [vmem:[%s1298 + $0x16b] sm:$0xff]
  %v2485 = vld [vmem:[%s1298 + $0x173] sm:$0xff]
  %v2486 = vld [vmem:[%s1298 + $0x1cb] sm:$0xff]
  %v2487 = vld [vmem:[%s1298 + $0x1d3] sm:$0xff]
  %v2488 = vld [vmem:[%s1298 + $0x1e3] sm:$0xff]
  %v2489 = vld [vmem:[%s1298 + $0x1eb] sm:$0xff]
  %v2490 = vld [vmem:[%s1298 + $0x1fb] sm:$0xff]
  %v2491 = vld [vmem:[%s1298 + $0x203] sm:$0xff]
  %v2492 = vld [vmem:[%s1298 + $0x213] sm:$0xff]
  %v2493 = vld [vmem:[%s1298 + $0x21b] sm:$0xff]
  %v2494 = vld [vmem:[%s1298 + $0x22b] sm:$0xff]
  %v2495 = vld [vmem:[%s1298 + $0x233] sm:$0xff]
  %v2496 = vld [vmem:[%s1298 + $0x243] sm:$0xff]
  %v2497 = vld [vmem:[%s1298 + $0x24b] sm:$0xff]
  %v2498 = vld [vmem:[%s1298 + $0x25b] sm:$0xff]
  %v2499 = vld [vmem:[%s1298 + $0x263] sm:$0xff]
  %v2500 = vld [vmem:[%s1298 + $0x273] sm:$0xff]
  %v2501 = vld [vmem:[%s1298 + $0x27b] sm:$0xff]
  %v2502 = vld [vmem:[%s1298 + $0x28b] sm:$0xff]
  %v2503 = vld [vmem:[%s1298 + $0x293] sm:$0xff]
  %v2504 = vld [vmem:[%s1298 + $0x2a3] sm:$0xff]
  %v2505 = vld [vmem:[%s1298 + $0x2ab] sm:$0xff]
  %v2506 = vld [vmem:[%s1298 + $0x2bb] sm:$0xff]
  %v2507 = vld [vmem:[%s1298 + $0x2c3] sm:$0xff]
  %v2508 = vld [vmem:[%s1298 + $0x2d3] sm:$0xff]
  %v2509 = vld [vmem:[%s1298 + $0x2db] sm:$0xff]
  %v2510 = vld [vmem:[%s1298 + $0x2eb] sm:$0xff]
  %v2511 = vld [vmem:[%s1298 + $0x2f3] sm:$0xff]
  %v2512 = vld [vmem:[%s1298 + $0x303] sm:$0xff]
  %v2513 = vld [vmem:[%s1298 + $0x30b] sm:$0xff]
  %v2514 = vld [vmem:[%s1298 + $0x31b] sm:$0xff]
  %v2515 = vld [vmem:[%s1298 + $0x323] sm:$0xff]
  %v2516 = vld [vmem:[%s1298 + $0x333] sm:$0xff]
  %v2517 = vld [vmem:[%s1298 + $0x33b] sm:$0xff]
  %2582 = vrot.lane.b32.xlu0 %v2454, 56
  %v2583 = vpop.permute.xlu0 %2582
  %2584 = vrot.lane.b32.xlu0 %v2455, 56
  %v2585 = vpop.permute.xlu0 %2584
  %2586 = vrot.lane.b32.xlu0 %v2456, 56
  %v2587 = vpop.permute.xlu0 %2586
  %2588 = vrot.lane.b32.xlu0 %v2457, 56
  %v2589 = vpop.permute.xlu0 %2588
  %2590 = vrot.lane.b32.xlu0 %v2458, 56
  %v2591 = vpop.permute.xlu0 %2590
  %2592 = vrot.lane.b32.xlu0 %v2459, 56
  %v2593 = vpop.permute.xlu0 %2592
  %2594 = vrot.lane.b32.xlu0 %v2460, 56
  %v2595 = vpop.permute.xlu0 %2594
  %2596 = vrot.lane.b32.xlu0 %v2461, 56
  %v2597 = vpop.permute.xlu0 %2596
  %2598 = vrot.lane.b32.xlu0 %v2462, 56
  %v2599 = vpop.permute.xlu0 %2598
  %2600 = vrot.lane.b32.xlu0 %v2463, 56
  %v2601 = vpop.permute.xlu0 %2600
  %2602 = vrot.lane.b32.xlu0 %v2464, 56
  %v2603 = vpop.permute.xlu0 %2602
  %2604 = vrot.lane.b32.xlu0 %v2465, 56
  %v2605 = vpop.permute.xlu0 %2604
  %2606 = vrot.lane.b32.xlu0 %v2466, 56
  %v2607 = vpop.permute.xlu0 %2606
  %2608 = vrot.lane.b32.xlu0 %v2467, 56
  %v2609 = vpop.permute.xlu0 %2608
  %2610 = vrot.lane.b32.xlu0 %v2468, 56
  %v2611 = vpop.permute.xlu0 %2610
  %2612 = vrot.lane.b32.xlu0 %v2469, 56
  %v2613 = vpop.permute.xlu0 %2612
  %2614 = vrot.lane.b32.xlu0 %v2470, 56
  %v2615 = vpop.permute.xlu0 %2614
  %2616 = vrot.lane.b32.xlu0 %v2471, 56
  %v2617 = vpop.permute.xlu0 %2616
  %2618 = vrot.lane.b32.xlu0 %v2472, 56
  %v2619 = vpop.permute.xlu0 %2618
  %2620 = vrot.lane.b32.xlu0 %v2473, 56
  %v2621 = vpop.permute.xlu0 %2620
  %2622 = vrot.lane.b32.xlu0 %v2474, 56
  %v2623 = vpop.permute.xlu0 %2622
  %2624 = vrot.lane.b32.xlu0 %v2475, 56
  %v2625 = vpop.permute.xlu0 %2624
  %2626 = vrot.lane.b32.xlu0 %v2476, 56
  %v2627 = vpop.permute.xlu0 %2626
  %2628 = vrot.lane.b32.xlu0 %v2477, 56
  %v2629 = vpop.permute.xlu0 %2628
  %2630 = vrot.lane.b32.xlu0 %v2478, 56
  %v2631 = vpop.permute.xlu0 %2630
  %2632 = vrot.lane.b32.xlu0 %v2479, 56
  %v2633 = vpop.permute.xlu0 %2632
  %2634 = vrot.lane.b32.xlu0 %v2480, 56
  %v2635 = vpop.permute.xlu0 %2634
  %2636 = vrot.lane.b32.xlu0 %v2481, 56
  %v2637 = vpop.permute.xlu0 %2636
  %2638 = vrot.lane.b32.xlu0 %v2482, 56
  %v2639 = vpop.permute.xlu0 %2638
  %2640 = vrot.lane.b32.xlu0 %v2483, 56
  %v2641 = vpop.permute.xlu0 %2640
  %2642 = vrot.lane.b32.xlu0 %v2484, 56
  %v2643 = vpop.permute.xlu0 %2642
  %2644 = vrot.lane.b32.xlu0 %v2485, 56
  %v2645 = vpop.permute.xlu0 %2644
  %2646 = vrot.lane.b32.xlu0 %v2486, 56
  %v2647 = vpop.permute.xlu0 %2646
  %2648 = vrot.lane.b32.xlu0 %v2487, 56
  %v2649 = vpop.permute.xlu0 %2648
  %2650 = vrot.lane.b32.xlu0 %v2488, 56
  %v2651 = vpop.permute.xlu0 %2650
  %2652 = vrot.lane.b32.xlu0 %v2489, 56
  %v2653 = vpop.permute.xlu0 %2652
  %2654 = vrot.lane.b32.xlu0 %v2490, 56
  %v2655 = vpop.permute.xlu0 %2654
  %2656 = vrot.lane.b32.xlu0 %v2491, 56
  %v2657 = vpop.permute.xlu0 %2656
  %2658 = vrot.lane.b32.xlu0 %v2492, 56
  %v2659 = vpop.permute.xlu0 %2658
  %2660 = vrot.lane.b32.xlu0 %v2493, 56
  %v2661 = vpop.permute.xlu0 %2660
  %2662 = vrot.lane.b32.xlu0 %v2494, 56
  %v2663 = vpop.permute.xlu0 %2662
  %2664 = vrot.lane.b32.xlu0 %v2495, 56
  %v2665 = vpop.permute.xlu0 %2664
  %2666 = vrot.lane.b32.xlu0 %v2496, 56
  %v2667 = vpop.permute.xlu0 %2666
  %2668 = vrot.lane.b32.xlu0 %v2497, 56
  %v2669 = vpop.permute.xlu0 %2668
  %2670 = vrot.lane.b32.xlu0 %v2498, 56
  %v2671 = vpop.permute.xlu0 %2670
  %2672 = vrot.lane.b32.xlu0 %v2499, 56
  %v2673 = vpop.permute.xlu0 %2672
  %2674 = vrot.lane.b32.xlu0 %v2500, 56
  %v2675 = vpop.permute.xlu0 %2674
  %2676 = vrot.lane.b32.xlu0 %v2501, 56
  %v2677 = vpop.permute.xlu0 %2676
  %2678 = vrot.lane.b32.xlu0 %v2502, 56
  %v2679 = vpop.permute.xlu0 %2678
  %2680 = vrot.lane.b32.xlu0 %v2503, 56
  %v2681 = vpop.permute.xlu0 %2680
  %2682 = vrot.lane.b32.xlu0 %v2504, 56
  %v2683 = vpop.permute.xlu0 %2682
  %2684 = vrot.lane.b32.xlu0 %v2505, 56
  %v2685 = vpop.permute.xlu0 %2684
  %2686 = vrot.lane.b32.xlu0 %v2506, 56
  %v2687 = vpop.permute.xlu0 %2686
  %2688 = vrot.lane.b32.xlu0 %v2507, 56
  %v2689 = vpop.permute.xlu0 %2688
  %2690 = vrot.lane.b32.xlu0 %v2508, 56
  %v2691 = vpop.permute.xlu0 %2690
  %2692 = vrot.lane.b32.xlu0 %v2509, 56
  %v2693 = vpop.permute.xlu0 %2692
  %2694 = vrot.lane.b32.xlu0 %v2510, 56
  %v2695 = vpop.permute.xlu0 %2694
  %2696 = vrot.lane.b32.xlu0 %v2511, 56
  %v2697 = vpop.permute.xlu0 %2696
  %2698 = vrot.lane.b32.xlu0 %v2512, 56
  %v2699 = vpop.permute.xlu0 %2698
  %2700 = vrot.lane.b32.xlu0 %v2513, 56
  %v2701 = vpop.permute.xlu0 %2700
  %2702 = vrot.lane.b32.xlu0 %v2514, 56
  %v2703 = vpop.permute.xlu0 %2702
  %2704 = vrot.lane.b32.xlu0 %v2515, 56
  %v2705 = vpop.permute.xlu0 %2704
  %2706 = vrot.lane.b32.xlu0 %v2516, 56
  %v2707 = vpop.permute.xlu0 %2706
  %2708 = vrot.lane.b32.xlu0 %v2517, 56
  %v2709 = vpop.permute.xlu0 %2708
  %vm2774 = vcmask 523712
  %2775 = vst.msk [vmem:[#allocation2] sm:$0xff] %vm2774, %v2583
  %2776 = vst.msk [vmem:[#allocation2 + $0x8] sm:$0xff] %vm2774, %v2585
  %2777 = vst.msk [vmem:[#allocation2 + $0x10] sm:$0xff] %vm2774, %v2587
  %2778 = vst.msk [vmem:[#allocation2 + $0x18] sm:$0xff] %vm2774, %v2589
  %2779 = vst.msk [vmem:[#allocation2 + $0x20] sm:$0xff] %vm2774, %v2591
  %2780 = vst.msk [vmem:[#allocation2 + $0x28] sm:$0xff] %vm2774, %v2593
  %2781 = vst.msk [vmem:[#allocation2 + $0x30] sm:$0xff] %vm2774, %v2595
  %2782 = vst.msk [vmem:[#allocation2 + $0x38] sm:$0xff] %vm2774, %v2597
  %2783 = vst.msk [vmem:[#allocation2 + $0x40] sm:$0xff] %vm2774, %v2599
  %2784 = vst.msk [vmem:[#allocation2 + $0x48] sm:$0xff] %vm2774, %v2601
  %2785 = vst.msk [vmem:[#allocation2 + $0x50] sm:$0xff] %vm2774, %v2603
  %2786 = vst.msk [vmem:[#allocation2 + $0x58] sm:$0xff] %vm2774, %v2605
  %2787 = vst.msk [vmem:[#allocation2 + $0x60] sm:$0xff] %vm2774, %v2607
  %2788 = vst.msk [vmem:[#allocation2 + $0x68] sm:$0xff] %vm2774, %v2609
  %2789 = vst.msk [vmem:[#allocation2 + $0x70] sm:$0xff] %vm2774, %v2611
  %2790 = vst.msk [vmem:[#allocation2 + $0x78] sm:$0xff] %vm2774, %v2613
  %2791 = vst.msk [vmem:[#allocation2 + $0x80] sm:$0xff] %vm2774, %v2615
  %2792 = vst.msk [vmem:[#allocation2 + $0x88] sm:$0xff] %vm2774, %v2617
  %2793 = vst.msk [vmem:[#allocation2 + $0x90] sm:$0xff] %vm2774, %v2619
  %2794 = vst.msk [vmem:[#allocation2 + $0x98] sm:$0xff] %vm2774, %v2621
  %2795 = vst.msk [vmem:[#allocation2 + $0xa0] sm:$0xff] %vm2774, %v2623
  %2796 = vst.msk [vmem:[#allocation2 + $0xa8] sm:$0xff] %vm2774, %v2625
  %2797 = vst.msk [vmem:[#allocation2 + $0xb0] sm:$0xff] %vm2774, %v2627
  %2798 = vst.msk [vmem:[#allocation2 + $0xb8] sm:$0xff] %vm2774, %v2629
  %2799 = vst.msk [vmem:[#allocation2 + $0xc0] sm:$0xff] %vm2774, %v2631
  %2800 = vst.msk [vmem:[#allocation2 + $0xc8] sm:$0xff] %vm2774, %v2633
  %2801 = vst.msk [vmem:[#allocation2 + $0xd0] sm:$0xff] %vm2774, %v2635
  %2802 = vst.msk [vmem:[#allocation2 + $0xd8] sm:$0xff] %vm2774, %v2637
  %2803 = vst.msk [vmem:[#allocation2 + $0xe0] sm:$0xff] %vm2774, %v2639
  %2804 = vst.msk [vmem:[#allocation2 + $0xe8] sm:$0xff] %vm2774, %v2641
  %2805 = vst.msk [vmem:[#allocation2 + $0xf0] sm:$0xff] %vm2774, %v2643
  %2806 = vst.msk [vmem:[#allocation2 + $0xf8] sm:$0xff] %vm2774, %v2645
  %2807 = vst.msk [vmem:[#allocation2 + $0x100] sm:$0xff] %vm2774, %v2647
  %2808 = vst.msk [vmem:[#allocation2 + $0x108] sm:$0xff] %vm2774, %v2649
  %2809 = vst.msk [vmem:[#allocation2 + $0x110] sm:$0xff] %vm2774, %v2651
  %2810 = vst.msk [vmem:[#allocation2 + $0x118] sm:$0xff] %vm2774, %v2653
  %2811 = vst.msk [vmem:[#allocation2 + $0x120] sm:$0xff] %vm2774, %v2655
  %2812 = vst.msk [vmem:[#allocation2 + $0x128] sm:$0xff] %vm2774, %v2657
  %2813 = vst.msk [vmem:[#allocation2 + $0x130] sm:$0xff] %vm2774, %v2659
  %2814 = vst.msk [vmem:[#allocation2 + $0x138] sm:$0xff] %vm2774, %v2661
  %2815 = vst.msk [vmem:[#allocation2 + $0x140] sm:$0xff] %vm2774, %v2663
  %2816 = vst.msk [vmem:[#allocation2 + $0x148] sm:$0xff] %vm2774, %v2665
  %2817 = vst.msk [vmem:[#allocation2 + $0x150] sm:$0xff] %vm2774, %v2667
  %2818 = vst.msk [vmem:[#allocation2 + $0x158] sm:$0xff] %vm2774, %v2669
  %2819 = vst.msk [vmem:[#allocation2 + $0x160] sm:$0xff] %vm2774, %v2671
  %2820 = vst.msk [vmem:[#allocation2 + $0x168] sm:$0xff] %vm2774, %v2673
  %2821 = vst.msk [vmem:[#allocation2 + $0x170] sm:$0xff] %vm2774, %v2675
  %2822 = vst.msk [vmem:[#allocation2 + $0x178] sm:$0xff] %vm2774, %v2677
  %2823 = vst.msk [vmem:[#allocation2 + $0x180] sm:$0xff] %vm2774, %v2679
  %2824 = vst.msk [vmem:[#allocation2 + $0x188] sm:$0xff] %vm2774, %v2681
  %2825 = vst.msk [vmem:[#allocation2 + $0x190] sm:$0xff] %vm2774, %v2683
  %2826 = vst.msk [vmem:[#allocation2 + $0x198] sm:$0xff] %vm2774, %v2685
  %2827 = vst.msk [vmem:[#allocation2 + $0x1a0] sm:$0xff] %vm2774, %v2687
  %2828 = vst.msk [vmem:[#allocation2 + $0x1a8] sm:$0xff] %vm2774, %v2689
  %2829 = vst.msk [vmem:[#allocation2 + $0x1b0] sm:$0xff] %vm2774, %v2691
  %2830 = vst.msk [vmem:[#allocation2 + $0x1b8] sm:$0xff] %vm2774, %v2693
  %2831 = vst.msk [vmem:[#allocation2 + $0x1c0] sm:$0xff] %vm2774, %v2695
  %2832 = vst.msk [vmem:[#allocation2 + $0x1c8] sm:$0xff] %vm2774, %v2697
  %2833 = vst.msk [vmem:[#allocation2 + $0x1d0] sm:$0xff] %vm2774, %v2699
  %2834 = vst.msk [vmem:[#allocation2 + $0x1d8] sm:$0xff] %vm2774, %v2701
  %2835 = vst.msk [vmem:[#allocation2 + $0x1e0] sm:$0xff] %vm2774, %v2703
  %2836 = vst.msk [vmem:[#allocation2 + $0x1e8] sm:$0xff] %vm2774, %v2705
  %2837 = vst.msk [vmem:[#allocation2 + $0x1f0] sm:$0xff] %vm2774, %v2707
  %2838 = vst.msk [vmem:[#allocation2 + $0x1f8] sm:$0xff] %vm2774, %v2709
  %s2839 = scalar_lea.vmem %s0, 48
  %v2840 = vld [vmem:[%s2839] sm:$0xff]
  %v2841 = vld [vmem:[%s2839 + $0x8] sm:$0xff]
  %v2842 = vld [vmem:[%s2839 + $0x18] sm:$0xff]
  %v2843 = vld [vmem:[%s2839 + $0x20] sm:$0xff]
  %v2844 = vld [vmem:[%s2839 + $0x30] sm:$0xff]
  %v2845 = vld [vmem:[%s2839 + $0x38] sm:$0xff]
  %v2846 = vld [vmem:[%s2839 + $0x48] sm:$0xff]
  %v2847 = vld [vmem:[%s2839 + $0x50] sm:$0xff]
  %v2848 = vld [vmem:[%s2839 + $0x60] sm:$0xff]
  %v2849 = vld [vmem:[%s2839 + $0x68] sm:$0xff]
  %v2850 = vld [vmem:[%s2839 + $0x78] sm:$0xff]
  %v2851 = vld [vmem:[%s2839 + $0x80] sm:$0xff]
  %v2852 = vld [vmem:[%s2839 + $0x90] sm:$0xff]
  %v2853 = vld [vmem:[%s2839 + $0x98] sm:$0xff]
  %v2854 = vld [vmem:[%s2839 + $0xa8] sm:$0xff]
  %v2855 = vld [vmem:[%s2839 + $0xb0] sm:$0xff]
  %v2856 = vld [vmem:[%s2839 + $0xc0] sm:$0xff]
  %v2857 = vld [vmem:[%s2839 + $0xc8] sm:$0xff]
  %v2858 = vld [vmem:[%s2839 + $0xd8] sm:$0xff]
  %v2859 = vld [vmem:[%s2839 + $0xe0] sm:$0xff]
  %v2860 = vld [vmem:[%s2839 + $0xf0] sm:$0xff]
  %v2861 = vld [vmem:[%s2839 + $0xf8] sm:$0xff]
  %v2862 = vld [vmem:[%s2839 + $0x108] sm:$0xff]
  %v2863 = vld [vmem:[%s2839 + $0x110] sm:$0xff]
  %v2864 = vld [vmem:[%s2839 + $0x120] sm:$0xff]
  %v2865 = vld [vmem:[%s2839 + $0x128] sm:$0xff]
  %v2866 = vld [vmem:[%s2839 + $0x138] sm:$0xff]
  %v2867 = vld [vmem:[%s2839 + $0x140] sm:$0xff]
  %v2868 = vld [vmem:[%s2839 + $0x150] sm:$0xff]
  %v2869 = vld [vmem:[%s2839 + $0x158] sm:$0xff]
  %v2870 = vld [vmem:[%s2839 + $0x168] sm:$0xff]
  %v2871 = vld [vmem:[%s2839 + $0x170] sm:$0xff]
  %v2872 = vld [vmem:[%s2839 + $0x1c8] sm:$0xff]
  %v2873 = vld [vmem:[%s2839 + $0x1d0] sm:$0xff]
  %v2874 = vld [vmem:[%s2839 + $0x1e0] sm:$0xff]
  %v2875 = vld [vmem:[%s2839 + $0x1e8] sm:$0xff]
  %v2876 = vld [vmem:[%s2839 + $0x1f8] sm:$0xff]
  %v2877 = vld [vmem:[%s2839 + $0x200] sm:$0xff]
  %v2878 = vld [vmem:[%s2839 + $0x210] sm:$0xff]
  %v2879 = vld [vmem:[%s2839 + $0x218] sm:$0xff]
  %v2880 = vld [vmem:[%s2839 + $0x228] sm:$0xff]
  %v2881 = vld [vmem:[%s2839 + $0x230] sm:$0xff]
  %v2882 = vld [vmem:[%s2839 + $0x240] sm:$0xff]
  %v2883 = vld [vmem:[%s2839 + $0x248] sm:$0xff]
  %v2884 = vld [vmem:[%s2839 + $0x258] sm:$0xff]
  %v2885 = vld [vmem:[%s2839 + $0x260] sm:$0xff]
  %v2886 = vld [vmem:[%s2839 + $0x270] sm:$0xff]
  %v2887 = vld [vmem:[%s2839 + $0x278] sm:$0xff]
  %v2888 = vld [vmem:[%s2839 + $0x288] sm:$0xff]
  %v2889 = vld [vmem:[%s2839 + $0x290] sm:$0xff]
  %v2890 = vld [vmem:[%s2839 + $0x2a0] sm:$0xff]
  %v2891 = vld [vmem:[%s2839 + $0x2a8] sm:$0xff]
  %v2892 = vld [vmem:[%s2839 + $0x2b8] sm:$0xff]
  %v2893 = vld [vmem:[%s2839 + $0x2c0] sm:$0xff]
  %v2894 = vld [vmem:[%s2839 + $0x2d0] sm:$0xff]
  %v2895 = vld [vmem:[%s2839 + $0x2d8] sm:$0xff]
  %v2896 = vld [vmem:[%s2839 + $0x2e8] sm:$0xff]
  %v2897 = vld [vmem:[%s2839 + $0x2f0] sm:$0xff]
  %v2898 = vld [vmem:[%s2839 + $0x300] sm:$0xff]
  %v2899 = vld [vmem:[%s2839 + $0x308] sm:$0xff]
  %v2900 = vld [vmem:[%s2839 + $0x318] sm:$0xff]
  %v2901 = vld [vmem:[%s2839 + $0x320] sm:$0xff]
  %v2902 = vld [vmem:[%s2839 + $0x330] sm:$0xff]
  %v2903 = vld [vmem:[%s2839 + $0x338] sm:$0xff]
  %2968 = vrot.lane.b32.xlu0 %v2840, 64
  %v2969 = vpop.permute.xlu0 %2968
  %2970 = vrot.lane.b32.xlu0 %v2841, 64
  %v2971 = vpop.permute.xlu0 %2970
  %2972 = vrot.lane.b32.xlu0 %v2842, 64
  %v2973 = vpop.permute.xlu0 %2972
  %2974 = vrot.lane.b32.xlu0 %v2843, 64
  %v2975 = vpop.permute.xlu0 %2974
  %2976 = vrot.lane.b32.xlu0 %v2844, 64
  %v2977 = vpop.permute.xlu0 %2976
  %2978 = vrot.lane.b32.xlu0 %v2845, 64
  %v2979 = vpop.permute.xlu0 %2978
  %2980 = vrot.lane.b32.xlu0 %v2846, 64
  %v2981 = vpop.permute.xlu0 %2980
  %2982 = vrot.lane.b32.xlu0 %v2847, 64
  %v2983 = vpop.permute.xlu0 %2982
  %2984 = vrot.lane.b32.xlu0 %v2848, 64
  %v2985 = vpop.permute.xlu0 %2984
  %2986 = vrot.lane.b32.xlu0 %v2849, 64
  %v2987 = vpop.permute.xlu0 %2986
  %2988 = vrot.lane.b32.xlu0 %v2850, 64
  %v2989 = vpop.permute.xlu0 %2988
  %2990 = vrot.lane.b32.xlu0 %v2851, 64
  %v2991 = vpop.permute.xlu0 %2990
  %2992 = vrot.lane.b32.xlu0 %v2852, 64
  %v2993 = vpop.permute.xlu0 %2992
  %2994 = vrot.lane.b32.xlu0 %v2853, 64
  %v2995 = vpop.permute.xlu0 %2994
  %2996 = vrot.lane.b32.xlu0 %v2854, 64
  %v2997 = vpop.permute.xlu0 %2996
  %2998 = vrot.lane.b32.xlu0 %v2855, 64
  %v2999 = vpop.permute.xlu0 %2998
  %3000 = vrot.lane.b32.xlu0 %v2856, 64
  %v3001 = vpop.permute.xlu0 %3000
  %3002 = vrot.lane.b32.xlu0 %v2857, 64
  %v3003 = vpop.permute.xlu0 %3002
  %3004 = vrot.lane.b32.xlu0 %v2858, 64
  %v3005 = vpop.permute.xlu0 %3004
  %3006 = vrot.lane.b32.xlu0 %v2859, 64
  %v3007 = vpop.permute.xlu0 %3006
  %3008 = vrot.lane.b32.xlu0 %v2860, 64
  %v3009 = vpop.permute.xlu0 %3008
  %3010 = vrot.lane.b32.xlu0 %v2861, 64
  %v3011 = vpop.permute.xlu0 %3010
  %3012 = vrot.lane.b32.xlu0 %v2862, 64
  %v3013 = vpop.permute.xlu0 %3012
  %3014 = vrot.lane.b32.xlu0 %v2863, 64
  %v3015 = vpop.permute.xlu0 %3014
  %3016 = vrot.lane.b32.xlu0 %v2864, 64
  %v3017 = vpop.permute.xlu0 %3016
  %3018 = vrot.lane.b32.xlu0 %v2865, 64
  %v3019 = vpop.permute.xlu0 %3018
  %3020 = vrot.lane.b32.xlu0 %v2866, 64
  %v3021 = vpop.permute.xlu0 %3020
  %3022 = vrot.lane.b32.xlu0 %v2867, 64
  %v3023 = vpop.permute.xlu0 %3022
  %3024 = vrot.lane.b32.xlu0 %v2868, 64
  %v3025 = vpop.permute.xlu0 %3024
  %3026 = vrot.lane.b32.xlu0 %v2869, 64
  %v3027 = vpop.permute.xlu0 %3026
  %3028 = vrot.lane.b32.xlu0 %v2870, 64
  %v3029 = vpop.permute.xlu0 %3028
  %3030 = vrot.lane.b32.xlu0 %v2871, 64
  %v3031 = vpop.permute.xlu0 %3030
  %3032 = vrot.lane.b32.xlu0 %v2872, 64
  %v3033 = vpop.permute.xlu0 %3032
  %3034 = vrot.lane.b32.xlu0 %v2873, 64
  %v3035 = vpop.permute.xlu0 %3034
  %3036 = vrot.lane.b32.xlu0 %v2874, 64
  %v3037 = vpop.permute.xlu0 %3036
  %3038 = vrot.lane.b32.xlu0 %v2875, 64
  %v3039 = vpop.permute.xlu0 %3038
  %3040 = vrot.lane.b32.xlu0 %v2876, 64
  %v3041 = vpop.permute.xlu0 %3040
  %3042 = vrot.lane.b32.xlu0 %v2877, 64
  %v3043 = vpop.permute.xlu0 %3042
  %3044 = vrot.lane.b32.xlu0 %v2878, 64
  %v3045 = vpop.permute.xlu0 %3044
  %3046 = vrot.lane.b32.xlu0 %v2879, 64
  %v3047 = vpop.permute.xlu0 %3046
  %3048 = vrot.lane.b32.xlu0 %v2880, 64
  %v3049 = vpop.permute.xlu0 %3048
  %3050 = vrot.lane.b32.xlu0 %v2881, 64
  %v3051 = vpop.permute.xlu0 %3050
  %3052 = vrot.lane.b32.xlu0 %v2882, 64
  %v3053 = vpop.permute.xlu0 %3052
  %3054 = vrot.lane.b32.xlu0 %v2883, 64
  %v3055 = vpop.permute.xlu0 %3054
  %3056 = vrot.lane.b32.xlu0 %v2884, 64
  %v3057 = vpop.permute.xlu0 %3056
  %3058 = vrot.lane.b32.xlu0 %v2885, 64
  %v3059 = vpop.permute.xlu0 %3058
  %3060 = vrot.lane.b32.xlu0 %v2886, 64
  %v3061 = vpop.permute.xlu0 %3060
  %3062 = vrot.lane.b32.xlu0 %v2887, 64
  %v3063 = vpop.permute.xlu0 %3062
  %3064 = vrot.lane.b32.xlu0 %v2888, 64
  %v3065 = vpop.permute.xlu0 %3064
  %3066 = vrot.lane.b32.xlu0 %v2889, 64
  %v3067 = vpop.permute.xlu0 %3066
  %3068 = vrot.lane.b32.xlu0 %v2890, 64
  %v3069 = vpop.permute.xlu0 %3068
  %3070 = vrot.lane.b32.xlu0 %v2891, 64
  %v3071 = vpop.permute.xlu0 %3070
  %3072 = vrot.lane.b32.xlu0 %v2892, 64
  %v3073 = vpop.permute.xlu0 %3072
  %3074 = vrot.lane.b32.xlu0 %v2893, 64
  %v3075 = vpop.permute.xlu0 %3074
  %3076 = vrot.lane.b32.xlu0 %v2894, 64
  %v3077 = vpop.permute.xlu0 %3076
  %3078 = vrot.lane.b32.xlu0 %v2895, 64
  %v3079 = vpop.permute.xlu0 %3078
  %3080 = vrot.lane.b32.xlu0 %v2896, 64
  %v3081 = vpop.permute.xlu0 %3080
  %3082 = vrot.lane.b32.xlu0 %v2897, 64
  %v3083 = vpop.permute.xlu0 %3082
  %3084 = vrot.lane.b32.xlu0 %v2898, 64
  %v3085 = vpop.permute.xlu0 %3084
  %3086 = vrot.lane.b32.xlu0 %v2899, 64
  %v3087 = vpop.permute.xlu0 %3086
  %3088 = vrot.lane.b32.xlu0 %v2900, 64
  %v3089 = vpop.permute.xlu0 %3088
  %3090 = vrot.lane.b32.xlu0 %v2901, 64
  %v3091 = vpop.permute.xlu0 %3090
  %3092 = vrot.lane.b32.xlu0 %v2902, 64
  %v3093 = vpop.permute.xlu0 %3092
  %3094 = vrot.lane.b32.xlu0 %v2903, 64
  %v3095 = vpop.permute.xlu0 %3094
  %vm3160 = vcmask 589312
  %3161 = vst.msk [vmem:[#allocation2] sm:$0xff] %vm3160, %v2969
  %3162 = vst.msk [vmem:[#allocation2 + $0x8] sm:$0xff] %vm3160, %v2971
  %3163 = vst.msk [vmem:[#allocation2 + $0x10] sm:$0xff] %vm3160, %v2973
  %3164 = vst.msk [vmem:[#allocation2 + $0x18] sm:$0xff] %vm3160, %v2975
  %3165 = vst.msk [vmem:[#allocation2 + $0x20] sm:$0xff] %vm3160, %v2977
  %3166 = vst.msk [vmem:[#allocation2 + $0x28] sm:$0xff] %vm3160, %v2979
  %3167 = vst.msk [vmem:[#allocation2 + $0x30] sm:$0xff] %vm3160, %v2981
  %3168 = vst.msk [vmem:[#allocation2 + $0x38] sm:$0xff] %vm3160, %v2983
  %3169 = vst.msk [vmem:[#allocation2 + $0x40] sm:$0xff] %vm3160, %v2985
  %3170 = vst.msk [vmem:[#allocation2 + $0x48] sm:$0xff] %vm3160, %v2987
  %3171 = vst.msk [vmem:[#allocation2 + $0x50] sm:$0xff] %vm3160, %v2989
  %3172 = vst.msk [vmem:[#allocation2 + $0x58] sm:$0xff] %vm3160, %v2991
  %3173 = vst.msk [vmem:[#allocation2 + $0x60] sm:$0xff] %vm3160, %v2993
  %3174 = vst.msk [vmem:[#allocation2 + $0x68] sm:$0xff] %vm3160, %v2995
  %3175 = vst.msk [vmem:[#allocation2 + $0x70] sm:$0xff] %vm3160, %v2997
  %3176 = vst.msk [vmem:[#allocation2 + $0x78] sm:$0xff] %vm3160, %v2999
  %3177 = vst.msk [vmem:[#allocation2 + $0x80] sm:$0xff] %vm3160, %v3001
  %3178 = vst.msk [vmem:[#allocation2 + $0x88] sm:$0xff] %vm3160, %v3003
  %3179 = vst.msk [vmem:[#allocation2 + $0x90] sm:$0xff] %vm3160, %v3005
  %3180 = vst.msk [vmem:[#allocation2 + $0x98] sm:$0xff] %vm3160, %v3007
  %3181 = vst.msk [vmem:[#allocation2 + $0xa0] sm:$0xff] %vm3160, %v3009
  %3182 = vst.msk [vmem:[#allocation2 + $0xa8] sm:$0xff] %vm3160, %v3011
  %3183 = vst.msk [vmem:[#allocation2 + $0xb0] sm:$0xff] %vm3160, %v3013
  %3184 = vst.msk [vmem:[#allocation2 + $0xb8] sm:$0xff] %vm3160, %v3015
  %3185 = vst.msk [vmem:[#allocation2 + $0xc0] sm:$0xff] %vm3160, %v3017
  %3186 = vst.msk [vmem:[#allocation2 + $0xc8] sm:$0xff] %vm3160, %v3019
  %3187 = vst.msk [vmem:[#allocation2 + $0xd0] sm:$0xff] %vm3160, %v3021
  %3188 = vst.msk [vmem:[#allocation2 + $0xd8] sm:$0xff] %vm3160, %v3023
  %3189 = vst.msk [vmem:[#allocation2 + $0xe0] sm:$0xff] %vm3160, %v3025
  %3190 = vst.msk [vmem:[#allocation2 + $0xe8] sm:$0xff] %vm3160, %v3027
  %3191 = vst.msk [vmem:[#allocation2 + $0xf0] sm:$0xff] %vm3160, %v3029
  %3192 = vst.msk [vmem:[#allocation2 + $0xf8] sm:$0xff] %vm3160, %v3031
  %3193 = vst.msk [vmem:[#allocation2 + $0x100] sm:$0xff] %vm3160, %v3033
  %3194 = vst.msk [vmem:[#allocation2 + $0x108] sm:$0xff] %vm3160, %v3035
  %3195 = vst.msk [vmem:[#allocation2 + $0x110] sm:$0xff] %vm3160, %v3037
  %3196 = vst.msk [vmem:[#allocation2 + $0x118] sm:$0xff] %vm3160, %v3039
  %3197 = vst.msk [vmem:[#allocation2 + $0x120] sm:$0xff] %vm3160, %v3041
  %3198 = vst.msk [vmem:[#allocation2 + $0x128] sm:$0xff] %vm3160, %v3043
  %3199 = vst.msk [vmem:[#allocation2 + $0x130] sm:$0xff] %vm3160, %v3045
  %3200 = vst.msk [vmem:[#allocation2 + $0x138] sm:$0xff] %vm3160, %v3047
  %3201 = vst.msk [vmem:[#allocation2 + $0x140] sm:$0xff] %vm3160, %v3049
  %3202 = vst.msk [vmem:[#allocation2 + $0x148] sm:$0xff] %vm3160, %v3051
  %3203 = vst.msk [vmem:[#allocation2 + $0x150] sm:$0xff] %vm3160, %v3053
  %3204 = vst.msk [vmem:[#allocation2 + $0x158] sm:$0xff] %vm3160, %v3055
  %3205 = vst.msk [vmem:[#allocation2 + $0x160] sm:$0xff] %vm3160, %v3057
  %3206 = vst.msk [vmem:[#allocation2 + $0x168] sm:$0xff] %vm3160, %v3059
  %3207 = vst.msk [vmem:[#allocation2 + $0x170] sm:$0xff] %vm3160, %v3061
  %3208 = vst.msk [vmem:[#allocation2 + $0x178] sm:$0xff] %vm3160, %v3063
  %3209 = vst.msk [vmem:[#allocation2 + $0x180] sm:$0xff] %vm3160, %v3065
  %3210 = vst.msk [vmem:[#allocation2 + $0x188] sm:$0xff] %vm3160, %v3067
  %3211 = vst.msk [vmem:[#allocation2 + $0x190] sm:$0xff] %vm3160, %v3069
  %3212 = vst.msk [vmem:[#allocation2 + $0x198] sm:$0xff] %vm3160, %v3071
  %3213 = vst.msk [vmem:[#allocation2 + $0x1a0] sm:$0xff] %vm3160, %v3073
  %3214 = vst.msk [vmem:[#allocation2 + $0x1a8] sm:$0xff] %vm3160, %v3075
  %3215 = vst.msk [vmem:[#allocation2 + $0x1b0] sm:$0xff] %vm3160, %v3077
  %3216 = vst.msk [vmem:[#allocation2 + $0x1b8] sm:$0xff] %vm3160, %v3079
  %3217 = vst.msk [vmem:[#allocation2 + $0x1c0] sm:$0xff] %vm3160, %v3081
  %3218 = vst.msk [vmem:[#allocation2 + $0x1c8] sm:$0xff] %vm3160, %v3083
  %3219 = vst.msk [vmem:[#allocation2 + $0x1d0] sm:$0xff] %vm3160, %v3085
  %3220 = vst.msk [vmem:[#allocation2 + $0x1d8] sm:$0xff] %vm3160, %v3087
  %3221 = vst.msk [vmem:[#allocation2 + $0x1e0] sm:$0xff] %vm3160, %v3089
  %3222 = vst.msk [vmem:[#allocation2 + $0x1e8] sm:$0xff] %vm3160, %v3091
  %3223 = vst.msk [vmem:[#allocation2 + $0x1f0] sm:$0xff] %vm3160, %v3093
  %3224 = vst.msk [vmem:[#allocation2 + $0x1f8] sm:$0xff] %vm3160, %v3095
  %v3225 = vld [vmem:[%s2839 + $0x1] sm:$0xff]
  %v3226 = vld [vmem:[%s2839 + $0x9] sm:$0xff]
  %v3227 = vld [vmem:[%s2839 + $0x19] sm:$0xff]
  %v3228 = vld [vmem:[%s2839 + $0x21] sm:$0xff]
  %v3229 = vld [vmem:[%s2839 + $0x31] sm:$0xff]
  %v3230 = vld [vmem:[%s2839 + $0x39] sm:$0xff]
  %v3231 = vld [vmem:[%s2839 + $0x49] sm:$0xff]
  %v3232 = vld [vmem:[%s2839 + $0x51] sm:$0xff]
  %v3233 = vld [vmem:[%s2839 + $0x61] sm:$0xff]
  %v3234 = vld [vmem:[%s2839 + $0x69] sm:$0xff]
  %v3235 = vld [vmem:[%s2839 + $0x79] sm:$0xff]
  %v3236 = vld [vmem:[%s2839 + $0x81] sm:$0xff]
  %v3237 = vld [vmem:[%s2839 + $0x91] sm:$0xff]
  %v3238 = vld [vmem:[%s2839 + $0x99] sm:$0xff]
  %v3239 = vld [vmem:[%s2839 + $0xa9] sm:$0xff]
  %v3240 = vld [vmem:[%s2839 + $0xb1] sm:$0xff]
  %v3241 = vld [vmem:[%s2839 + $0xc1] sm:$0xff]
  %v3242 = vld [vmem:[%s2839 + $0xc9] sm:$0xff]
  %v3243 = vld [vmem:[%s2839 + $0xd9] sm:$0xff]
  %v3244 = vld [vmem:[%s2839 + $0xe1] sm:$0xff]
  %v3245 = vld [vmem:[%s2839 + $0xf1] sm:$0xff]
  %v3246 = vld [vmem:[%s2839 + $0xf9] sm:$0xff]
  %v3247 = vld [vmem:[%s2839 + $0x109] sm:$0xff]
  %v3248 = vld [vmem:[%s2839 + $0x111] sm:$0xff]
  %v3249 = vld [vmem:[%s2839 + $0x121] sm:$0xff]
  %v3250 = vld [vmem:[%s2839 + $0x129] sm:$0xff]
  %v3251 = vld [vmem:[%s2839 + $0x139] sm:$0xff]
  %v3252 = vld [vmem:[%s2839 + $0x141] sm:$0xff]
  %v3253 = vld [vmem:[%s2839 + $0x151] sm:$0xff]
  %v3254 = vld [vmem:[%s2839 + $0x159] sm:$0xff]
  %v3255 = vld [vmem:[%s2839 + $0x169] sm:$0xff]
  %v3256 = vld [vmem:[%s2839 + $0x171] sm:$0xff]
  %v3257 = vld [vmem:[%s2839 + $0x1c9] sm:$0xff]
  %v3258 = vld [vmem:[%s2839 + $0x1d1] sm:$0xff]
  %v3259 = vld [vmem:[%s2839 + $0x1e1] sm:$0xff]
  %v3260 = vld [vmem:[%s2839 + $0x1e9] sm:$0xff]
  %v3261 = vld [vmem:[%s2839 + $0x1f9] sm:$0xff]
  %v3262 = vld [vmem:[%s2839 + $0x201] sm:$0xff]
  %v3263 = vld [vmem:[%s2839 + $0x211] sm:$0xff]
  %v3264 = vld [vmem:[%s2839 + $0x219] sm:$0xff]
  %v3265 = vld [vmem:[%s2839 + $0x229] sm:$0xff]
  %v3266 = vld [vmem:[%s2839 + $0x231] sm:$0xff]
  %v3267 = vld [vmem:[%s2839 + $0x241] sm:$0xff]
  %v3268 = vld [vmem:[%s2839 + $0x249] sm:$0xff]
  %v3269 = vld [vmem:[%s2839 + $0x259] sm:$0xff]
  %v3270 = vld [vmem:[%s2839 + $0x261] sm:$0xff]
  %v3271 = vld [vmem:[%s2839 + $0x271] sm:$0xff]
  %v3272 = vld [vmem:[%s2839 + $0x279] sm:$0xff]
  %v3273 = vld [vmem:[%s2839 + $0x289] sm:$0xff]
  %v3274 = vld [vmem:[%s2839 + $0x291] sm:$0xff]
  %v3275 = vld [vmem:[%s2839 + $0x2a1] sm:$0xff]
  %v3276 = vld [vmem:[%s2839 + $0x2a9] sm:$0xff]
  %v3277 = vld [vmem:[%s2839 + $0x2b9] sm:$0xff]
  %v3278 = vld [vmem:[%s2839 + $0x2c1] sm:$0xff]
  %v3279 = vld [vmem:[%s2839 + $0x2d1] sm:$0xff]
  %v3280 = vld [vmem:[%s2839 + $0x2d9] sm:$0xff]
  %v3281 = vld [vmem:[%s2839 + $0x2e9] sm:$0xff]
  %v3282 = vld [vmem:[%s2839 + $0x2f1] sm:$0xff]
  %v3283 = vld [vmem:[%s2839 + $0x301] sm:$0xff]
  %v3284 = vld [vmem:[%s2839 + $0x309] sm:$0xff]
  %v3285 = vld [vmem:[%s2839 + $0x319] sm:$0xff]
  %v3286 = vld [vmem:[%s2839 + $0x321] sm:$0xff]
  %v3287 = vld [vmem:[%s2839 + $0x331] sm:$0xff]
  %v3288 = vld [vmem:[%s2839 + $0x339] sm:$0xff]
  %3353 = vrot.lane.b32.xlu0 %v3225, 72
  %v3354 = vpop.permute.xlu0 %3353
  %3355 = vrot.lane.b32.xlu0 %v3226, 72
  %v3356 = vpop.permute.xlu0 %3355
  %3357 = vrot.lane.b32.xlu0 %v3227, 72
  %v3358 = vpop.permute.xlu0 %3357
  %3359 = vrot.lane.b32.xlu0 %v3228, 72
  %v3360 = vpop.permute.xlu0 %3359
  %3361 = vrot.lane.b32.xlu0 %v3229, 72
  %v3362 = vpop.permute.xlu0 %3361
  %3363 = vrot.lane.b32.xlu0 %v3230, 72
  %v3364 = vpop.permute.xlu0 %3363
  %3365 = vrot.lane.b32.xlu0 %v3231, 72
  %v3366 = vpop.permute.xlu0 %3365
  %3367 = vrot.lane.b32.xlu0 %v3232, 72
  %v3368 = vpop.permute.xlu0 %3367
  %3369 = vrot.lane.b32.xlu0 %v3233, 72
  %v3370 = vpop.permute.xlu0 %3369
  %3371 = vrot.lane.b32.xlu0 %v3234, 72
  %v3372 = vpop.permute.xlu0 %3371
  %3373 = vrot.lane.b32.xlu0 %v3235, 72
  %v3374 = vpop.permute.xlu0 %3373
  %3375 = vrot.lane.b32.xlu0 %v3236, 72
  %v3376 = vpop.permute.xlu0 %3375
  %3377 = vrot.lane.b32.xlu0 %v3237, 72
  %v3378 = vpop.permute.xlu0 %3377
  %3379 = vrot.lane.b32.xlu0 %v3238, 72
  %v3380 = vpop.permute.xlu0 %3379
  %3381 = vrot.lane.b32.xlu0 %v3239, 72
  %v3382 = vpop.permute.xlu0 %3381
  %3383 = vrot.lane.b32.xlu0 %v3240, 72
  %v3384 = vpop.permute.xlu0 %3383
  %3385 = vrot.lane.b32.xlu0 %v3241, 72
  %v3386 = vpop.permute.xlu0 %3385
  %3387 = vrot.lane.b32.xlu0 %v3242, 72
  %v3388 = vpop.permute.xlu0 %3387
  %3389 = vrot.lane.b32.xlu0 %v3243, 72
  %v3390 = vpop.permute.xlu0 %3389
  %3391 = vrot.lane.b32.xlu0 %v3244, 72
  %v3392 = vpop.permute.xlu0 %3391
  %3393 = vrot.lane.b32.xlu0 %v3245, 72
  %v3394 = vpop.permute.xlu0 %3393
  %3395 = vrot.lane.b32.xlu0 %v3246, 72
  %v3396 = vpop.permute.xlu0 %3395
  %3397 = vrot.lane.b32.xlu0 %v3247, 72
  %v3398 = vpop.permute.xlu0 %3397
  %3399 = vrot.lane.b32.xlu0 %v3248, 72
  %v3400 = vpop.permute.xlu0 %3399
  %3401 = vrot.lane.b32.xlu0 %v3249, 72
  %v3402 = vpop.permute.xlu0 %3401
  %3403 = vrot.lane.b32.xlu0 %v3250, 72
  %v3404 = vpop.permute.xlu0 %3403
  %3405 = vrot.lane.b32.xlu0 %v3251, 72
  %v3406 = vpop.permute.xlu0 %3405
  %3407 = vrot.lane.b32.xlu0 %v3252, 72
  %v3408 = vpop.permute.xlu0 %3407
  %3409 = vrot.lane.b32.xlu0 %v3253, 72
  %v3410 = vpop.permute.xlu0 %3409
  %3411 = vrot.lane.b32.xlu0 %v3254, 72
  %v3412 = vpop.permute.xlu0 %3411
  %3413 = vrot.lane.b32.xlu0 %v3255, 72
  %v3414 = vpop.permute.xlu0 %3413
  %3415 = vrot.lane.b32.xlu0 %v3256, 72
  %v3416 = vpop.permute.xlu0 %3415
  %3417 = vrot.lane.b32.xlu0 %v3257, 72
  %v3418 = vpop.permute.xlu0 %3417
  %3419 = vrot.lane.b32.xlu0 %v3258, 72
  %v3420 = vpop.permute.xlu0 %3419
  %3421 = vrot.lane.b32.xlu0 %v3259, 72
  %v3422 = vpop.permute.xlu0 %3421
  %3423 = vrot.lane.b32.xlu0 %v3260, 72
  %v3424 = vpop.permute.xlu0 %3423
  %3425 = vrot.lane.b32.xlu0 %v3261, 72
  %v3426 = vpop.permute.xlu0 %3425
  %3427 = vrot.lane.b32.xlu0 %v3262, 72
  %v3428 = vpop.permute.xlu0 %3427
  %3429 = vrot.lane.b32.xlu0 %v3263, 72
  %v3430 = vpop.permute.xlu0 %3429
  %3431 = vrot.lane.b32.xlu0 %v3264, 72
  %v3432 = vpop.permute.xlu0 %3431
  %3433 = vrot.lane.b32.xlu0 %v3265, 72
  %v3434 = vpop.permute.xlu0 %3433
  %3435 = vrot.lane.b32.xlu0 %v3266, 72
  %v3436 = vpop.permute.xlu0 %3435
  %3437 = vrot.lane.b32.xlu0 %v3267, 72
  %v3438 = vpop.permute.xlu0 %3437
  %3439 = vrot.lane.b32.xlu0 %v3268, 72
  %v3440 = vpop.permute.xlu0 %3439
  %3441 = vrot.lane.b32.xlu0 %v3269, 72
  %v3442 = vpop.permute.xlu0 %3441
  %3443 = vrot.lane.b32.xlu0 %v3270, 72
  %v3444 = vpop.permute.xlu0 %3443
  %3445 = vrot.lane.b32.xlu0 %v3271, 72
  %v3446 = vpop.permute.xlu0 %3445
  %3447 = vrot.lane.b32.xlu0 %v3272, 72
  %v3448 = vpop.permute.xlu0 %3447
  %3449 = vrot.lane.b32.xlu0 %v3273, 72
  %v3450 = vpop.permute.xlu0 %3449
  %3451 = vrot.lane.b32.xlu0 %v3274, 72
  %v3452 = vpop.permute.xlu0 %3451
  %3453 = vrot.lane.b32.xlu0 %v3275, 72
  %v3454 = vpop.permute.xlu0 %3453
  %3455 = vrot.lane.b32.xlu0 %v3276, 72
  %v3456 = vpop.permute.xlu0 %3455
  %3457 = vrot.lane.b32.xlu0 %v3277, 72
  %v3458 = vpop.permute.xlu0 %3457
  %3459 = vrot.lane.b32.xlu0 %v3278, 72
  %v3460 = vpop.permute.xlu0 %3459
  %3461 = vrot.lane.b32.xlu0 %v3279, 72
  %v3462 = vpop.permute.xlu0 %3461
  %3463 = vrot.lane.b32.xlu0 %v3280, 72
  %v3464 = vpop.permute.xlu0 %3463
  %3465 = vrot.lane.b32.xlu0 %v3281, 72
  %v3466 = vpop.permute.xlu0 %3465
  %3467 = vrot.lane.b32.xlu0 %v3282, 72
  %v3468 = vpop.permute.xlu0 %3467
  %3469 = vrot.lane.b32.xlu0 %v3283, 72
  %v3470 = vpop.permute.xlu0 %3469
  %3471 = vrot.lane.b32.xlu0 %v3284, 72
  %v3472 = vpop.permute.xlu0 %3471
  %3473 = vrot.lane.b32.xlu0 %v3285, 72
  %v3474 = vpop.permute.xlu0 %3473
  %3475 = vrot.lane.b32.xlu0 %v3286, 72
  %v3476 = vpop.permute.xlu0 %3475
  %3477 = vrot.lane.b32.xlu0 %v3287, 72
  %v3478 = vpop.permute.xlu0 %3477
  %3479 = vrot.lane.b32.xlu0 %v3288, 72
  %v3480 = vpop.permute.xlu0 %3479
  %vm3545 = vcmask 654912
  %3546 = vst.msk [vmem:[#allocation2] sm:$0xff] %vm3545, %v3354
  %3547 = vst.msk [vmem:[#allocation2 + $0x8] sm:$0xff] %vm3545, %v3356
  %3548 = vst.msk [vmem:[#allocation2 + $0x10] sm:$0xff] %vm3545, %v3358
  %3549 = vst.msk [vmem:[#allocation2 + $0x18] sm:$0xff] %vm3545, %v3360
  %3550 = vst.msk [vmem:[#allocation2 + $0x20] sm:$0xff] %vm3545, %v3362
  %3551 = vst.msk [vmem:[#allocation2 + $0x28] sm:$0xff] %vm3545, %v3364
  %3552 = vst.msk [vmem:[#allocation2 + $0x30] sm:$0xff] %vm3545, %v3366
  %3553 = vst.msk [vmem:[#allocation2 + $0x38] sm:$0xff] %vm3545, %v3368
  %3554 = vst.msk [vmem:[#allocation2 + $0x40] sm:$0xff] %vm3545, %v3370
  %3555 = vst.msk [vmem:[#allocation2 + $0x48] sm:$0xff] %vm3545, %v3372
  %3556 = vst.msk [vmem:[#allocation2 + $0x50] sm:$0xff] %vm3545, %v3374
  %3557 = vst.msk [vmem:[#allocation2 + $0x58] sm:$0xff] %vm3545, %v3376
  %3558 = vst.msk [vmem:[#allocation2 + $0x60] sm:$0xff] %vm3545, %v3378
  %3559 = vst.msk [vmem:[#allocation2 + $0x68] sm:$0xff] %vm3545, %v3380
  %3560 = vst.msk [vmem:[#allocation2 + $0x70] sm:$0xff] %vm3545, %v3382
  %3561 = vst.msk [vmem:[#allocation2 + $0x78] sm:$0xff] %vm3545, %v3384
  %3562 = vst.msk [vmem:[#allocation2 + $0x80] sm:$0xff] %vm3545, %v3386
  %3563 = vst.msk [vmem:[#allocation2 + $0x88] sm:$0xff] %vm3545, %v3388
  %3564 = vst.msk [vmem:[#allocation2 + $0x90] sm:$0xff] %vm3545, %v3390
  %3565 = vst.msk [vmem:[#allocation2 + $0x98] sm:$0xff] %vm3545, %v3392
  %3566 = vst.msk [vmem:[#allocation2 + $0xa0] sm:$0xff] %vm3545, %v3394
  %3567 = vst.msk [vmem:[#allocation2 + $0xa8] sm:$0xff] %vm3545, %v3396
  %3568 = vst.msk [vmem:[#allocation2 + $0xb0] sm:$0xff] %vm3545, %v3398
  %3569 = vst.msk [vmem:[#allocation2 + $0xb8] sm:$0xff] %vm3545, %v3400
  %3570 = vst.msk [vmem:[#allocation2 + $0xc0] sm:$0xff] %vm3545, %v3402
  %3571 = vst.msk [vmem:[#allocation2 + $0xc8] sm:$0xff] %vm3545, %v3404
  %3572 = vst.msk [vmem:[#allocation2 + $0xd0] sm:$0xff] %vm3545, %v3406
  %3573 = vst.msk [vmem:[#allocation2 + $0xd8] sm:$0xff] %vm3545, %v3408
  %3574 = vst.msk [vmem:[#allocation2 + $0xe0] sm:$0xff] %vm3545, %v3410
  %3575 = vst.msk [vmem:[#allocation2 + $0xe8] sm:$0xff] %vm3545, %v3412
  %3576 = vst.msk [vmem:[#allocation2 + $0xf0] sm:$0xff] %vm3545, %v3414
  %3577 = vst.msk [vmem:[#allocation2 + $0xf8] sm:$0xff] %vm3545, %v3416
  %3578 = vst.msk [vmem:[#allocation2 + $0x100] sm:$0xff] %vm3545, %v3418
  %3579 = vst.msk [vmem:[#allocation2 + $0x108] sm:$0xff] %vm3545, %v3420
  %3580 = vst.msk [vmem:[#allocation2 + $0x110] sm:$0xff] %vm3545, %v3422
  %3581 = vst.msk [vmem:[#allocation2 + $0x118] sm:$0xff] %vm3545, %v3424
  %3582 = vst.msk [vmem:[#allocation2 + $0x120] sm:$0xff] %vm3545, %v3426
  %3583 = vst.msk [vmem:[#allocation2 + $0x128] sm:$0xff] %vm3545, %v3428
  %3584 = vst.msk [vmem:[#allocation2 + $0x130] sm:$0xff] %vm3545, %v3430
  %3585 = vst.msk [vmem:[#allocation2 + $0x138] sm:$0xff] %vm3545, %v3432
  %3586 = vst.msk [vmem:[#allocation2 + $0x140] sm:$0xff] %vm3545, %v3434
  %3587 = vst.msk [vmem:[#allocation2 + $0x148] sm:$0xff] %vm3545, %v3436
  %3588 = vst.msk [vmem:[#allocation2 + $0x150] sm:$0xff] %vm3545, %v3438
  %3589 = vst.msk [vmem:[#allocation2 + $0x158] sm:$0xff] %vm3545, %v3440
  %3590 = vst.msk [vmem:[#allocation2 + $0x160] sm:$0xff] %vm3545, %v3442
  %3591 = vst.msk [vmem:[#allocation2 + $0x168] sm:$0xff] %vm3545, %v3444
  %3592 = vst.msk [vmem:[#allocation2 + $0x170] sm:$0xff] %vm3545, %v3446
  %3593 = vst.msk [vmem:[#allocation2 + $0x178] sm:$0xff] %vm3545, %v3448
  %3594 = vst.msk [vmem:[#allocation2 + $0x180] sm:$0xff] %vm3545, %v3450
  %3595 = vst.msk [vmem:[#allocation2 + $0x188] sm:$0xff] %vm3545, %v3452
  %3596 = vst.msk [vmem:[#allocation2 + $0x190] sm:$0xff] %vm3545, %v3454
  %3597 = vst.msk [vmem:[#allocation2 + $0x198] sm:$0xff] %vm3545, %v3456
  %3598 = vst.msk [vmem:[#allocation2 + $0x1a0] sm:$0xff] %vm3545, %v3458
  %3599 = vst.msk [vmem:[#allocation2 + $0x1a8] sm:$0xff] %vm3545, %v3460
  %3600 = vst.msk [vmem:[#allocation2 + $0x1b0] sm:$0xff] %vm3545, %v3462
  %3601 = vst.msk [vmem:[#allocation2 + $0x1b8] sm:$0xff] %vm3545, %v3464
  %3602 = vst.msk [vmem:[#allocation2 + $0x1c0] sm:$0xff] %vm3545, %v3466
  %3603 = vst.msk [vmem:[#allocation2 + $0x1c8] sm:$0xff] %vm3545, %v3468
  %3604 = vst.msk [vmem:[#allocation2 + $0x1d0] sm:$0xff] %vm3545, %v3470
  %3605 = vst.msk [vmem:[#allocation2 + $0x1d8] sm:$0xff] %vm3545, %v3472
  %3606 = vst.msk [vmem:[#allocation2 + $0x1e0] sm:$0xff] %vm3545, %v3474
  %3607 = vst.msk [vmem:[#allocation2 + $0x1e8] sm:$0xff] %vm3545, %v3476
  %3608 = vst.msk [vmem:[#allocation2 + $0x1f0] sm:$0xff] %vm3545, %v3478
  %3609 = vst.msk [vmem:[#allocation2 + $0x1f8] sm:$0xff] %vm3545, %v3480
  %v3610 = vld [vmem:[%s2839 + $0x2] sm:$0xff]
  %v3611 = vld [vmem:[%s2839 + $0xa] sm:$0xff]
  %v3612 = vld [vmem:[%s2839 + $0x1a] sm:$0xff]
  %v3613 = vld [vmem:[%s2839 + $0x22] sm:$0xff]
  %v3614 = vld [vmem:[%s2839 + $0x32] sm:$0xff]
  %v3615 = vld [vmem:[%s2839 + $0x3a] sm:$0xff]
  %v3616 = vld [vmem:[%s2839 + $0x4a] sm:$0xff]
  %v3617 = vld [vmem:[%s2839 + $0x52] sm:$0xff]
  %v3618 = vld [vmem:[%s2839 + $0x62] sm:$0xff]
  %v3619 = vld [vmem:[%s2839 + $0x6a] sm:$0xff]
  %v3620 = vld [vmem:[%s2839 + $0x7a] sm:$0xff]
  %v3621 = vld [vmem:[%s2839 + $0x82] sm:$0xff]
  %v3622 = vld [vmem:[%s2839 + $0x92] sm:$0xff]
  %v3623 = vld [vmem:[%s2839 + $0x9a] sm:$0xff]
  %v3624 = vld [vmem:[%s2839 + $0xaa] sm:$0xff]
  %v3625 = vld [vmem:[%s2839 + $0xb2] sm:$0xff]
  %v3626 = vld [vmem:[%s2839 + $0xc2] sm:$0xff]
  %v3627 = vld [vmem:[%s2839 + $0xca] sm:$0xff]
  %v3628 = vld [vmem:[%s2839 + $0xda] sm:$0xff]
  %v3629 = vld [vmem:[%s2839 + $0xe2] sm:$0xff]
  %v3630 = vld [vmem:[%s2839 + $0xf2] sm:$0xff]
  %v3631 = vld [vmem:[%s2839 + $0xfa] sm:$0xff]
  %v3632 = vld [vmem:[%s2839 + $0x10a] sm:$0xff]
  %v3633 = vld [vmem:[%s2839 + $0x112] sm:$0xff]
  %v3634 = vld [vmem:[%s2839 + $0x122] sm:$0xff]
  %v3635 = vld [vmem:[%s2839 + $0x12a] sm:$0xff]
  %v3636 = vld [vmem:[%s2839 + $0x13a] sm:$0xff]
  %v3637 = vld [vmem:[%s2839 + $0x142] sm:$0xff]
  %v3638 = vld [vmem:[%s2839 + $0x152] sm:$0xff]
  %v3639 = vld [vmem:[%s2839 + $0x15a] sm:$0xff]
  %v3640 = vld [vmem:[%s2839 + $0x16a] sm:$0xff]
  %v3641 = vld [vmem:[%s2839 + $0x172] sm:$0xff]
  %v3642 = vld [vmem:[%s2839 + $0x1ca] sm:$0xff]
  %v3643 = vld [vmem:[%s2839 + $0x1d2] sm:$0xff]
  %v3644 = vld [vmem:[%s2839 + $0x1e2] sm:$0xff]
  %v3645 = vld [vmem:[%s2839 + $0x1ea] sm:$0xff]
  %v3646 = vld [vmem:[%s2839 + $0x1fa] sm:$0xff]
  %v3647 = vld [vmem:[%s2839 + $0x202] sm:$0xff]
  %v3648 = vld [vmem:[%s2839 + $0x212] sm:$0xff]
  %v3649 = vld [vmem:[%s2839 + $0x21a] sm:$0xff]
  %v3650 = vld [vmem:[%s2839 + $0x22a] sm:$0xff]
  %v3651 = vld [vmem:[%s2839 + $0x232] sm:$0xff]
  %v3652 = vld [vmem:[%s2839 + $0x242] sm:$0xff]
  %v3653 = vld [vmem:[%s2839 + $0x24a] sm:$0xff]
  %v3654 = vld [vmem:[%s2839 + $0x25a] sm:$0xff]
  %v3655 = vld [vmem:[%s2839 + $0x262] sm:$0xff]
  %v3656 = vld [vmem:[%s2839 + $0x272] sm:$0xff]
  %v3657 = vld [vmem:[%s2839 + $0x27a] sm:$0xff]
  %v3658 = vld [vmem:[%s2839 + $0x28a] sm:$0xff]
  %v3659 = vld [vmem:[%s2839 + $0x292] sm:$0xff]
  %v3660 = vld [vmem:[%s2839 + $0x2a2] sm:$0xff]
  %v3661 = vld [vmem:[%s2839 + $0x2aa] sm:$0xff]
  %v3662 = vld [vmem:[%s2839 + $0x2ba] sm:$0xff]
  %v3663 = vld [vmem:[%s2839 + $0x2c2] sm:$0xff]
  %v3664 = vld [vmem:[%s2839 + $0x2d2] sm:$0xff]
  %v3665 = vld [vmem:[%s2839 + $0x2da] sm:$0xff]
  %v3666 = vld [vmem:[%s2839 + $0x2ea] sm:$0xff]
  %v3667 = vld [vmem:[%s2839 + $0x2f2] sm:$0xff]
  %v3668 = vld [vmem:[%s2839 + $0x302] sm:$0xff]
  %v3669 = vld [vmem:[%s2839 + $0x30a] sm:$0xff]
  %v3670 = vld [vmem:[%s2839 + $0x31a] sm:$0xff]
  %v3671 = vld [vmem:[%s2839 + $0x322] sm:$0xff]
  %v3672 = vld [vmem:[%s2839 + $0x332] sm:$0xff]
  %v3673 = vld [vmem:[%s2839 + $0x33a] sm:$0xff]
  %3738 = vrot.lane.b32.xlu0 %v3610, 80
  %v3739 = vpop.permute.xlu0 %3738
  %3740 = vrot.lane.b32.xlu0 %v3611, 80
  %v3741 = vpop.permute.xlu0 %3740
  %3742 = vrot.lane.b32.xlu0 %v3612, 80
  %v3743 = vpop.permute.xlu0 %3742
  %3744 = vrot.lane.b32.xlu0 %v3613, 80
  %v3745 = vpop.permute.xlu0 %3744
  %3746 = vrot.lane.b32.xlu0 %v3614, 80
  %v3747 = vpop.permute.xlu0 %3746
  %3748 = vrot.lane.b32.xlu0 %v3615, 80
  %v3749 = vpop.permute.xlu0 %3748
  %3750 = vrot.lane.b32.xlu0 %v3616, 80
  %v3751 = vpop.permute.xlu0 %3750
  %3752 = vrot.lane.b32.xlu0 %v3617, 80
  %v3753 = vpop.permute.xlu0 %3752
  %3754 = vrot.lane.b32.xlu0 %v3618, 80
  %v3755 = vpop.permute.xlu0 %3754
  %3756 = vrot.lane.b32.xlu0 %v3619, 80
  %v3757 = vpop.permute.xlu0 %3756
  %3758 = vrot.lane.b32.xlu0 %v3620, 80
  %v3759 = vpop.permute.xlu0 %3758
  %3760 = vrot.lane.b32.xlu0 %v3621, 80
  %v3761 = vpop.permute.xlu0 %3760
  %3762 = vrot.lane.b32.xlu0 %v3622, 80
  %v3763 = vpop.permute.xlu0 %3762
  %3764 = vrot.lane.b32.xlu0 %v3623, 80
  %v3765 = vpop.permute.xlu0 %3764
  %3766 = vrot.lane.b32.xlu0 %v3624, 80
  %v3767 = vpop.permute.xlu0 %3766
  %3768 = vrot.lane.b32.xlu0 %v3625, 80
  %v3769 = vpop.permute.xlu0 %3768
  %3770 = vrot.lane.b32.xlu0 %v3626, 80
  %v3771 = vpop.permute.xlu0 %3770
  %3772 = vrot.lane.b32.xlu0 %v3627, 80
  %v3773 = vpop.permute.xlu0 %3772
  %3774 = vrot.lane.b32.xlu0 %v3628, 80
  %v3775 = vpop.permute.xlu0 %3774
  %3776 = vrot.lane.b32.xlu0 %v3629, 80
  %v3777 = vpop.permute.xlu0 %3776
  %3778 = vrot.lane.b32.xlu0 %v3630, 80
  %v3779 = vpop.permute.xlu0 %3778
  %3780 = vrot.lane.b32.xlu0 %v3631, 80
  %v3781 = vpop.permute.xlu0 %3780
  %3782 = vrot.lane.b32.xlu0 %v3632, 80
  %v3783 = vpop.permute.xlu0 %3782
  %3784 = vrot.lane.b32.xlu0 %v3633, 80
  %v3785 = vpop.permute.xlu0 %3784
  %3786 = vrot.lane.b32.xlu0 %v3634, 80
  %v3787 = vpop.permute.xlu0 %3786
  %3788 = vrot.lane.b32.xlu0 %v3635, 80
  %v3789 = vpop.permute.xlu0 %3788
  %3790 = vrot.lane.b32.xlu0 %v3636, 80
  %v3791 = vpop.permute.xlu0 %3790
  %3792 = vrot.lane.b32.xlu0 %v3637, 80
  %v3793 = vpop.permute.xlu0 %3792
  %3794 = vrot.lane.b32.xlu0 %v3638, 80
  %v3795 = vpop.permute.xlu0 %3794
  %3796 = vrot.lane.b32.xlu0 %v3639, 80
  %v3797 = vpop.permute.xlu0 %3796
  %3798 = vrot.lane.b32.xlu0 %v3640, 80
  %v3799 = vpop.permute.xlu0 %3798
  %3800 = vrot.lane.b32.xlu0 %v3641, 80
  %v3801 = vpop.permute.xlu0 %3800
  %3802 = vrot.lane.b32.xlu0 %v3642, 80
  %v3803 = vpop.permute.xlu0 %3802
  %3804 = vrot.lane.b32.xlu0 %v3643, 80
  %v3805 = vpop.permute.xlu0 %3804
  %3806 = vrot.lane.b32.xlu0 %v3644, 80
  %v3807 = vpop.permute.xlu0 %3806
  %3808 = vrot.lane.b32.xlu0 %v3645, 80
  %v3809 = vpop.permute.xlu0 %3808
  %3810 = vrot.lane.b32.xlu0 %v3646, 80
  %v3811 = vpop.permute.xlu0 %3810
  %3812 = vrot.lane.b32.xlu0 %v3647, 80
  %v3813 = vpop.permute.xlu0 %3812
  %3814 = vrot.lane.b32.xlu0 %v3648, 80
  %v3815 = vpop.permute.xlu0 %3814
  %3816 = vrot.lane.b32.xlu0 %v3649, 80
  %v3817 = vpop.permute.xlu0 %3816
  %3818 = vrot.lane.b32.xlu0 %v3650, 80
  %v3819 = vpop.permute.xlu0 %3818
  %3820 = vrot.lane.b32.xlu0 %v3651, 80
  %v3821 = vpop.permute.xlu0 %3820
  %3822 = vrot.lane.b32.xlu0 %v3652, 80
  %v3823 = vpop.permute.xlu0 %3822
  %3824 = vrot.lane.b32.xlu0 %v3653, 80
  %v3825 = vpop.permute.xlu0 %3824
  %3826 = vrot.lane.b32.xlu0 %v3654, 80
  %v3827 = vpop.permute.xlu0 %3826
  %3828 = vrot.lane.b32.xlu0 %v3655, 80
  %v3829 = vpop.permute.xlu0 %3828
  %3830 = vrot.lane.b32.xlu0 %v3656, 80
  %v3831 = vpop.permute.xlu0 %3830
  %3832 = vrot.lane.b32.xlu0 %v3657, 80
  %v3833 = vpop.permute.xlu0 %3832
  %3834 = vrot.lane.b32.xlu0 %v3658, 80
  %v3835 = vpop.permute.xlu0 %3834
  %3836 = vrot.lane.b32.xlu0 %v3659, 80
  %v3837 = vpop.permute.xlu0 %3836
  %3838 = vrot.lane.b32.xlu0 %v3660, 80
  %v3839 = vpop.permute.xlu0 %3838
  %3840 = vrot.lane.b32.xlu0 %v3661, 80
  %v3841 = vpop.permute.xlu0 %3840
  %3842 = vrot.lane.b32.xlu0 %v3662, 80
  %v3843 = vpop.permute.xlu0 %3842
  %3844 = vrot.lane.b32.xlu0 %v3663, 80
  %v3845 = vpop.permute.xlu0 %3844
  %3846 = vrot.lane.b32.xlu0 %v3664, 80
  %v3847 = vpop.permute.xlu0 %3846
  %3848 = vrot.lane.b32.xlu0 %v3665, 80
  %v3849 = vpop.permute.xlu0 %3848
  %3850 = vrot.lane.b32.xlu0 %v3666, 80
  %v3851 = vpop.permute.xlu0 %3850
  %3852 = vrot.lane.b32.xlu0 %v3667, 80
  %v3853 = vpop.permute.xlu0 %3852
  %3854 = vrot.lane.b32.xlu0 %v3668, 80
  %v3855 = vpop.permute.xlu0 %3854
  %3856 = vrot.lane.b32.xlu0 %v3669, 80
  %v3857 = vpop.permute.xlu0 %3856
  %3858 = vrot.lane.b32.xlu0 %v3670, 80
  %v3859 = vpop.permute.xlu0 %3858
  %3860 = vrot.lane.b32.xlu0 %v3671, 80
  %v3861 = vpop.permute.xlu0 %3860
  %3862 = vrot.lane.b32.xlu0 %v3672, 80
  %v3863 = vpop.permute.xlu0 %3862
  %3864 = vrot.lane.b32.xlu0 %v3673, 80
  %v3865 = vpop.permute.xlu0 %3864
  %vm3930 = vcmask 720512
  %3931 = vst.msk [vmem:[#allocation2] sm:$0xff] %vm3930, %v3739
  %3932 = vst.msk [vmem:[#allocation2 + $0x8] sm:$0xff] %vm3930, %v3741
  %3933 = vst.msk [vmem:[#allocation2 + $0x10] sm:$0xff] %vm3930, %v3743
  %3934 = vst.msk [vmem:[#allocation2 + $0x18] sm:$0xff] %vm3930, %v3745
  %3935 = vst.msk [vmem:[#allocation2 + $0x20] sm:$0xff] %vm3930, %v3747
  %3936 = vst.msk [vmem:[#allocation2 + $0x28] sm:$0xff] %vm3930, %v3749
  %3937 = vst.msk [vmem:[#allocation2 + $0x30] sm:$0xff] %vm3930, %v3751
  %3938 = vst.msk [vmem:[#allocation2 + $0x38] sm:$0xff] %vm3930, %v3753
  %3939 = vst.msk [vmem:[#allocation2 + $0x40] sm:$0xff] %vm3930, %v3755
  %3940 = vst.msk [vmem:[#allocation2 + $0x48] sm:$0xff] %vm3930, %v3757
  %3941 = vst.msk [vmem:[#allocation2 + $0x50] sm:$0xff] %vm3930, %v3759
  %3942 = vst.msk [vmem:[#allocation2 + $0x58] sm:$0xff] %vm3930, %v3761
  %3943 = vst.msk [vmem:[#allocation2 + $0x60] sm:$0xff] %vm3930, %v3763
  %3944 = vst.msk [vmem:[#allocation2 + $0x68] sm:$0xff] %vm3930, %v3765
  %3945 = vst.msk [vmem:[#allocation2 + $0x70] sm:$0xff] %vm3930, %v3767
  %3946 = vst.msk [vmem:[#allocation2 + $0x78] sm:$0xff] %vm3930, %v3769
  %3947 = vst.msk [vmem:[#allocation2 + $0x80] sm:$0xff] %vm3930, %v3771
  %3948 = vst.msk [vmem:[#allocation2 + $0x88] sm:$0xff] %vm3930, %v3773
  %3949 = vst.msk [vmem:[#allocation2 + $0x90] sm:$0xff] %vm3930, %v3775
  %3950 = vst.msk [vmem:[#allocation2 + $0x98] sm:$0xff] %vm3930, %v3777
  %3951 = vst.msk [vmem:[#allocation2 + $0xa0] sm:$0xff] %vm3930, %v3779
  %3952 = vst.msk [vmem:[#allocation2 + $0xa8] sm:$0xff] %vm3930, %v3781
  %3953 = vst.msk [vmem:[#allocation2 + $0xb0] sm:$0xff] %vm3930, %v3783
  %3954 = vst.msk [vmem:[#allocation2 + $0xb8] sm:$0xff] %vm3930, %v3785
  %3955 = vst.msk [vmem:[#allocation2 + $0xc0] sm:$0xff] %vm3930, %v3787
  %3956 = vst.msk [vmem:[#allocation2 + $0xc8] sm:$0xff] %vm3930, %v3789
  %3957 = vst.msk [vmem:[#allocation2 + $0xd0] sm:$0xff] %vm3930, %v3791
  %3958 = vst.msk [vmem:[#allocation2 + $0xd8] sm:$0xff] %vm3930, %v3793
  %3959 = vst.msk [vmem:[#allocation2 + $0xe0] sm:$0xff] %vm3930, %v3795
  %3960 = vst.msk [vmem:[#allocation2 + $0xe8] sm:$0xff] %vm3930, %v3797
  %3961 = vst.msk [vmem:[#allocation2 + $0xf0] sm:$0xff] %vm3930, %v3799
  %3962 = vst.msk [vmem:[#allocation2 + $0xf8] sm:$0xff] %vm3930, %v3801
  %3963 = vst.msk [vmem:[#allocation2 + $0x100] sm:$0xff] %vm3930, %v3803
  %3964 = vst.msk [vmem:[#allocation2 + $0x108] sm:$0xff] %vm3930, %v3805
  %3965 = vst.msk [vmem:[#allocation2 + $0x110] sm:$0xff] %vm3930, %v3807
  %3966 = vst.msk [vmem:[#allocation2 + $0x118] sm:$0xff] %vm3930, %v3809
  %3967 = vst.msk [vmem:[#allocation2 + $0x120] sm:$0xff] %vm3930, %v3811
  %3968 = vst.msk [vmem:[#allocation2 + $0x128] sm:$0xff] %vm3930, %v3813
  %3969 = vst.msk [vmem:[#allocation2 + $0x130] sm:$0xff] %vm3930, %v3815
  %3970 = vst.msk [vmem:[#allocation2 + $0x138] sm:$0xff] %vm3930, %v3817
  %3971 = vst.msk [vmem:[#allocation2 + $0x140] sm:$0xff] %vm3930, %v3819
  %3972 = vst.msk [vmem:[#allocation2 + $0x148] sm:$0xff] %vm3930, %v3821
  %3973 = vst.msk [vmem:[#allocation2 + $0x150] sm:$0xff] %vm3930, %v3823
  %3974 = vst.msk [vmem:[#allocation2 + $0x158] sm:$0xff] %vm3930, %v3825
  %3975 = vst.msk [vmem:[#allocation2 + $0x160] sm:$0xff] %vm3930, %v3827
  %3976 = vst.msk [vmem:[#allocation2 + $0x168] sm:$0xff] %vm3930, %v3829
  %3977 = vst.msk [vmem:[#allocation2 + $0x170] sm:$0xff] %vm3930, %v3831
  %3978 = vst.msk [vmem:[#allocation2 + $0x178] sm:$0xff] %vm3930, %v3833
  %3979 = vst.msk [vmem:[#allocation2 + $0x180] sm:$0xff] %vm3930, %v3835
  %3980 = vst.msk [vmem:[#allocation2 + $0x188] sm:$0xff] %vm3930, %v3837
  %3981 = vst.msk [vmem:[#allocation2 + $0x190] sm:$0xff] %vm3930, %v3839
  %3982 = vst.msk [vmem:[#allocation2 + $0x198] sm:$0xff] %vm3930, %v3841
  %3983 = vst.msk [vmem:[#allocation2 + $0x1a0] sm:$0xff] %vm3930, %v3843
  %3984 = vst.msk [vmem:[#allocation2 + $0x1a8] sm:$0xff] %vm3930, %v3845
  %3985 = vst.msk [vmem:[#allocation2 + $0x1b0] sm:$0xff] %vm3930, %v3847
  %3986 = vst.msk [vmem:[#allocation2 + $0x1b8] sm:$0xff] %vm3930, %v3849
  %3987 = vst.msk [vmem:[#allocation2 + $0x1c0] sm:$0xff] %vm3930, %v3851
  %3988 = vst.msk [vmem:[#allocation2 + $0x1c8] sm:$0xff] %vm3930, %v3853
  %3989 = vst.msk [vmem:[#allocation2 + $0x1d0] sm:$0xff] %vm3930, %v3855
  %3990 = vst.msk [vmem:[#allocation2 + $0x1d8] sm:$0xff] %vm3930, %v3857
  %3991 = vst.msk [vmem:[#allocation2 + $0x1e0] sm:$0xff] %vm3930, %v3859
  %3992 = vst.msk [vmem:[#allocation2 + $0x1e8] sm:$0xff] %vm3930, %v3861
  %3993 = vst.msk [vmem:[#allocation2 + $0x1f0] sm:$0xff] %vm3930, %v3863
  %3994 = vst.msk [vmem:[#allocation2 + $0x1f8] sm:$0xff] %vm3930, %v3865
  %v3995 = vld [vmem:[%s2839 + $0x3] sm:$0xff]
  %v3996 = vld [vmem:[%s2839 + $0xb] sm:$0xff]
  %v3997 = vld [vmem:[%s2839 + $0x1b] sm:$0xff]
  %v3998 = vld [vmem:[%s2839 + $0x23] sm:$0xff]
  %v3999 = vld [vmem:[%s2839 + $0x33] sm:$0xff]
  %v4000 = vld [vmem:[%s2839 + $0x3b] sm:$0xff]
  %v4001 = vld [vmem:[%s2839 + $0x4b] sm:$0xff]
  %v4002 = vld [vmem:[%s2839 + $0x53] sm:$0xff]
  %v4003 = vld [vmem:[%s2839 + $0x63] sm:$0xff]
  %v4004 = vld [vmem:[%s2839 + $0x6b] sm:$0xff]
  %v4005 = vld [vmem:[%s2839 + $0x7b] sm:$0xff]
  %v4006 = vld [vmem:[%s2839 + $0x83] sm:$0xff]
  %v4007 = vld [vmem:[%s2839 + $0x93] sm:$0xff]
  %v4008 = vld [vmem:[%s2839 + $0x9b] sm:$0xff]
  %v4009 = vld [vmem:[%s2839 + $0xab] sm:$0xff]
  %v4010 = vld [vmem:[%s2839 + $0xb3] sm:$0xff]
  %v4011 = vld [vmem:[%s2839 + $0xc3] sm:$0xff]
  %v4012 = vld [vmem:[%s2839 + $0xcb] sm:$0xff]
  %v4013 = vld [vmem:[%s2839 + $0xdb] sm:$0xff]
  %v4014 = vld [vmem:[%s2839 + $0xe3] sm:$0xff]
  %v4015 = vld [vmem:[%s2839 + $0xf3] sm:$0xff]
  %v4016 = vld [vmem:[%s2839 + $0xfb] sm:$0xff]
  %v4017 = vld [vmem:[%s2839 + $0x10b] sm:$0xff]
  %v4018 = vld [vmem:[%s2839 + $0x113] sm:$0xff]
  %v4019 = vld [vmem:[%s2839 + $0x123] sm:$0xff]
  %v4020 = vld [vmem:[%s2839 + $0x12b] sm:$0xff]
  %v4021 = vld [vmem:[%s2839 + $0x13b] sm:$0xff]
  %v4022 = vld [vmem:[%s2839 + $0x143] sm:$0xff]
  %v4023 = vld [vmem:[%s2839 + $0x153] sm:$0xff]
  %v4024 = vld [vmem:[%s2839 + $0x15b] sm:$0xff]
  %v4025 = vld [vmem:[%s2839 + $0x16b] sm:$0xff]
  %v4026 = vld [vmem:[%s2839 + $0x173] sm:$0xff]
  %v4027 = vld [vmem:[%s2839 + $0x1cb] sm:$0xff]
  %v4028 = vld [vmem:[%s2839 + $0x1d3] sm:$0xff]
  %v4029 = vld [vmem:[%s2839 + $0x1e3] sm:$0xff]
  %v4030 = vld [vmem:[%s2839 + $0x1eb] sm:$0xff]
  %v4031 = vld [vmem:[%s2839 + $0x1fb] sm:$0xff]
  %v4032 = vld [vmem:[%s2839 + $0x203] sm:$0xff]
  %v4033 = vld [vmem:[%s2839 + $0x213] sm:$0xff]
  %v4034 = vld [vmem:[%s2839 + $0x21b] sm:$0xff]
  %v4035 = vld [vmem:[%s2839 + $0x22b] sm:$0xff]
  %v4036 = vld [vmem:[%s2839 + $0x233] sm:$0xff]
  %v4037 = vld [vmem:[%s2839 + $0x243] sm:$0xff]
  %v4038 = vld [vmem:[%s2839 + $0x24b] sm:$0xff]
  %v4039 = vld [vmem:[%s2839 + $0x25b] sm:$0xff]
  %v4040 = vld [vmem:[%s2839 + $0x263] sm:$0xff]
  %v4041 = vld [vmem:[%s2839 + $0x273] sm:$0xff]
  %v4042 = vld [vmem:[%s2839 + $0x27b] sm:$0xff]
  %v4043 = vld [vmem:[%s2839 + $0x28b] sm:$0xff]
  %v4044 = vld [vmem:[%s2839 + $0x293] sm:$0xff]
  %v4045 = vld [vmem:[%s2839 + $0x2a3] sm:$0xff]
  %v4046 = vld [vmem:[%s2839 + $0x2ab] sm:$0xff]
  %v4047 = vld [vmem:[%s2839 + $0x2bb] sm:$0xff]
  %v4048 = vld [vmem:[%s2839 + $0x2c3] sm:$0xff]
  %v4049 = vld [vmem:[%s2839 + $0x2d3] sm:$0xff]
  %v4050 = vld [vmem:[%s2839 + $0x2db] sm:$0xff]
  %v4051 = vld [vmem:[%s2839 + $0x2eb] sm:$0xff]
  %v4052 = vld [vmem:[%s2839 + $0x2f3] sm:$0xff]
  %v4053 = vld [vmem:[%s2839 + $0x303] sm:$0xff]
  %v4054 = vld [vmem:[%s2839 + $0x30b] sm:$0xff]
  %v4055 = vld [vmem:[%s2839 + $0x31b] sm:$0xff]
  %v4056 = vld [vmem:[%s2839 + $0x323] sm:$0xff]
  %v4057 = vld [vmem:[%s2839 + $0x333] sm:$0xff]
  %v4058 = vld [vmem:[%s2839 + $0x33b] sm:$0xff]
  %4123 = vrot.lane.b32.xlu0 %v3995, 88
  %v4124 = vpop.permute.xlu0 %4123
  %4125 = vrot.lane.b32.xlu0 %v3996, 88
  %v4126 = vpop.permute.xlu0 %4125
  %4127 = vrot.lane.b32.xlu0 %v3997, 88
  %v4128 = vpop.permute.xlu0 %4127
  %4129 = vrot.lane.b32.xlu0 %v3998, 88
  %v4130 = vpop.permute.xlu0 %4129
  %4131 = vrot.lane.b32.xlu0 %v3999, 88
  %v4132 = vpop.permute.xlu0 %4131
  %4133 = vrot.lane.b32.xlu0 %v4000, 88
  %v4134 = vpop.permute.xlu0 %4133
  %4135 = vrot.lane.b32.xlu0 %v4001, 88
  %v4136 = vpop.permute.xlu0 %4135
  %4137 = vrot.lane.b32.xlu0 %v4002, 88
  %v4138 = vpop.permute.xlu0 %4137
  %4139 = vrot.lane.b32.xlu0 %v4003, 88
  %v4140 = vpop.permute.xlu0 %4139
  %4141 = vrot.lane.b32.xlu0 %v4004, 88
  %v4142 = vpop.permute.xlu0 %4141
  %4143 = vrot.lane.b32.xlu0 %v4005, 88
  %v4144 = vpop.permute.xlu0 %4143
  %4145 = vrot.lane.b32.xlu0 %v4006, 88
  %v4146 = vpop.permute.xlu0 %4145
  %4147 = vrot.lane.b32.xlu0 %v4007, 88
  %v4148 = vpop.permute.xlu0 %4147
  %4149 = vrot.lane.b32.xlu0 %v4008, 88
  %v4150 = vpop.permute.xlu0 %4149
  %4151 = vrot.lane.b32.xlu0 %v4009, 88
  %v4152 = vpop.permute.xlu0 %4151
  %4153 = vrot.lane.b32.xlu0 %v4010, 88
  %v4154 = vpop.permute.xlu0 %4153
  %4155 = vrot.lane.b32.xlu0 %v4011, 88
  %v4156 = vpop.permute.xlu0 %4155
  %4157 = vrot.lane.b32.xlu0 %v4012, 88
  %v4158 = vpop.permute.xlu0 %4157
  %4159 = vrot.lane.b32.xlu0 %v4013, 88
  %v4160 = vpop.permute.xlu0 %4159
  %4161 = vrot.lane.b32.xlu0 %v4014, 88
  %v4162 = vpop.permute.xlu0 %4161
  %4163 = vrot.lane.b32.xlu0 %v4015, 88
  %v4164 = vpop.permute.xlu0 %4163
  %4165 = vrot.lane.b32.xlu0 %v4016, 88
  %v4166 = vpop.permute.xlu0 %4165
  %4167 = vrot.lane.b32.xlu0 %v4017, 88
  %v4168 = vpop.permute.xlu0 %4167
  %4169 = vrot.lane.b32.xlu0 %v4018, 88
  %v4170 = vpop.permute.xlu0 %4169
  %4171 = vrot.lane.b32.xlu0 %v4019, 88
  %v4172 = vpop.permute.xlu0 %4171
  %4173 = vrot.lane.b32.xlu0 %v4020, 88
  %v4174 = vpop.permute.xlu0 %4173
  %4175 = vrot.lane.b32.xlu0 %v4021, 88
  %v4176 = vpop.permute.xlu0 %4175
  %4177 = vrot.lane.b32.xlu0 %v4022, 88
  %v4178 = vpop.permute.xlu0 %4177
  %4179 = vrot.lane.b32.xlu0 %v4023, 88
  %v4180 = vpop.permute.xlu0 %4179
  %4181 = vrot.lane.b32.xlu0 %v4024, 88
  %v4182 = vpop.permute.xlu0 %4181
  %4183 = vrot.lane.b32.xlu0 %v4025, 88
  %v4184 = vpop.permute.xlu0 %4183
  %4185 = vrot.lane.b32.xlu0 %v4026, 88
  %v4186 = vpop.permute.xlu0 %4185
  %4187 = vrot.lane.b32.xlu0 %v4027, 88
  %v4188 = vpop.permute.xlu0 %4187
  %4189 = vrot.lane.b32.xlu0 %v4028, 88
  %v4190 = vpop.permute.xlu0 %4189
  %4191 = vrot.lane.b32.xlu0 %v4029, 88
  %v4192 = vpop.permute.xlu0 %4191
  %4193 = vrot.lane.b32.xlu0 %v4030, 88
  %v4194 = vpop.permute.xlu0 %4193
  %4195 = vrot.lane.b32.xlu0 %v4031, 88
  %v4196 = vpop.permute.xlu0 %4195
  %4197 = vrot.lane.b32.xlu0 %v4032, 88
  %v4198 = vpop.permute.xlu0 %4197
  %4199 = vrot.lane.b32.xlu0 %v4033, 88
  %v4200 = vpop.permute.xlu0 %4199
  %4201 = vrot.lane.b32.xlu0 %v4034, 88
  %v4202 = vpop.permute.xlu0 %4201
  %4203 = vrot.lane.b32.xlu0 %v4035, 88
  %v4204 = vpop.permute.xlu0 %4203
  %4205 = vrot.lane.b32.xlu0 %v4036, 88
  %v4206 = vpop.permute.xlu0 %4205
  %4207 = vrot.lane.b32.xlu0 %v4037, 88
  %v4208 = vpop.permute.xlu0 %4207
  %4209 = vrot.lane.b32.xlu0 %v4038, 88
  %v4210 = vpop.permute.xlu0 %4209
  %4211 = vrot.lane.b32.xlu0 %v4039, 88
  %v4212 = vpop.permute.xlu0 %4211
  %4213 = vrot.lane.b32.xlu0 %v4040, 88
  %v4214 = vpop.permute.xlu0 %4213
  %4215 = vrot.lane.b32.xlu0 %v4041, 88
  %v4216 = vpop.permute.xlu0 %4215
  %4217 = vrot.lane.b32.xlu0 %v4042, 88
  %v4218 = vpop.permute.xlu0 %4217
  %4219 = vrot.lane.b32.xlu0 %v4043, 88
  %v4220 = vpop.permute.xlu0 %4219
  %4221 = vrot.lane.b32.xlu0 %v4044, 88
  %v4222 = vpop.permute.xlu0 %4221
  %4223 = vrot.lane.b32.xlu0 %v4045, 88
  %v4224 = vpop.permute.xlu0 %4223
  %4225 = vrot.lane.b32.xlu0 %v4046, 88
  %v4226 = vpop.permute.xlu0 %4225
  %4227 = vrot.lane.b32.xlu0 %v4047, 88
  %v4228 = vpop.permute.xlu0 %4227
  %4229 = vrot.lane.b32.xlu0 %v4048, 88
  %v4230 = vpop.permute.xlu0 %4229
  %4231 = vrot.lane.b32.xlu0 %v4049, 88
  %v4232 = vpop.permute.xlu0 %4231
  %4233 = vrot.lane.b32.xlu0 %v4050, 88
  %v4234 = vpop.permute.xlu0 %4233
  %4235 = vrot.lane.b32.xlu0 %v4051, 88
  %v4236 = vpop.permute.xlu0 %4235
  %4237 = vrot.lane.b32.xlu0 %v4052, 88
  %v4238 = vpop.permute.xlu0 %4237
  %4239 = vrot.lane.b32.xlu0 %v4053, 88
  %v4240 = vpop.permute.xlu0 %4239
  %4241 = vrot.lane.b32.xlu0 %v4054, 88
  %v4242 = vpop.permute.xlu0 %4241
  %4243 = vrot.lane.b32.xlu0 %v4055, 88
  %v4244 = vpop.permute.xlu0 %4243
  %4245 = vrot.lane.b32.xlu0 %v4056, 88
  %v4246 = vpop.permute.xlu0 %4245
  %4247 = vrot.lane.b32.xlu0 %v4057, 88
  %v4248 = vpop.permute.xlu0 %4247
  %4249 = vrot.lane.b32.xlu0 %v4058, 88
  %v4250 = vpop.permute.xlu0 %4249
  %vm4315 = vcmask 786112
  %4316 = vst.msk [vmem:[#allocation2] sm:$0xff] %vm4315, %v4124
  %4317 = vst.msk [vmem:[#allocation2 + $0x8] sm:$0xff] %vm4315, %v4126
  %4318 = vst.msk [vmem:[#allocation2 + $0x10] sm:$0xff] %vm4315, %v4128
  %4319 = vst.msk [vmem:[#allocation2 + $0x18] sm:$0xff] %vm4315, %v4130
  %4320 = vst.msk [vmem:[#allocation2 + $0x20] sm:$0xff] %vm4315, %v4132
  %4321 = vst.msk [vmem:[#allocation2 + $0x28] sm:$0xff] %vm4315, %v4134
  %4322 = vst.msk [vmem:[#allocation2 + $0x30] sm:$0xff] %vm4315, %v4136
  %4323 = vst.msk [vmem:[#allocation2 + $0x38] sm:$0xff] %vm4315, %v4138
  %4324 = vst.msk [vmem:[#allocation2 + $0x40] sm:$0xff] %vm4315, %v4140
  %4325 = vst.msk [vmem:[#allocation2 + $0x48] sm:$0xff] %vm4315, %v4142
  %4326 = vst.msk [vmem:[#allocation2 + $0x50] sm:$0xff] %vm4315, %v4144
  %4327 = vst.msk [vmem:[#allocation2 + $0x58] sm:$0xff] %vm4315, %v4146
  %4328 = vst.msk [vmem:[#allocation2 + $0x60] sm:$0xff] %vm4315, %v4148
  %4329 = vst.msk [vmem:[#allocation2 + $0x68] sm:$0xff] %vm4315, %v4150
  %4330 = vst.msk [vmem:[#allocation2 + $0x70] sm:$0xff] %vm4315, %v4152
  %4331 = vst.msk [vmem:[#allocation2 + $0x78] sm:$0xff] %vm4315, %v4154
  %4332 = vst.msk [vmem:[#allocation2 + $0x80] sm:$0xff] %vm4315, %v4156
  %4333 = vst.msk [vmem:[#allocation2 + $0x88] sm:$0xff] %vm4315, %v4158
  %4334 = vst.msk [vmem:[#allocation2 + $0x90] sm:$0xff] %vm4315, %v4160
  %4335 = vst.msk [vmem:[#allocation2 + $0x98] sm:$0xff] %vm4315, %v4162
  %4336 = vst.msk [vmem:[#allocation2 + $0xa0] sm:$0xff] %vm4315, %v4164
  %4337 = vst.msk [vmem:[#allocation2 + $0xa8] sm:$0xff] %vm4315, %v4166
  %4338 = vst.msk [vmem:[#allocation2 + $0xb0] sm:$0xff] %vm4315, %v4168
  %4339 = vst.msk [vmem:[#allocation2 + $0xb8] sm:$0xff] %vm4315, %v4170
  %4340 = vst.msk [vmem:[#allocation2 + $0xc0] sm:$0xff] %vm4315, %v4172
  %4341 = vst.msk [vmem:[#allocation2 + $0xc8] sm:$0xff] %vm4315, %v4174
  %4342 = vst.msk [vmem:[#allocation2 + $0xd0] sm:$0xff] %vm4315, %v4176
  %4343 = vst.msk [vmem:[#allocation2 + $0xd8] sm:$0xff] %vm4315, %v4178
  %4344 = vst.msk [vmem:[#allocation2 + $0xe0] sm:$0xff] %vm4315, %v4180
  %4345 = vst.msk [vmem:[#allocation2 + $0xe8] sm:$0xff] %vm4315, %v4182
  %4346 = vst.msk [vmem:[#allocation2 + $0xf0] sm:$0xff] %vm4315, %v4184
  %4347 = vst.msk [vmem:[#allocation2 + $0xf8] sm:$0xff] %vm4315, %v4186
  %4348 = vst.msk [vmem:[#allocation2 + $0x100] sm:$0xff] %vm4315, %v4188
  %4349 = vst.msk [vmem:[#allocation2 + $0x108] sm:$0xff] %vm4315, %v4190
  %4350 = vst.msk [vmem:[#allocation2 + $0x110] sm:$0xff] %vm4315, %v4192
  %4351 = vst.msk [vmem:[#allocation2 + $0x118] sm:$0xff] %vm4315, %v4194
  %4352 = vst.msk [vmem:[#allocation2 + $0x120] sm:$0xff] %vm4315, %v4196
  %4353 = vst.msk [vmem:[#allocation2 + $0x128] sm:$0xff] %vm4315, %v4198
  %4354 = vst.msk [vmem:[#allocation2 + $0x130] sm:$0xff] %vm4315, %v4200
  %4355 = vst.msk [vmem:[#allocation2 + $0x138] sm:$0xff] %vm4315, %v4202
  %4356 = vst.msk [vmem:[#allocation2 + $0x140] sm:$0xff] %vm4315, %v4204
  %4357 = vst.msk [vmem:[#allocation2 + $0x148] sm:$0xff] %vm4315, %v4206
  %4358 = vst.msk [vmem:[#allocation2 + $0x150] sm:$0xff] %vm4315, %v4208
  %4359 = vst.msk [vmem:[#allocation2 + $0x158] sm:$0xff] %vm4315, %v4210
  %4360 = vst.msk [vmem:[#allocation2 + $0x160] sm:$0xff] %vm4315, %v4212
  %4361 = vst.msk [vmem:[#allocation2 + $0x168] sm:$0xff] %vm4315, %v4214
  %4362 = vst.msk [vmem:[#allocation2 + $0x170] sm:$0xff] %vm4315, %v4216
  %4363 = vst.msk [vmem:[#allocation2 + $0x178] sm:$0xff] %vm4315, %v4218
  %4364 = vst.msk [vmem:[#allocation2 + $0x180] sm:$0xff] %vm4315, %v4220
  %4365 = vst.msk [vmem:[#allocation2 + $0x188] sm:$0xff] %vm4315, %v4222
  %4366 = vst.msk [vmem:[#allocation2 + $0x190] sm:$0xff] %vm4315, %v4224
  %4367 = vst.msk [vmem:[#allocation2 + $0x198] sm:$0xff] %vm4315, %v4226
  %4368 = vst.msk [vmem:[#allocation2 + $0x1a0] sm:$0xff] %vm4315, %v4228
  %4369 = vst.msk [vmem:[#allocation2 + $0x1a8] sm:$0xff] %vm4315, %v4230
  %4370 = vst.msk [vmem:[#allocation2 + $0x1b0] sm:$0xff] %vm4315, %v4232
  %4371 = vst.msk [vmem:[#allocation2 + $0x1b8] sm:$0xff] %vm4315, %v4234
  %4372 = vst.msk [vmem:[#allocation2 + $0x1c0] sm:$0xff] %vm4315, %v4236
  %4373 = vst.msk [vmem:[#allocation2 + $0x1c8] sm:$0xff] %vm4315, %v4238
  %4374 = vst.msk [vmem:[#allocation2 + $0x1d0] sm:$0xff] %vm4315, %v4240
  %4375 = vst.msk [vmem:[#allocation2 + $0x1d8] sm:$0xff] %vm4315, %v4242
  %4376 = vst.msk [vmem:[#allocation2 + $0x1e0] sm:$0xff] %vm4315, %v4244
  %4377 = vst.msk [vmem:[#allocation2 + $0x1e8] sm:$0xff] %vm4315, %v4246
  %4378 = vst.msk [vmem:[#allocation2 + $0x1f0] sm:$0xff] %vm4315, %v4248
  %4379 = vst.msk [vmem:[#allocation2 + $0x1f8] sm:$0xff] %vm4315, %v4250
  %s4380 = scalar_lea.vmem %s0, 72
  %v4381 = vld [vmem:[%s4380] sm:$0xff]
  %v4382 = vld [vmem:[%s4380 + $0x8] sm:$0xff]
  %v4383 = vld [vmem:[%s4380 + $0x18] sm:$0xff]
  %v4384 = vld [vmem:[%s4380 + $0x20] sm:$0xff]
  %v4385 = vld [vmem:[%s4380 + $0x30] sm:$0xff]
  %v4386 = vld [vmem:[%s4380 + $0x38] sm:$0xff]
  %v4387 = vld [vmem:[%s4380 + $0x48] sm:$0xff]
  %v4388 = vld [vmem:[%s4380 + $0x50] sm:$0xff]
  %v4389 = vld [vmem:[%s4380 + $0x60] sm:$0xff]
  %v4390 = vld [vmem:[%s4380 + $0x68] sm:$0xff]
  %v4391 = vld [vmem:[%s4380 + $0x78] sm:$0xff]
  %v4392 = vld [vmem:[%s4380 + $0x80] sm:$0xff]
  %v4393 = vld [vmem:[%s4380 + $0x90] sm:$0xff]
  %v4394 = vld [vmem:[%s4380 + $0x98] sm:$0xff]
  %v4395 = vld [vmem:[%s4380 + $0xa8] sm:$0xff]
  %v4396 = vld [vmem:[%s4380 + $0xb0] sm:$0xff]
  %v4397 = vld [vmem:[%s4380 + $0xc0] sm:$0xff]
  %v4398 = vld [vmem:[%s4380 + $0xc8] sm:$0xff]
  %v4399 = vld [vmem:[%s4380 + $0xd8] sm:$0xff]
  %v4400 = vld [vmem:[%s4380 + $0xe0] sm:$0xff]
  %v4401 = vld [vmem:[%s4380 + $0xf0] sm:$0xff]
  %v4402 = vld [vmem:[%s4380 + $0xf8] sm:$0xff]
  %v4403 = vld [vmem:[%s4380 + $0x108] sm:$0xff]
  %v4404 = vld [vmem:[%s4380 + $0x110] sm:$0xff]
  %v4405 = vld [vmem:[%s4380 + $0x120] sm:$0xff]
  %v4406 = vld [vmem:[%s4380 + $0x128] sm:$0xff]
  %v4407 = vld [vmem:[%s4380 + $0x138] sm:$0xff]
  %v4408 = vld [vmem:[%s4380 + $0x140] sm:$0xff]
  %v4409 = vld [vmem:[%s4380 + $0x150] sm:$0xff]
  %v4410 = vld [vmem:[%s4380 + $0x158] sm:$0xff]
  %v4411 = vld [vmem:[%s4380 + $0x168] sm:$0xff]
  %v4412 = vld [vmem:[%s4380 + $0x170] sm:$0xff]
  %v4413 = vld [vmem:[%s4380 + $0x1c8] sm:$0xff]
  %v4414 = vld [vmem:[%s4380 + $0x1d0] sm:$0xff]
  %v4415 = vld [vmem:[%s4380 + $0x1e0] sm:$0xff]
  %v4416 = vld [vmem:[%s4380 + $0x1e8] sm:$0xff]
  %v4417 = vld [vmem:[%s4380 + $0x1f8] sm:$0xff]
  %v4418 = vld [vmem:[%s4380 + $0x200] sm:$0xff]
  %v4419 = vld [vmem:[%s4380 + $0x210] sm:$0xff]
  %v4420 = vld [vmem:[%s4380 + $0x218] sm:$0xff]
  %v4421 = vld [vmem:[%s4380 + $0x228] sm:$0xff]
  %v4422 = vld [vmem:[%s4380 + $0x230] sm:$0xff]
  %v4423 = vld [vmem:[%s4380 + $0x240] sm:$0xff]
  %v4424 = vld [vmem:[%s4380 + $0x248] sm:$0xff]
  %v4425 = vld [vmem:[%s4380 + $0x258] sm:$0xff]
  %v4426 = vld [vmem:[%s4380 + $0x260] sm:$0xff]
  %v4427 = vld [vmem:[%s4380 + $0x270] sm:$0xff]
  %v4428 = vld [vmem:[%s4380 + $0x278] sm:$0xff]
  %v4429 = vld [vmem:[%s4380 + $0x288] sm:$0xff]
  %v4430 = vld [vmem:[%s4380 + $0x290] sm:$0xff]
  %v4431 = vld [vmem:[%s4380 + $0x2a0] sm:$0xff]
  %v4432 = vld [vmem:[%s4380 + $0x2a8] sm:$0xff]
  %v4433 = vld [vmem:[%s4380 + $0x2b8] sm:$0xff]
  %v4434 = vld [vmem:[%s4380 + $0x2c0] sm:$0xff]
  %v4435 = vld [vmem:[%s4380 + $0x2d0] sm:$0xff]
  %v4436 = vld [vmem:[%s4380 + $0x2d8] sm:$0xff]
  %v4437 = vld [vmem:[%s4380 + $0x2e8] sm:$0xff]
  %v4438 = vld [vmem:[%s4380 + $0x2f0] sm:$0xff]
  %v4439 = vld [vmem:[%s4380 + $0x300] sm:$0xff]
  %v4440 = vld [vmem:[%s4380 + $0x308] sm:$0xff]
  %v4441 = vld [vmem:[%s4380 + $0x318] sm:$0xff]
  %v4442 = vld [vmem:[%s4380 + $0x320] sm:$0xff]
  %v4443 = vld [vmem:[%s4380 + $0x330] sm:$0xff]
  %v4444 = vld [vmem:[%s4380 + $0x338] sm:$0xff]
  %4509 = vrot.lane.b32.xlu0 %v4381, 96
  %v4510 = vpop.permute.xlu0 %4509
  %4511 = vrot.lane.b32.xlu0 %v4382, 96
  %v4512 = vpop.permute.xlu0 %4511
  %4513 = vrot.lane.b32.xlu0 %v4383, 96
  %v4514 = vpop.permute.xlu0 %4513
  %4515 = vrot.lane.b32.xlu0 %v4384, 96
  %v4516 = vpop.permute.xlu0 %4515
  %4517 = vrot.lane.b32.xlu0 %v4385, 96
  %v4518 = vpop.permute.xlu0 %4517
  %4519 = vrot.lane.b32.xlu0 %v4386, 96
  %v4520 = vpop.permute.xlu0 %4519
  %4521 = vrot.lane.b32.xlu0 %v4387, 96
  %v4522 = vpop.permute.xlu0 %4521
  %4523 = vrot.lane.b32.xlu0 %v4388, 96
  %v4524 = vpop.permute.xlu0 %4523
  %4525 = vrot.lane.b32.xlu0 %v4389, 96
  %v4526 = vpop.permute.xlu0 %4525
  %4527 = vrot.lane.b32.xlu0 %v4390, 96
  %v4528 = vpop.permute.xlu0 %4527
  %4529 = vrot.lane.b32.xlu0 %v4391, 96
  %v4530 = vpop.permute.xlu0 %4529
  %4531 = vrot.lane.b32.xlu0 %v4392, 96
  %v4532 = vpop.permute.xlu0 %4531
  %4533 = vrot.lane.b32.xlu0 %v4393, 96
  %v4534 = vpop.permute.xlu0 %4533
  %4535 = vrot.lane.b32.xlu0 %v4394, 96
  %v4536 = vpop.permute.xlu0 %4535
  %4537 = vrot.lane.b32.xlu0 %v4395, 96
  %v4538 = vpop.permute.xlu0 %4537
  %4539 = vrot.lane.b32.xlu0 %v4396, 96
  %v4540 = vpop.permute.xlu0 %4539
  %4541 = vrot.lane.b32.xlu0 %v4397, 96
  %v4542 = vpop.permute.xlu0 %4541
  %4543 = vrot.lane.b32.xlu0 %v4398, 96
  %v4544 = vpop.permute.xlu0 %4543
  %4545 = vrot.lane.b32.xlu0 %v4399, 96
  %v4546 = vpop.permute.xlu0 %4545
  %4547 = vrot.lane.b32.xlu0 %v4400, 96
  %v4548 = vpop.permute.xlu0 %4547
  %4549 = vrot.lane.b32.xlu0 %v4401, 96
  %v4550 = vpop.permute.xlu0 %4549
  %4551 = vrot.lane.b32.xlu0 %v4402, 96
  %v4552 = vpop.permute.xlu0 %4551
  %4553 = vrot.lane.b32.xlu0 %v4403, 96
  %v4554 = vpop.permute.xlu0 %4553
  %4555 = vrot.lane.b32.xlu0 %v4404, 96
  %v4556 = vpop.permute.xlu0 %4555
  %4557 = vrot.lane.b32.xlu0 %v4405, 96
  %v4558 = vpop.permute.xlu0 %4557
  %4559 = vrot.lane.b32.xlu0 %v4406, 96
  %v4560 = vpop.permute.xlu0 %4559
  %4561 = vrot.lane.b32.xlu0 %v4407, 96
  %v4562 = vpop.permute.xlu0 %4561
  %4563 = vrot.lane.b32.xlu0 %v4408, 96
  %v4564 = vpop.permute.xlu0 %4563
  %4565 = vrot.lane.b32.xlu0 %v4409, 96
  %v4566 = vpop.permute.xlu0 %4565
  %4567 = vrot.lane.b32.xlu0 %v4410, 96
  %v4568 = vpop.permute.xlu0 %4567
  %4569 = vrot.lane.b32.xlu0 %v4411, 96
  %v4570 = vpop.permute.xlu0 %4569
  %4571 = vrot.lane.b32.xlu0 %v4412, 96
  %v4572 = vpop.permute.xlu0 %4571
  %4573 = vrot.lane.b32.xlu0 %v4413, 96
  %v4574 = vpop.permute.xlu0 %4573
  %4575 = vrot.lane.b32.xlu0 %v4414, 96
  %v4576 = vpop.permute.xlu0 %4575
  %4577 = vrot.lane.b32.xlu0 %v4415, 96
  %v4578 = vpop.permute.xlu0 %4577
  %4579 = vrot.lane.b32.xlu0 %v4416, 96
  %v4580 = vpop.permute.xlu0 %4579
  %4581 = vrot.lane.b32.xlu0 %v4417, 96
  %v4582 = vpop.permute.xlu0 %4581
  %4583 = vrot.lane.b32.xlu0 %v4418, 96
  %v4584 = vpop.permute.xlu0 %4583
  %4585 = vrot.lane.b32.xlu0 %v4419, 96
  %v4586 = vpop.permute.xlu0 %4585
  %4587 = vrot.lane.b32.xlu0 %v4420, 96
  %v4588 = vpop.permute.xlu0 %4587
  %4589 = vrot.lane.b32.xlu0 %v4421, 96
  %v4590 = vpop.permute.xlu0 %4589
  %4591 = vrot.lane.b32.xlu0 %v4422, 96
  %v4592 = vpop.permute.xlu0 %4591
  %4593 = vrot.lane.b32.xlu0 %v4423, 96
  %v4594 = vpop.permute.xlu0 %4593
  %4595 = vrot.lane.b32.xlu0 %v4424, 96
  %v4596 = vpop.permute.xlu0 %4595
  %4597 = vrot.lane.b32.xlu0 %v4425, 96
  %v4598 = vpop.permute.xlu0 %4597
  %4599 = vrot.lane.b32.xlu0 %v4426, 96
  %v4600 = vpop.permute.xlu0 %4599
  %4601 = vrot.lane.b32.xlu0 %v4427, 96
  %v4602 = vpop.permute.xlu0 %4601
  %4603 = vrot.lane.b32.xlu0 %v4428, 96
  %v4604 = vpop.permute.xlu0 %4603
  %4605 = vrot.lane.b32.xlu0 %v4429, 96
  %v4606 = vpop.permute.xlu0 %4605
  %4607 = vrot.lane.b32.xlu0 %v4430, 96
  %v4608 = vpop.permute.xlu0 %4607
  %4609 = vrot.lane.b32.xlu0 %v4431, 96
  %v4610 = vpop.permute.xlu0 %4609
  %4611 = vrot.lane.b32.xlu0 %v4432, 96
  %v4612 = vpop.permute.xlu0 %4611
  %4613 = vrot.lane.b32.xlu0 %v4433, 96
  %v4614 = vpop.permute.xlu0 %4613
  %4615 = vrot.lane.b32.xlu0 %v4434, 96
  %v4616 = vpop.permute.xlu0 %4615
  %4617 = vrot.lane.b32.xlu0 %v4435, 96
  %v4618 = vpop.permute.xlu0 %4617
  %4619 = vrot.lane.b32.xlu0 %v4436, 96
  %v4620 = vpop.permute.xlu0 %4619
  %4621 = vrot.lane.b32.xlu0 %v4437, 96
  %v4622 = vpop.permute.xlu0 %4621
  %4623 = vrot.lane.b32.xlu0 %v4438, 96
  %v4624 = vpop.permute.xlu0 %4623
  %4625 = vrot.lane.b32.xlu0 %v4439, 96
  %v4626 = vpop.permute.xlu0 %4625
  %4627 = vrot.lane.b32.xlu0 %v4440, 96
  %v4628 = vpop.permute.xlu0 %4627
  %4629 = vrot.lane.b32.xlu0 %v4441, 96
  %v4630 = vpop.permute.xlu0 %4629
  %4631 = vrot.lane.b32.xlu0 %v4442, 96
  %v4632 = vpop.permute.xlu0 %4631
  %4633 = vrot.lane.b32.xlu0 %v4443, 96
  %v4634 = vpop.permute.xlu0 %4633
  %4635 = vrot.lane.b32.xlu0 %v4444, 96
  %v4636 = vpop.permute.xlu0 %4635
  %vm4701 = vcmask 851712
  %4702 = vst.msk [vmem:[#allocation2] sm:$0xff] %vm4701, %v4510
  %4703 = vst.msk [vmem:[#allocation2 + $0x8] sm:$0xff] %vm4701, %v4512
  %4704 = vst.msk [vmem:[#allocation2 + $0x10] sm:$0xff] %vm4701, %v4514
  %4705 = vst.msk [vmem:[#allocation2 + $0x18] sm:$0xff] %vm4701, %v4516
  %4706 = vst.msk [vmem:[#allocation2 + $0x20] sm:$0xff] %vm4701, %v4518
  %4707 = vst.msk [vmem:[#allocation2 + $0x28] sm:$0xff] %vm4701, %v4520
  %4708 = vst.msk [vmem:[#allocation2 + $0x30] sm:$0xff] %vm4701, %v4522
  %4709 = vst.msk [vmem:[#allocation2 + $0x38] sm:$0xff] %vm4701, %v4524
  %4710 = vst.msk [vmem:[#allocation2 + $0x40] sm:$0xff] %vm4701, %v4526
  %4711 = vst.msk [vmem:[#allocation2 + $0x48] sm:$0xff] %vm4701, %v4528
  %4712 = vst.msk [vmem:[#allocation2 + $0x50] sm:$0xff] %vm4701, %v4530
  %4713 = vst.msk [vmem:[#allocation2 + $0x58] sm:$0xff] %vm4701, %v4532
  %4714 = vst.msk [vmem:[#allocation2 + $0x60] sm:$0xff] %vm4701, %v4534
  %4715 = vst.msk [vmem:[#allocation2 + $0x68] sm:$0xff] %vm4701, %v4536
  %4716 = vst.msk [vmem:[#allocation2 + $0x70] sm:$0xff] %vm4701, %v4538
  %4717 = vst.msk [vmem:[#allocation2 + $0x78] sm:$0xff] %vm4701, %v4540
  %4718 = vst.msk [vmem:[#allocation2 + $0x80] sm:$0xff] %vm4701, %v4542
  %4719 = vst.msk [vmem:[#allocation2 + $0x88] sm:$0xff] %vm4701, %v4544
  %4720 = vst.msk [vmem:[#allocation2 + $0x90] sm:$0xff] %vm4701, %v4546
  %4721 = vst.msk [vmem:[#allocation2 + $0x98] sm:$0xff] %vm4701, %v4548
  %4722 = vst.msk [vmem:[#allocation2 + $0xa0] sm:$0xff] %vm4701, %v4550
  %4723 = vst.msk [vmem:[#allocation2 + $0xa8] sm:$0xff] %vm4701, %v4552
  %4724 = vst.msk [vmem:[#allocation2 + $0xb0] sm:$0xff] %vm4701, %v4554
  %4725 = vst.msk [vmem:[#allocation2 + $0xb8] sm:$0xff] %vm4701, %v4556
  %4726 = vst.msk [vmem:[#allocation2 + $0xc0] sm:$0xff] %vm4701, %v4558
  %4727 = vst.msk [vmem:[#allocation2 + $0xc8] sm:$0xff] %vm4701, %v4560
  %4728 = vst.msk [vmem:[#allocation2 + $0xd0] sm:$0xff] %vm4701, %v4562
  %4729 = vst.msk [vmem:[#allocation2 + $0xd8] sm:$0xff] %vm4701, %v4564
  %4730 = vst.msk [vmem:[#allocation2 + $0xe0] sm:$0xff] %vm4701, %v4566
  %4731 = vst.msk [vmem:[#allocation2 + $0xe8] sm:$0xff] %vm4701, %v4568
  %4732 = vst.msk [vmem:[#allocation2 + $0xf0] sm:$0xff] %vm4701, %v4570
  %4733 = vst.msk [vmem:[#allocation2 + $0xf8] sm:$0xff] %vm4701, %v4572
  %4734 = vst.msk [vmem:[#allocation2 + $0x100] sm:$0xff] %vm4701, %v4574
  %4735 = vst.msk [vmem:[#allocation2 + $0x108] sm:$0xff] %vm4701, %v4576
  %4736 = vst.msk [vmem:[#allocation2 + $0x110] sm:$0xff] %vm4701, %v4578
  %4737 = vst.msk [vmem:[#allocation2 + $0x118] sm:$0xff] %vm4701, %v4580
  %4738 = vst.msk [vmem:[#allocation2 + $0x120] sm:$0xff] %vm4701, %v4582
  %4739 = vst.msk [vmem:[#allocation2 + $0x128] sm:$0xff] %vm4701, %v4584
  %4740 = vst.msk [vmem:[#allocation2 + $0x130] sm:$0xff] %vm4701, %v4586
  %4741 = vst.msk [vmem:[#allocation2 + $0x138] sm:$0xff] %vm4701, %v4588
  %4742 = vst.msk [vmem:[#allocation2 + $0x140] sm:$0xff] %vm4701, %v4590
  %4743 = vst.msk [vmem:[#allocation2 + $0x148] sm:$0xff] %vm4701, %v4592
  %4744 = vst.msk [vmem:[#allocation2 + $0x150] sm:$0xff] %vm4701, %v4594
  %4745 = vst.msk [vmem:[#allocation2 + $0x158] sm:$0xff] %vm4701, %v4596
  %4746 = vst.msk [vmem:[#allocation2 + $0x160] sm:$0xff] %vm4701, %v4598
  %4747 = vst.msk [vmem:[#allocation2 + $0x168] sm:$0xff] %vm4701, %v4600
  %4748 = vst.msk [vmem:[#allocation2 + $0x170] sm:$0xff] %vm4701, %v4602
  %4749 = vst.msk [vmem:[#allocation2 + $0x178] sm:$0xff] %vm4701, %v4604
  %4750 = vst.msk [vmem:[#allocation2 + $0x180] sm:$0xff] %vm4701, %v4606
  %4751 = vst.msk [vmem:[#allocation2 + $0x188] sm:$0xff] %vm4701, %v4608
  %4752 = vst.msk [vmem:[#allocation2 + $0x190] sm:$0xff] %vm4701, %v4610
  %4753 = vst.msk [vmem:[#allocation2 + $0x198] sm:$0xff] %vm4701, %v4612
  %4754 = vst.msk [vmem:[#allocation2 + $0x1a0] sm:$0xff] %vm4701, %v4614
  %4755 = vst.msk [vmem:[#allocation2 + $0x1a8] sm:$0xff] %vm4701, %v4616
  %4756 = vst.msk [vmem:[#allocation2 + $0x1b0] sm:$0xff] %vm4701, %v4618
  %4757 = vst.msk [vmem:[#allocation2 + $0x1b8] sm:$0xff] %vm4701, %v4620
  %4758 = vst.msk [vmem:[#allocation2 + $0x1c0] sm:$0xff] %vm4701, %v4622
  %4759 = vst.msk [vmem:[#allocation2 + $0x1c8] sm:$0xff] %vm4701, %v4624
  %4760 = vst.msk [vmem:[#allocation2 + $0x1d0] sm:$0xff] %vm4701, %v4626
  %4761 = vst.msk [vmem:[#allocation2 + $0x1d8] sm:$0xff] %vm4701, %v4628
  %4762 = vst.msk [vmem:[#allocation2 + $0x1e0] sm:$0xff] %vm4701, %v4630
  %4763 = vst.msk [vmem:[#allocation2 + $0x1e8] sm:$0xff] %vm4701, %v4632
  %4764 = vst.msk [vmem:[#allocation2 + $0x1f0] sm:$0xff] %vm4701, %v4634
  %4765 = vst.msk [vmem:[#allocation2 + $0x1f8] sm:$0xff] %vm4701, %v4636
  %v4766 = vld [vmem:[%s4380 + $0x1] sm:$0xff]
  %v4767 = vld [vmem:[%s4380 + $0x9] sm:$0xff]
  %v4768 = vld [vmem:[%s4380 + $0x19] sm:$0xff]
  %v4769 = vld [vmem:[%s4380 + $0x21] sm:$0xff]
  %v4770 = vld [vmem:[%s4380 + $0x31] sm:$0xff]
  %v4771 = vld [vmem:[%s4380 + $0x39] sm:$0xff]
  %v4772 = vld [vmem:[%s4380 + $0x49] sm:$0xff]
  %v4773 = vld [vmem:[%s4380 + $0x51] sm:$0xff]
  %v4774 = vld [vmem:[%s4380 + $0x61] sm:$0xff]
  %v4775 = vld [vmem:[%s4380 + $0x69] sm:$0xff]
  %v4776 = vld [vmem:[%s4380 + $0x79] sm:$0xff]
  %v4777 = vld [vmem:[%s4380 + $0x81] sm:$0xff]
  %v4778 = vld [vmem:[%s4380 + $0x91] sm:$0xff]
  %v4779 = vld [vmem:[%s4380 + $0x99] sm:$0xff]
  %v4780 = vld [vmem:[%s4380 + $0xa9] sm:$0xff]
  %v4781 = vld [vmem:[%s4380 + $0xb1] sm:$0xff]
  %v4782 = vld [vmem:[%s4380 + $0xc1] sm:$0xff]
  %v4783 = vld [vmem:[%s4380 + $0xc9] sm:$0xff]
  %v4784 = vld [vmem:[%s4380 + $0xd9] sm:$0xff]
  %v4785 = vld [vmem:[%s4380 + $0xe1] sm:$0xff]
  %v4786 = vld [vmem:[%s4380 + $0xf1] sm:$0xff]
  %v4787 = vld [vmem:[%s4380 + $0xf9] sm:$0xff]
  %v4788 = vld [vmem:[%s4380 + $0x109] sm:$0xff]
  %v4789 = vld [vmem:[%s4380 + $0x111] sm:$0xff]
  %v4790 = vld [vmem:[%s4380 + $0x121] sm:$0xff]
  %v4791 = vld [vmem:[%s4380 + $0x129] sm:$0xff]
  %v4792 = vld [vmem:[%s4380 + $0x139] sm:$0xff]
  %v4793 = vld [vmem:[%s4380 + $0x141] sm:$0xff]
  %v4794 = vld [vmem:[%s4380 + $0x151] sm:$0xff]
  %v4795 = vld [vmem:[%s4380 + $0x159] sm:$0xff]
  %v4796 = vld [vmem:[%s4380 + $0x169] sm:$0xff]
  %v4797 = vld [vmem:[%s4380 + $0x171] sm:$0xff]
  %v4798 = vld [vmem:[%s4380 + $0x1c9] sm:$0xff]
  %v4799 = vld [vmem:[%s4380 + $0x1d1] sm:$0xff]
  %v4800 = vld [vmem:[%s4380 + $0x1e1] sm:$0xff]
  %v4801 = vld [vmem:[%s4380 + $0x1e9] sm:$0xff]
  %v4802 = vld [vmem:[%s4380 + $0x1f9] sm:$0xff]
  %v4803 = vld [vmem:[%s4380 + $0x201] sm:$0xff]
  %v4804 = vld [vmem:[%s4380 + $0x211] sm:$0xff]
  %v4805 = vld [vmem:[%s4380 + $0x219] sm:$0xff]
  %v4806 = vld [vmem:[%s4380 + $0x229] sm:$0xff]
  %v4807 = vld [vmem:[%s4380 + $0x231] sm:$0xff]
  %v4808 = vld [vmem:[%s4380 + $0x241] sm:$0xff]
  %v4809 = vld [vmem:[%s4380 + $0x249] sm:$0xff]
  %v4810 = vld [vmem:[%s4380 + $0x259] sm:$0xff]
  %v4811 = vld [vmem:[%s4380 + $0x261] sm:$0xff]
  %v4812 = vld [vmem:[%s4380 + $0x271] sm:$0xff]
  %v4813 = vld [vmem:[%s4380 + $0x279] sm:$0xff]
  %v4814 = vld [vmem:[%s4380 + $0x289] sm:$0xff]
  %v4815 = vld [vmem:[%s4380 + $0x291] sm:$0xff]
  %v4816 = vld [vmem:[%s4380 + $0x2a1] sm:$0xff]
  %v4817 = vld [vmem:[%s4380 + $0x2a9] sm:$0xff]
  %v4818 = vld [vmem:[%s4380 + $0x2b9] sm:$0xff]
  %v4819 = vld [vmem:[%s4380 + $0x2c1] sm:$0xff]
  %v4820 = vld [vmem:[%s4380 + $0x2d1] sm:$0xff]
  %v4821 = vld [vmem:[%s4380 + $0x2d9] sm:$0xff]
  %v4822 = vld [vmem:[%s4380 + $0x2e9] sm:$0xff]
  %v4823 = vld [vmem:[%s4380 + $0x2f1] sm:$0xff]
  %v4824 = vld [vmem:[%s4380 + $0x301] sm:$0xff]
  %v4825 = vld [vmem:[%s4380 + $0x309] sm:$0xff]
  %v4826 = vld [vmem:[%s4380 + $0x319] sm:$0xff]
  %v4827 = vld [vmem:[%s4380 + $0x321] sm:$0xff]
  %v4828 = vld [vmem:[%s4380 + $0x331] sm:$0xff]
  %v4829 = vld [vmem:[%s4380 + $0x339] sm:$0xff]
  %4894 = vrot.lane.b32.xlu0 %v4766, 104
  %v4895 = vpop.permute.xlu0 %4894
  %4896 = vrot.lane.b32.xlu0 %v4767, 104
  %v4897 = vpop.permute.xlu0 %4896
  %4898 = vrot.lane.b32.xlu0 %v4768, 104
  %v4899 = vpop.permute.xlu0 %4898
  %4900 = vrot.lane.b32.xlu0 %v4769, 104
  %v4901 = vpop.permute.xlu0 %4900
  %4902 = vrot.lane.b32.xlu0 %v4770, 104
  %v4903 = vpop.permute.xlu0 %4902
  %4904 = vrot.lane.b32.xlu0 %v4771, 104
  %v4905 = vpop.permute.xlu0 %4904
  %4906 = vrot.lane.b32.xlu0 %v4772, 104
  %v4907 = vpop.permute.xlu0 %4906
  %4908 = vrot.lane.b32.xlu0 %v4773, 104
  %v4909 = vpop.permute.xlu0 %4908
  %4910 = vrot.lane.b32.xlu0 %v4774, 104
  %v4911 = vpop.permute.xlu0 %4910
  %4912 = vrot.lane.b32.xlu0 %v4775, 104
  %v4913 = vpop.permute.xlu0 %4912
  %4914 = vrot.lane.b32.xlu0 %v4776, 104
  %v4915 = vpop.permute.xlu0 %4914
  %4916 = vrot.lane.b32.xlu0 %v4777, 104
  %v4917 = vpop.permute.xlu0 %4916
  %4918 = vrot.lane.b32.xlu0 %v4778, 104
  %v4919 = vpop.permute.xlu0 %4918
  %4920 = vrot.lane.b32.xlu0 %v4779, 104
  %v4921 = vpop.permute.xlu0 %4920
  %4922 = vrot.lane.b32.xlu0 %v4780, 104
  %v4923 = vpop.permute.xlu0 %4922
  %4924 = vrot.lane.b32.xlu0 %v4781, 104
  %v4925 = vpop.permute.xlu0 %4924
  %4926 = vrot.lane.b32.xlu0 %v4782, 104
  %v4927 = vpop.permute.xlu0 %4926
  %4928 = vrot.lane.b32.xlu0 %v4783, 104
  %v4929 = vpop.permute.xlu0 %4928
  %4930 = vrot.lane.b32.xlu0 %v4784, 104
  %v4931 = vpop.permute.xlu0 %4930
  %4932 = vrot.lane.b32.xlu0 %v4785, 104
  %v4933 = vpop.permute.xlu0 %4932
  %4934 = vrot.lane.b32.xlu0 %v4786, 104
  %v4935 = vpop.permute.xlu0 %4934
  %4936 = vrot.lane.b32.xlu0 %v4787, 104
  %v4937 = vpop.permute.xlu0 %4936
  %4938 = vrot.lane.b32.xlu0 %v4788, 104
  %v4939 = vpop.permute.xlu0 %4938
  %4940 = vrot.lane.b32.xlu0 %v4789, 104
  %v4941 = vpop.permute.xlu0 %4940
  %4942 = vrot.lane.b32.xlu0 %v4790, 104
  %v4943 = vpop.permute.xlu0 %4942
  %4944 = vrot.lane.b32.xlu0 %v4791, 104
  %v4945 = vpop.permute.xlu0 %4944
  %4946 = vrot.lane.b32.xlu0 %v4792, 104
  %v4947 = vpop.permute.xlu0 %4946
  %4948 = vrot.lane.b32.xlu0 %v4793, 104
  %v4949 = vpop.permute.xlu0 %4948
  %4950 = vrot.lane.b32.xlu0 %v4794, 104
  %v4951 = vpop.permute.xlu0 %4950
  %4952 = vrot.lane.b32.xlu0 %v4795, 104
  %v4953 = vpop.permute.xlu0 %4952
  %4954 = vrot.lane.b32.xlu0 %v4796, 104
  %v4955 = vpop.permute.xlu0 %4954
  %4956 = vrot.lane.b32.xlu0 %v4797, 104
  %v4957 = vpop.permute.xlu0 %4956
  %4958 = vrot.lane.b32.xlu0 %v4798, 104
  %v4959 = vpop.permute.xlu0 %4958
  %4960 = vrot.lane.b32.xlu0 %v4799, 104
  %v4961 = vpop.permute.xlu0 %4960
  %4962 = vrot.lane.b32.xlu0 %v4800, 104
  %v4963 = vpop.permute.xlu0 %4962
  %4964 = vrot.lane.b32.xlu0 %v4801, 104
  %v4965 = vpop.permute.xlu0 %4964
  %4966 = vrot.lane.b32.xlu0 %v4802, 104
  %v4967 = vpop.permute.xlu0 %4966
  %4968 = vrot.lane.b32.xlu0 %v4803, 104
  %v4969 = vpop.permute.xlu0 %4968
  %4970 = vrot.lane.b32.xlu0 %v4804, 104
  %v4971 = vpop.permute.xlu0 %4970
  %4972 = vrot.lane.b32.xlu0 %v4805, 104
  %v4973 = vpop.permute.xlu0 %4972
  %4974 = vrot.lane.b32.xlu0 %v4806, 104
  %v4975 = vpop.permute.xlu0 %4974
  %4976 = vrot.lane.b32.xlu0 %v4807, 104
  %v4977 = vpop.permute.xlu0 %4976
  %4978 = vrot.lane.b32.xlu0 %v4808, 104
  %v4979 = vpop.permute.xlu0 %4978
  %4980 = vrot.lane.b32.xlu0 %v4809, 104
  %v4981 = vpop.permute.xlu0 %4980
  %4982 = vrot.lane.b32.xlu0 %v4810, 104
  %v4983 = vpop.permute.xlu0 %4982
  %4984 = vrot.lane.b32.xlu0 %v4811, 104
  %v4985 = vpop.permute.xlu0 %4984
  %4986 = vrot.lane.b32.xlu0 %v4812, 104
  %v4987 = vpop.permute.xlu0 %4986
  %4988 = vrot.lane.b32.xlu0 %v4813, 104
  %v4989 = vpop.permute.xlu0 %4988
  %4990 = vrot.lane.b32.xlu0 %v4814, 104
  %v4991 = vpop.permute.xlu0 %4990
  %4992 = vrot.lane.b32.xlu0 %v4815, 104
  %v4993 = vpop.permute.xlu0 %4992
  %4994 = vrot.lane.b32.xlu0 %v4816, 104
  %v4995 = vpop.permute.xlu0 %4994
  %4996 = vrot.lane.b32.xlu0 %v4817, 104
  %v4997 = vpop.permute.xlu0 %4996
  %4998 = vrot.lane.b32.xlu0 %v4818, 104
  %v4999 = vpop.permute.xlu0 %4998
  %5000 = vrot.lane.b32.xlu0 %v4819, 104
  %v5001 = vpop.permute.xlu0 %5000
  %5002 = vrot.lane.b32.xlu0 %v4820, 104
  %v5003 = vpop.permute.xlu0 %5002
  %5004 = vrot.lane.b32.xlu0 %v4821, 104
  %v5005 = vpop.permute.xlu0 %5004
  %5006 = vrot.lane.b32.xlu0 %v4822, 104
  %v5007 = vpop.permute.xlu0 %5006
  %5008 = vrot.lane.b32.xlu0 %v4823, 104
  %v5009 = vpop.permute.xlu0 %5008
  %5010 = vrot.lane.b32.xlu0 %v4824, 104
  %v5011 = vpop.permute.xlu0 %5010
  %5012 = vrot.lane.b32.xlu0 %v4825, 104
  %v5013 = vpop.permute.xlu0 %5012
  %5014 = vrot.lane.b32.xlu0 %v4826, 104
  %v5015 = vpop.permute.xlu0 %5014
  %5016 = vrot.lane.b32.xlu0 %v4827, 104
  %v5017 = vpop.permute.xlu0 %5016
  %5018 = vrot.lane.b32.xlu0 %v4828, 104
  %v5019 = vpop.permute.xlu0 %5018
  %5020 = vrot.lane.b32.xlu0 %v4829, 104
  %v5021 = vpop.permute.xlu0 %5020
  %vm5086 = vcmask 917312
  %5087 = vst.msk [vmem:[#allocation2] sm:$0xff] %vm5086, %v4895
  %5088 = vst.msk [vmem:[#allocation2 + $0x8] sm:$0xff] %vm5086, %v4897
  %5089 = vst.msk [vmem:[#allocation2 + $0x10] sm:$0xff] %vm5086, %v4899
  %5090 = vst.msk [vmem:[#allocation2 + $0x18] sm:$0xff] %vm5086, %v4901
  %5091 = vst.msk [vmem:[#allocation2 + $0x20] sm:$0xff] %vm5086, %v4903
  %5092 = vst.msk [vmem:[#allocation2 + $0x28] sm:$0xff] %vm5086, %v4905
  %5093 = vst.msk [vmem:[#allocation2 + $0x30] sm:$0xff] %vm5086, %v4907
  %5094 = vst.msk [vmem:[#allocation2 + $0x38] sm:$0xff] %vm5086, %v4909
  %5095 = vst.msk [vmem:[#allocation2 + $0x40] sm:$0xff] %vm5086, %v4911
  %5096 = vst.msk [vmem:[#allocation2 + $0x48] sm:$0xff] %vm5086, %v4913
  %5097 = vst.msk [vmem:[#allocation2 + $0x50] sm:$0xff] %vm5086, %v4915
  %5098 = vst.msk [vmem:[#allocation2 + $0x58] sm:$0xff] %vm5086, %v4917
  %5099 = vst.msk [vmem:[#allocation2 + $0x60] sm:$0xff] %vm5086, %v4919
  %5100 = vst.msk [vmem:[#allocation2 + $0x68] sm:$0xff] %vm5086, %v4921
  %5101 = vst.msk [vmem:[#allocation2 + $0x70] sm:$0xff] %vm5086, %v4923
  %5102 = vst.msk [vmem:[#allocation2 + $0x78] sm:$0xff] %vm5086, %v4925
  %5103 = vst.msk [vmem:[#allocation2 + $0x80] sm:$0xff] %vm5086, %v4927
  %5104 = vst.msk [vmem:[#allocation2 + $0x88] sm:$0xff] %vm5086, %v4929
  %5105 = vst.msk [vmem:[#allocation2 + $0x90] sm:$0xff] %vm5086, %v4931
  %5106 = vst.msk [vmem:[#allocation2 + $0x98] sm:$0xff] %vm5086, %v4933
  %5107 = vst.msk [vmem:[#allocation2 + $0xa0] sm:$0xff] %vm5086, %v4935
  %5108 = vst.msk [vmem:[#allocation2 + $0xa8] sm:$0xff] %vm5086, %v4937
  %5109 = vst.msk [vmem:[#allocation2 + $0xb0] sm:$0xff] %vm5086, %v4939
  %5110 = vst.msk [vmem:[#allocation2 + $0xb8] sm:$0xff] %vm5086, %v4941
  %5111 = vst.msk [vmem:[#allocation2 + $0xc0] sm:$0xff] %vm5086, %v4943
  %5112 = vst.msk [vmem:[#allocation2 + $0xc8] sm:$0xff] %vm5086, %v4945
  %5113 = vst.msk [vmem:[#allocation2 + $0xd0] sm:$0xff] %vm5086, %v4947
  %5114 = vst.msk [vmem:[#allocation2 + $0xd8] sm:$0xff] %vm5086, %v4949
  %5115 = vst.msk [vmem:[#allocation2 + $0xe0] sm:$0xff] %vm5086, %v4951
  %5116 = vst.msk [vmem:[#allocation2 + $0xe8] sm:$0xff] %vm5086, %v4953
  %5117 = vst.msk [vmem:[#allocation2 + $0xf0] sm:$0xff] %vm5086, %v4955
  %5118 = vst.msk [vmem:[#allocation2 + $0xf8] sm:$0xff] %vm5086, %v4957
  %5119 = vst.msk [vmem:[#allocation2 + $0x100] sm:$0xff] %vm5086, %v4959
  %5120 = vst.msk [vmem:[#allocation2 + $0x108] sm:$0xff] %vm5086, %v4961
  %5121 = vst.msk [vmem:[#allocation2 + $0x110] sm:$0xff] %vm5086, %v4963
  %5122 = vst.msk [vmem:[#allocation2 + $0x118] sm:$0xff] %vm5086, %v4965
  %5123 = vst.msk [vmem:[#allocation2 + $0x120] sm:$0xff] %vm5086, %v4967
  %5124 = vst.msk [vmem:[#allocation2 + $0x128] sm:$0xff] %vm5086, %v4969
  %5125 = vst.msk [vmem:[#allocation2 + $0x130] sm:$0xff] %vm5086, %v4971
  %5126 = vst.msk [vmem:[#allocation2 + $0x138] sm:$0xff] %vm5086, %v4973
  %5127 = vst.msk [vmem:[#allocation2 + $0x140] sm:$0xff] %vm5086, %v4975
  %5128 = vst.msk [vmem:[#allocation2 + $0x148] sm:$0xff] %vm5086, %v4977
  %5129 = vst.msk [vmem:[#allocation2 + $0x150] sm:$0xff] %vm5086, %v4979
  %5130 = vst.msk [vmem:[#allocation2 + $0x158] sm:$0xff] %vm5086, %v4981
  %5131 = vst.msk [vmem:[#allocation2 + $0x160] sm:$0xff] %vm5086, %v4983
  %5132 = vst.msk [vmem:[#allocation2 + $0x168] sm:$0xff] %vm5086, %v4985
  %5133 = vst.msk [vmem:[#allocation2 + $0x170] sm:$0xff] %vm5086, %v4987
  %5134 = vst.msk [vmem:[#allocation2 + $0x178] sm:$0xff] %vm5086, %v4989
  %5135 = vst.msk [vmem:[#allocation2 + $0x180] sm:$0xff] %vm5086, %v4991
  %5136 = vst.msk [vmem:[#allocation2 + $0x188] sm:$0xff] %vm5086, %v4993
  %5137 = vst.msk [vmem:[#allocation2 + $0x190] sm:$0xff] %vm5086, %v4995
  %5138 = vst.msk [vmem:[#allocation2 + $0x198] sm:$0xff] %vm5086, %v4997
  %5139 = vst.msk [vmem:[#allocation2 + $0x1a0] sm:$0xff] %vm5086, %v4999
  %5140 = vst.msk [vmem:[#allocation2 + $0x1a8] sm:$0xff] %vm5086, %v5001
  %5141 = vst.msk [vmem:[#allocation2 + $0x1b0] sm:$0xff] %vm5086, %v5003
  %5142 = vst.msk [vmem:[#allocation2 + $0x1b8] sm:$0xff] %vm5086, %v5005
  %5143 = vst.msk [vmem:[#allocation2 + $0x1c0] sm:$0xff] %vm5086, %v5007
  %5144 = vst.msk [vmem:[#allocation2 + $0x1c8] sm:$0xff] %vm5086, %v5009
  %5145 = vst.msk [vmem:[#allocation2 + $0x1d0] sm:$0xff] %vm5086, %v5011
  %5146 = vst.msk [vmem:[#allocation2 + $0x1d8] sm:$0xff] %vm5086, %v5013
  %5147 = vst.msk [vmem:[#allocation2 + $0x1e0] sm:$0xff] %vm5086, %v5015
  %5148 = vst.msk [vmem:[#allocation2 + $0x1e8] sm:$0xff] %vm5086, %v5017
  %5149 = vst.msk [vmem:[#allocation2 + $0x1f0] sm:$0xff] %vm5086, %v5019
  %5150 = vst.msk [vmem:[#allocation2 + $0x1f8] sm:$0xff] %vm5086, %v5021
  %v5151 = vld [vmem:[%s4380 + $0x2] sm:$0xff]
  %v5152 = vld [vmem:[%s4380 + $0xa] sm:$0xff]
  %v5153 = vld [vmem:[%s4380 + $0x1a] sm:$0xff]
  %v5154 = vld [vmem:[%s4380 + $0x22] sm:$0xff]
  %v5155 = vld [vmem:[%s4380 + $0x32] sm:$0xff]
  %v5156 = vld [vmem:[%s4380 + $0x3a] sm:$0xff]
  %v5157 = vld [vmem:[%s4380 + $0x4a] sm:$0xff]
  %v5158 = vld [vmem:[%s4380 + $0x52] sm:$0xff]
  %v5159 = vld [vmem:[%s4380 + $0x62] sm:$0xff]
  %v5160 = vld [vmem:[%s4380 + $0x6a] sm:$0xff]
  %v5161 = vld [vmem:[%s4380 + $0x7a] sm:$0xff]
  %v5162 = vld [vmem:[%s4380 + $0x82] sm:$0xff]
  %v5163 = vld [vmem:[%s4380 + $0x92] sm:$0xff]
  %v5164 = vld [vmem:[%s4380 + $0x9a] sm:$0xff]
  %v5165 = vld [vmem:[%s4380 + $0xaa] sm:$0xff]
  %v5166 = vld [vmem:[%s4380 + $0xb2] sm:$0xff]
  %v5167 = vld [vmem:[%s4380 + $0xc2] sm:$0xff]
  %v5168 = vld [vmem:[%s4380 + $0xca] sm:$0xff]
  %v5169 = vld [vmem:[%s4380 + $0xda] sm:$0xff]
  %v5170 = vld [vmem:[%s4380 + $0xe2] sm:$0xff]
  %v5171 = vld [vmem:[%s4380 + $0xf2] sm:$0xff]
  %v5172 = vld [vmem:[%s4380 + $0xfa] sm:$0xff]
  %v5173 = vld [vmem:[%s4380 + $0x10a] sm:$0xff]
  %v5174 = vld [vmem:[%s4380 + $0x112] sm:$0xff]
  %v5175 = vld [vmem:[%s4380 + $0x122] sm:$0xff]
  %v5176 = vld [vmem:[%s4380 + $0x12a] sm:$0xff]
  %v5177 = vld [vmem:[%s4380 + $0x13a] sm:$0xff]
  %v5178 = vld [vmem:[%s4380 + $0x142] sm:$0xff]
  %v5179 = vld [vmem:[%s4380 + $0x152] sm:$0xff]
  %v5180 = vld [vmem:[%s4380 + $0x15a] sm:$0xff]
  %v5181 = vld [vmem:[%s4380 + $0x16a] sm:$0xff]
  %v5182 = vld [vmem:[%s4380 + $0x172] sm:$0xff]
  %v5183 = vld [vmem:[%s4380 + $0x1ca] sm:$0xff]
  %v5184 = vld [vmem:[%s4380 + $0x1d2] sm:$0xff]
  %v5185 = vld [vmem:[%s4380 + $0x1e2] sm:$0xff]
  %v5186 = vld [vmem:[%s4380 + $0x1ea] sm:$0xff]
  %v5187 = vld [vmem:[%s4380 + $0x1fa] sm:$0xff]
  %v5188 = vld [vmem:[%s4380 + $0x202] sm:$0xff]
  %v5189 = vld [vmem:[%s4380 + $0x212] sm:$0xff]
  %v5190 = vld [vmem:[%s4380 + $0x21a] sm:$0xff]
  %v5191 = vld [vmem:[%s4380 + $0x22a] sm:$0xff]
  %v5192 = vld [vmem:[%s4380 + $0x232] sm:$0xff]
  %v5193 = vld [vmem:[%s4380 + $0x242] sm:$0xff]
  %v5194 = vld [vmem:[%s4380 + $0x24a] sm:$0xff]
  %v5195 = vld [vmem:[%s4380 + $0x25a] sm:$0xff]
  %v5196 = vld [vmem:[%s4380 + $0x262] sm:$0xff]
  %v5197 = vld [vmem:[%s4380 + $0x272] sm:$0xff]
  %v5198 = vld [vmem:[%s4380 + $0x27a] sm:$0xff]
  %v5199 = vld [vmem:[%s4380 + $0x28a] sm:$0xff]
  %v5200 = vld [vmem:[%s4380 + $0x292] sm:$0xff]
  %v5201 = vld [vmem:[%s4380 + $0x2a2] sm:$0xff]
  %v5202 = vld [vmem:[%s4380 + $0x2aa] sm:$0xff]
  %v5203 = vld [vmem:[%s4380 + $0x2ba] sm:$0xff]
  %v5204 = vld [vmem:[%s4380 + $0x2c2] sm:$0xff]
  %v5205 = vld [vmem:[%s4380 + $0x2d2] sm:$0xff]
  %v5206 = vld [vmem:[%s4380 + $0x2da] sm:$0xff]
  %v5207 = vld [vmem:[%s4380 + $0x2ea] sm:$0xff]
  %v5208 = vld [vmem:[%s4380 + $0x2f2] sm:$0xff]
  %v5209 = vld [vmem:[%s4380 + $0x302] sm:$0xff]
  %v5210 = vld [vmem:[%s4380 + $0x30a] sm:$0xff]
  %v5211 = vld [vmem:[%s4380 + $0x31a] sm:$0xff]
  %v5212 = vld [vmem:[%s4380 + $0x322] sm:$0xff]
  %v5213 = vld [vmem:[%s4380 + $0x332] sm:$0xff]
  %v5214 = vld [vmem:[%s4380 + $0x33a] sm:$0xff]
  %5279 = vrot.lane.b32.xlu0 %v5151, 112
  %v5280 = vpop.permute.xlu0 %5279
  %5281 = vrot.lane.b32.xlu0 %v5152, 112
  %v5282 = vpop.permute.xlu0 %5281
  %5283 = vrot.lane.b32.xlu0 %v5153, 112
  %v5284 = vpop.permute.xlu0 %5283
  %5285 = vrot.lane.b32.xlu0 %v5154, 112
  %v5286 = vpop.permute.xlu0 %5285
  %5287 = vrot.lane.b32.xlu0 %v5155, 112
  %v5288 = vpop.permute.xlu0 %5287
  %5289 = vrot.lane.b32.xlu0 %v5156, 112
  %v5290 = vpop.permute.xlu0 %5289
  %5291 = vrot.lane.b32.xlu0 %v5157, 112
  %v5292 = vpop.permute.xlu0 %5291
  %5293 = vrot.lane.b32.xlu0 %v5158, 112
  %v5294 = vpop.permute.xlu0 %5293
  %5295 = vrot.lane.b32.xlu0 %v5159, 112
  %v5296 = vpop.permute.xlu0 %5295
  %5297 = vrot.lane.b32.xlu0 %v5160, 112
  %v5298 = vpop.permute.xlu0 %5297
  %5299 = vrot.lane.b32.xlu0 %v5161, 112
  %v5300 = vpop.permute.xlu0 %5299
  %5301 = vrot.lane.b32.xlu0 %v5162, 112
  %v5302 = vpop.permute.xlu0 %5301
  %5303 = vrot.lane.b32.xlu0 %v5163, 112
  %v5304 = vpop.permute.xlu0 %5303
  %5305 = vrot.lane.b32.xlu0 %v5164, 112
  %v5306 = vpop.permute.xlu0 %5305
  %5307 = vrot.lane.b32.xlu0 %v5165, 112
  %v5308 = vpop.permute.xlu0 %5307
  %5309 = vrot.lane.b32.xlu0 %v5166, 112
  %v5310 = vpop.permute.xlu0 %5309
  %5311 = vrot.lane.b32.xlu0 %v5167, 112
  %v5312 = vpop.permute.xlu0 %5311
  %5313 = vrot.lane.b32.xlu0 %v5168, 112
  %v5314 = vpop.permute.xlu0 %5313
  %5315 = vrot.lane.b32.xlu0 %v5169, 112
  %v5316 = vpop.permute.xlu0 %5315
  %5317 = vrot.lane.b32.xlu0 %v5170, 112
  %v5318 = vpop.permute.xlu0 %5317
  %5319 = vrot.lane.b32.xlu0 %v5171, 112
  %v5320 = vpop.permute.xlu0 %5319
  %5321 = vrot.lane.b32.xlu0 %v5172, 112
  %v5322 = vpop.permute.xlu0 %5321
  %5323 = vrot.lane.b32.xlu0 %v5173, 112
  %v5324 = vpop.permute.xlu0 %5323
  %5325 = vrot.lane.b32.xlu0 %v5174, 112
  %v5326 = vpop.permute.xlu0 %5325
  %5327 = vrot.lane.b32.xlu0 %v5175, 112
  %v5328 = vpop.permute.xlu0 %5327
  %5329 = vrot.lane.b32.xlu0 %v5176, 112
  %v5330 = vpop.permute.xlu0 %5329
  %5331 = vrot.lane.b32.xlu0 %v5177, 112
  %v5332 = vpop.permute.xlu0 %5331
  %5333 = vrot.lane.b32.xlu0 %v5178, 112
  %v5334 = vpop.permute.xlu0 %5333
  %5335 = vrot.lane.b32.xlu0 %v5179, 112
  %v5336 = vpop.permute.xlu0 %5335
  %5337 = vrot.lane.b32.xlu0 %v5180, 112
  %v5338 = vpop.permute.xlu0 %5337
  %5339 = vrot.lane.b32.xlu0 %v5181, 112
  %v5340 = vpop.permute.xlu0 %5339
  %5341 = vrot.lane.b32.xlu0 %v5182, 112
  %v5342 = vpop.permute.xlu0 %5341
  %5343 = vrot.lane.b32.xlu0 %v5183, 112
  %v5344 = vpop.permute.xlu0 %5343
  %5345 = vrot.lane.b32.xlu0 %v5184, 112
  %v5346 = vpop.permute.xlu0 %5345
  %5347 = vrot.lane.b32.xlu0 %v5185, 112
  %v5348 = vpop.permute.xlu0 %5347
  %5349 = vrot.lane.b32.xlu0 %v5186, 112
  %v5350 = vpop.permute.xlu0 %5349
  %5351 = vrot.lane.b32.xlu0 %v5187, 112
  %v5352 = vpop.permute.xlu0 %5351
  %5353 = vrot.lane.b32.xlu0 %v5188, 112
  %v5354 = vpop.permute.xlu0 %5353
  %5355 = vrot.lane.b32.xlu0 %v5189, 112
  %v5356 = vpop.permute.xlu0 %5355
  %5357 = vrot.lane.b32.xlu0 %v5190, 112
  %v5358 = vpop.permute.xlu0 %5357
  %5359 = vrot.lane.b32.xlu0 %v5191, 112
  %v5360 = vpop.permute.xlu0 %5359
  %5361 = vrot.lane.b32.xlu0 %v5192, 112
  %v5362 = vpop.permute.xlu0 %5361
  %5363 = vrot.lane.b32.xlu0 %v5193, 112
  %v5364 = vpop.permute.xlu0 %5363
  %5365 = vrot.lane.b32.xlu0 %v5194, 112
  %v5366 = vpop.permute.xlu0 %5365
  %5367 = vrot.lane.b32.xlu0 %v5195, 112
  %v5368 = vpop.permute.xlu0 %5367
  %5369 = vrot.lane.b32.xlu0 %v5196, 112
  %v5370 = vpop.permute.xlu0 %5369
  %5371 = vrot.lane.b32.xlu0 %v5197, 112
  %v5372 = vpop.permute.xlu0 %5371
  %5373 = vrot.lane.b32.xlu0 %v5198, 112
  %v5374 = vpop.permute.xlu0 %5373
  %5375 = vrot.lane.b32.xlu0 %v5199, 112
  %v5376 = vpop.permute.xlu0 %5375
  %5377 = vrot.lane.b32.xlu0 %v5200, 112
  %v5378 = vpop.permute.xlu0 %5377
  %5379 = vrot.lane.b32.xlu0 %v5201, 112
  %v5380 = vpop.permute.xlu0 %5379
  %5381 = vrot.lane.b32.xlu0 %v5202, 112
  %v5382 = vpop.permute.xlu0 %5381
  %5383 = vrot.lane.b32.xlu0 %v5203, 112
  %v5384 = vpop.permute.xlu0 %5383
  %5385 = vrot.lane.b32.xlu0 %v5204, 112
  %v5386 = vpop.permute.xlu0 %5385
  %5387 = vrot.lane.b32.xlu0 %v5205, 112
  %v5388 = vpop.permute.xlu0 %5387
  %5389 = vrot.lane.b32.xlu0 %v5206, 112
  %v5390 = vpop.permute.xlu0 %5389
  %5391 = vrot.lane.b32.xlu0 %v5207, 112
  %v5392 = vpop.permute.xlu0 %5391
  %5393 = vrot.lane.b32.xlu0 %v5208, 112
  %v5394 = vpop.permute.xlu0 %5393
  %5395 = vrot.lane.b32.xlu0 %v5209, 112
  %v5396 = vpop.permute.xlu0 %5395
  %5397 = vrot.lane.b32.xlu0 %v5210, 112
  %v5398 = vpop.permute.xlu0 %5397
  %5399 = vrot.lane.b32.xlu0 %v5211, 112
  %v5400 = vpop.permute.xlu0 %5399
  %5401 = vrot.lane.b32.xlu0 %v5212, 112
  %v5402 = vpop.permute.xlu0 %5401
  %5403 = vrot.lane.b32.xlu0 %v5213, 112
  %v5404 = vpop.permute.xlu0 %5403
  %5405 = vrot.lane.b32.xlu0 %v5214, 112
  %v5406 = vpop.permute.xlu0 %5405
  %vm5471 = vcmask 982912
  %5472 = vst.msk [vmem:[#allocation2] sm:$0xff] %vm5471, %v5280
  %5473 = vst.msk [vmem:[#allocation2 + $0x8] sm:$0xff] %vm5471, %v5282
  %5474 = vst.msk [vmem:[#allocation2 + $0x10] sm:$0xff] %vm5471, %v5284
  %5475 = vst.msk [vmem:[#allocation2 + $0x18] sm:$0xff] %vm5471, %v5286
  %5476 = vst.msk [vmem:[#allocation2 + $0x20] sm:$0xff] %vm5471, %v5288
  %5477 = vst.msk [vmem:[#allocation2 + $0x28] sm:$0xff] %vm5471, %v5290
  %5478 = vst.msk [vmem:[#allocation2 + $0x30] sm:$0xff] %vm5471, %v5292
  %5479 = vst.msk [vmem:[#allocation2 + $0x38] sm:$0xff] %vm5471, %v5294
  %5480 = vst.msk [vmem:[#allocation2 + $0x40] sm:$0xff] %vm5471, %v5296
  %5481 = vst.msk [vmem:[#allocation2 + $0x48] sm:$0xff] %vm5471, %v5298
  %5482 = vst.msk [vmem:[#allocation2 + $0x50] sm:$0xff] %vm5471, %v5300
  %5483 = vst.msk [vmem:[#allocation2 + $0x58] sm:$0xff] %vm5471, %v5302
  %5484 = vst.msk [vmem:[#allocation2 + $0x60] sm:$0xff] %vm5471, %v5304
  %5485 = vst.msk [vmem:[#allocation2 + $0x68] sm:$0xff] %vm5471, %v5306
  %5486 = vst.msk [vmem:[#allocation2 + $0x70] sm:$0xff] %vm5471, %v5308
  %5487 = vst.msk [vmem:[#allocation2 + $0x78] sm:$0xff] %vm5471, %v5310
  %5488 = vst.msk [vmem:[#allocation2 + $0x80] sm:$0xff] %vm5471, %v5312
  %5489 = vst.msk [vmem:[#allocation2 + $0x88] sm:$0xff] %vm5471, %v5314
  %5490 = vst.msk [vmem:[#allocation2 + $0x90] sm:$0xff] %vm5471, %v5316
  %5491 = vst.msk [vmem:[#allocation2 + $0x98] sm:$0xff] %vm5471, %v5318
  %5492 = vst.msk [vmem:[#allocation2 + $0xa0] sm:$0xff] %vm5471, %v5320
  %5493 = vst.msk [vmem:[#allocation2 + $0xa8] sm:$0xff] %vm5471, %v5322
  %5494 = vst.msk [vmem:[#allocation2 + $0xb0] sm:$0xff] %vm5471, %v5324
  %5495 = vst.msk [vmem:[#allocation2 + $0xb8] sm:$0xff] %vm5471, %v5326
  %5496 = vst.msk [vmem:[#allocation2 + $0xc0] sm:$0xff] %vm5471, %v5328
  %5497 = vst.msk [vmem:[#allocation2 + $0xc8] sm:$0xff] %vm5471, %v5330
  %5498 = vst.msk [vmem:[#allocation2 + $0xd0] sm:$0xff] %vm5471, %v5332
  %5499 = vst.msk [vmem:[#allocation2 + $0xd8] sm:$0xff] %vm5471, %v5334
  %5500 = vst.msk [vmem:[#allocation2 + $0xe0] sm:$0xff] %vm5471, %v5336
  %5501 = vst.msk [vmem:[#allocation2 + $0xe8] sm:$0xff] %vm5471, %v5338
  %5502 = vst.msk [vmem:[#allocation2 + $0xf0] sm:$0xff] %vm5471, %v5340
  %5503 = vst.msk [vmem:[#allocation2 + $0xf8] sm:$0xff] %vm5471, %v5342
  %5504 = vst.msk [vmem:[#allocation2 + $0x100] sm:$0xff] %vm5471, %v5344
  %5505 = vst.msk [vmem:[#allocation2 + $0x108] sm:$0xff] %vm5471, %v5346
  %5506 = vst.msk [vmem:[#allocation2 + $0x110] sm:$0xff] %vm5471, %v5348
  %5507 = vst.msk [vmem:[#allocation2 + $0x118] sm:$0xff] %vm5471, %v5350
  %5508 = vst.msk [vmem:[#allocation2 + $0x120] sm:$0xff] %vm5471, %v5352
  %5509 = vst.msk [vmem:[#allocation2 + $0x128] sm:$0xff] %vm5471, %v5354
  %5510 = vst.msk [vmem:[#allocation2 + $0x130] sm:$0xff] %vm5471, %v5356
  %5511 = vst.msk [vmem:[#allocation2 + $0x138] sm:$0xff] %vm5471, %v5358
  %5512 = vst.msk [vmem:[#allocation2 + $0x140] sm:$0xff] %vm5471, %v5360
  %5513 = vst.msk [vmem:[#allocation2 + $0x148] sm:$0xff] %vm5471, %v5362
  %5514 = vst.msk [vmem:[#allocation2 + $0x150] sm:$0xff] %vm5471, %v5364
  %5515 = vst.msk [vmem:[#allocation2 + $0x158] sm:$0xff] %vm5471, %v5366
  %5516 = vst.msk [vmem:[#allocation2 + $0x160] sm:$0xff] %vm5471, %v5368
  %5517 = vst.msk [vmem:[#allocation2 + $0x168] sm:$0xff] %vm5471, %v5370
  %5518 = vst.msk [vmem:[#allocation2 + $0x170] sm:$0xff] %vm5471, %v5372
  %5519 = vst.msk [vmem:[#allocation2 + $0x178] sm:$0xff] %vm5471, %v5374
  %5520 = vst.msk [vmem:[#allocation2 + $0x180] sm:$0xff] %vm5471, %v5376
  %5521 = vst.msk [vmem:[#allocation2 + $0x188] sm:$0xff] %vm5471, %v5378
  %5522 = vst.msk [vmem:[#allocation2 + $0x190] sm:$0xff] %vm5471, %v5380
  %5523 = vst.msk [vmem:[#allocation2 + $0x198] sm:$0xff] %vm5471, %v5382
  %5524 = vst.msk [vmem:[#allocation2 + $0x1a0] sm:$0xff] %vm5471, %v5384
  %5525 = vst.msk [vmem:[#allocation2 + $0x1a8] sm:$0xff] %vm5471, %v5386
  %5526 = vst.msk [vmem:[#allocation2 + $0x1b0] sm:$0xff] %vm5471, %v5388
  %5527 = vst.msk [vmem:[#allocation2 + $0x1b8] sm:$0xff] %vm5471, %v5390
  %5528 = vst.msk [vmem:[#allocation2 + $0x1c0] sm:$0xff] %vm5471, %v5392
  %5529 = vst.msk [vmem:[#allocation2 + $0x1c8] sm:$0xff] %vm5471, %v5394
  %5530 = vst.msk [vmem:[#allocation2 + $0x1d0] sm:$0xff] %vm5471, %v5396
  %5531 = vst.msk [vmem:[#allocation2 + $0x1d8] sm:$0xff] %vm5471, %v5398
  %5532 = vst.msk [vmem:[#allocation2 + $0x1e0] sm:$0xff] %vm5471, %v5400
  %5533 = vst.msk [vmem:[#allocation2 + $0x1e8] sm:$0xff] %vm5471, %v5402
  %5534 = vst.msk [vmem:[#allocation2 + $0x1f0] sm:$0xff] %vm5471, %v5404
  %5535 = vst.msk [vmem:[#allocation2 + $0x1f8] sm:$0xff] %vm5471, %v5406
  %v5536 = vld [vmem:[%s4380 + $0x3] sm:$0xff]
  %v5537 = vld [vmem:[%s4380 + $0xb] sm:$0xff]
  %v5538 = vld [vmem:[%s4380 + $0x1b] sm:$0xff]
  %v5539 = vld [vmem:[%s4380 + $0x23] sm:$0xff]
  %v5540 = vld [vmem:[%s4380 + $0x33] sm:$0xff]
  %v5541 = vld [vmem:[%s4380 + $0x3b] sm:$0xff]
  %v5542 = vld [vmem:[%s4380 + $0x4b] sm:$0xff]
  %v5543 = vld [vmem:[%s4380 + $0x53] sm:$0xff]
  %v5544 = vld [vmem:[%s4380 + $0x63] sm:$0xff]
  %v5545 = vld [vmem:[%s4380 + $0x6b] sm:$0xff]
  %v5546 = vld [vmem:[%s4380 + $0x7b] sm:$0xff]
  %v5547 = vld [vmem:[%s4380 + $0x83] sm:$0xff]
  %v5548 = vld [vmem:[%s4380 + $0x93] sm:$0xff]
  %v5549 = vld [vmem:[%s4380 + $0x9b] sm:$0xff]
  %v5550 = vld [vmem:[%s4380 + $0xab] sm:$0xff]
  %v5551 = vld [vmem:[%s4380 + $0xb3] sm:$0xff]
  %v5552 = vld [vmem:[%s4380 + $0xc3] sm:$0xff]
  %v5553 = vld [vmem:[%s4380 + $0xcb] sm:$0xff]
  %v5554 = vld [vmem:[%s4380 + $0xdb] sm:$0xff]
  %v5555 = vld [vmem:[%s4380 + $0xe3] sm:$0xff]
  %v5556 = vld [vmem:[%s4380 + $0xf3] sm:$0xff]
  %v5557 = vld [vmem:[%s4380 + $0xfb] sm:$0xff]
  %v5558 = vld [vmem:[%s4380 + $0x10b] sm:$0xff]
  %v5559 = vld [vmem:[%s4380 + $0x113] sm:$0xff]
  %v5560 = vld [vmem:[%s4380 + $0x123] sm:$0xff]
  %v5561 = vld [vmem:[%s4380 + $0x12b] sm:$0xff]
  %v5562 = vld [vmem:[%s4380 + $0x13b] sm:$0xff]
  %v5563 = vld [vmem:[%s4380 + $0x143] sm:$0xff]
  %v5564 = vld [vmem:[%s4380 + $0x153] sm:$0xff]
  %v5565 = vld [vmem:[%s4380 + $0x15b] sm:$0xff]
  %v5566 = vld [vmem:[%s4380 + $0x16b] sm:$0xff]
  %v5567 = vld [vmem:[%s4380 + $0x173] sm:$0xff]
  %v5568 = vld [vmem:[%s4380 + $0x1cb] sm:$0xff]
  %v5569 = vld [vmem:[%s4380 + $0x1d3] sm:$0xff]
  %v5570 = vld [vmem:[%s4380 + $0x1e3] sm:$0xff]
  %v5571 = vld [vmem:[%s4380 + $0x1eb] sm:$0xff]
  %v5572 = vld [vmem:[%s4380 + $0x1fb] sm:$0xff]
  %v5573 = vld [vmem:[%s4380 + $0x203] sm:$0xff]
  %v5574 = vld [vmem:[%s4380 + $0x213] sm:$0xff]
  %v5575 = vld [vmem:[%s4380 + $0x21b] sm:$0xff]
  %v5576 = vld [vmem:[%s4380 + $0x22b] sm:$0xff]
  %v5577 = vld [vmem:[%s4380 + $0x233] sm:$0xff]
  %v5578 = vld [vmem:[%s4380 + $0x243] sm:$0xff]
  %v5579 = vld [vmem:[%s4380 + $0x24b] sm:$0xff]
  %v5580 = vld [vmem:[%s4380 + $0x25b] sm:$0xff]
  %v5581 = vld [vmem:[%s4380 + $0x263] sm:$0xff]
  %v5582 = vld [vmem:[%s4380 + $0x273] sm:$0xff]
  %v5583 = vld [vmem:[%s4380 + $0x27b] sm:$0xff]
  %v5584 = vld [vmem:[%s4380 + $0x28b] sm:$0xff]
  %v5585 = vld [vmem:[%s4380 + $0x293] sm:$0xff]
  %v5586 = vld [vmem:[%s4380 + $0x2a3] sm:$0xff]
  %v5587 = vld [vmem:[%s4380 + $0x2ab] sm:$0xff]
  %v5588 = vld [vmem:[%s4380 + $0x2bb] sm:$0xff]
  %v5589 = vld [vmem:[%s4380 + $0x2c3] sm:$0xff]
  %v5590 = vld [vmem:[%s4380 + $0x2d3] sm:$0xff]
  %v5591 = vld [vmem:[%s4380 + $0x2db] sm:$0xff]
  %v5592 = vld [vmem:[%s4380 + $0x2eb] sm:$0xff]
  %v5593 = vld [vmem:[%s4380 + $0x2f3] sm:$0xff]
  %v5594 = vld [vmem:[%s4380 + $0x303] sm:$0xff]
  %v5595 = vld [vmem:[%s4380 + $0x30b] sm:$0xff]
  %v5596 = vld [vmem:[%s4380 + $0x31b] sm:$0xff]
  %v5597 = vld [vmem:[%s4380 + $0x323] sm:$0xff]
  %v5598 = vld [vmem:[%s4380 + $0x333] sm:$0xff]
  %v5599 = vld [vmem:[%s4380 + $0x33b] sm:$0xff]
  %5664 = vrot.lane.b32.xlu0 %v5536, 120
  %v5665 = vpop.permute.xlu0 %5664
  %5666 = vrot.lane.b32.xlu0 %v5537, 120
  %v5667 = vpop.permute.xlu0 %5666
  %5668 = vrot.lane.b32.xlu0 %v5538, 120
  %v5669 = vpop.permute.xlu0 %5668
  %5670 = vrot.lane.b32.xlu0 %v5539, 120
  %v5671 = vpop.permute.xlu0 %5670
  %5672 = vrot.lane.b32.xlu0 %v5540, 120
  %v5673 = vpop.permute.xlu0 %5672
  %5674 = vrot.lane.b32.xlu0 %v5541, 120
  %v5675 = vpop.permute.xlu0 %5674
  %5676 = vrot.lane.b32.xlu0 %v5542, 120
  %v5677 = vpop.permute.xlu0 %5676
  %5678 = vrot.lane.b32.xlu0 %v5543, 120
  %v5679 = vpop.permute.xlu0 %5678
  %5680 = vrot.lane.b32.xlu0 %v5544, 120
  %v5681 = vpop.permute.xlu0 %5680
  %5682 = vrot.lane.b32.xlu0 %v5545, 120
  %v5683 = vpop.permute.xlu0 %5682
  %5684 = vrot.lane.b32.xlu0 %v5546, 120
  %v5685 = vpop.permute.xlu0 %5684
  %5686 = vrot.lane.b32.xlu0 %v5547, 120
  %v5687 = vpop.permute.xlu0 %5686
  %5688 = vrot.lane.b32.xlu0 %v5548, 120
  %v5689 = vpop.permute.xlu0 %5688
  %5690 = vrot.lane.b32.xlu0 %v5549, 120
  %v5691 = vpop.permute.xlu0 %5690
  %5692 = vrot.lane.b32.xlu0 %v5550, 120
  %v5693 = vpop.permute.xlu0 %5692
  %5694 = vrot.lane.b32.xlu0 %v5551, 120
  %v5695 = vpop.permute.xlu0 %5694
  %5696 = vrot.lane.b32.xlu0 %v5552, 120
  %v5697 = vpop.permute.xlu0 %5696
  %5698 = vrot.lane.b32.xlu0 %v5553, 120
  %v5699 = vpop.permute.xlu0 %5698
  %5700 = vrot.lane.b32.xlu0 %v5554, 120
  %v5701 = vpop.permute.xlu0 %5700
  %5702 = vrot.lane.b32.xlu0 %v5555, 120
  %v5703 = vpop.permute.xlu0 %5702
  %5704 = vrot.lane.b32.xlu0 %v5556, 120
  %v5705 = vpop.permute.xlu0 %5704
  %5706 = vrot.lane.b32.xlu0 %v5557, 120
  %v5707 = vpop.permute.xlu0 %5706
  %5708 = vrot.lane.b32.xlu0 %v5558, 120
  %v5709 = vpop.permute.xlu0 %5708
  %5710 = vrot.lane.b32.xlu0 %v5559, 120
  %v5711 = vpop.permute.xlu0 %5710
  %5712 = vrot.lane.b32.xlu0 %v5560, 120
  %v5713 = vpop.permute.xlu0 %5712
  %5714 = vrot.lane.b32.xlu0 %v5561, 120
  %v5715 = vpop.permute.xlu0 %5714
  %5716 = vrot.lane.b32.xlu0 %v5562, 120
  %v5717 = vpop.permute.xlu0 %5716
  %5718 = vrot.lane.b32.xlu0 %v5563, 120
  %v5719 = vpop.permute.xlu0 %5718
  %5720 = vrot.lane.b32.xlu0 %v5564, 120
  %v5721 = vpop.permute.xlu0 %5720
  %5722 = vrot.lane.b32.xlu0 %v5565, 120
  %v5723 = vpop.permute.xlu0 %5722
  %5724 = vrot.lane.b32.xlu0 %v5566, 120
  %v5725 = vpop.permute.xlu0 %5724
  %5726 = vrot.lane.b32.xlu0 %v5567, 120
  %v5727 = vpop.permute.xlu0 %5726
  %5728 = vrot.lane.b32.xlu0 %v5568, 120
  %v5729 = vpop.permute.xlu0 %5728
  %5730 = vrot.lane.b32.xlu0 %v5569, 120
  %v5731 = vpop.permute.xlu0 %5730
  %5732 = vrot.lane.b32.xlu0 %v5570, 120
  %v5733 = vpop.permute.xlu0 %5732
  %5734 = vrot.lane.b32.xlu0 %v5571, 120
  %v5735 = vpop.permute.xlu0 %5734
  %5736 = vrot.lane.b32.xlu0 %v5572, 120
  %v5737 = vpop.permute.xlu0 %5736
  %5738 = vrot.lane.b32.xlu0 %v5573, 120
  %v5739 = vpop.permute.xlu0 %5738
  %5740 = vrot.lane.b32.xlu0 %v5574, 120
  %v5741 = vpop.permute.xlu0 %5740
  %5742 = vrot.lane.b32.xlu0 %v5575, 120
  %v5743 = vpop.permute.xlu0 %5742
  %5744 = vrot.lane.b32.xlu0 %v5576, 120
  %v5745 = vpop.permute.xlu0 %5744
  %5746 = vrot.lane.b32.xlu0 %v5577, 120
  %v5747 = vpop.permute.xlu0 %5746
  %5748 = vrot.lane.b32.xlu0 %v5578, 120
  %v5749 = vpop.permute.xlu0 %5748
  %5750 = vrot.lane.b32.xlu0 %v5579, 120
  %v5751 = vpop.permute.xlu0 %5750
  %5752 = vrot.lane.b32.xlu0 %v5580, 120
  %v5753 = vpop.permute.xlu0 %5752
  %5754 = vrot.lane.b32.xlu0 %v5581, 120
  %v5755 = vpop.permute.xlu0 %5754
  %5756 = vrot.lane.b32.xlu0 %v5582, 120
  %v5757 = vpop.permute.xlu0 %5756
  %5758 = vrot.lane.b32.xlu0 %v5583, 120
  %v5759 = vpop.permute.xlu0 %5758
  %5760 = vrot.lane.b32.xlu0 %v5584, 120
  %v5761 = vpop.permute.xlu0 %5760
  %5762 = vrot.lane.b32.xlu0 %v5585, 120
  %v5763 = vpop.permute.xlu0 %5762
  %5764 = vrot.lane.b32.xlu0 %v5586, 120
  %v5765 = vpop.permute.xlu0 %5764
  %5766 = vrot.lane.b32.xlu0 %v5587, 120
  %v5767 = vpop.permute.xlu0 %5766
  %5768 = vrot.lane.b32.xlu0 %v5588, 120
  %v5769 = vpop.permute.xlu0 %5768
  %5770 = vrot.lane.b32.xlu0 %v5589, 120
  %v5771 = vpop.permute.xlu0 %5770
  %5772 = vrot.lane.b32.xlu0 %v5590, 120
  %v5773 = vpop.permute.xlu0 %5772
  %5774 = vrot.lane.b32.xlu0 %v5591, 120
  %v5775 = vpop.permute.xlu0 %5774
  %5776 = vrot.lane.b32.xlu0 %v5592, 120
  %v5777 = vpop.permute.xlu0 %5776
  %5778 = vrot.lane.b32.xlu0 %v5593, 120
  %v5779 = vpop.permute.xlu0 %5778
  %5780 = vrot.lane.b32.xlu0 %v5594, 120
  %v5781 = vpop.permute.xlu0 %5780
  %5782 = vrot.lane.b32.xlu0 %v5595, 120
  %v5783 = vpop.permute.xlu0 %5782
  %5784 = vrot.lane.b32.xlu0 %v5596, 120
  %v5785 = vpop.permute.xlu0 %5784
  %5786 = vrot.lane.b32.xlu0 %v5597, 120
  %v5787 = vpop.permute.xlu0 %5786
  %5788 = vrot.lane.b32.xlu0 %v5598, 120
  %v5789 = vpop.permute.xlu0 %5788
  %5790 = vrot.lane.b32.xlu0 %v5599, 120
  %v5791 = vpop.permute.xlu0 %5790
  %vm5856 = vcmask 1048512
  %5857 = vst.msk [vmem:[#allocation2] sm:$0xff] %vm5856, %v5665
  %5858 = vst.msk [vmem:[#allocation2 + $0x8] sm:$0xff] %vm5856, %v5667
  %5859 = vst.msk [vmem:[#allocation2 + $0x10] sm:$0xff] %vm5856, %v5669
  %5860 = vst.msk [vmem:[#allocation2 + $0x18] sm:$0xff] %vm5856, %v5671
  %5861 = vst.msk [vmem:[#allocation2 + $0x20] sm:$0xff] %vm5856, %v5673
  %5862 = vst.msk [vmem:[#allocation2 + $0x28] sm:$0xff] %vm5856, %v5675
  %5863 = vst.msk [vmem:[#allocation2 + $0x30] sm:$0xff] %vm5856, %v5677
  %5864 = vst.msk [vmem:[#allocation2 + $0x38] sm:$0xff] %vm5856, %v5679
  %5865 = vst.msk [vmem:[#allocation2 + $0x40] sm:$0xff] %vm5856, %v5681
  %5866 = vst.msk [vmem:[#allocation2 + $0x48] sm:$0xff] %vm5856, %v5683
  %5867 = vst.msk [vmem:[#allocation2 + $0x50] sm:$0xff] %vm5856, %v5685
  %5868 = vst.msk [vmem:[#allocation2 + $0x58] sm:$0xff] %vm5856, %v5687
  %5869 = vst.msk [vmem:[#allocation2 + $0x60] sm:$0xff] %vm5856, %v5689
  %5870 = vst.msk [vmem:[#allocation2 + $0x68] sm:$0xff] %vm5856, %v5691
  %5871 = vst.msk [vmem:[#allocation2 + $0x70] sm:$0xff] %vm5856, %v5693
  %5872 = vst.msk [vmem:[#allocation2 + $0x78] sm:$0xff] %vm5856, %v5695
  %5873 = vst.msk [vmem:[#allocation2 + $0x80] sm:$0xff] %vm5856, %v5697
  %5874 = vst.msk [vmem:[#allocation2 + $0x88] sm:$0xff] %vm5856, %v5699
  %5875 = vst.msk [vmem:[#allocation2 + $0x90] sm:$0xff] %vm5856, %v5701
  %5876 = vst.msk [vmem:[#allocation2 + $0x98] sm:$0xff] %vm5856, %v5703
  %5877 = vst.msk [vmem:[#allocation2 + $0xa0] sm:$0xff] %vm5856, %v5705
  %5878 = vst.msk [vmem:[#allocation2 + $0xa8] sm:$0xff] %vm5856, %v5707
  %5879 = vst.msk [vmem:[#allocation2 + $0xb0] sm:$0xff] %vm5856, %v5709
  %5880 = vst.msk [vmem:[#allocation2 + $0xb8] sm:$0xff] %vm5856, %v5711
  %5881 = vst.msk [vmem:[#allocation2 + $0xc0] sm:$0xff] %vm5856, %v5713
  %5882 = vst.msk [vmem:[#allocation2 + $0xc8] sm:$0xff] %vm5856, %v5715
  %5883 = vst.msk [vmem:[#allocation2 + $0xd0] sm:$0xff] %vm5856, %v5717
  %5884 = vst.msk [vmem:[#allocation2 + $0xd8] sm:$0xff] %vm5856, %v5719
  %5885 = vst.msk [vmem:[#allocation2 + $0xe0] sm:$0xff] %vm5856, %v5721
  %5886 = vst.msk [vmem:[#allocation2 + $0xe8] sm:$0xff] %vm5856, %v5723
  %5887 = vst.msk [vmem:[#allocation2 + $0xf0] sm:$0xff] %vm5856, %v5725
  %5888 = vst.msk [vmem:[#allocation2 + $0xf8] sm:$0xff] %vm5856, %v5727
  %5889 = vst.msk [vmem:[#allocation2 + $0x100] sm:$0xff] %vm5856, %v5729
  %5890 = vst.msk [vmem:[#allocation2 + $0x108] sm:$0xff] %vm5856, %v5731
  %5891 = vst.msk [vmem:[#allocation2 + $0x110] sm:$0xff] %vm5856, %v5733
  %5892 = vst.msk [vmem:[#allocation2 + $0x118] sm:$0xff] %vm5856, %v5735
  %5893 = vst.msk [vmem:[#allocation2 + $0x120] sm:$0xff] %vm5856, %v5737
  %5894 = vst.msk [vmem:[#allocation2 + $0x128] sm:$0xff] %vm5856, %v5739
  %5895 = vst.msk [vmem:[#allocation2 + $0x130] sm:$0xff] %vm5856, %v5741
  %5896 = vst.msk [vmem:[#allocation2 + $0x138] sm:$0xff] %vm5856, %v5743
  %5897 = vst.msk [vmem:[#allocation2 + $0x140] sm:$0xff] %vm5856, %v5745
  %5898 = vst.msk [vmem:[#allocation2 + $0x148] sm:$0xff] %vm5856, %v5747
  %5899 = vst.msk [vmem:[#allocation2 + $0x150] sm:$0xff] %vm5856, %v5749
  %5900 = vst.msk [vmem:[#allocation2 + $0x158] sm:$0xff] %vm5856, %v5751
  %5901 = vst.msk [vmem:[#allocation2 + $0x160] sm:$0xff] %vm5856, %v5753
  %5902 = vst.msk [vmem:[#allocation2 + $0x168] sm:$0xff] %vm5856, %v5755
  %5903 = vst.msk [vmem:[#allocation2 + $0x170] sm:$0xff] %vm5856, %v5757
  %5904 = vst.msk [vmem:[#allocation2 + $0x178] sm:$0xff] %vm5856, %v5759
  %5905 = vst.msk [vmem:[#allocation2 + $0x180] sm:$0xff] %vm5856, %v5761
  %5906 = vst.msk [vmem:[#allocation2 + $0x188] sm:$0xff] %vm5856, %v5763
  %5907 = vst.msk [vmem:[#allocation2 + $0x190] sm:$0xff] %vm5856, %v5765
  %5908 = vst.msk [vmem:[#allocation2 + $0x198] sm:$0xff] %vm5856, %v5767
  %5909 = vst.msk [vmem:[#allocation2 + $0x1a0] sm:$0xff] %vm5856, %v5769
  %5910 = vst.msk [vmem:[#allocation2 + $0x1a8] sm:$0xff] %vm5856, %v5771
  %5911 = vst.msk [vmem:[#allocation2 + $0x1b0] sm:$0xff] %vm5856, %v5773
  %5912 = vst.msk [vmem:[#allocation2 + $0x1b8] sm:$0xff] %vm5856, %v5775
  %5913 = vst.msk [vmem:[#allocation2 + $0x1c0] sm:$0xff] %vm5856, %v5777
  %5914 = vst.msk [vmem:[#allocation2 + $0x1c8] sm:$0xff] %vm5856, %v5779
  %5915 = vst.msk [vmem:[#allocation2 + $0x1d0] sm:$0xff] %vm5856, %v5781
  %5916 = vst.msk [vmem:[#allocation2 + $0x1d8] sm:$0xff] %vm5856, %v5783
  %5917 = vst.msk [vmem:[#allocation2 + $0x1e0] sm:$0xff] %vm5856, %v5785
  %5918 = vst.msk [vmem:[#allocation2 + $0x1e8] sm:$0xff] %vm5856, %v5787
  %5919 = vst.msk [vmem:[#allocation2 + $0x1f0] sm:$0xff] %vm5856, %v5789
  %5920 = vst.msk [vmem:[#allocation2 + $0x1f8] sm:$0xff] %vm5856, %v5791
  %v5921 = vld [vmem:[#allocation2] sm:$0xff]
  %v5922 = vld [vmem:[#allocation2 + $0x8] sm:$0xff]
  %v5923 = vld [vmem:[#allocation2 + $0x10] sm:$0xff]
  %v5924 = vld [vmem:[#allocation2 + $0x18] sm:$0xff]
  %v5925 = vld [vmem:[#allocation2 + $0x20] sm:$0xff]
  %v5926 = vld [vmem:[#allocation2 + $0x28] sm:$0xff]
  %v5927 = vld [vmem:[#allocation2 + $0x30] sm:$0xff]
  %v5928 = vld [vmem:[#allocation2 + $0x38] sm:$0xff]
  %v5929 = vld [vmem:[#allocation2 + $0x40] sm:$0xff]
  %v5930 = vld [vmem:[#allocation2 + $0x48] sm:$0xff]
  %v5931 = vld [vmem:[#allocation2 + $0x50] sm:$0xff]
  %v5932 = vld [vmem:[#allocation2 + $0x58] sm:$0xff]
  %v5933 = vld [vmem:[#allocation2 + $0x60] sm:$0xff]
  %v5934 = vld [vmem:[#allocation2 + $0x68] sm:$0xff]
  %v5935 = vld [vmem:[#allocation2 + $0x70] sm:$0xff]
  %v5936 = vld [vmem:[#allocation2 + $0x78] sm:$0xff]
  %v5937 = vld [vmem:[#allocation2 + $0x80] sm:$0xff]
  %v5938 = vld [vmem:[#allocation2 + $0x88] sm:$0xff]
  %v5939 = vld [vmem:[#allocation2 + $0x90] sm:$0xff]
  %v5940 = vld [vmem:[#allocation2 + $0x98] sm:$0xff]
  %v5941 = vld [vmem:[#allocation2 + $0xa0] sm:$0xff]
  %v5942 = vld [vmem:[#allocation2 + $0xa8] sm:$0xff]
  %v5943 = vld [vmem:[#allocation2 + $0xb0] sm:$0xff]
  %v5944 = vld [vmem:[#allocation2 + $0xb8] sm:$0xff]
  %v5945 = vld [vmem:[#allocation2 + $0xc0] sm:$0xff]
  %v5946 = vld [vmem:[#allocation2 + $0xc8] sm:$0xff]
  %v5947 = vld [vmem:[#allocation2 + $0xd0] sm:$0xff]
  %v5948 = vld [vmem:[#allocation2 + $0xd8] sm:$0xff]
  %v5949 = vld [vmem:[#allocation2 + $0xe0] sm:$0xff]
  %v5950 = vld [vmem:[#allocation2 + $0xe8] sm:$0xff]
  %v5951 = vld [vmem:[#allocation2 + $0xf0] sm:$0xff]
  %v5952 = vld [vmem:[#allocation2 + $0xf8] sm:$0xff]
  %v5953 = vld [vmem:[#allocation2 + $0x100] sm:$0xff]
  %v5954 = vld [vmem:[#allocation2 + $0x108] sm:$0xff]
  %v5955 = vld [vmem:[#allocation2 + $0x110] sm:$0xff]
  %v5956 = vld [vmem:[#allocation2 + $0x118] sm:$0xff]
  %v5957 = vld [vmem:[#allocation2 + $0x120] sm:$0xff]
  %v5958 = vld [vmem:[#allocation2 + $0x128] sm:$0xff]
  %v5959 = vld [vmem:[#allocation2 + $0x130] sm:$0xff]
  %v5960 = vld [vmem:[#allocation2 + $0x138] sm:$0xff]
  %v5961 = vld [vmem:[#allocation2 + $0x140] sm:$0xff]
  %v5962 = vld [vmem:[#allocation2 + $0x148] sm:$0xff]
  %v5963 = vld [vmem:[#allocation2 + $0x150] sm:$0xff]
  %v5964 = vld [vmem:[#allocation2 + $0x158] sm:$0xff]
  %v5965 = vld [vmem:[#allocation2 + $0x160] sm:$0xff]
  %v5966 = vld [vmem:[#allocation2 + $0x168] sm:$0xff]
  %v5967 = vld [vmem:[#allocation2 + $0x170] sm:$0xff]
  %v5968 = vld [vmem:[#allocation2 + $0x178] sm:$0xff]
  %v5969 = vld [vmem:[#allocation2 + $0x180] sm:$0xff]
  %v5970 = vld [vmem:[#allocation2 + $0x188] sm:$0xff]
  %v5971 = vld [vmem:[#allocation2 + $0x190] sm:$0xff]
  %v5972 = vld [vmem:[#allocation2 + $0x198] sm:$0xff]
  %v5973 = vld [vmem:[#allocation2 + $0x1a0] sm:$0xff]
  %v5974 = vld [vmem:[#allocation2 + $0x1a8] sm:$0xff]
  %v5975 = vld [vmem:[#allocation2 + $0x1b0] sm:$0xff]
  %v5976 = vld [vmem:[#allocation2 + $0x1b8] sm:$0xff]
  %v5977 = vld [vmem:[#allocation2 + $0x1c0] sm:$0xff]
  %v5978 = vld [vmem:[#allocation2 + $0x1c8] sm:$0xff]
  %v5979 = vld [vmem:[#allocation2 + $0x1d0] sm:$0xff]
  %v5980 = vld [vmem:[#allocation2 + $0x1d8] sm:$0xff]
  %v5981 = vld [vmem:[#allocation2 + $0x1e0] sm:$0xff]
  %v5982 = vld [vmem:[#allocation2 + $0x1e8] sm:$0xff]
  %v5983 = vld [vmem:[#allocation2 + $0x1f0] sm:$0xff]
  %v5984 = vld [vmem:[#allocation2 + $0x1f8] sm:$0xff]
  %v5985 = vld [vmem:[%s1] sm:$0xff]
  %v5986 = vld [vmem:[%s1 + $0x8] sm:$0xff]
  %v5987 = vld [vmem:[%s1 + $0x10] sm:$0xff]
  %v5988 = vld [vmem:[%s1 + $0x18] sm:$0xff]
  %v5989 = vld [vmem:[%s1 + $0x20] sm:$0xff]
  %v5990 = vld [vmem:[%s1 + $0x28] sm:$0xff]
  %v5991 = vld [vmem:[%s1 + $0x30] sm:$0xff]
  %v5992 = vld [vmem:[%s1 + $0x38] sm:$0xff]
  %v5993 = vld [vmem:[%s1 + $0x40] sm:$0xff]
  %v5994 = vld [vmem:[%s1 + $0x48] sm:$0xff]
  %v5995 = vld [vmem:[%s1 + $0x50] sm:$0xff]
  %v5996 = vld [vmem:[%s1 + $0x58] sm:$0xff]
  %v5997 = vld [vmem:[%s1 + $0x60] sm:$0xff]
  %v5998 = vld [vmem:[%s1 + $0x68] sm:$0xff]
  %v5999 = vld [vmem:[%s1 + $0x70] sm:$0xff]
  %v6000 = vld [vmem:[%s1 + $0x78] sm:$0xff]
  %v6001 = vld [vmem:[%s2] sm:$0x1]
  %v6002 = vlaneseq
  %v6003 = vshrl.u32 %v6002, 7
  %v6004 = vsub.s32 0, %v6003
  %v6005 = vrot.slane %v6001, %v6004
  %6006 = vmatprep.subr.mxu0 0.0
  %6007 = vmatpush1.msra.mxu0 %v6000
  %6008 = vmatprep.subr.mxu0 0.0
  %6009 = vmatpush1.msra.mxu0 %v5999
  %6010 = vmatprep.subr.mxu0 0.0
  %6011 = vmatpush1.msra.mxu0 %v5998
  %6012 = vmatprep.subr.mxu0 0.0
  %6013 = vmatpush1.msra.mxu0 %v5997
  %6014 = vmatprep.subr.mxu0 0.0
  %6015 = vmatpush1.msra.mxu0 %v5996
  %6016 = vmatprep.subr.mxu0 0.0
  %6017 = vmatpush1.msra.mxu0 %v5995
  %6018 = vmatprep.subr.mxu0 0.0
  %6019 = vmatpush1.msra.mxu0 %v5994
  %6020 = vmatprep.subr.mxu0 0.0
  %6021 = vmatpush1.msra.mxu0 %v5993
  %6022 = vmatprep.subr.mxu0 0.0
  %6023 = vmatpush1.msra.mxu0 %v5992
  %6024 = vmatprep.subr.mxu0 0.0
  %6025 = vmatpush1.msra.mxu0 %v5991
  %6026 = vmatprep.subr.mxu0 0.0
  %6027 = vmatpush1.msra.mxu0 %v5990
  %6028 = vmatprep.subr.mxu0 0.0
  %6029 = vmatpush1.msra.mxu0 %v5989
  %6030 = vmatprep.subr.mxu0 0.0
  %6031 = vmatpush1.msra.mxu0 %v5988
  %6032 = vmatprep.subr.mxu0 0.0
  %6033 = vmatpush1.msra.mxu0 %v5987
  %6034 = vmatprep.subr.mxu0 0.0
  %6035 = vmatpush1.msra.mxu0 %v5986
  %6036 = vmatprep.subr.mxu0 0.0
  %6037 = vmatpush1.msra.mxu0 %v5985
  %6038 = vmatprep.subr.mxu0 0.0
  %6039 = vmatpush2.msra.mxu0 0.0
  %6040 = vmatprep.subr.mxu0 0.0
  %6041 = vmatpush2.msra.mxu0 0.0
  %6042 = vmatprep.subr.mxu0 0.0
  %6043 = vmatpush2.msra.mxu0 0.0
  %6044 = vmatprep.subr.mxu0 0.0
  %6045 = vmatpush2.msra.mxu0 0.0
  %6046 = vmatprep.subr.mxu0 0.0
  %6047 = vmatpush2.msra.mxu0 0.0
  %6048 = vmatprep.subr.mxu0 0.0
  %6049 = vmatpush2.msra.mxu0 0.0
  %6050 = vmatprep.subr.mxu0 0.0
  %6051 = vmatpush2.msra.mxu0 0.0
  %6052 = vmatprep.subr.mxu0 0.0
  %6053 = vmatpush2.msra.mxu0 0.0
  %6054 = vmatprep.subr.mxu0 0.0
  %6055 = vmatpush2.msra.mxu0 0.0
  %6056 = vmatprep.subr.mxu0 0.0
  %6057 = vmatpush2.msra.mxu0 0.0
  %6058 = vmatprep.subr.mxu0 0.0
  %6059 = vmatpush2.msra.mxu0 0.0
  %6060 = vmatprep.subr.mxu0 0.0
  %6061 = vmatpush2.msra.mxu0 0.0
  %6062 = vmatprep.subr.mxu0 0.0
  %6063 = vmatpush2.msra.mxu0 0.0
  %6064 = vmatprep.subr.mxu0 0.0
  %6065 = vmatpush2.msra.mxu0 0.0
  %6066 = vmatprep.subr.mxu0 0.0
  %6067 = vmatpush2.msra.mxu0 0.0
  %6068 = vmatprep.subr.mxu0 0.0
  %6069 = vmatpush2.msra.mxu0 0.0
  %6070 = vmatprep.mubr.f32.mxu0 0.0
  %6071 = vmatmul.mubr.f32.gmra.mxu0 %v5921
  %v6072 = vpop.f32.mrf.mxu0
  %v6073 = vadd.f32 %v6005, %v6072
  %v6074 = vpop.f32.mrf.mxu0
  %6075 = vmatprep.mubr.f32.mxu0 0.0
  %6076 = vmatmul.mubr.f32.gmra.mxu0 %v5922
  %v6077 = vpop.f32.mrf.mxu0
  %v6078 = vadd.f32 %v6005, %v6077
  %v6079 = vpop.f32.mrf.mxu0
  %6080 = vmatprep.mubr.f32.mxu0 0.0
  %6081 = vmatmul.mubr.f32.gmra.mxu0 %v5923
  %v6082 = vpop.f32.mrf.mxu0
  %v6083 = vadd.f32 %v6005, %v6082
  %v6084 = vpop.f32.mrf.mxu0
  %6085 = vmatprep.mubr.f32.mxu0 0.0
  %6086 = vmatmul.mubr.f32.gmra.mxu0 %v5924
  %v6087 = vpop.f32.mrf.mxu0
  %v6088 = vadd.f32 %v6005, %v6087
  %v6089 = vpop.f32.mrf.mxu0
  %6090 = vmatprep.mubr.f32.mxu0 0.0
  %6091 = vmatmul.mubr.f32.gmra.mxu0 %v5925
  %v6092 = vpop.f32.mrf.mxu0
  %v6093 = vadd.f32 %v6005, %v6092
  %v6094 = vpop.f32.mrf.mxu0
  %6095 = vmatprep.mubr.f32.mxu0 0.0
  %6096 = vmatmul.mubr.f32.gmra.mxu0 %v5926
  %v6097 = vpop.f32.mrf.mxu0
  %v6098 = vadd.f32 %v6005, %v6097
  %v6099 = vpop.f32.mrf.mxu0
  %6100 = vmatprep.mubr.f32.mxu0 0.0
  %6101 = vmatmul.mubr.f32.gmra.mxu0 %v5927
  %v6102 = vpop.f32.mrf.mxu0
  %v6103 = vadd.f32 %v6005, %v6102
  %v6104 = vpop.f32.mrf.mxu0
  %6105 = vmatprep.mubr.f32.mxu0 0.0
  %6106 = vmatmul.mubr.f32.gmra.mxu0 %v5928
  %v6107 = vpop.f32.mrf.mxu0
  %v6108 = vadd.f32 %v6005, %v6107
  %v6109 = vpop.f32.mrf.mxu0
  %6110 = vmatprep.mubr.f32.mxu0 0.0
  %6111 = vmatmul.mubr.f32.gmra.mxu0 %v5929
  %v6112 = vpop.f32.mrf.mxu0
  %v6113 = vadd.f32 %v6005, %v6112
  %v6114 = vpop.f32.mrf.mxu0
  %6115 = vmatprep.mubr.f32.mxu0 0.0
  %6116 = vmatmul.mubr.f32.gmra.mxu0 %v5930
  %v6117 = vpop.f32.mrf.mxu0
  %v6118 = vadd.f32 %v6005, %v6117
  %v6119 = vpop.f32.mrf.mxu0
  %6120 = vmatprep.mubr.f32.mxu0 0.0
  %6121 = vmatmul.mubr.f32.gmra.mxu0 %v5931
  %v6122 = vpop.f32.mrf.mxu0
  %v6123 = vadd.f32 %v6005, %v6122
  %v6124 = vpop.f32.mrf.mxu0
  %6125 = vmatprep.mubr.f32.mxu0 0.0
  %6126 = vmatmul.mubr.f32.gmra.mxu0 %v5932
  %v6127 = vpop.f32.mrf.mxu0
  %v6128 = vadd.f32 %v6005, %v6127
  %v6129 = vpop.f32.mrf.mxu0
  %6130 = vmatprep.mubr.f32.mxu0 0.0
  %6131 = vmatmul.mubr.f32.gmra.mxu0 %v5933
  %v6132 = vpop.f32.mrf.mxu0
  %v6133 = vadd.f32 %v6005, %v6132
  %v6134 = vpop.f32.mrf.mxu0
  %6135 = vmatprep.mubr.f32.mxu0 0.0
  %6136 = vmatmul.mubr.f32.gmra.mxu0 %v5934
  %v6137 = vpop.f32.mrf.mxu0
  %v6138 = vadd.f32 %v6005, %v6137
  %v6139 = vpop.f32.mrf.mxu0
  %6140 = vmatprep.mubr.f32.mxu0 0.0
  %6141 = vmatmul.mubr.f32.gmra.mxu0 %v5935
  %v6142 = vpop.f32.mrf.mxu0
  %v6143 = vadd.f32 %v6005, %v6142
  %v6144 = vpop.f32.mrf.mxu0
  %6145 = vmatprep.mubr.f32.mxu0 0.0
  %6146 = vmatmul.mubr.f32.gmra.mxu0 %v5936
  %v6147 = vpop.f32.mrf.mxu0
  %v6148 = vadd.f32 %v6005, %v6147
  %v6149 = vpop.f32.mrf.mxu0
  %6150 = vmatprep.mubr.f32.mxu0 0.0
  %6151 = vmatmul.mubr.f32.gmra.mxu0 %v5937
  %v6152 = vpop.f32.mrf.mxu0
  %v6153 = vadd.f32 %v6005, %v6152
  %v6154 = vpop.f32.mrf.mxu0
  %6155 = vmatprep.mubr.f32.mxu0 0.0
  %6156 = vmatmul.mubr.f32.gmra.mxu0 %v5938
  %v6157 = vpop.f32.mrf.mxu0
  %v6158 = vadd.f32 %v6005, %v6157
  %v6159 = vpop.f32.mrf.mxu0
  %6160 = vmatprep.mubr.f32.mxu0 0.0
  %6161 = vmatmul.mubr.f32.gmra.mxu0 %v5939
  %v6162 = vpop.f32.mrf.mxu0
  %v6163 = vadd.f32 %v6005, %v6162
  %v6164 = vpop.f32.mrf.mxu0
  %6165 = vmatprep.mubr.f32.mxu0 0.0
  %6166 = vmatmul.mubr.f32.gmra.mxu0 %v5940
  %v6167 = vpop.f32.mrf.mxu0
  %v6168 = vadd.f32 %v6005, %v6167
  %v6169 = vpop.f32.mrf.mxu0
  %6170 = vmatprep.mubr.f32.mxu0 0.0
  %6171 = vmatmul.mubr.f32.gmra.mxu0 %v5941
  %v6172 = vpop.f32.mrf.mxu0
  %v6173 = vadd.f32 %v6005, %v6172
  %v6174 = vpop.f32.mrf.mxu0
  %6175 = vmatprep.mubr.f32.mxu0 0.0
  %6176 = vmatmul.mubr.f32.gmra.mxu0 %v5942
  %v6177 = vpop.f32.mrf.mxu0
  %v6178 = vadd.f32 %v6005, %v6177
  %v6179 = vpop.f32.mrf.mxu0
  %6180 = vmatprep.mubr.f32.mxu0 0.0
  %6181 = vmatmul.mubr.f32.gmra.mxu0 %v5943
  %v6182 = vpop.f32.mrf.mxu0
  %v6183 = vadd.f32 %v6005, %v6182
  %v6184 = vpop.f32.mrf.mxu0
  %6185 = vmatprep.mubr.f32.mxu0 0.0
  %6186 = vmatmul.mubr.f32.gmra.mxu0 %v5944
  %v6187 = vpop.f32.mrf.mxu0
  %v6188 = vadd.f32 %v6005, %v6187
  %v6189 = vpop.f32.mrf.mxu0
  %6190 = vmatprep.mubr.f32.mxu0 0.0
  %6191 = vmatmul.mubr.f32.gmra.mxu0 %v5945
  %v6192 = vpop.f32.mrf.mxu0
  %v6193 = vadd.f32 %v6005, %v6192
  %v6194 = vpop.f32.mrf.mxu0
  %6195 = vmatprep.mubr.f32.mxu0 0.0
  %6196 = vmatmul.mubr.f32.gmra.mxu0 %v5946
  %v6197 = vpop.f32.mrf.mxu0
  %v6198 = vadd.f32 %v6005, %v6197
  %v6199 = vpop.f32.mrf.mxu0
  %6200 = vmatprep.mubr.f32.mxu0 0.0
  %6201 = vmatmul.mubr.f32.gmra.mxu0 %v5947
  %v6202 = vpop.f32.mrf.mxu0
  %v6203 = vadd.f32 %v6005, %v6202
  %v6204 = vpop.f32.mrf.mxu0
  %6205 = vmatprep.mubr.f32.mxu0 0.0
  %6206 = vmatmul.mubr.f32.gmra.mxu0 %v5948
  %v6207 = vpop.f32.mrf.mxu0
  %v6208 = vadd.f32 %v6005, %v6207
  %v6209 = vpop.f32.mrf.mxu0
  %6210 = vmatprep.mubr.f32.mxu0 0.0
  %6211 = vmatmul.mubr.f32.gmra.mxu0 %v5949
  %v6212 = vpop.f32.mrf.mxu0
  %v6213 = vadd.f32 %v6005, %v6212
  %v6214 = vpop.f32.mrf.mxu0
  %6215 = vmatprep.mubr.f32.mxu0 0.0
  %6216 = vmatmul.mubr.f32.gmra.mxu0 %v5950
  %v6217 = vpop.f32.mrf.mxu0
  %v6218 = vadd.f32 %v6005, %v6217
  %v6219 = vpop.f32.mrf.mxu0
  %6220 = vmatprep.mubr.f32.mxu0 0.0
  %6221 = vmatmul.mubr.f32.gmra.mxu0 %v5951
  %v6222 = vpop.f32.mrf.mxu0
  %v6223 = vadd.f32 %v6005, %v6222
  %v6224 = vpop.f32.mrf.mxu0
  %6225 = vmatprep.mubr.f32.mxu0 0.0
  %6226 = vmatmul.mubr.f32.gmra.mxu0 %v5952
  %v6227 = vpop.f32.mrf.mxu0
  %v6228 = vadd.f32 %v6005, %v6227
  %v6229 = vpop.f32.mrf.mxu0
  %6230 = vmatprep.mubr.f32.mxu0 0.0
  %6231 = vmatmul.mubr.f32.gmra.mxu0 %v5953
  %v6232 = vpop.f32.mrf.mxu0
  %v6233 = vadd.f32 %v6005, %v6232
  %v6234 = vpop.f32.mrf.mxu0
  %6235 = vmatprep.mubr.f32.mxu0 0.0
  %6236 = vmatmul.mubr.f32.gmra.mxu0 %v5954
  %v6237 = vpop.f32.mrf.mxu0
  %v6238 = vadd.f32 %v6005, %v6237
  %v6239 = vpop.f32.mrf.mxu0
  %6240 = vmatprep.mubr.f32.mxu0 0.0
  %6241 = vmatmul.mubr.f32.gmra.mxu0 %v5955
  %v6242 = vpop.f32.mrf.mxu0
  %v6243 = vadd.f32 %v6005, %v6242
  %v6244 = vpop.f32.mrf.mxu0
  %6245 = vmatprep.mubr.f32.mxu0 0.0
  %6246 = vmatmul.mubr.f32.gmra.mxu0 %v5956
  %v6247 = vpop.f32.mrf.mxu0
  %v6248 = vadd.f32 %v6005, %v6247
  %v6249 = vpop.f32.mrf.mxu0
  %6250 = vmatprep.mubr.f32.mxu0 0.0
  %6251 = vmatmul.mubr.f32.gmra.mxu0 %v5957
  %v6252 = vpop.f32.mrf.mxu0
  %v6253 = vadd.f32 %v6005, %v6252
  %v6254 = vpop.f32.mrf.mxu0
  %6255 = vmatprep.mubr.f32.mxu0 0.0
  %6256 = vmatmul.mubr.f32.gmra.mxu0 %v5958
  %v6257 = vpop.f32.mrf.mxu0
  %v6258 = vadd.f32 %v6005, %v6257
  %v6259 = vpop.f32.mrf.mxu0
  %6260 = vmatprep.mubr.f32.mxu0 0.0
  %6261 = vmatmul.mubr.f32.gmra.mxu0 %v5959
  %v6262 = vpop.f32.mrf.mxu0
  %v6263 = vadd.f32 %v6005, %v6262
  %v6264 = vpop.f32.mrf.mxu0
  %6265 = vmatprep.mubr.f32.mxu0 0.0
  %6266 = vmatmul.mubr.f32.gmra.mxu0 %v5960
  %v6267 = vpop.f32.mrf.mxu0
  %v6268 = vadd.f32 %v6005, %v6267
  %v6269 = vpop.f32.mrf.mxu0
  %6270 = vmatprep.mubr.f32.mxu0 0.0
  %6271 = vmatmul.mubr.f32.gmra.mxu0 %v5961
  %v6272 = vpop.f32.mrf.mxu0
  %v6273 = vadd.f32 %v6005, %v6272
  %v6274 = vpop.f32.mrf.mxu0
  %6275 = vmatprep.mubr.f32.mxu0 0.0
  %6276 = vmatmul.mubr.f32.gmra.mxu0 %v5962
  %v6277 = vpop.f32.mrf.mxu0
  %v6278 = vadd.f32 %v6005, %v6277
  %v6279 = vpop.f32.mrf.mxu0
  %6280 = vmatprep.mubr.f32.mxu0 0.0
  %6281 = vmatmul.mubr.f32.gmra.mxu0 %v5963
  %v6282 = vpop.f32.mrf.mxu0
  %v6283 = vadd.f32 %v6005, %v6282
  %v6284 = vpop.f32.mrf.mxu0
  %6285 = vmatprep.mubr.f32.mxu0 0.0
  %6286 = vmatmul.mubr.f32.gmra.mxu0 %v5964
  %v6287 = vpop.f32.mrf.mxu0
  %v6288 = vadd.f32 %v6005, %v6287
  %v6289 = vpop.f32.mrf.mxu0
  %6290 = vmatprep.mubr.f32.mxu0 0.0
  %6291 = vmatmul.mubr.f32.gmra.mxu0 %v5965
  %v6292 = vpop.f32.mrf.mxu0
  %v6293 = vadd.f32 %v6005, %v6292
  %v6294 = vpop.f32.mrf.mxu0
  %6295 = vmatprep.mubr.f32.mxu0 0.0
  %6296 = vmatmul.mubr.f32.gmra.mxu0 %v5966
  %v6297 = vpop.f32.mrf.mxu0
  %v6298 = vadd.f32 %v6005, %v6297
  %v6299 = vpop.f32.mrf.mxu0
  %6300 = vmatprep.mubr.f32.mxu0 0.0
  %6301 = vmatmul.mubr.f32.gmra.mxu0 %v5967
  %v6302 = vpop.f32.mrf.mxu0
  %v6303 = vadd.f32 %v6005, %v6302
  %v6304 = vpop.f32.mrf.mxu0
  %6305 = vmatprep.mubr.f32.mxu0 0.0
  %6306 = vmatmul.mubr.f32.gmra.mxu0 %v5968
  %v6307 = vpop.f32.mrf.mxu0
  %v6308 = vadd.f32 %v6005, %v6307
  %v6309 = vpop.f32.mrf.mxu0
  %6310 = vmatprep.mubr.f32.mxu0 0.0
  %6311 = vmatmul.mubr.f32.gmra.mxu0 %v5969
  %v6312 = vpop.f32.mrf.mxu0
  %v6313 = vadd.f32 %v6005, %v6312
  %v6314 = vpop.f32.mrf.mxu0
  %6315 = vmatprep.mubr.f32.mxu0 0.0
  %6316 = vmatmul.mubr.f32.gmra.mxu0 %v5970
  %v6317 = vpop.f32.mrf.mxu0
  %v6318 = vadd.f32 %v6005, %v6317
  %v6319 = vpop.f32.mrf.mxu0
  %6320 = vmatprep.mubr.f32.mxu0 0.0
  %6321 = vmatmul.mubr.f32.gmra.mxu0 %v5971
  %v6322 = vpop.f32.mrf.mxu0
  %v6323 = vadd.f32 %v6005, %v6322
  %v6324 = vpop.f32.mrf.mxu0
  %6325 = vmatprep.mubr.f32.mxu0 0.0
  %6326 = vmatmul.mubr.f32.gmra.mxu0 %v5972
  %v6327 = vpop.f32.mrf.mxu0
  %v6328 = vadd.f32 %v6005, %v6327
  %v6329 = vpop.f32.mrf.mxu0
  %6330 = vmatprep.mubr.f32.mxu0 0.0
  %6331 = vmatmul.mubr.f32.gmra.mxu0 %v5973
  %v6332 = vpop.f32.mrf.mxu0
  %v6333 = vadd.f32 %v6005, %v6332
  %v6334 = vpop.f32.mrf.mxu0
  %6335 = vmatprep.mubr.f32.mxu0 0.0
  %6336 = vmatmul.mubr.f32.gmra.mxu0 %v5974
  %v6337 = vpop.f32.mrf.mxu0
  %v6338 = vadd.f32 %v6005, %v6337
  %v6339 = vpop.f32.mrf.mxu0
  %6340 = vmatprep.mubr.f32.mxu0 0.0
  %6341 = vmatmul.mubr.f32.gmra.mxu0 %v5975
  %v6342 = vpop.f32.mrf.mxu0
  %v6343 = vadd.f32 %v6005, %v6342
  %v6344 = vpop.f32.mrf.mxu0
  %6345 = vmatprep.mubr.f32.mxu0 0.0
  %6346 = vmatmul.mubr.f32.gmra.mxu0 %v5976
  %v6347 = vpop.f32.mrf.mxu0
  %v6348 = vadd.f32 %v6005, %v6347
  %v6349 = vpop.f32.mrf.mxu0
  %6350 = vmatprep.mubr.f32.mxu0 0.0
  %6351 = vmatmul.mubr.f32.gmra.mxu0 %v5977
  %v6352 = vpop.f32.mrf.mxu0
  %v6353 = vadd.f32 %v6005, %v6352
  %v6354 = vpop.f32.mrf.mxu0
  %6355 = vmatprep.mubr.f32.mxu0 0.0
  %6356 = vmatmul.mubr.f32.gmra.mxu0 %v5978
  %v6357 = vpop.f32.mrf.mxu0
  %v6358 = vadd.f32 %v6005, %v6357
  %v6359 = vpop.f32.mrf.mxu0
  %6360 = vmatprep.mubr.f32.mxu0 0.0
  %6361 = vmatmul.mubr.f32.gmra.mxu0 %v5979
  %v6362 = vpop.f32.mrf.mxu0
  %v6363 = vadd.f32 %v6005, %v6362
  %v6364 = vpop.f32.mrf.mxu0
  %6365 = vmatprep.mubr.f32.mxu0 0.0
  %6366 = vmatmul.mubr.f32.gmra.mxu0 %v5980
  %v6367 = vpop.f32.mrf.mxu0
  %v6368 = vadd.f32 %v6005, %v6367
  %v6369 = vpop.f32.mrf.mxu0
  %6370 = vmatprep.mubr.f32.mxu0 0.0
  %6371 = vmatmul.mubr.f32.gmra.mxu0 %v5981
  %v6372 = vpop.f32.mrf.mxu0
  %v6373 = vadd.f32 %v6005, %v6372
  %v6374 = vpop.f32.mrf.mxu0
  %6375 = vmatprep.mubr.f32.mxu0 0.0
  %6376 = vmatmul.mubr.f32.gmra.mxu0 %v5982
  %v6377 = vpop.f32.mrf.mxu0
  %v6378 = vadd.f32 %v6005, %v6377
  %v6379 = vpop.f32.mrf.mxu0
  %6380 = vmatprep.mubr.f32.mxu0 0.0
  %6381 = vmatmul.mubr.f32.gmra.mxu0 %v5983
  %v6382 = vpop.f32.mrf.mxu0
  %v6383 = vadd.f32 %v6005, %v6382
  %v6384 = vpop.f32.mrf.mxu0
  %6385 = vmatprep.mubr.f32.mxu0 0.0
  %6386 = vmatmul.mubr.f32.gmra.mxu0 %v5984
  %v6387 = vpop.f32.mrf.mxu0
  %v6388 = vadd.f32 %v6005, %v6387
  %v6389 = vpop.f32.mrf.mxu0
  %6390 = vdwg.mxu0
  %v6391 = vtanh.pop %v6073
  %v6392 = vtanh.pop %v6078
  %v6393 = vtanh.pop %v6083
  %v6394 = vtanh.pop %v6088
  %v6395 = vtanh.pop %v6093
  %v6396 = vtanh.pop %v6098
  %v6397 = vtanh.pop %v6103
  %v6398 = vtanh.pop %v6108
  %v6399 = vtanh.pop %v6113
  %v6400 = vtanh.pop %v6118
  %v6401 = vtanh.pop %v6123
  %v6402 = vtanh.pop %v6128
  %v6403 = vtanh.pop %v6133
  %v6404 = vtanh.pop %v6138
  %v6405 = vtanh.pop %v6143
  %v6406 = vtanh.pop %v6148
  %v6407 = vtanh.pop %v6153
  %v6408 = vtanh.pop %v6158
  %v6409 = vtanh.pop %v6163
  %v6410 = vtanh.pop %v6168
  %v6411 = vtanh.pop %v6173
  %v6412 = vtanh.pop %v6178
  %v6413 = vtanh.pop %v6183
  %v6414 = vtanh.pop %v6188
  %v6415 = vtanh.pop %v6193
  %v6416 = vtanh.pop %v6198
  %v6417 = vtanh.pop %v6203
  %v6418 = vtanh.pop %v6208
  %v6419 = vtanh.pop %v6213
  %v6420 = vtanh.pop %v6218
  %v6421 = vtanh.pop %v6223
  %v6422 = vtanh.pop %v6228
  %v6423 = vtanh.pop %v6233
  %v6424 = vtanh.pop %v6238
  %v6425 = vtanh.pop %v6243
  %v6426 = vtanh.pop %v6248
  %v6427 = vtanh.pop %v6253
  %v6428 = vtanh.pop %v6258
  %v6429 = vtanh.pop %v6263
  %v6430 = vtanh.pop %v6268
  %v6431 = vtanh.pop %v6273
  %v6432 = vtanh.pop %v6278
  %v6433 = vtanh.pop %v6283
  %v6434 = vtanh.pop %v6288
  %v6435 = vtanh.pop %v6293
  %v6436 = vtanh.pop %v6298
  %v6437 = vtanh.pop %v6303
  %v6438 = vtanh.pop %v6308
  %v6439 = vtanh.pop %v6313
  %v6440 = vtanh.pop %v6318
  %v6441 = vtanh.pop %v6323
  %v6442 = vtanh.pop %v6328
  %v6443 = vtanh.pop %v6333
  %v6444 = vtanh.pop %v6338
  %v6445 = vtanh.pop %v6343
  %v6446 = vtanh.pop %v6348
  %v6447 = vtanh.pop %v6353
  %v6448 = vtanh.pop %v6358
  %v6449 = vtanh.pop %v6363
  %v6450 = vtanh.pop %v6368
  %v6451 = vtanh.pop %v6373
  %v6452 = vtanh.pop %v6378
  %v6453 = vtanh.pop %v6383
  %v6454 = vtanh.pop %v6388
  %vm6455 = vcmask 31744
  %6456 = vst.msk [vmem:[%s3] sm:$0xff] %vm6455, %v6391
  %6457 = vst.msk [vmem:[%s3 + $0x8] sm:$0xff] %vm6455, %v6392
  %6458 = vst.msk [vmem:[%s3 + $0x10] sm:$0xff] %vm6455, %v6393
  %6459 = vst.msk [vmem:[%s3 + $0x18] sm:$0xff] %vm6455, %v6394
  %6460 = vst.msk [vmem:[%s3 + $0x20] sm:$0xff] %vm6455, %v6395
  %6461 = vst.msk [vmem:[%s3 + $0x28] sm:$0xff] %vm6455, %v6396
  %6462 = vst.msk [vmem:[%s3 + $0x30] sm:$0xff] %vm6455, %v6397
  %6463 = vst.msk [vmem:[%s3 + $0x38] sm:$0xff] %vm6455, %v6398
  %6464 = vst.msk [vmem:[%s3 + $0x40] sm:$0xff] %vm6455, %v6399
  %6465 = vst.msk [vmem:[%s3 + $0x48] sm:$0xff] %vm6455, %v6400
  %6466 = vst.msk [vmem:[%s3 + $0x50] sm:$0xff] %vm6455, %v6401
  %6467 = vst.msk [vmem:[%s3 + $0x58] sm:$0xff] %vm6455, %v6402
  %6468 = vst.msk [vmem:[%s3 + $0x60] sm:$0xff] %vm6455, %v6403
  %6469 = vst.msk [vmem:[%s3 + $0x68] sm:$0xff] %vm6455, %v6404
  %6470 = vst.msk [vmem:[%s3 + $0x70] sm:$0xff] %vm6455, %v6405
  %6471 = vst.msk [vmem:[%s3 + $0x78] sm:$0xff] %vm6455, %v6406
  %6472 = vst.msk [vmem:[%s3 + $0x80] sm:$0xff] %vm6455, %v6407
  %6473 = vst.msk [vmem:[%s3 + $0x88] sm:$0xff] %vm6455, %v6408
  %6474 = vst.msk [vmem:[%s3 + $0x90] sm:$0xff] %vm6455, %v6409
  %6475 = vst.msk [vmem:[%s3 + $0x98] sm:$0xff] %vm6455, %v6410
  %6476 = vst.msk [vmem:[%s3 + $0xa0] sm:$0xff] %vm6455, %v6411
  %6477 = vst.msk [vmem:[%s3 + $0xa8] sm:$0xff] %vm6455, %v6412
  %6478 = vst.msk [vmem:[%s3 + $0xb0] sm:$0xff] %vm6455, %v6413
  %6479 = vst.msk [vmem:[%s3 + $0xb8] sm:$0xff] %vm6455, %v6414
  %6480 = vst.msk [vmem:[%s3 + $0xc0] sm:$0xff] %vm6455, %v6415
  %6481 = vst.msk [vmem:[%s3 + $0xc8] sm:$0xff] %vm6455, %v6416
  %6482 = vst.msk [vmem:[%s3 + $0xd0] sm:$0xff] %vm6455, %v6417
  %6483 = vst.msk [vmem:[%s3 + $0xd8] sm:$0xff] %vm6455, %v6418
  %6484 = vst.msk [vmem:[%s3 + $0xe0] sm:$0xff] %vm6455, %v6419
  %6485 = vst.msk [vmem:[%s3 + $0xe8] sm:$0xff] %vm6455, %v6420
  %6486 = vst.msk [vmem:[%s3 + $0xf0] sm:$0xff] %vm6455, %v6421
  %6487 = vst.msk [vmem:[%s3 + $0xf8] sm:$0xff] %vm6455, %v6422
  %6488 = vst.msk [vmem:[%s3 + $0x100] sm:$0xff] %vm6455, %v6423
  %6489 = vst.msk [vmem:[%s3 + $0x108] sm:$0xff] %vm6455, %v6424
  %6490 = vst.msk [vmem:[%s3 + $0x110] sm:$0xff] %vm6455, %v6425
  %6491 = vst.msk [vmem:[%s3 + $0x118] sm:$0xff] %vm6455, %v6426
  %6492 = vst.msk [vmem:[%s3 + $0x120] sm:$0xff] %vm6455, %v6427
  %6493 = vst.msk [vmem:[%s3 + $0x128] sm:$0xff] %vm6455, %v6428
  %6494 = vst.msk [vmem:[%s3 + $0x130] sm:$0xff] %vm6455, %v6429
  %6495 = vst.msk [vmem:[%s3 + $0x138] sm:$0xff] %vm6455, %v6430
  %6496 = vst.msk [vmem:[%s3 + $0x140] sm:$0xff] %vm6455, %v6431
  %6497 = vst.msk [vmem:[%s3 + $0x148] sm:$0xff] %vm6455, %v6432
  %6498 = vst.msk [vmem:[%s3 + $0x150] sm:$0xff] %vm6455, %v6433
  %6499 = vst.msk [vmem:[%s3 + $0x158] sm:$0xff] %vm6455, %v6434
  %6500 = vst.msk [vmem:[%s3 + $0x160] sm:$0xff] %vm6455, %v6435
  %6501 = vst.msk [vmem:[%s3 + $0x168] sm:$0xff] %vm6455, %v6436
  %6502 = vst.msk [vmem:[%s3 + $0x170] sm:$0xff] %vm6455, %v6437
  %6503 = vst.msk [vmem:[%s3 + $0x178] sm:$0xff] %vm6455, %v6438
  %6504 = vst.msk [vmem:[%s3 + $0x180] sm:$0xff] %vm6455, %v6439
  %6505 = vst.msk [vmem:[%s3 + $0x188] sm:$0xff] %vm6455, %v6440
  %6506 = vst.msk [vmem:[%s3 + $0x190] sm:$0xff] %vm6455, %v6441
  %6507 = vst.msk [vmem:[%s3 + $0x198] sm:$0xff] %vm6455, %v6442
  %6508 = vst.msk [vmem:[%s3 + $0x1a0] sm:$0xff] %vm6455, %v6443
  %6509 = vst.msk [vmem:[%s3 + $0x1a8] sm:$0xff] %vm6455, %v6444
  %6510 = vst.msk [vmem:[%s3 + $0x1b0] sm:$0xff] %vm6455, %v6445
  %6511 = vst.msk [vmem:[%s3 + $0x1b8] sm:$0xff] %vm6455, %v6446
  %6512 = vst.msk [vmem:[%s3 + $0x1c0] sm:$0xff] %vm6455, %v6447
  %6513 = vst.msk [vmem:[%s3 + $0x1c8] sm:$0xff] %vm6455, %v6448
  %6514 = vst.msk [vmem:[%s3 + $0x1d0] sm:$0xff] %vm6455, %v6449
  %6515 = vst.msk [vmem:[%s3 + $0x1d8] sm:$0xff] %vm6455, %v6450
  %6516 = vst.msk [vmem:[%s3 + $0x1e0] sm:$0xff] %vm6455, %v6451
  %6517 = vst.msk [vmem:[%s3 + $0x1e8] sm:$0xff] %vm6455, %v6452
  %6518 = vst.msk [vmem:[%s3 + $0x1f0] sm:$0xff] %vm6455, %v6453
  %6519 = vst.msk [vmem:[%s3 + $0x1f8] sm:$0xff] %vm6455, %v6454
  // Predicated region
  $region14: #{_lambda_.3} parent=0 // pred_check
    _
  $region15: #{_lambda_.3} parent=0 // pred_check_branch
    %6521 = sbr.rel (0) target = $region17
  $region16: #{_lambda_.3} parent=0 // pred_region
    _
  $region17: #{_lambda_.3} parent=0 // pred_fallthru
    _
  // Predicated region
  $region18: #{_lambda_.3} parent=0 // pred_check
    _
  $region19: #{_lambda_.3} parent=0 // pred_check_branch
    %6523 = sbr.rel (0) target = $region21
  $region20: #{_lambda_.3} parent=0 // pred_region
    _
  $region21: #{_lambda_.3} parent=0 // pred_fallthru
    _

</llo_original>
